<compile_context>
chip_gen: v7x
topology: tpu7x:2x2x1
jax: 0.10.0
libtpu: 0.0.40
codegen_flags: <defaults>
</compile_context>

<pallas_src>
import math

import jax
import jax.numpy as jnp
from jax.experimental import pallas as pl
from jax.experimental.pallas import tpu as pltpu  # noqa: F401  (CompilerParams when scaling up)

# ---- model hyper-parameters (small synthetic BERT) -------------------------
B, S, H = 2, 8, 32          # batch, seq len, hidden
NUM_HEADS = 2
HEAD_DIM = H // NUM_HEADS
INTER = 64                  # FFN intermediate size
VOCAB = 50
N_LAYERS = 2
LN_EPS = 1e-12              # BERT LayerNorm eps
MARGIN = 3.0                # TripletMarginLoss(margin=3)
TRIPLET_EPS = 1e-6          # PyTorch pairwise_distance eps
BE = 3 * B                  # fused anchor/positive/negative batch


def _layer_norm(x, g, b):
    # single-pass variance: both lane reductions depend only on x and can
    # issue back-to-back (no (x - mu) broadcast on the dependent path)
    mu = jnp.mean(x, axis=-1, keepdims=True)
    var = jnp.maximum(jnp.mean(x * x, axis=-1, keepdims=True) - mu * mu, 0.0)
    return (x - mu) * jax.lax.rsqrt(var + LN_EPS) * g + b


# ---------------------------------------------------------------------------
# Single fused Pallas kernel: embedding LN -> 2 encoder layers -> mean pool
# -> TripletMarginLoss. One gridless invocation, everything VMEM-resident.
# ---------------------------------------------------------------------------
def triplet_bert_kernel(x_ref, mask_ref, embg_ref, embb_ref,
                        wqkv_ref, bqkv_ref, wo_ref, bo_ref,
                        ln1g_ref, ln1b_ref,
                        w1_ref, b1_ref, w2_ref, b2_ref,
                        ln2g_ref, ln2b_ref, out_ref):
    # x_ref: [BE*S, H] summed embeddings ; mask_ref: [BE, S] (1 = keep)
    x = _layer_norm(x_ref[...], embg_ref[...], embb_ref[...])         # [48, 32]

    # additive attention bias, pre-broadcast ONCE to its final head-batched
    # shape [BE*NH, S, S] (head-major ordering h*BE + b), hoisted out of loops
    neg = (1.0 - mask_ref[...]) * -10000.0                            # [6, 8]
    bias = jnp.broadcast_to(neg[:, None, :], (BE, S, S))              # [6, 8, 8]
    bias = jnp.concatenate([bias] * NUM_HEADS, axis=0)                # [12, 8, 8]

    # per-head lane masks for V (hoisted); used to place each head's context
    # into its own 16-lane half of a full-width tensor
    lane = jax.lax.broadcasted_iota(jnp.int32, (1, 1, H), 2)
    head_masks = [((lane >= h * HEAD_DIM) &
                   (lane < (h + 1) * HEAD_DIM)).astype(jnp.float32)
                  for h in range(NUM_HEADS)]

    scale = 1.0 / math.sqrt(HEAD_DIM)

    for l in range(N_LAYERS):                 # static unroll over layers
        # ---- self attention -------------------------------------------------
        # fused QKV projection: one [48,32] @ [32,96] MXU op
        qkv = (jnp.dot(x, wqkv_ref[l], preferred_element_type=jnp.float32)
               + bqkv_ref[l])                                          # [48, 96]

        def heads_of(base):
            # stack the NUM_HEADS 16-lane column slices on the batch axis
            # (head-major): [48, 16] slices -> [BE*NH, S, HD] = [12, 8, 16]
            return jnp.concatenate(
                [qkv[:, base * H + h * HEAD_DIM:
                        base * H + (h + 1) * HEAD_DIM].reshape(BE, S, HEAD_DIM)
                 for h in range(NUM_HEADS)], axis=0)

        qh = heads_of(0) * scale              # pre-scale q once per layer
        kh = heads_of(1)                                               # [12, 8, 16]
        v3 = qkv[:, 2 * H:3 * H].reshape(BE, S, H)                     # [6, 8, 32]
        # per-head masked V copies: head h's 16 lanes survive, others are 0,
        # so the single batched context einsum already produces a lane-placed
        # (merge-ready) full-width output per head
        vh = jnp.concatenate([v3 * m for m in head_masks], axis=0)     # [12, 8, 32]

        # ONE batched scores einsum + ONE softmax + ONE context einsum
        s = jnp.einsum('bqd,bkd->bqk', qh, kh,
                       preferred_element_type=jnp.float32) + bias      # [12, 8, 8]
        s = s - jnp.max(s, axis=-1, keepdims=True)
        p = jnp.exp(s)
        p = p / jnp.sum(p, axis=-1, keepdims=True)   # exact divide (PyTorch parity)
        ctx = jnp.einsum('bqk,bkd->bqd', p, vh,
                         preferred_element_type=jnp.float32)           # [12, 8, 32]

        # re-assemble full-width context: each head only occupies its own
        # lanes, so summing the head-batched halves IS the merge (no lane
        # concatenate / transpose needed)
        merged = ctx[0:BE]
        for h in range(1, NUM_HEADS):
            merged = merged + ctx[h * BE:(h + 1) * BE]                 # [6, 8, 32]
        merged = merged.reshape(BE * S, H)                             # [48, 32]

        # single full-width output projection: one [48,32] @ [32,32] MXU op
        attn = (jnp.dot(merged, wo_ref[l], preferred_element_type=jnp.float32)
                + bo_ref[l])
        x1 = _layer_norm(x + attn, ln1g_ref[l], ln1b_ref[l])           # [48, 32]

        # ---- feed forward ----------------------------------------------------
        hdn = (jnp.dot(x1, w1_ref[l], preferred_element_type=jnp.float32)
               + b1_ref[l])
        # TODO(synk): HF BERT uses exact erf-GELU; tanh-approx GELU used here.
        hdn = jax.nn.gelu(hdn, approximate=True)
        hdn = (jnp.dot(hdn, w2_ref[l], preferred_element_type=jnp.float32)
               + b2_ref[l])
        x = _layer_norm(x1 + hdn, ln2g_ref[l], ln2b_ref[l])

    # ---- epilogue: mean pooling + TripletMarginLoss(margin=3) ---------------
    # Unmasked mean over seq positions: exactly matches the reference
    # `torch.mean(h_embedding, dim=1)` (padded positions ARE included there).
    pooled = jnp.mean(x.reshape(BE, S, H), axis=1)                     # [6, 32]
    a_out = pooled[0:B]
    p_out = pooled[B:2 * B]
    n_out = pooled[2 * B:3 * B]
    # PyTorch pairwise_distance: ||x1 - x2 + eps||_2 with eps=1e-6
    d_ap = jnp.sqrt(jnp.sum((a_out - p_out + TRIPLET_EPS) ** 2,
                            axis=-1, keepdims=True))
    d_an = jnp.sqrt(jnp.sum((a_out - n_out + TRIPLET_EPS) ** 2,
                            axis=-1, keepdims=True))
    losses = jnp.maximum(d_ap - d_an + MARGIN, 0.0)                    # [B, 1]
    # (1,1) VMEM output: the lane-sparse masked store is acknowledged — it is a
    # single one-time 4 KiB writeback off the critical path at these shapes.
    out_ref[...] = jnp.mean(losses, keepdims=True)                     # (1, 1)


def fused_triplet_forward(x_emb_flat, mask, params):
    """x_emb_flat: [3B*S, H] summed embeddings, mask: [3B, S] -> scalar loss."""
    loss = pl.pallas_call(
        triplet_bert_kernel,
        out_shape=jax.ShapeDtypeStruct((1, 1), jnp.float32),
        # gridless: single invocation, all operands whole VMEM-resident blocks
    )(x_emb_flat, mask,
      params['emb_ln_g'], params['emb_ln_b'],
      params['wqkv'], params['bqkv'], params['wo'], params['bo'],
      params['ln1g'], params['ln1b'],
      params['w1'], params['b1'], params['w2'], params['b2'],
      params['ln2g'], params['ln2b'])
    return loss[0, 0]


# ---------------------------------------------------------------------------
# Glue: fuse the 3 streams, embedding gather, then one kernel call.
# ---------------------------------------------------------------------------
def triplet_model_forward(params, a_ids, a_mask, p_ids, p_mask, n_ids, n_mask):
    ids = jnp.concatenate([a_ids, p_ids, n_ids], axis=0)               # [3B, S]
    mask = jnp.concatenate([a_mask, p_mask, n_mask], axis=0)           # [3B, S]
    mask = mask.astype(jnp.float32)
    # embedding gather stays in plain JAX (dynamic vocab gather)
    x = (params['word_emb'][ids]
         + params['pos_emb'][None, :, :]
         + params['type_emb'][0][None, None, :])                       # [3B, S, H]
    x_flat = x.reshape(BE * S, H)
    return fused_triplet_forward(x_flat, mask, params)


# ---------------------------------------------------------------------------
# Deterministic synthetic parameter init (per-layer weights stacked on axis 0)
# ---------------------------------------------------------------------------
def init_params(key):
    std = 0.02
    ks = jax.random.split(key, 8)
    params = {
        'word_emb': jax.random.normal(ks[0], (VOCAB, H), jnp.float32) * std,
        'pos_emb': jax.random.normal(ks[1], (S, H), jnp.float32) * std,
        'type_emb': jax.random.normal(ks[2], (2, H), jnp.float32) * std,
        'emb_ln_g': jnp.ones((1, H), jnp.float32),
        'emb_ln_b': jnp.zeros((1, H), jnp.float32),
        # fused QKV weight: [L, H, 3H]
        'wqkv': jax.random.normal(ks[3], (N_LAYERS, H, 3 * H), jnp.float32) * std,
        'bqkv': jnp.zeros((N_LAYERS, 1, 3 * H), jnp.float32),
        'wo': jax.random.normal(ks[4], (N_LAYERS, H, H), jnp.float32) * std,
        'bo': jnp.zeros((N_LAYERS, 1, H), jnp.float32),
        'ln1g': jnp.ones((N_LAYERS, 1, H), jnp.float32),
        'ln1b': jnp.zeros((N_LAYERS, 1, H), jnp.float32),
        'w1': jax.random.normal(ks[5], (N_LAYERS, H, INTER), jnp.float32) * std,
        'b1': jnp.zeros((N_LAYERS, 1, INTER), jnp.float32),
        'w2': jax.random.normal(ks[6], (N_LAYERS, INTER, H), jnp.float32) * std,
        'b2': jnp.zeros((N_LAYERS, 1, H), jnp.float32),
        'ln2g': jnp.ones((N_LAYERS, 1, H), jnp.float32),
        'ln2b': jnp.zeros((N_LAYERS, 1, H), jnp.float32),
    }
    return params


if __name__ == "__main__":
    key = jax.random.PRNGKey(0)
    pkey, dkey = jax.random.split(key)
    params = init_params(pkey)

    iks = jax.random.split(dkey, 3)
    anchor_ids = jax.random.randint(iks[0], (B, S), 0, VOCAB, dtype=jnp.int32)
    positive_ids = jax.random.randint(iks[1], (B, S), 0, VOCAB, dtype=jnp.int32)
    negative_ids = jax.random.randint(iks[2], (B, S), 0, VOCAB, dtype=jnp.int32)
    # example attention masks: second row has 3 padded positions
    mask = jnp.array([[1.0] * S, [1.0] * (S - 3) + [0.0] * 3], dtype=jnp.float32)
    anchor_mask = positive_mask = negative_mask = mask

    loss = jax.jit(triplet_model_forward)(
        params, anchor_ids, anchor_mask, positive_ids, positive_mask,
        negative_ids, negative_mask)
    jax.block_until_ready(loss)
    assert loss.shape == () and jnp.isfinite(loss)
    print("KERNEL_OK")
</pallas_src>

<mosaic_0001>
module attributes {stable_mosaic.version = 11 : i64} {
  func.func @triplet_bert_kernel(%arg0: memref<48x32xf32, #tpu.memory_space<vmem>>, %arg1: memref<6x8xf32, #tpu.memory_space<vmem>>, %arg2: memref<1x32xf32, #tpu.memory_space<vmem>>, %arg3: memref<1x32xf32, #tpu.memory_space<vmem>>, %arg4: memref<2x32x96xf32, #tpu.memory_space<vmem>>, %arg5: memref<2x1x96xf32, #tpu.memory_space<vmem>>, %arg6: memref<2x32x32xf32, #tpu.memory_space<vmem>>, %arg7: memref<2x1x32xf32, #tpu.memory_space<vmem>>, %arg8: memref<2x1x32xf32, #tpu.memory_space<vmem>>, %arg9: memref<2x1x32xf32, #tpu.memory_space<vmem>>, %arg10: memref<2x32x64xf32, #tpu.memory_space<vmem>>, %arg11: memref<2x1x64xf32, #tpu.memory_space<vmem>>, %arg12: memref<2x64x32xf32, #tpu.memory_space<vmem>>, %arg13: memref<2x1x32xf32, #tpu.memory_space<vmem>>, %arg14: memref<2x1x32xf32, #tpu.memory_space<vmem>>, %arg15: memref<2x1x32xf32, #tpu.memory_space<vmem>>, %arg16: memref<1x1xf32, #tpu.memory_space<vmem>>) attributes {dimension_semantics = [], scalar_prefetch = 0 : i64, scratch_operands = 0 : i64, tpu.core_type = #tpu.core_type<tc>} {
    %c0 = arith.constant 0 : index
    %c0_0 = arith.constant 0 : index
    %0 = vector.load %arg0[%c0, %c0_0] : memref<48x32xf32, #tpu.memory_space<vmem>>, vector<48x32xf32>
    %c0_1 = arith.constant 0 : index
    %c0_2 = arith.constant 0 : index
    %1 = vector.load %arg2[%c0_1, %c0_2] : memref<1x32xf32, #tpu.memory_space<vmem>>, vector<1x32xf32>
    %c0_3 = arith.constant 0 : index
    %c0_4 = arith.constant 0 : index
    %2 = vector.load %arg3[%c0_3, %c0_4] : memref<1x32xf32, #tpu.memory_space<vmem>>, vector<1x32xf32>
    %cst = arith.constant dense<0.000000e+00> : vector<48xf32>
    %3 = vector.multi_reduction <add>, %0, %cst [1] : vector<48x32xf32> to vector<48xf32>
    %4 = vector.shape_cast %3 : vector<48xf32> to vector<48x1xf32>
    %cst_5 = arith.constant 3.200000e+01 : f32
    %5 = vector.broadcast %cst_5 : f32 to vector<48x1xf32>
    %6 = arith.divf %4, %5 : vector<48x1xf32>
    %7 = arith.mulf %0, %0 : vector<48x32xf32>
    %cst_6 = arith.constant dense<0.000000e+00> : vector<48xf32>
    %8 = vector.multi_reduction <add>, %7, %cst_6 [1] : vector<48x32xf32> to vector<48xf32>
    %9 = vector.shape_cast %8 : vector<48xf32> to vector<48x1xf32>
    %cst_7 = arith.constant 3.200000e+01 : f32
    %10 = vector.broadcast %cst_7 : f32 to vector<48x1xf32>
    %11 = arith.divf %9, %10 : vector<48x1xf32>
    %12 = arith.mulf %6, %6 : vector<48x1xf32>
    %13 = arith.subf %11, %12 : vector<48x1xf32>
    %cst_8 = arith.constant 0.000000e+00 : f32
    %14 = vector.broadcast %cst_8 : f32 to vector<48x1xf32>
    %15 = arith.maximumf %13, %14 : vector<48x1xf32>
    %16 = vector.broadcast %6 : vector<48x1xf32> to vector<48x32xf32>
    %17 = arith.subf %0, %16 : vector<48x32xf32>
    %cst_9 = arith.constant 9.99999996E-13 : f32
    %18 = vector.broadcast %cst_9 : f32 to vector<48x1xf32>
    %19 = arith.addf %15, %18 : vector<48x1xf32>
    %20 = math.rsqrt %19 : vector<48x1xf32>
    %21 = vector.broadcast %20 : vector<48x1xf32> to vector<48x32xf32>
    %22 = arith.mulf %17, %21 : vector<48x32xf32>
    %23 = vector.broadcast %1 : vector<1x32xf32> to vector<48x32xf32>
    %24 = arith.mulf %22, %23 : vector<48x32xf32>
    %25 = vector.broadcast %2 : vector<1x32xf32> to vector<48x32xf32>
    %26 = arith.addf %24, %25 : vector<48x32xf32>
    %c0_10 = arith.constant 0 : index
    %c0_11 = arith.constant 0 : index
    %27 = vector.load %arg1[%c0_10, %c0_11] : memref<6x8xf32, #tpu.memory_space<vmem>>, vector<6x8xf32>
    %cst_12 = arith.constant 1.000000e+00 : f32
    %28 = vector.broadcast %cst_12 : f32 to vector<6x8xf32>
    %29 = arith.subf %28, %27 : vector<6x8xf32>
    %cst_13 = arith.constant -1.000000e+04 : f32
    %30 = vector.broadcast %cst_13 : f32 to vector<6x8xf32>
    %31 = arith.mulf %29, %30 : vector<6x8xf32>
    %32 = vector.shape_cast %31 : vector<6x8xf32> to vector<6x1x8xf32>
    %33 = vector.shape_cast %32 : vector<6x1x8xf32> to vector<6x1x8xf32>
    %34 = vector.broadcast %33 : vector<6x1x8xf32> to vector<6x8x8xf32>
    %35 = tpu.concatenate %34, %34 in 0 : vector<6x8x8xf32>, vector<6x8x8xf32> -> vector<12x8x8xf32>
    %36 = tpu.iota {dimensions = array<i32: 2>} : vector<1x1x32xi32>
    %c0_i32 = arith.constant 0 : i32
    %37 = vector.broadcast %c0_i32 : i32 to vector<1x1x32xi32>
    %38 = arith.cmpi sge, %36, %37 : vector<1x1x32xi32>
    %c16_i32 = arith.constant 16 : i32
    %39 = vector.broadcast %c16_i32 : i32 to vector<1x1x32xi32>
    %40 = arith.cmpi slt, %36, %39 : vector<1x1x32xi32>
    %41 = arith.andi %38, %40 : vector<1x1x32xi1>
    %42 = arith.extui %41 : vector<1x1x32xi1> to vector<1x1x32xi32>
    %43 = arith.sitofp %42 : vector<1x1x32xi32> to vector<1x1x32xf32>
    %c16_i32_14 = arith.constant 16 : i32
    %44 = vector.broadcast %c16_i32_14 : i32 to vector<1x1x32xi32>
    %45 = arith.cmpi sge, %36, %44 : vector<1x1x32xi32>
    %c32_i32 = arith.constant 32 : i32
    %46 = vector.broadcast %c32_i32 : i32 to vector<1x1x32xi32>
    %47 = arith.cmpi slt, %36, %46 : vector<1x1x32xi32>
    %48 = arith.andi %45, %47 : vector<1x1x32xi1>
    %49 = arith.extui %48 : vector<1x1x32xi1> to vector<1x1x32xi32>
    %50 = arith.sitofp %49 : vector<1x1x32xi32> to vector<1x1x32xf32>
    %c0_15 = arith.constant 0 : index
    %c0_16 = arith.constant 0 : index
    %c0_17 = arith.constant 0 : index
    %51 = vector.load %arg4[%c0_15, %c0_16, %c0_17] : memref<2x32x96xf32, #tpu.memory_space<vmem>>, vector<1x32x96xf32>
    %52 = vector.shape_cast %51 : vector<1x32x96xf32> to vector<32x96xf32>
    %cst_18 = arith.constant dense<0.000000e+00> : vector<48x96xf32>
    %53 = tpu.matmul %26, %52, %cst_18 {dimension_numbers = #tpu.dot_dimension_numbers<[1], [0], [0], [1], [0, 0, 1, 1], [], []>} : vector<48x32xf32>, vector<32x96xf32>, vector<48x96xf32> -> vector<48x96xf32>
    %c0_19 = arith.constant 0 : index
    %c0_20 = arith.constant 0 : index
    %c0_21 = arith.constant 0 : index
    %54 = vector.load %arg5[%c0_19, %c0_20, %c0_21] : memref<2x1x96xf32, #tpu.memory_space<vmem>>, vector<1x1x96xf32>
    %55 = vector.shape_cast %54 : vector<1x1x96xf32> to vector<1x96xf32>
    %56 = vector.broadcast %55 : vector<1x96xf32> to vector<48x96xf32>
    %57 = arith.addf %53, %56 : vector<48x96xf32>
    %58 = vector.extract_strided_slice %57 {offsets = [0, 0], sizes = [48, 16], strides = [1, 1]} : vector<48x96xf32> to vector<48x16xf32>
    %59 = vector.shape_cast %58 : vector<48x16xf32> to vector<6x8x16xf32>
    %60 = vector.extract_strided_slice %57 {offsets = [0, 16], sizes = [48, 16], strides = [1, 1]} : vector<48x96xf32> to vector<48x16xf32>
    %61 = vector.shape_cast %60 : vector<48x16xf32> to vector<6x8x16xf32>
    %62 = tpu.concatenate %59, %61 in 0 : vector<6x8x16xf32>, vector<6x8x16xf32> -> vector<12x8x16xf32>
    %cst_22 = arith.constant 2.500000e-01 : f32
    %63 = vector.broadcast %cst_22 : f32 to vector<12x8x16xf32>
    %64 = arith.mulf %62, %63 : vector<12x8x16xf32>
    %65 = vector.extract_strided_slice %57 {offsets = [0, 32], sizes = [48, 16], strides = [1, 1]} : vector<48x96xf32> to vector<48x16xf32>
    %66 = vector.shape_cast %65 : vector<48x16xf32> to vector<6x8x16xf32>
    %67 = vector.extract_strided_slice %57 {offsets = [0, 48], sizes = [48, 16], strides = [1, 1]} : vector<48x96xf32> to vector<48x16xf32>
    %68 = vector.shape_cast %67 : vector<48x16xf32> to vector<6x8x16xf32>
    %69 = tpu.concatenate %66, %68 in 0 : vector<6x8x16xf32>, vector<6x8x16xf32> -> vector<12x8x16xf32>
    %70 = vector.extract_strided_slice %57 {offsets = [0, 64], sizes = [48, 32], strides = [1, 1]} : vector<48x96xf32> to vector<48x32xf32>
    %71 = vector.shape_cast %70 : vector<48x32xf32> to vector<6x8x32xf32>
    %72 = vector.broadcast %43 : vector<1x1x32xf32> to vector<6x8x32xf32>
    %73 = arith.mulf %71, %72 : vector<6x8x32xf32>
    %74 = vector.broadcast %50 : vector<1x1x32xf32> to vector<6x8x32xf32>
    %75 = arith.mulf %71, %74 : vector<6x8x32xf32>
    %76 = tpu.concatenate %73, %75 in 0 : vector<6x8x32xf32>, vector<6x8x32xf32> -> vector<12x8x32xf32>
    "tpu.trace_start"() <{level = 10 : i32, message = "bqd,bkd->bqk"}> : () -> ()
    %cst_23 = arith.constant dense<0.000000e+00> : vector<12x8x8xf32>
    %77 = tpu.matmul %64, %69, %cst_23 {dimension_numbers = #tpu.dot_dimension_numbers<[2], [2], [1], [1], [0, 0, 0, 1, 1, 1], [0], [0]>} : vector<12x8x16xf32>, vector<12x8x16xf32>, vector<12x8x8xf32> -> vector<12x8x8xf32>
    "tpu.trace_stop"() : () -> ()
    %78 = arith.addf %77, %35 : vector<12x8x8xf32>
    %cst_24 = arith.constant dense<0xFF800000> : vector<12x8xf32>
    %79 = vector.multi_reduction <maximumf>, %78, %cst_24 [2] : vector<12x8x8xf32> to vector<12x8xf32>
    %80 = vector.shape_cast %79 : vector<12x8xf32> to vector<12x8x1xf32>
    %81 = vector.broadcast %80 : vector<12x8x1xf32> to vector<12x8x8xf32>
    %82 = arith.subf %78, %81 : vector<12x8x8xf32>
    %83 = math.exp %82 : vector<12x8x8xf32>
    %cst_25 = arith.constant dense<0.000000e+00> : vector<12x8xf32>
    %84 = vector.multi_reduction <add>, %83, %cst_25 [2] : vector<12x8x8xf32> to vector<12x8xf32>
    %85 = vector.shape_cast %84 : vector<12x8xf32> to vector<12x8x1xf32>
    %86 = vector.broadcast %85 : vector<12x8x1xf32> to vector<12x8x8xf32>
    %87 = arith.divf %83, %86 : vector<12x8x8xf32>
    "tpu.trace_start"() <{level = 10 : i32, message = "bqk,bkd->bqd"}> : () -> ()
    %cst_26 = arith.constant dense<0.000000e+00> : vector<12x8x32xf32>
    %88 = tpu.matmul %87, %76, %cst_26 {dimension_numbers = #tpu.dot_dimension_numbers<[2], [1], [1], [2], [0, 0, 0, 1, 1, 2], [0], [0]>} : vector<12x8x8xf32>, vector<12x8x32xf32>, vector<12x8x32xf32> -> vector<12x8x32xf32>
    "tpu.trace_stop"() : () -> ()
    %89 = vector.extract_strided_slice %88 {offsets = [0, 0, 0], sizes = [6, 8, 32], strides = [1, 1, 1]} : vector<12x8x32xf32> to vector<6x8x32xf32>
    %90 = vector.extract_strided_slice %88 {offsets = [6, 0, 0], sizes = [6, 8, 32], strides = [1, 1, 1]} : vector<12x8x32xf32> to vector<6x8x32xf32>
    %91 = arith.addf %89, %90 : vector<6x8x32xf32>
    %92 = vector.shape_cast %91 : vector<6x8x32xf32> to vector<48x32xf32>
    %c0_27 = arith.constant 0 : index
    %c0_28 = arith.constant 0 : index
    %c0_29 = arith.constant 0 : index
    %93 = vector.load %arg6[%c0_27, %c0_28, %c0_29] : memref<2x32x32xf32, #tpu.memory_space<vmem>>, vector<1x32x32xf32>
    %94 = vector.shape_cast %93 : vector<1x32x32xf32> to vector<32x32xf32>
    %cst_30 = arith.constant dense<0.000000e+00> : vector<48x32xf32>
    %95 = tpu.matmul %92, %94, %cst_30 {dimension_numbers = #tpu.dot_dimension_numbers<[1], [0], [0], [1], [0, 0, 1, 1], [], []>} : vector<48x32xf32>, vector<32x32xf32>, vector<48x32xf32> -> vector<48x32xf32>
    %c0_31 = arith.constant 0 : index
    %c0_32 = arith.constant 0 : index
    %c0_33 = arith.constant 0 : index
    %96 = vector.load %arg7[%c0_31, %c0_32, %c0_33] : memref<2x1x32xf32, #tpu.memory_space<vmem>>, vector<1x1x32xf32>
    %97 = vector.shape_cast %96 : vector<1x1x32xf32> to vector<1x32xf32>
    %98 = vector.broadcast %97 : vector<1x32xf32> to vector<48x32xf32>
    %99 = arith.addf %95, %98 : vector<48x32xf32>
    %100 = arith.addf %26, %99 : vector<48x32xf32>
    %c0_34 = arith.constant 0 : index
    %c0_35 = arith.constant 0 : index
    %c0_36 = arith.constant 0 : index
    %101 = vector.load %arg8[%c0_34, %c0_35, %c0_36] : memref<2x1x32xf32, #tpu.memory_space<vmem>>, vector<1x1x32xf32>
    %102 = vector.shape_cast %101 : vector<1x1x32xf32> to vector<1x32xf32>
    %c0_37 = arith.constant 0 : index
    %c0_38 = arith.constant 0 : index
    %c0_39 = arith.constant 0 : index
    %103 = vector.load %arg9[%c0_37, %c0_38, %c0_39] : memref<2x1x32xf32, #tpu.memory_space<vmem>>, vector<1x1x32xf32>
    %104 = vector.shape_cast %103 : vector<1x1x32xf32> to vector<1x32xf32>
    %cst_40 = arith.constant dense<0.000000e+00> : vector<48xf32>
    %105 = vector.multi_reduction <add>, %100, %cst_40 [1] : vector<48x32xf32> to vector<48xf32>
    %106 = vector.shape_cast %105 : vector<48xf32> to vector<48x1xf32>
    %cst_41 = arith.constant 3.200000e+01 : f32
    %107 = vector.broadcast %cst_41 : f32 to vector<48x1xf32>
    %108 = arith.divf %106, %107 : vector<48x1xf32>
    %109 = arith.mulf %100, %100 : vector<48x32xf32>
    %cst_42 = arith.constant dense<0.000000e+00> : vector<48xf32>
    %110 = vector.multi_reduction <add>, %109, %cst_42 [1] : vector<48x32xf32> to vector<48xf32>
    %111 = vector.shape_cast %110 : vector<48xf32> to vector<48x1xf32>
    %cst_43 = arith.constant 3.200000e+01 : f32
    %112 = vector.broadcast %cst_43 : f32 to vector<48x1xf32>
    %113 = arith.divf %111, %112 : vector<48x1xf32>
    %114 = arith.mulf %108, %108 : vector<48x1xf32>
    %115 = arith.subf %113, %114 : vector<48x1xf32>
    %cst_44 = arith.constant 0.000000e+00 : f32
    %116 = vector.broadcast %cst_44 : f32 to vector<48x1xf32>
    %117 = arith.maximumf %115, %116 : vector<48x1xf32>
    %118 = vector.broadcast %108 : vector<48x1xf32> to vector<48x32xf32>
    %119 = arith.subf %100, %118 : vector<48x32xf32>
    %cst_45 = arith.constant 9.99999996E-13 : f32
    %120 = vector.broadcast %cst_45 : f32 to vector<48x1xf32>
    %121 = arith.addf %117, %120 : vector<48x1xf32>
    %122 = math.rsqrt %121 : vector<48x1xf32>
    %123 = vector.broadcast %122 : vector<48x1xf32> to vector<48x32xf32>
    %124 = arith.mulf %119, %123 : vector<48x32xf32>
    %125 = vector.broadcast %102 : vector<1x32xf32> to vector<48x32xf32>
    %126 = arith.mulf %124, %125 : vector<48x32xf32>
    %127 = vector.broadcast %104 : vector<1x32xf32> to vector<48x32xf32>
    %128 = arith.addf %126, %127 : vector<48x32xf32>
    %c0_46 = arith.constant 0 : index
    %c0_47 = arith.constant 0 : index
    %c0_48 = arith.constant 0 : index
    %129 = vector.load %arg10[%c0_46, %c0_47, %c0_48] : memref<2x32x64xf32, #tpu.memory_space<vmem>>, vector<1x32x64xf32>
    %130 = vector.shape_cast %129 : vector<1x32x64xf32> to vector<32x64xf32>
    %cst_49 = arith.constant dense<0.000000e+00> : vector<48x64xf32>
    %131 = tpu.matmul %128, %130, %cst_49 {dimension_numbers = #tpu.dot_dimension_numbers<[1], [0], [0], [1], [0, 0, 1, 1], [], []>} : vector<48x32xf32>, vector<32x64xf32>, vector<48x64xf32> -> vector<48x64xf32>
    %c0_50 = arith.constant 0 : index
    %c0_51 = arith.constant 0 : index
    %c0_52 = arith.constant 0 : index
    %132 = vector.load %arg11[%c0_50, %c0_51, %c0_52] : memref<2x1x64xf32, #tpu.memory_space<vmem>>, vector<1x1x64xf32>
    %133 = vector.shape_cast %132 : vector<1x1x64xf32> to vector<1x64xf32>
    %134 = vector.broadcast %133 : vector<1x64xf32> to vector<48x64xf32>
    %135 = arith.addf %131, %134 : vector<48x64xf32>
    %136 = arith.mulf %135, %135 : vector<48x64xf32>
    %137 = arith.mulf %135, %136 : vector<48x64xf32>
    %cst_53 = arith.constant 4.471500e-02 : f32
    %138 = vector.broadcast %cst_53 : f32 to vector<48x64xf32>
    %139 = arith.mulf %138, %137 : vector<48x64xf32>
    %140 = arith.addf %135, %139 : vector<48x64xf32>
    %cst_54 = arith.constant 0.797884583 : f32
    %141 = vector.broadcast %cst_54 : f32 to vector<48x64xf32>
    %142 = arith.mulf %141, %140 : vector<48x64xf32>
    %143 = math.tanh %142 : vector<48x64xf32>
    %cst_55 = arith.constant 1.000000e+00 : f32
    %144 = vector.broadcast %cst_55 : f32 to vector<48x64xf32>
    %145 = arith.addf %144, %143 : vector<48x64xf32>
    %cst_56 = arith.constant 5.000000e-01 : f32
    %146 = vector.broadcast %cst_56 : f32 to vector<48x64xf32>
    %147 = arith.mulf %146, %145 : vector<48x64xf32>
    %148 = arith.mulf %135, %147 : vector<48x64xf32>
    %c0_57 = arith.constant 0 : index
    %c0_58 = arith.constant 0 : index
    %c0_59 = arith.constant 0 : index
    %149 = vector.load %arg12[%c0_57, %c0_58, %c0_59] : memref<2x64x32xf32, #tpu.memory_space<vmem>>, vector<1x64x32xf32>
    %150 = vector.shape_cast %149 : vector<1x64x32xf32> to vector<64x32xf32>
    %cst_60 = arith.constant dense<0.000000e+00> : vector<48x32xf32>
    %151 = tpu.matmul %148, %150, %cst_60 {dimension_numbers = #tpu.dot_dimension_numbers<[1], [0], [0], [1], [0, 0, 1, 1], [], []>} : vector<48x64xf32>, vector<64x32xf32>, vector<48x32xf32> -> vector<48x32xf32>
    %c0_61 = arith.constant 0 : index
    %c0_62 = arith.constant 0 : index
    %c0_63 = arith.constant 0 : index
    %152 = vector.load %arg13[%c0_61, %c0_62, %c0_63] : memref<2x1x32xf32, #tpu.memory_space<vmem>>, vector<1x1x32xf32>
    %153 = vector.shape_cast %152 : vector<1x1x32xf32> to vector<1x32xf32>
    %154 = vector.broadcast %153 : vector<1x32xf32> to vector<48x32xf32>
    %155 = arith.addf %151, %154 : vector<48x32xf32>
    %156 = arith.addf %128, %155 : vector<48x32xf32>
    %c0_64 = arith.constant 0 : index
    %c0_65 = arith.constant 0 : index
    %c0_66 = arith.constant 0 : index
    %157 = vector.load %arg14[%c0_64, %c0_65, %c0_66] : memref<2x1x32xf32, #tpu.memory_space<vmem>>, vector<1x1x32xf32>
    %158 = vector.shape_cast %157 : vector<1x1x32xf32> to vector<1x32xf32>
    %c0_67 = arith.constant 0 : index
    %c0_68 = arith.constant 0 : index
    %c0_69 = arith.constant 0 : index
    %159 = vector.load %arg15[%c0_67, %c0_68, %c0_69] : memref<2x1x32xf32, #tpu.memory_space<vmem>>, vector<1x1x32xf32>
    %160 = vector.shape_cast %159 : vector<1x1x32xf32> to vector<1x32xf32>
    %cst_70 = arith.constant dense<0.000000e+00> : vector<48xf32>
    %161 = vector.multi_reduction <add>, %156, %cst_70 [1] : vector<48x32xf32> to vector<48xf32>
    %162 = vector.shape_cast %161 : vector<48xf32> to vector<48x1xf32>
    %cst_71 = arith.constant 3.200000e+01 : f32
    %163 = vector.broadcast %cst_71 : f32 to vector<48x1xf32>
    %164 = arith.divf %162, %163 : vector<48x1xf32>
    %165 = arith.mulf %156, %156 : vector<48x32xf32>
    %cst_72 = arith.constant dense<0.000000e+00> : vector<48xf32>
    %166 = vector.multi_reduction <add>, %165, %cst_72 [1] : vector<48x32xf32> to vector<48xf32>
    %167 = vector.shape_cast %166 : vector<48xf32> to vector<48x1xf32>
    %cst_73 = arith.constant 3.200000e+01 : f32
    %168 = vector.broadcast %cst_73 : f32 to vector<48x1xf32>
    %169 = arith.divf %167, %168 : vector<48x1xf32>
    %170 = arith.mulf %164, %164 : vector<48x1xf32>
    %171 = arith.subf %169, %170 : vector<48x1xf32>
    %cst_74 = arith.constant 0.000000e+00 : f32
    %172 = vector.broadcast %cst_74 : f32 to vector<48x1xf32>
    %173 = arith.maximumf %171, %172 : vector<48x1xf32>
    %174 = vector.broadcast %164 : vector<48x1xf32> to vector<48x32xf32>
    %175 = arith.subf %156, %174 : vector<48x32xf32>
    %cst_75 = arith.constant 9.99999996E-13 : f32
    %176 = vector.broadcast %cst_75 : f32 to vector<48x1xf32>
    %177 = arith.addf %173, %176 : vector<48x1xf32>
    %178 = math.rsqrt %177 : vector<48x1xf32>
    %179 = vector.broadcast %178 : vector<48x1xf32> to vector<48x32xf32>
    %180 = arith.mulf %175, %179 : vector<48x32xf32>
    %181 = vector.broadcast %158 : vector<1x32xf32> to vector<48x32xf32>
    %182 = arith.mulf %180, %181 : vector<48x32xf32>
    %183 = vector.broadcast %160 : vector<1x32xf32> to vector<48x32xf32>
    %184 = arith.addf %182, %183 : vector<48x32xf32>
    %c1 = arith.constant 1 : index
    %c0_76 = arith.constant 0 : index
    %c0_77 = arith.constant 0 : index
    %185 = vector.load %arg4[%c1, %c0_76, %c0_77] : memref<2x32x96xf32, #tpu.memory_space<vmem>>, vector<1x32x96xf32>
    %186 = vector.shape_cast %185 : vector<1x32x96xf32> to vector<32x96xf32>
    %cst_78 = arith.constant dense<0.000000e+00> : vector<48x96xf32>
    %187 = tpu.matmul %184, %186, %cst_78 {dimension_numbers = #tpu.dot_dimension_numbers<[1], [0], [0], [1], [0, 0, 1, 1], [], []>} : vector<48x32xf32>, vector<32x96xf32>, vector<48x96xf32> -> vector<48x96xf32>
    %c1_79 = arith.constant 1 : index
    %c0_80 = arith.constant 0 : index
    %c0_81 = arith.constant 0 : index
    %188 = vector.load %arg5[%c1_79, %c0_80, %c0_81] : memref<2x1x96xf32, #tpu.memory_space<vmem>>, vector<1x1x96xf32>
    %189 = vector.shape_cast %188 : vector<1x1x96xf32> to vector<1x96xf32>
    %190 = vector.broadcast %189 : vector<1x96xf32> to vector<48x96xf32>
    %191 = arith.addf %187, %190 : vector<48x96xf32>
    %192 = vector.extract_strided_slice %191 {offsets = [0, 0], sizes = [48, 16], strides = [1, 1]} : vector<48x96xf32> to vector<48x16xf32>
    %193 = vector.shape_cast %192 : vector<48x16xf32> to vector<6x8x16xf32>
    %194 = vector.extract_strided_slice %191 {offsets = [0, 16], sizes = [48, 16], strides = [1, 1]} : vector<48x96xf32> to vector<48x16xf32>
    %195 = vector.shape_cast %194 : vector<48x16xf32> to vector<6x8x16xf32>
    %196 = tpu.concatenate %193, %195 in 0 : vector<6x8x16xf32>, vector<6x8x16xf32> -> vector<12x8x16xf32>
    %cst_82 = arith.constant 2.500000e-01 : f32
    %197 = vector.broadcast %cst_82 : f32 to vector<12x8x16xf32>
    %198 = arith.mulf %196, %197 : vector<12x8x16xf32>
    %199 = vector.extract_strided_slice %191 {offsets = [0, 32], sizes = [48, 16], strides = [1, 1]} : vector<48x96xf32> to vector<48x16xf32>
    %200 = vector.shape_cast %199 : vector<48x16xf32> to vector<6x8x16xf32>
    %201 = vector.extract_strided_slice %191 {offsets = [0, 48], sizes = [48, 16], strides = [1, 1]} : vector<48x96xf32> to vector<48x16xf32>
    %202 = vector.shape_cast %201 : vector<48x16xf32> to vector<6x8x16xf32>
    %203 = tpu.concatenate %200, %202 in 0 : vector<6x8x16xf32>, vector<6x8x16xf32> -> vector<12x8x16xf32>
    %204 = vector.extract_strided_slice %191 {offsets = [0, 64], sizes = [48, 32], strides = [1, 1]} : vector<48x96xf32> to vector<48x32xf32>
    %205 = vector.shape_cast %204 : vector<48x32xf32> to vector<6x8x32xf32>
    %206 = vector.broadcast %43 : vector<1x1x32xf32> to vector<6x8x32xf32>
    %207 = arith.mulf %205, %206 : vector<6x8x32xf32>
    %208 = vector.broadcast %50 : vector<1x1x32xf32> to vector<6x8x32xf32>
    %209 = arith.mulf %205, %208 : vector<6x8x32xf32>
    %210 = tpu.concatenate %207, %209 in 0 : vector<6x8x32xf32>, vector<6x8x32xf32> -> vector<12x8x32xf32>
    "tpu.trace_start"() <{level = 10 : i32, message = "bqd,bkd->bqk"}> : () -> ()
    %cst_83 = arith.constant dense<0.000000e+00> : vector<12x8x8xf32>
    %211 = tpu.matmul %198, %203, %cst_83 {dimension_numbers = #tpu.dot_dimension_numbers<[2], [2], [1], [1], [0, 0, 0, 1, 1, 1], [0], [0]>} : vector<12x8x16xf32>, vector<12x8x16xf32>, vector<12x8x8xf32> -> vector<12x8x8xf32>
    "tpu.trace_stop"() : () -> ()
    %212 = arith.addf %211, %35 : vector<12x8x8xf32>
    %cst_84 = arith.constant dense<0xFF800000> : vector<12x8xf32>
    %213 = vector.multi_reduction <maximumf>, %212, %cst_84 [2] : vector<12x8x8xf32> to vector<12x8xf32>
    %214 = vector.shape_cast %213 : vector<12x8xf32> to vector<12x8x1xf32>
    %215 = vector.broadcast %214 : vector<12x8x1xf32> to vector<12x8x8xf32>
    %216 = arith.subf %212, %215 : vector<12x8x8xf32>
    %217 = math.exp %216 : vector<12x8x8xf32>
    %cst_85 = arith.constant dense<0.000000e+00> : vector<12x8xf32>
    %218 = vector.multi_reduction <add>, %217, %cst_85 [2] : vector<12x8x8xf32> to vector<12x8xf32>
    %219 = vector.shape_cast %218 : vector<12x8xf32> to vector<12x8x1xf32>
    %220 = vector.broadcast %219 : vector<12x8x1xf32> to vector<12x8x8xf32>
    %221 = arith.divf %217, %220 : vector<12x8x8xf32>
    "tpu.trace_start"() <{level = 10 : i32, message = "bqk,bkd->bqd"}> : () -> ()
    %cst_86 = arith.constant dense<0.000000e+00> : vector<12x8x32xf32>
    %222 = tpu.matmul %221, %210, %cst_86 {dimension_numbers = #tpu.dot_dimension_numbers<[2], [1], [1], [2], [0, 0, 0, 1, 1, 2], [0], [0]>} : vector<12x8x8xf32>, vector<12x8x32xf32>, vector<12x8x32xf32> -> vector<12x8x32xf32>
    "tpu.trace_stop"() : () -> ()
    %223 = vector.extract_strided_slice %222 {offsets = [0, 0, 0], sizes = [6, 8, 32], strides = [1, 1, 1]} : vector<12x8x32xf32> to vector<6x8x32xf32>
    %224 = vector.extract_strided_slice %222 {offsets = [6, 0, 0], sizes = [6, 8, 32], strides = [1, 1, 1]} : vector<12x8x32xf32> to vector<6x8x32xf32>
    %225 = arith.addf %223, %224 : vector<6x8x32xf32>
    %226 = vector.shape_cast %225 : vector<6x8x32xf32> to vector<48x32xf32>
    %c1_87 = arith.constant 1 : index
    %c0_88 = arith.constant 0 : index
    %c0_89 = arith.constant 0 : index
    %227 = vector.load %arg6[%c1_87, %c0_88, %c0_89] : memref<2x32x32xf32, #tpu.memory_space<vmem>>, vector<1x32x32xf32>
    %228 = vector.shape_cast %227 : vector<1x32x32xf32> to vector<32x32xf32>
    %cst_90 = arith.constant dense<0.000000e+00> : vector<48x32xf32>
    %229 = tpu.matmul %226, %228, %cst_90 {dimension_numbers = #tpu.dot_dimension_numbers<[1], [0], [0], [1], [0, 0, 1, 1], [], []>} : vector<48x32xf32>, vector<32x32xf32>, vector<48x32xf32> -> vector<48x32xf32>
    %c1_91 = arith.constant 1 : index
    %c0_92 = arith.constant 0 : index
    %c0_93 = arith.constant 0 : index
    %230 = vector.load %arg7[%c1_91, %c0_92, %c0_93] : memref<2x1x32xf32, #tpu.memory_space<vmem>>, vector<1x1x32xf32>
    %231 = vector.shape_cast %230 : vector<1x1x32xf32> to vector<1x32xf32>
    %232 = vector.broadcast %231 : vector<1x32xf32> to vector<48x32xf32>
    %233 = arith.addf %229, %232 : vector<48x32xf32>
    %234 = arith.addf %184, %233 : vector<48x32xf32>
    %c1_94 = arith.constant 1 : index
    %c0_95 = arith.constant 0 : index
    %c0_96 = arith.constant 0 : index
    %235 = vector.load %arg8[%c1_94, %c0_95, %c0_96] : memref<2x1x32xf32, #tpu.memory_space<vmem>>, vector<1x1x32xf32>
    %236 = vector.shape_cast %235 : vector<1x1x32xf32> to vector<1x32xf32>
    %c1_97 = arith.constant 1 : index
    %c0_98 = arith.constant 0 : index
    %c0_99 = arith.constant 0 : index
    %237 = vector.load %arg9[%c1_97, %c0_98, %c0_99] : memref<2x1x32xf32, #tpu.memory_space<vmem>>, vector<1x1x32xf32>
    %238 = vector.shape_cast %237 : vector<1x1x32xf32> to vector<1x32xf32>
    %cst_100 = arith.constant dense<0.000000e+00> : vector<48xf32>
    %239 = vector.multi_reduction <add>, %234, %cst_100 [1] : vector<48x32xf32> to vector<48xf32>
    %240 = vector.shape_cast %239 : vector<48xf32> to vector<48x1xf32>
    %cst_101 = arith.constant 3.200000e+01 : f32
    %241 = vector.broadcast %cst_101 : f32 to vector<48x1xf32>
    %242 = arith.divf %240, %241 : vector<48x1xf32>
    %243 = arith.mulf %234, %234 : vector<48x32xf32>
    %cst_102 = arith.constant dense<0.000000e+00> : vector<48xf32>
    %244 = vector.multi_reduction <add>, %243, %cst_102 [1] : vector<48x32xf32> to vector<48xf32>
    %245 = vector.shape_cast %244 : vector<48xf32> to vector<48x1xf32>
    %cst_103 = arith.constant 3.200000e+01 : f32
    %246 = vector.broadcast %cst_103 : f32 to vector<48x1xf32>
    %247 = arith.divf %245, %246 : vector<48x1xf32>
    %248 = arith.mulf %242, %242 : vector<48x1xf32>
    %249 = arith.subf %247, %248 : vector<48x1xf32>
    %cst_104 = arith.constant 0.000000e+00 : f32
    %250 = vector.broadcast %cst_104 : f32 to vector<48x1xf32>
    %251 = arith.maximumf %249, %250 : vector<48x1xf32>
    %252 = vector.broadcast %242 : vector<48x1xf32> to vector<48x32xf32>
    %253 = arith.subf %234, %252 : vector<48x32xf32>
    %cst_105 = arith.constant 9.99999996E-13 : f32
    %254 = vector.broadcast %cst_105 : f32 to vector<48x1xf32>
    %255 = arith.addf %251, %254 : vector<48x1xf32>
    %256 = math.rsqrt %255 : vector<48x1xf32>
    %257 = vector.broadcast %256 : vector<48x1xf32> to vector<48x32xf32>
    %258 = arith.mulf %253, %257 : vector<48x32xf32>
    %259 = vector.broadcast %236 : vector<1x32xf32> to vector<48x32xf32>
    %260 = arith.mulf %258, %259 : vector<48x32xf32>
    %261 = vector.broadcast %238 : vector<1x32xf32> to vector<48x32xf32>
    %262 = arith.addf %260, %261 : vector<48x32xf32>
    %c1_106 = arith.constant 1 : index
    %c0_107 = arith.constant 0 : index
    %c0_108 = arith.constant 0 : index
    %263 = vector.load %arg10[%c1_106, %c0_107, %c0_108] : memref<2x32x64xf32, #tpu.memory_space<vmem>>, vector<1x32x64xf32>
    %264 = vector.shape_cast %263 : vector<1x32x64xf32> to vector<32x64xf32>
    %cst_109 = arith.constant dense<0.000000e+00> : vector<48x64xf32>
    %265 = tpu.matmul %262, %264, %cst_109 {dimension_numbers = #tpu.dot_dimension_numbers<[1], [0], [0], [1], [0, 0, 1, 1], [], []>} : vector<48x32xf32>, vector<32x64xf32>, vector<48x64xf32> -> vector<48x64xf32>
    %c1_110 = arith.constant 1 : index
    %c0_111 = arith.constant 0 : index
    %c0_112 = arith.constant 0 : index
    %266 = vector.load %arg11[%c1_110, %c0_111, %c0_112] : memref<2x1x64xf32, #tpu.memory_space<vmem>>, vector<1x1x64xf32>
    %267 = vector.shape_cast %266 : vector<1x1x64xf32> to vector<1x64xf32>
    %268 = vector.broadcast %267 : vector<1x64xf32> to vector<48x64xf32>
    %269 = arith.addf %265, %268 : vector<48x64xf32>
    %270 = arith.mulf %269, %269 : vector<48x64xf32>
    %271 = arith.mulf %269, %270 : vector<48x64xf32>
    %cst_113 = arith.constant 4.471500e-02 : f32
    %272 = vector.broadcast %cst_113 : f32 to vector<48x64xf32>
    %273 = arith.mulf %272, %271 : vector<48x64xf32>
    %274 = arith.addf %269, %273 : vector<48x64xf32>
    %cst_114 = arith.constant 0.797884583 : f32
    %275 = vector.broadcast %cst_114 : f32 to vector<48x64xf32>
    %276 = arith.mulf %275, %274 : vector<48x64xf32>
    %277 = math.tanh %276 : vector<48x64xf32>
    %cst_115 = arith.constant 1.000000e+00 : f32
    %278 = vector.broadcast %cst_115 : f32 to vector<48x64xf32>
    %279 = arith.addf %278, %277 : vector<48x64xf32>
    %cst_116 = arith.constant 5.000000e-01 : f32
    %280 = vector.broadcast %cst_116 : f32 to vector<48x64xf32>
    %281 = arith.mulf %280, %279 : vector<48x64xf32>
    %282 = arith.mulf %269, %281 : vector<48x64xf32>
    %c1_117 = arith.constant 1 : index
    %c0_118 = arith.constant 0 : index
    %c0_119 = arith.constant 0 : index
    %283 = vector.load %arg12[%c1_117, %c0_118, %c0_119] : memref<2x64x32xf32, #tpu.memory_space<vmem>>, vector<1x64x32xf32>
    %284 = vector.shape_cast %283 : vector<1x64x32xf32> to vector<64x32xf32>
    %cst_120 = arith.constant dense<0.000000e+00> : vector<48x32xf32>
    %285 = tpu.matmul %282, %284, %cst_120 {dimension_numbers = #tpu.dot_dimension_numbers<[1], [0], [0], [1], [0, 0, 1, 1], [], []>} : vector<48x64xf32>, vector<64x32xf32>, vector<48x32xf32> -> vector<48x32xf32>
    %c1_121 = arith.constant 1 : index
    %c0_122 = arith.constant 0 : index
    %c0_123 = arith.constant 0 : index
    %286 = vector.load %arg13[%c1_121, %c0_122, %c0_123] : memref<2x1x32xf32, #tpu.memory_space<vmem>>, vector<1x1x32xf32>
    %287 = vector.shape_cast %286 : vector<1x1x32xf32> to vector<1x32xf32>
    %288 = vector.broadcast %287 : vector<1x32xf32> to vector<48x32xf32>
    %289 = arith.addf %285, %288 : vector<48x32xf32>
    %290 = arith.addf %262, %289 : vector<48x32xf32>
    %c1_124 = arith.constant 1 : index
    %c0_125 = arith.constant 0 : index
    %c0_126 = arith.constant 0 : index
    %291 = vector.load %arg14[%c1_124, %c0_125, %c0_126] : memref<2x1x32xf32, #tpu.memory_space<vmem>>, vector<1x1x32xf32>
    %292 = vector.shape_cast %291 : vector<1x1x32xf32> to vector<1x32xf32>
    %c1_127 = arith.constant 1 : index
    %c0_128 = arith.constant 0 : index
    %c0_129 = arith.constant 0 : index
    %293 = vector.load %arg15[%c1_127, %c0_128, %c0_129] : memref<2x1x32xf32, #tpu.memory_space<vmem>>, vector<1x1x32xf32>
    %294 = vector.shape_cast %293 : vector<1x1x32xf32> to vector<1x32xf32>
    %cst_130 = arith.constant dense<0.000000e+00> : vector<48xf32>
    %295 = vector.multi_reduction <add>, %290, %cst_130 [1] : vector<48x32xf32> to vector<48xf32>
    %296 = vector.shape_cast %295 : vector<48xf32> to vector<48x1xf32>
    %cst_131 = arith.constant 3.200000e+01 : f32
    %297 = vector.broadcast %cst_131 : f32 to vector<48x1xf32>
    %298 = arith.divf %296, %297 : vector<48x1xf32>
    %299 = arith.mulf %290, %290 : vector<48x32xf32>
    %cst_132 = arith.constant dense<0.000000e+00> : vector<48xf32>
    %300 = vector.multi_reduction <add>, %299, %cst_132 [1] : vector<48x32xf32> to vector<48xf32>
    %301 = vector.shape_cast %300 : vector<48xf32> to vector<48x1xf32>
    %cst_133 = arith.constant 3.200000e+01 : f32
    %302 = vector.broadcast %cst_133 : f32 to vector<48x1xf32>
    %303 = arith.divf %301, %302 : vector<48x1xf32>
    %304 = arith.mulf %298, %298 : vector<48x1xf32>
    %305 = arith.subf %303, %304 : vector<48x1xf32>
    %cst_134 = arith.constant 0.000000e+00 : f32
    %306 = vector.broadcast %cst_134 : f32 to vector<48x1xf32>
    %307 = arith.maximumf %305, %306 : vector<48x1xf32>
    %308 = vector.broadcast %298 : vector<48x1xf32> to vector<48x32xf32>
    %309 = arith.subf %290, %308 : vector<48x32xf32>
    %cst_135 = arith.constant 9.99999996E-13 : f32
    %310 = vector.broadcast %cst_135 : f32 to vector<48x1xf32>
    %311 = arith.addf %307, %310 : vector<48x1xf32>
    %312 = math.rsqrt %311 : vector<48x1xf32>
    %313 = vector.broadcast %312 : vector<48x1xf32> to vector<48x32xf32>
    %314 = arith.mulf %309, %313 : vector<48x32xf32>
    %315 = vector.broadcast %292 : vector<1x32xf32> to vector<48x32xf32>
    %316 = arith.mulf %314, %315 : vector<48x32xf32>
    %317 = vector.broadcast %294 : vector<1x32xf32> to vector<48x32xf32>
    %318 = arith.addf %316, %317 : vector<48x32xf32>
    %319 = vector.shape_cast %318 : vector<48x32xf32> to vector<6x8x32xf32>
    %cst_136 = arith.constant dense<0.000000e+00> : vector<6x32xf32>
    %320 = vector.multi_reduction <add>, %319, %cst_136 [1] : vector<6x8x32xf32> to vector<6x32xf32>
    %cst_137 = arith.constant 8.000000e+00 : f32
    %321 = vector.broadcast %cst_137 : f32 to vector<6x32xf32>
    %322 = arith.divf %320, %321 : vector<6x32xf32>
    %323 = vector.extract_strided_slice %322 {offsets = [0, 0], sizes = [2, 32], strides = [1, 1]} : vector<6x32xf32> to vector<2x32xf32>
    %324 = vector.extract_strided_slice %322 {offsets = [2, 0], sizes = [2, 32], strides = [1, 1]} : vector<6x32xf32> to vector<2x32xf32>
    %325 = vector.extract_strided_slice %322 {offsets = [4, 0], sizes = [2, 32], strides = [1, 1]} : vector<6x32xf32> to vector<2x32xf32>
    %326 = arith.subf %323, %324 : vector<2x32xf32>
    %cst_138 = arith.constant 9.99999997E-7 : f32
    %327 = vector.broadcast %cst_138 : f32 to vector<2x32xf32>
    %328 = arith.addf %326, %327 : vector<2x32xf32>
    %329 = arith.mulf %328, %328 : vector<2x32xf32>
    %cst_139 = arith.constant dense<0.000000e+00> : vector<2xf32>
    %330 = vector.multi_reduction <add>, %329, %cst_139 [1] : vector<2x32xf32> to vector<2xf32>
    %331 = vector.shape_cast %330 : vector<2xf32> to vector<2x1xf32>
    %332 = math.sqrt %331 : vector<2x1xf32>
    %333 = arith.subf %323, %325 : vector<2x32xf32>
    %cst_140 = arith.constant 9.99999997E-7 : f32
    %334 = vector.broadcast %cst_140 : f32 to vector<2x32xf32>
    %335 = arith.addf %333, %334 : vector<2x32xf32>
    %336 = arith.mulf %335, %335 : vector<2x32xf32>
    %cst_141 = arith.constant dense<0.000000e+00> : vector<2xf32>
    %337 = vector.multi_reduction <add>, %336, %cst_141 [1] : vector<2x32xf32> to vector<2xf32>
    %338 = vector.shape_cast %337 : vector<2xf32> to vector<2x1xf32>
    %339 = math.sqrt %338 : vector<2x1xf32>
    %340 = arith.subf %332, %339 : vector<2x1xf32>
    %cst_142 = arith.constant 3.000000e+00 : f32
    %341 = vector.broadcast %cst_142 : f32 to vector<2x1xf32>
    %342 = arith.addf %340, %341 : vector<2x1xf32>
    %cst_143 = arith.constant 0.000000e+00 : f32
    %343 = vector.broadcast %cst_143 : f32 to vector<2x1xf32>
    %344 = arith.maximumf %342, %343 : vector<2x1xf32>
    %345 = vector.shape_cast %344 : vector<2x1xf32> to vector<1x2x1xf32>
    %cst_144 = arith.constant dense<0.000000e+00> : vector<1xf32>
    %346 = vector.multi_reduction <add>, %345, %cst_144 [1, 2] : vector<1x2x1xf32> to vector<1xf32>
    %347 = vector.shape_cast %346 : vector<1xf32> to vector<1x1x1xf32>
    %348 = vector.extract %347[0, 0, 0] : f32 from vector<1x1x1xf32>
    %349 = vector.broadcast %348 : f32 to vector<1x1xf32>
    %cst_145 = arith.constant 2.000000e+00 : f32
    %350 = vector.broadcast %cst_145 : f32 to vector<1x1xf32>
    %351 = arith.divf %349, %350 : vector<1x1xf32>
    %c0_146 = arith.constant 0 : index
    %c0_147 = arith.constant 0 : index
    %352 = vector.load %arg16[%c0_146, %c0_147] : memref<1x1xf32, #tpu.memory_space<vmem>>, vector<1x1xf32>
    tpu.vector_store %arg16[%c0_146, %c0_147], %351 {strides = array<i32>} : memref<1x1xf32, #tpu.memory_space<vmem>>, vector<1x1xf32>,
    return
  }
}

</mosaic_0001>

<llo_original>
// kernel: triplet_model_forward.1
$region0: #{triplet_model_forward.1}
  #allocation0 [shape = 'u32[]', space=smem, size = 0x4, offset = 0x4, fixed_abs, tag = 'smem constant byte address 0x4 - core index']
  #allocation1 [shape = 'u32[144,128]{1,0:T(1,128)}', space=vmem, size = 0x12000, scoped, tag = 'internal scratch']
  %s0 = inlined_call_operand.vmem [shape: f32[48,32], index: 0, kind: input, shape index: {}]
  %s1 = inlined_call_operand.vmem [shape: f32[6,8], index: 1, kind: input, shape index: {}]
  %s2 = inlined_call_operand.vmem [shape: f32[1,32], index: 2, kind: input, shape index: {}]
  %s3 = inlined_call_operand.vmem [shape: f32[1,32], index: 3, kind: input, shape index: {}]
  %s4 = inlined_call_operand.vmem [shape: f32[2,32,96], index: 4, kind: input, shape index: {}]
  %s5 = inlined_call_operand.vmem [shape: f32[2,1,96], index: 5, kind: input, shape index: {}]
  %s6 = inlined_call_operand.vmem [shape: f32[2,32,32], index: 6, kind: input, shape index: {}]
  %s7 = inlined_call_operand.vmem [shape: f32[2,1,32], index: 7, kind: input, shape index: {}]
  %s8 = inlined_call_operand.vmem [shape: f32[2,1,32], index: 8, kind: input, shape index: {}]
  %s9 = inlined_call_operand.vmem [shape: f32[2,1,32], index: 9, kind: input, shape index: {}]
  %s10 = inlined_call_operand.vmem [shape: f32[2,32,64], index: 10, kind: input, shape index: {}]
  %s11 = inlined_call_operand.vmem [shape: f32[2,1,64], index: 11, kind: input, shape index: {}]
  %s12 = inlined_call_operand.vmem [shape: f32[2,64,32], index: 12, kind: input, shape index: {}]
  %s13 = inlined_call_operand.vmem [shape: f32[2,1,32], index: 13, kind: input, shape index: {}]
  %s14 = inlined_call_operand.vmem [shape: f32[2,1,32], index: 14, kind: input, shape index: {}]
  %s15 = inlined_call_operand.vmem [shape: f32[2,1,32], index: 15, kind: input, shape index: {}]
  %s16 = inlined_call_operand.hbm [shape: f32[1,1], index: 16, kind: output, shape index: {}]
  %s17 = sld [smem:[#allocation0]]
  $region74: #{triplet_model_forward.1} parent=0
    _
  %s19 = ssub.s32 1, %s17
  %s20 = scalar_select 0, %s19, %s17
  $region1: #{triplet_model_forward.1} parent=0
    #allocation2 [shape = 'u8[512]{0}', space=vmem, size = 0x400, scoped, tag = 'output window, operand 0, single buffered']
    #allocation3 [shape = 's32[1]{0}', space=sflag, size = 0x4, scoped, tag = 'scoped memory for triplet_model_forward.1']
    %21 = vsyncpa [#allocation3], 0
    // Predicated region
    $region2: #{triplet_model_forward.1} parent=1 // pred_check
      _
    $region3: #{triplet_model_forward.1} parent=1 // pred_check_branch
      %23 = sbr.rel (0) target = $region5
    $region4: #{triplet_model_forward.1} parent=1 // pred_region
      _
    $region5: #{triplet_model_forward.1} parent=1 // pred_fallthru
      _
    // Predicated region
    $region6: #{triplet_model_forward.1} parent=1 // pred_check
      _
    $region7: #{triplet_model_forward.1} parent=1 // pred_check_branch
      %25 = sbr.rel (0) target = $region9
    $region8: #{triplet_model_forward.1} parent=1 // pred_region
      _
    $region9: #{triplet_model_forward.1} parent=1 // pred_fallthru
      _
    // Predicated region
    $region10: #{triplet_model_forward.1} parent=1 // pred_check
      _
    $region11: #{triplet_model_forward.1} parent=1 // pred_check_branch
      %27 = sbr.rel (0) target = $region13
    $region12: #{triplet_model_forward.1} parent=1 // pred_region
      _
    $region13: #{triplet_model_forward.1} parent=1 // pred_fallthru
      _
    // Predicated region
    $region14: #{triplet_model_forward.1} parent=1 // pred_check
      _
    $region15: #{triplet_model_forward.1} parent=1 // pred_check_branch
      %29 = sbr.rel (0) target = $region17
    $region16: #{triplet_model_forward.1} parent=1 // pred_region
      _
    $region17: #{triplet_model_forward.1} parent=1 // pred_fallthru
      _
    // Predicated region
    $region18: #{triplet_model_forward.1} parent=1 // pred_check
      _
    $region19: #{triplet_model_forward.1} parent=1 // pred_check_branch
      %31 = sbr.rel (0) target = $region21
    $region20: #{triplet_model_forward.1} parent=1 // pred_region
      _
    $region21: #{triplet_model_forward.1} parent=1 // pred_fallthru
      _
    // Predicated region
    $region22: #{triplet_model_forward.1} parent=1 // pred_check
      _
    $region23: #{triplet_model_forward.1} parent=1 // pred_check_branch
      %33 = sbr.rel (0) target = $region25
    $region24: #{triplet_model_forward.1} parent=1 // pred_region
      _
    $region25: #{triplet_model_forward.1} parent=1 // pred_fallthru
      _
    // Predicated region
    $region26: #{triplet_model_forward.1} parent=1 // pred_check
      _
    $region27: #{triplet_model_forward.1} parent=1 // pred_check_branch
      %35 = sbr.rel (0) target = $region29
    $region28: #{triplet_model_forward.1} parent=1 // pred_region
      _
    $region29: #{triplet_model_forward.1} parent=1 // pred_fallthru
      _
    // Predicated region
    $region30: #{triplet_model_forward.1} parent=1 // pred_check
      _
    $region31: #{triplet_model_forward.1} parent=1 // pred_check_branch
      %37 = sbr.rel (0) target = $region33
    $region32: #{triplet_model_forward.1} parent=1 // pred_region
      _
    $region33: #{triplet_model_forward.1} parent=1 // pred_fallthru
      _
    // Predicated region
    $region34: #{triplet_model_forward.1} parent=1 // pred_check
      _
    $region35: #{triplet_model_forward.1} parent=1 // pred_check_branch
      %39 = sbr.rel (0) target = $region37
    $region36: #{triplet_model_forward.1} parent=1 // pred_region
      _
    $region37: #{triplet_model_forward.1} parent=1 // pred_fallthru
      _
    // Predicated region
    $region38: #{triplet_model_forward.1} parent=1 // pred_check
      _
    $region39: #{triplet_model_forward.1} parent=1 // pred_check_branch
      %41 = sbr.rel (0) target = $region41
    $region40: #{triplet_model_forward.1} parent=1 // pred_region
      _
    $region41: #{triplet_model_forward.1} parent=1 // pred_fallthru
      _
    // Predicated region
    $region42: #{triplet_model_forward.1} parent=1 // pred_check
      _
    $region43: #{triplet_model_forward.1} parent=1 // pred_check_branch
      %43 = sbr.rel (0) target = $region45
    $region44: #{triplet_model_forward.1} parent=1 // pred_region
      _
    $region45: #{triplet_model_forward.1} parent=1 // pred_fallthru
      _
    // Predicated region
    $region46: #{triplet_model_forward.1} parent=1 // pred_check
      _
    $region47: #{triplet_model_forward.1} parent=1 // pred_check_branch
      %45 = sbr.rel (0) target = $region49
    $region48: #{triplet_model_forward.1} parent=1 // pred_region
      _
    $region49: #{triplet_model_forward.1} parent=1 // pred_fallthru
      _
    // Predicated region
    $region50: #{triplet_model_forward.1} parent=1 // pred_check
      _
    $region51: #{triplet_model_forward.1} parent=1 // pred_check_branch
      %47 = sbr.rel (0) target = $region53
    $region52: #{triplet_model_forward.1} parent=1 // pred_region
      _
    $region53: #{triplet_model_forward.1} parent=1 // pred_fallthru
      _
    // Predicated region
    $region54: #{triplet_model_forward.1} parent=1 // pred_check
      _
    $region55: #{triplet_model_forward.1} parent=1 // pred_check_branch
      %49 = sbr.rel (0) target = $region57
    $region56: #{triplet_model_forward.1} parent=1 // pred_region
      _
    $region57: #{triplet_model_forward.1} parent=1 // pred_fallthru
      _
    // Predicated region
    $region58: #{triplet_model_forward.1} parent=1 // pred_check
      _
    $region59: #{triplet_model_forward.1} parent=1 // pred_check_branch
      %51 = sbr.rel (0) target = $region61
    $region60: #{triplet_model_forward.1} parent=1 // pred_region
      _
    $region61: #{triplet_model_forward.1} parent=1 // pred_fallthru
      _
    // Predicated region
    $region62: #{triplet_model_forward.1} parent=1 // pred_check
      _
    $region63: #{triplet_model_forward.1} parent=1 // pred_check_branch
      %53 = sbr.rel (0) target = $region65
    $region64: #{triplet_model_forward.1} parent=1 // pred_region
      _
    $region65: #{triplet_model_forward.1} parent=1 // pred_fallthru
      _
    %v54 = vld [vmem:[%s0] sm:$0xff]
    %v55 = vld [vmem:[%s0 + $0x8] sm:$0xff]
    %v56 = vld [vmem:[%s0 + $0x10] sm:$0xff]
    %v57 = vld [vmem:[%s0 + $0x18] sm:$0xff]
    %v58 = vld [vmem:[%s0 + $0x20] sm:$0xff]
    %v59 = vld [vmem:[%s0 + $0x28] sm:$0xff]
    %v60 = vld [vmem:[%s2] sm:$0x1]
    %v61 = vld [vmem:[%s3] sm:$0x1]
    %vm62 = vcmask 261120
    %v63 = vsel %vm62, %v54, 0.0
    %64 = vadd.xlane.f32.xlu0 %v63
    %v65 = vpop.xlane.xlu0 %64
    %v66 = vsel %vm62, %v55, 0.0
    %67 = vadd.xlane.f32.xlu0 %v66
    %v68 = vpop.xlane.xlu0 %67
    %v69 = vsel %vm62, %v56, 0.0
    %70 = vadd.xlane.f32.xlu0 %v69
    %v71 = vpop.xlane.xlu0 %70
    %v72 = vsel %vm62, %v57, 0.0
    %73 = vadd.xlane.f32.xlu0 %v72
    %v74 = vpop.xlane.xlu0 %73
    %v75 = vsel %vm62, %v58, 0.0
    %76 = vadd.xlane.f32.xlu0 %v75
    %v77 = vpop.xlane.xlu0 %76
    %v78 = vsel %vm62, %v59, 0.0
    %79 = vadd.xlane.f32.xlu0 %v78
    %v80 = vpop.xlane.xlu0 %79
    %v81 = vrcp.pop 32.0
    %v82 = vmul.f32 %v65, %v81
    %v83 = vmul.f32 %v68, %v81
    %v84 = vmul.f32 %v71, %v81
    %v85 = vmul.f32 %v74, %v81
    %v86 = vmul.f32 %v77, %v81
    %v87 = vmul.f32 %v80, %v81
    %v88 = vmul.f32 %v54, %v54
    %v89 = vmul.f32 %v55, %v55
    %v90 = vmul.f32 %v56, %v56
    %v91 = vmul.f32 %v57, %v57
    %v92 = vmul.f32 %v58, %v58
    %v93 = vmul.f32 %v59, %v59
    %v94 = vsel %vm62, %v88, 0.0
    %95 = vadd.xlane.f32.xlu0 %v94
    %v96 = vpop.xlane.xlu0 %95
    %v97 = vsel %vm62, %v89, 0.0
    %98 = vadd.xlane.f32.xlu0 %v97
    %v99 = vpop.xlane.xlu0 %98
    %v100 = vsel %vm62, %v90, 0.0
    %101 = vadd.xlane.f32.xlu0 %v100
    %v102 = vpop.xlane.xlu0 %101
    %v103 = vsel %vm62, %v91, 0.0
    %104 = vadd.xlane.f32.xlu0 %v103
    %v105 = vpop.xlane.xlu0 %104
    %v106 = vsel %vm62, %v92, 0.0
    %107 = vadd.xlane.f32.xlu0 %v106
    %v108 = vpop.xlane.xlu0 %107
    %v109 = vsel %vm62, %v93, 0.0
    %110 = vadd.xlane.f32.xlu0 %v109
    %v111 = vpop.xlane.xlu0 %110
    %v112 = vmul.f32 %v96, %v81
    %v113 = vmul.f32 %v99, %v81
    %v114 = vmul.f32 %v102, %v81
    %v115 = vmul.f32 %v105, %v81
    %v116 = vmul.f32 %v108, %v81
    %v117 = vmul.f32 %v111, %v81
    %v118 = vmul.f32 %v82, %v82
    %v119 = vmul.f32 %v83, %v83
    %v120 = vmul.f32 %v84, %v84
    %v121 = vmul.f32 %v85, %v85
    %v122 = vmul.f32 %v86, %v86
    %v123 = vmul.f32 %v87, %v87
    %v124 = vsub.f32 %v112, %v118
    %v125 = vsub.f32 %v113, %v119
    %v126 = vsub.f32 %v114, %v120
    %v127 = vsub.f32 %v115, %v121
    %v128 = vsub.f32 %v116, %v122
    %v129 = vsub.f32 %v117, %v123
    %v130 = vmax.f32 %v124, 0.0
    %v131 = vmax.f32 %v125, 0.0
    %v132 = vmax.f32 %v126, 0.0
    %v133 = vmax.f32 %v127, 0.0
    %v134 = vmax.f32 %v128, 0.0
    %v135 = vmax.f32 %v129, 0.0
    %v136 = vsub.f32 %v54, %v82
    %v137 = vsub.f32 %v55, %v83
    %v138 = vsub.f32 %v56, %v84
    %v139 = vsub.f32 %v57, %v85
    %v140 = vsub.f32 %v58, %v86
    %v141 = vsub.f32 %v59, %v87
    %v142 = vadd.f32 %v130, 1e-12
    %v143 = vadd.f32 %v131, 1e-12
    %v144 = vadd.f32 %v132, 1e-12
    %v145 = vadd.f32 %v133, 1e-12
    %v146 = vadd.f32 %v134, 1e-12
    %v147 = vadd.f32 %v135, 1e-12
    %v148 = vrsqrt.pop %v142
    %v149 = vrsqrt.pop %v143
    %v150 = vrsqrt.pop %v144
    %v151 = vrsqrt.pop %v145
    %v152 = vrsqrt.pop %v146
    %v153 = vrsqrt.pop %v147
    %v154 = vmul.f32 %v136, %v148
    %v155 = vmul.f32 %v137, %v149
    %v156 = vmul.f32 %v138, %v150
    %v157 = vmul.f32 %v139, %v151
    %v158 = vmul.f32 %v140, %v152
    %v159 = vmul.f32 %v141, %v153
    %v161 = vlaneseq
    %v162 = vshrl.u32 %v161, 7
    %v163 = vsub.s32 0, %v162
    %v164 = vrot.slane %v60, %v163
    %v166 = vmul.f32 %v154, %v164
    %v167 = vmul.f32 %v155, %v164
    %v168 = vmul.f32 %v156, %v164
    %v169 = vmul.f32 %v157, %v164
    %v170 = vmul.f32 %v158, %v164
    %v171 = vmul.f32 %v159, %v164
    %v173 = vlaneseq
    %v174 = vshrl.u32 %v173, 7
    %v175 = vsub.s32 0, %v174
    %v176 = vrot.slane %v61, %v175
    %v178 = vadd.f32 %v166, %v176
    %v179 = vadd.f32 %v167, %v176
    %v180 = vadd.f32 %v168, %v176
    %v181 = vadd.f32 %v169, %v176
    %v182 = vadd.f32 %v170, %v176
    %v183 = vadd.f32 %v171, %v176
    %v184 = vld [vmem:[%s1] sm:$0x3f]
    %v185 = vsub.f32 1.0, %v184
    %v186 = vmul.f32 %v185, -10000.0
    %v188 = vcombine.high %v186, %v186
    %v190 = vunpack.c.l.s4 1966171168
    %v191 = vunpack.c.0.s8 %v190
    %v192 = vlaneseq
    %v193 = vshrl.u32 %v192, 7
    %v194 = vsub.s32 %v191, %v193
    %v195 = vrot.slane %v186, %v194
    %v197 = vunpack.c.l.s4 1966171168
    %v198 = vunpack.c.0.s8 %v197
    %v199 = vlaneseq
    %v200 = vshrl.u32 %v199, 7
    %v201 = vsub.s32 %v198, %v200
    %v202 = vrot.slane %v188, %v201
    %v203 = vcombine.high %v195, %v195
    %v204 = vcombine.high %v202, %v202
    %v206 = vunpack.c.l.s4 1966171168
    %v207 = vunpack.c.0.s8 %v206
    %v208 = vlaneseq
    %v209 = vshrl.u32 %v208, 7
    %v210 = vsub.s32 %v207, %v209
    %v211 = vrot.slane %v195, %v210
    %v213 = vunpack.c.l.s4 1966171168
    %v214 = vunpack.c.0.s8 %v213
    %v215 = vlaneseq
    %v216 = vshrl.u32 %v215, 7
    %v217 = vsub.s32 %v214, %v216
    %v218 = vrot.slane %v202, %v217
    %v220 = vunpack.c.l.s4 1966171168
    %v221 = vunpack.c.0.s8 %v220
    %v222 = vlaneseq
    %v223 = vshrl.u32 %v222, 7
    %v224 = vsub.s32 %v221, %v223
    %v225 = vrot.slane %v203, %v224
    %v227 = vunpack.c.l.s4 1966171168
    %v228 = vunpack.c.0.s8 %v227
    %v229 = vlaneseq
    %v230 = vshrl.u32 %v229, 7
    %v231 = vsub.s32 %v228, %v230
    %v232 = vrot.slane %v204, %v231
    %v233 = vcombine.high %v211, %v211
    %v234 = vcombine.high %v225, %v225
    %v235 = vlaneseq
    %v236 = vshrl.u32 %v235, 7
    %v237 = vsub.s32 0, %v236
    %v238 = vrot.slane %v211, %v237
    %v239 = vlaneseq
    %v240 = vshrl.u32 %v239, 7
    %v241 = vsub.s32 0, %v240
    %v242 = vrot.slane %v225, %v241
    %v243 = vlaneseq
    %v244 = vshrl.u32 %v243, 7
    %v245 = vsub.s32 0, %v244
    %v246 = vrot.slane %v233, %v245
    %v247 = vlaneseq
    %v248 = vshrl.u32 %v247, 7
    %v249 = vsub.s32 0, %v248
    %v250 = vrot.slane %v234, %v249
    %v251 = vlaneseq
    %v252 = vshrl.u32 %v251, 7
    %v253 = vsub.s32 0, %v252
    %v254 = vrot.slane %v218, %v253
    %v255 = vlaneseq
    %v256 = vshrl.u32 %v255, 7
    %v257 = vsub.s32 0, %v256
    %v258 = vrot.slane %v232, %v257
    %v265 = vlaneseq
    %v266 = vand.u32 %v265, 127
    %vm267 = vcmp.ge.s32.totalorder %v266, 0
    %vm268 = vcmp.lt.s32.totalorder %v266, 16
    %vm269 = vmand %vm267, %vm268
    %v270 = vsel %vm269, 1, 0
    %v271 = vcvt.s32.f32 %v270
    %vm272 = vcmp.ge.s32.totalorder %v266, 16
    %vm273 = vcmp.lt.s32.totalorder %v266, 32
    %vm274 = vmand %vm272, %vm273
    %v275 = vsel %vm274, 1, 0
    %v276 = vcvt.s32.f32 %v275
    %v277 = vld [vmem:[%s4] sm:$0xff]
    %v278 = vld [vmem:[%s4 + $0x8] sm:$0xff]
    %v279 = vld [vmem:[%s4 + $0x10] sm:$0xff]
    %v280 = vld [vmem:[%s4 + $0x18] sm:$0xff]
    %v281 = vld [vmem:[%s5] sm:$0x1]
    %v283 = vlaneseq
    %v284 = vshrl.u32 %v283, 7
    %v285 = vsub.s32 0, %v284
    %v286 = vrot.slane %v281, %v285
    %v289 = vsel %vm62, %v178, 0
    %v292 = vsel %vm62, %v179, 0
    %v295 = vsel %vm62, %v180, 0
    %v298 = vsel %vm62, %v181, 0
    %v301 = vsel %vm62, %v182, 0
    %v304 = vsel %vm62, %v183, 0
    %306 = vmatprep.subr.mxu0 0.0
    %307 = vmatpush1.msra.mxu0 %v277
    %308 = vmatprep.subr.mxu0 0.0
    %309 = vmatpush1.msra.mxu0 %v278
    %310 = vmatprep.subr.mxu0 0.0
    %311 = vmatpush1.msra.mxu0 %v279
    %312 = vmatprep.subr.mxu0 0.0
    %313 = vmatpush1.msra.mxu0 %v280
    %314 = vmatprep.subr.mxu0 0.0
    %315 = vmatpush1.msra.mxu0 0.0
    %316 = vmatprep.subr.mxu0 0.0
    %317 = vmatpush1.msra.mxu0 0.0
    %318 = vmatprep.subr.mxu0 0.0
    %319 = vmatpush1.msra.mxu0 0.0
    %320 = vmatprep.subr.mxu0 0.0
    %321 = vmatpush1.msra.mxu0 0.0
    %322 = vmatprep.subr.mxu0 0.0
    %323 = vmatpush1.msra.mxu0 0.0
    %324 = vmatprep.subr.mxu0 0.0
    %325 = vmatpush1.msra.mxu0 0.0
    %326 = vmatprep.subr.mxu0 0.0
    %327 = vmatpush1.msra.mxu0 0.0
    %328 = vmatprep.subr.mxu0 0.0
    %329 = vmatpush1.msra.mxu0 0.0
    %330 = vmatprep.subr.mxu0 0.0
    %331 = vmatpush1.msra.mxu0 0.0
    %332 = vmatprep.subr.mxu0 0.0
    %333 = vmatpush1.msra.mxu0 0.0
    %334 = vmatprep.subr.mxu0 0.0
    %335 = vmatpush1.msra.mxu0 0.0
    %336 = vmatprep.subr.mxu0 0.0
    %337 = vmatpush1.msra.mxu0 0.0
    %338 = vmatprep.subr.mxu0 0.0
    %339 = vmatpush1.msra.mxu0 0.0
    %340 = vmatprep.subr.mxu0 0.0
    %341 = vmatpush1.msra.mxu0 0.0
    %342 = vmatprep.subr.mxu0 0.0
    %343 = vmatpush1.msra.mxu0 0.0
    %344 = vmatprep.subr.mxu0 0.0
    %345 = vmatpush1.msra.mxu0 0.0
    %346 = vmatprep.subr.mxu0 0.0
    %347 = vmatpush1.msra.mxu0 0.0
    %348 = vmatprep.subr.mxu0 0.0
    %349 = vmatpush1.msra.mxu0 0.0
    %350 = vmatprep.subr.mxu0 0.0
    %351 = vmatpush1.msra.mxu0 0.0
    %352 = vmatprep.subr.mxu0 0.0
    %353 = vmatpush1.msra.mxu0 0.0
    %354 = vmatprep.subr.mxu0 0.0
    %355 = vmatpush1.msra.mxu0 0.0
    %356 = vmatprep.subr.mxu0 0.0
    %357 = vmatpush1.msra.mxu0 0.0
    %358 = vmatprep.subr.mxu0 0.0
    %359 = vmatpush1.msra.mxu0 0.0
    %360 = vmatprep.subr.mxu0 0.0
    %361 = vmatpush1.msra.mxu0 0.0
    %362 = vmatprep.subr.mxu0 0.0
    %363 = vmatpush1.msra.mxu0 0.0
    %364 = vmatprep.subr.mxu0 0.0
    %365 = vmatpush1.msra.mxu0 0.0
    %366 = vmatprep.subr.mxu0 0.0
    %367 = vmatpush1.msra.mxu0 0.0
    %368 = vmatprep.subr.mxu0 0.0
    %369 = vmatpush1.msra.mxu0 0.0
    %370 = vmatprep.mubr.f32.mxu0 0.0
    %371 = vmatmul.mubr.f32.gmra.mrb[0].mxu0 %v289
    %v372 = vpop.f32.mrb[0].mxu0
    %v373 = vadd.f32 %v286, %v372
    %v374 = vpop.f32.mrb[0].mxu0
    %375 = vmatprep.mubr.f32.mxu0 0.0
    %376 = vmatmul.mubr.f32.gmra.mrb[0].mxu0 %v292
    %v377 = vpop.f32.mrb[0].mxu0
    %v378 = vadd.f32 %v286, %v377
    %v379 = vpop.f32.mrb[0].mxu0
    %380 = vmatprep.mubr.f32.mxu0 0.0
    %381 = vmatmul.mubr.f32.gmra.mrb[0].mxu0 %v295
    %v382 = vpop.f32.mrb[0].mxu0
    %v383 = vadd.f32 %v286, %v382
    %v384 = vpop.f32.mrb[0].mxu0
    %385 = vmatprep.mubr.f32.mxu0 0.0
    %386 = vmatmul.mubr.f32.gmra.mrb[0].mxu0 %v298
    %v387 = vpop.f32.mrb[0].mxu0
    %v388 = vadd.f32 %v286, %v387
    %v389 = vpop.f32.mrb[0].mxu0
    %390 = vmatprep.mubr.f32.mxu0 0.0
    %391 = vmatmul.mubr.f32.gmra.mrb[0].mxu0 %v301
    %v392 = vpop.f32.mrb[0].mxu0
    %v393 = vadd.f32 %v286, %v392
    %v394 = vpop.f32.mrb[0].mxu0
    %395 = vmatprep.mubr.f32.mxu0 0.0
    %396 = vmatmul.mubr.f32.gmra.mrb[0].mxu0 %v304
    %v397 = vpop.f32.mrb[0].mxu0
    %v398 = vadd.f32 %v286, %v397
    %v399 = vpop.f32.mrb[0].mxu0
    %400 = vdwg.mxu0
    %407 = vrot.lane.b32.xlu0 %v373, 112
    %v408 = vpop.permute.xlu0 %407
    %409 = vrot.lane.b32.xlu0 %v378, 112
    %v410 = vpop.permute.xlu0 %409
    %411 = vrot.lane.b32.xlu0 %v383, 112
    %v412 = vpop.permute.xlu0 %411
    %413 = vrot.lane.b32.xlu0 %v388, 112
    %v414 = vpop.permute.xlu0 %413
    %415 = vrot.lane.b32.xlu0 %v393, 112
    %v416 = vpop.permute.xlu0 %415
    %417 = vrot.lane.b32.xlu0 %v398, 112
    %v418 = vpop.permute.xlu0 %417
    %v425 = vmul.f32 %v373, 0.25
    %v426 = vmul.f32 %v378, 0.25
    %v427 = vmul.f32 %v383, 0.25
    %v428 = vmul.f32 %v388, 0.25
    %v429 = vmul.f32 %v393, 0.25
    %v430 = vmul.f32 %v398, 0.25
    %v431 = vmul.f32 %v408, 0.25
    %v432 = vmul.f32 %v410, 0.25
    %v433 = vmul.f32 %v412, 0.25
    %v434 = vmul.f32 %v414, 0.25
    %v435 = vmul.f32 %v416, 0.25
    %v436 = vmul.f32 %v418, 0.25
    %438 = vrot.lane.b32.xlu0 %v271, 64
    %v439 = vpop.permute.xlu0 %438
    %v441 = vmul.f32 %v373, %v439
    %v442 = vmul.f32 %v378, %v439
    %v443 = vmul.f32 %v383, %v439
    %v444 = vmul.f32 %v388, %v439
    %v445 = vmul.f32 %v393, %v439
    %v446 = vmul.f32 %v398, %v439
    %448 = vrot.lane.b32.xlu0 %v276, 64
    %v449 = vpop.permute.xlu0 %448
    %v451 = vmul.f32 %v373, %v449
    %v452 = vmul.f32 %v378, %v449
    %v453 = vmul.f32 %v383, %v449
    %v454 = vmul.f32 %v388, %v449
    %v455 = vmul.f32 %v393, %v449
    %v456 = vmul.f32 %v398, %v449
    %457 = vrot.lane.b32.xlu0 %v373, 96
    %v458 = vpop.permute.xlu0 %457
    %vm459 = vcmask 130048
    %v461 = vsel %vm459, %v425, 0
    %v463 = vsel %vm459, %v458, 0
    %465 = vmatprep.subr.mxu0 0.0
    %466 = vmatpush1.xpose.msra.mxu0 %v463
    %467 = vmatprep.subr.mxu0 0.0
    %468 = vmatpush1.xpose.msra.mxu0 0.0
    %469 = vmatprep.subr.mxu0 0.0
    %470 = vmatpush1.xpose.msra.mxu0 0.0
    %471 = vmatprep.subr.mxu0 0.0
    %472 = vmatpush1.xpose.msra.mxu0 0.0
    %473 = vmatprep.subr.mxu0 0.0
    %474 = vmatpush1.xpose.msra.mxu0 0.0
    %475 = vmatprep.subr.mxu0 0.0
    %476 = vmatpush1.xpose.msra.mxu0 0.0
    %477 = vmatprep.subr.mxu0 0.0
    %478 = vmatpush1.xpose.msra.mxu0 0.0
    %479 = vmatprep.subr.mxu0 0.0
    %480 = vmatpush1.xpose.msra.mxu0 0.0
    %481 = vmatprep.subr.mxu0 0.0
    %482 = vmatpush1.xpose.msra.mxu0 0.0
    %483 = vmatprep.subr.mxu0 0.0
    %484 = vmatpush1.xpose.msra.mxu0 0.0
    %485 = vmatprep.subr.mxu0 0.0
    %486 = vmatpush1.xpose.msra.mxu0 0.0
    %487 = vmatprep.subr.mxu0 0.0
    %488 = vmatpush1.xpose.msra.mxu0 0.0
    %489 = vmatprep.subr.mxu0 0.0
    %490 = vmatpush1.xpose.msra.mxu0 0.0
    %491 = vmatprep.subr.mxu0 0.0
    %492 = vmatpush1.xpose.msra.mxu0 0.0
    %493 = vmatprep.subr.mxu0 0.0
    %494 = vmatpush1.xpose.msra.mxu0 0.0
    %495 = vmatprep.subr.mxu0 0.0
    %496 = vmatpush1.xpose.msra.mxu0 0.0
    %497 = vmatprep.subr.mxu0 0.0
    %498 = vmatpush1.xpose.msra.mxu0 0.0
    %499 = vmatprep.subr.mxu0 0.0
    %500 = vmatpush1.xpose.msra.mxu0 0.0
    %501 = vmatprep.subr.mxu0 0.0
    %502 = vmatpush1.xpose.msra.mxu0 0.0
    %503 = vmatprep.subr.mxu0 0.0
    %504 = vmatpush1.xpose.msra.mxu0 0.0
    %505 = vmatprep.subr.mxu0 0.0
    %506 = vmatpush1.xpose.msra.mxu0 0.0
    %507 = vmatprep.subr.mxu0 0.0
    %508 = vmatpush1.xpose.msra.mxu0 0.0
    %509 = vmatprep.subr.mxu0 0.0
    %510 = vmatpush1.xpose.msra.mxu0 0.0
    %511 = vmatprep.subr.mxu0 0.0
    %512 = vmatpush1.xpose.msra.mxu0 0.0
    %513 = vmatprep.subr.mxu0 0.0
    %514 = vmatpush1.xpose.msra.mxu0 0.0
    %515 = vmatprep.subr.mxu0 0.0
    %516 = vmatpush1.xpose.msra.mxu0 0.0
    %517 = vmatprep.subr.mxu0 0.0
    %518 = vmatpush1.xpose.msra.mxu0 0.0
    %519 = vmatprep.subr.mxu0 0.0
    %520 = vmatpush1.xpose.msra.mxu0 0.0
    %521 = vmatprep.subr.mxu0 0.0
    %522 = vmatpush1.xpose.msra.mxu0 0.0
    %523 = vmatprep.subr.mxu0 0.0
    %524 = vmatpush1.xpose.msra.mxu0 0.0
    %525 = vmatprep.subr.mxu0 0.0
    %526 = vmatpush1.xpose.msra.mxu0 0.0
    %527 = vmatprep.subr.mxu0 0.0
    %528 = vmatpush1.xpose.msra.mxu0 0.0
    %529 = vmatprep.mubr.f32.mxu0 0.0
    %530 = vmatmul.mubr.f32.gmra.mrb[0].mxu0 %v461
    %v531 = vpop.f32.mrb[0].mxu0
    %v532 = vadd.f32 %v238, %v531
    %v533 = vpop.f32.mrb[0].mxu0
    %534 = vdwg.mxu0
    %535 = vrot.lane.b32.xlu0 %v378, 96
    %v536 = vpop.permute.xlu0 %535
    %v538 = vsel %vm459, %v426, 0
    %v540 = vsel %vm459, %v536, 0
    %542 = vmatprep.subr.mxu0 0.0
    %543 = vmatpush1.xpose.msra.mxu0 %v540
    %544 = vmatprep.subr.mxu0 0.0
    %545 = vmatpush1.xpose.msra.mxu0 0.0
    %546 = vmatprep.subr.mxu0 0.0
    %547 = vmatpush1.xpose.msra.mxu0 0.0
    %548 = vmatprep.subr.mxu0 0.0
    %549 = vmatpush1.xpose.msra.mxu0 0.0
    %550 = vmatprep.subr.mxu0 0.0
    %551 = vmatpush1.xpose.msra.mxu0 0.0
    %552 = vmatprep.subr.mxu0 0.0
    %553 = vmatpush1.xpose.msra.mxu0 0.0
    %554 = vmatprep.subr.mxu0 0.0
    %555 = vmatpush1.xpose.msra.mxu0 0.0
    %556 = vmatprep.subr.mxu0 0.0
    %557 = vmatpush1.xpose.msra.mxu0 0.0
    %558 = vmatprep.subr.mxu0 0.0
    %559 = vmatpush1.xpose.msra.mxu0 0.0
    %560 = vmatprep.subr.mxu0 0.0
    %561 = vmatpush1.xpose.msra.mxu0 0.0
    %562 = vmatprep.subr.mxu0 0.0
    %563 = vmatpush1.xpose.msra.mxu0 0.0
    %564 = vmatprep.subr.mxu0 0.0
    %565 = vmatpush1.xpose.msra.mxu0 0.0
    %566 = vmatprep.subr.mxu0 0.0
    %567 = vmatpush1.xpose.msra.mxu0 0.0
    %568 = vmatprep.subr.mxu0 0.0
    %569 = vmatpush1.xpose.msra.mxu0 0.0
    %570 = vmatprep.subr.mxu0 0.0
    %571 = vmatpush1.xpose.msra.mxu0 0.0
    %572 = vmatprep.subr.mxu0 0.0
    %573 = vmatpush1.xpose.msra.mxu0 0.0
    %574 = vmatprep.subr.mxu0 0.0
    %575 = vmatpush1.xpose.msra.mxu0 0.0
    %576 = vmatprep.subr.mxu0 0.0
    %577 = vmatpush1.xpose.msra.mxu0 0.0
    %578 = vmatprep.subr.mxu0 0.0
    %579 = vmatpush1.xpose.msra.mxu0 0.0
    %580 = vmatprep.subr.mxu0 0.0
    %581 = vmatpush1.xpose.msra.mxu0 0.0
    %582 = vmatprep.subr.mxu0 0.0
    %583 = vmatpush1.xpose.msra.mxu0 0.0
    %584 = vmatprep.subr.mxu0 0.0
    %585 = vmatpush1.xpose.msra.mxu0 0.0
    %586 = vmatprep.subr.mxu0 0.0
    %587 = vmatpush1.xpose.msra.mxu0 0.0
    %588 = vmatprep.subr.mxu0 0.0
    %589 = vmatpush1.xpose.msra.mxu0 0.0
    %590 = vmatprep.subr.mxu0 0.0
    %591 = vmatpush1.xpose.msra.mxu0 0.0
    %592 = vmatprep.subr.mxu0 0.0
    %593 = vmatpush1.xpose.msra.mxu0 0.0
    %594 = vmatprep.subr.mxu0 0.0
    %595 = vmatpush1.xpose.msra.mxu0 0.0
    %596 = vmatprep.subr.mxu0 0.0
    %597 = vmatpush1.xpose.msra.mxu0 0.0
    %598 = vmatprep.subr.mxu0 0.0
    %599 = vmatpush1.xpose.msra.mxu0 0.0
    %600 = vmatprep.subr.mxu0 0.0
    %601 = vmatpush1.xpose.msra.mxu0 0.0
    %602 = vmatprep.subr.mxu0 0.0
    %603 = vmatpush1.xpose.msra.mxu0 0.0
    %604 = vmatprep.subr.mxu0 0.0
    %605 = vmatpush1.xpose.msra.mxu0 0.0
    %606 = vmatprep.mubr.f32.mxu0 0.0
    %607 = vmatmul.mubr.f32.gmra.mrb[0].mxu0 %v538
    %v608 = vpop.f32.mrb[0].mxu0
    %v609 = vadd.f32 %v242, %v608
    %v610 = vpop.f32.mrb[0].mxu0
    %611 = vdwg.mxu0
    %612 = vrot.lane.b32.xlu0 %v383, 96
    %v613 = vpop.permute.xlu0 %612
    %v615 = vsel %vm459, %v427, 0
    %v617 = vsel %vm459, %v613, 0
    %619 = vmatprep.subr.mxu0 0.0
    %620 = vmatpush1.xpose.msra.mxu0 %v617
    %621 = vmatprep.subr.mxu0 0.0
    %622 = vmatpush1.xpose.msra.mxu0 0.0
    %623 = vmatprep.subr.mxu0 0.0
    %624 = vmatpush1.xpose.msra.mxu0 0.0
    %625 = vmatprep.subr.mxu0 0.0
    %626 = vmatpush1.xpose.msra.mxu0 0.0
    %627 = vmatprep.subr.mxu0 0.0
    %628 = vmatpush1.xpose.msra.mxu0 0.0
    %629 = vmatprep.subr.mxu0 0.0
    %630 = vmatpush1.xpose.msra.mxu0 0.0
    %631 = vmatprep.subr.mxu0 0.0
    %632 = vmatpush1.xpose.msra.mxu0 0.0
    %633 = vmatprep.subr.mxu0 0.0
    %634 = vmatpush1.xpose.msra.mxu0 0.0
    %635 = vmatprep.subr.mxu0 0.0
    %636 = vmatpush1.xpose.msra.mxu0 0.0
    %637 = vmatprep.subr.mxu0 0.0
    %638 = vmatpush1.xpose.msra.mxu0 0.0
    %639 = vmatprep.subr.mxu0 0.0
    %640 = vmatpush1.xpose.msra.mxu0 0.0
    %641 = vmatprep.subr.mxu0 0.0
    %642 = vmatpush1.xpose.msra.mxu0 0.0
    %643 = vmatprep.subr.mxu0 0.0
    %644 = vmatpush1.xpose.msra.mxu0 0.0
    %645 = vmatprep.subr.mxu0 0.0
    %646 = vmatpush1.xpose.msra.mxu0 0.0
    %647 = vmatprep.subr.mxu0 0.0
    %648 = vmatpush1.xpose.msra.mxu0 0.0
    %649 = vmatprep.subr.mxu0 0.0
    %650 = vmatpush1.xpose.msra.mxu0 0.0
    %651 = vmatprep.subr.mxu0 0.0
    %652 = vmatpush1.xpose.msra.mxu0 0.0
    %653 = vmatprep.subr.mxu0 0.0
    %654 = vmatpush1.xpose.msra.mxu0 0.0
    %655 = vmatprep.subr.mxu0 0.0
    %656 = vmatpush1.xpose.msra.mxu0 0.0
    %657 = vmatprep.subr.mxu0 0.0
    %658 = vmatpush1.xpose.msra.mxu0 0.0
    %659 = vmatprep.subr.mxu0 0.0
    %660 = vmatpush1.xpose.msra.mxu0 0.0
    %661 = vmatprep.subr.mxu0 0.0
    %662 = vmatpush1.xpose.msra.mxu0 0.0
    %663 = vmatprep.subr.mxu0 0.0
    %664 = vmatpush1.xpose.msra.mxu0 0.0
    %665 = vmatprep.subr.mxu0 0.0
    %666 = vmatpush1.xpose.msra.mxu0 0.0
    %667 = vmatprep.subr.mxu0 0.0
    %668 = vmatpush1.xpose.msra.mxu0 0.0
    %669 = vmatprep.subr.mxu0 0.0
    %670 = vmatpush1.xpose.msra.mxu0 0.0
    %671 = vmatprep.subr.mxu0 0.0
    %672 = vmatpush1.xpose.msra.mxu0 0.0
    %673 = vmatprep.subr.mxu0 0.0
    %674 = vmatpush1.xpose.msra.mxu0 0.0
    %675 = vmatprep.subr.mxu0 0.0
    %676 = vmatpush1.xpose.msra.mxu0 0.0
    %677 = vmatprep.subr.mxu0 0.0
    %678 = vmatpush1.xpose.msra.mxu0 0.0
    %679 = vmatprep.subr.mxu0 0.0
    %680 = vmatpush1.xpose.msra.mxu0 0.0
    %681 = vmatprep.subr.mxu0 0.0
    %682 = vmatpush1.xpose.msra.mxu0 0.0
    %683 = vmatprep.mubr.f32.mxu0 0.0
    %684 = vmatmul.mubr.f32.gmra.mrb[0].mxu0 %v615
    %v685 = vpop.f32.mrb[0].mxu0
    %v686 = vadd.f32 %v246, %v685
    %v687 = vpop.f32.mrb[0].mxu0
    %688 = vdwg.mxu0
    %689 = vrot.lane.b32.xlu0 %v388, 96
    %v690 = vpop.permute.xlu0 %689
    %v692 = vsel %vm459, %v428, 0
    %v694 = vsel %vm459, %v690, 0
    %696 = vmatprep.subr.mxu0 0.0
    %697 = vmatpush1.xpose.msra.mxu0 %v694
    %698 = vmatprep.subr.mxu0 0.0
    %699 = vmatpush1.xpose.msra.mxu0 0.0
    %700 = vmatprep.subr.mxu0 0.0
    %701 = vmatpush1.xpose.msra.mxu0 0.0
    %702 = vmatprep.subr.mxu0 0.0
    %703 = vmatpush1.xpose.msra.mxu0 0.0
    %704 = vmatprep.subr.mxu0 0.0
    %705 = vmatpush1.xpose.msra.mxu0 0.0
    %706 = vmatprep.subr.mxu0 0.0
    %707 = vmatpush1.xpose.msra.mxu0 0.0
    %708 = vmatprep.subr.mxu0 0.0
    %709 = vmatpush1.xpose.msra.mxu0 0.0
    %710 = vmatprep.subr.mxu0 0.0
    %711 = vmatpush1.xpose.msra.mxu0 0.0
    %712 = vmatprep.subr.mxu0 0.0
    %713 = vmatpush1.xpose.msra.mxu0 0.0
    %714 = vmatprep.subr.mxu0 0.0
    %715 = vmatpush1.xpose.msra.mxu0 0.0
    %716 = vmatprep.subr.mxu0 0.0
    %717 = vmatpush1.xpose.msra.mxu0 0.0
    %718 = vmatprep.subr.mxu0 0.0
    %719 = vmatpush1.xpose.msra.mxu0 0.0
    %720 = vmatprep.subr.mxu0 0.0
    %721 = vmatpush1.xpose.msra.mxu0 0.0
    %722 = vmatprep.subr.mxu0 0.0
    %723 = vmatpush1.xpose.msra.mxu0 0.0
    %724 = vmatprep.subr.mxu0 0.0
    %725 = vmatpush1.xpose.msra.mxu0 0.0
    %726 = vmatprep.subr.mxu0 0.0
    %727 = vmatpush1.xpose.msra.mxu0 0.0
    %728 = vmatprep.subr.mxu0 0.0
    %729 = vmatpush1.xpose.msra.mxu0 0.0
    %730 = vmatprep.subr.mxu0 0.0
    %731 = vmatpush1.xpose.msra.mxu0 0.0
    %732 = vmatprep.subr.mxu0 0.0
    %733 = vmatpush1.xpose.msra.mxu0 0.0
    %734 = vmatprep.subr.mxu0 0.0
    %735 = vmatpush1.xpose.msra.mxu0 0.0
    %736 = vmatprep.subr.mxu0 0.0
    %737 = vmatpush1.xpose.msra.mxu0 0.0
    %738 = vmatprep.subr.mxu0 0.0
    %739 = vmatpush1.xpose.msra.mxu0 0.0
    %740 = vmatprep.subr.mxu0 0.0
    %741 = vmatpush1.xpose.msra.mxu0 0.0
    %742 = vmatprep.subr.mxu0 0.0
    %743 = vmatpush1.xpose.msra.mxu0 0.0
    %744 = vmatprep.subr.mxu0 0.0
    %745 = vmatpush1.xpose.msra.mxu0 0.0
    %746 = vmatprep.subr.mxu0 0.0
    %747 = vmatpush1.xpose.msra.mxu0 0.0
    %748 = vmatprep.subr.mxu0 0.0
    %749 = vmatpush1.xpose.msra.mxu0 0.0
    %750 = vmatprep.subr.mxu0 0.0
    %751 = vmatpush1.xpose.msra.mxu0 0.0
    %752 = vmatprep.subr.mxu0 0.0
    %753 = vmatpush1.xpose.msra.mxu0 0.0
    %754 = vmatprep.subr.mxu0 0.0
    %755 = vmatpush1.xpose.msra.mxu0 0.0
    %756 = vmatprep.subr.mxu0 0.0
    %757 = vmatpush1.xpose.msra.mxu0 0.0
    %758 = vmatprep.subr.mxu0 0.0
    %759 = vmatpush1.xpose.msra.mxu0 0.0
    %760 = vmatprep.mubr.f32.mxu0 0.0
    %761 = vmatmul.mubr.f32.gmra.mrb[0].mxu0 %v692
    %v762 = vpop.f32.mrb[0].mxu0
    %v763 = vadd.f32 %v250, %v762
    %v764 = vpop.f32.mrb[0].mxu0
    %765 = vdwg.mxu0
    %766 = vrot.lane.b32.xlu0 %v393, 96
    %v767 = vpop.permute.xlu0 %766
    %v769 = vsel %vm459, %v429, 0
    %v771 = vsel %vm459, %v767, 0
    %773 = vmatprep.subr.mxu0 0.0
    %774 = vmatpush1.xpose.msra.mxu0 %v771
    %775 = vmatprep.subr.mxu0 0.0
    %776 = vmatpush1.xpose.msra.mxu0 0.0
    %777 = vmatprep.subr.mxu0 0.0
    %778 = vmatpush1.xpose.msra.mxu0 0.0
    %779 = vmatprep.subr.mxu0 0.0
    %780 = vmatpush1.xpose.msra.mxu0 0.0
    %781 = vmatprep.subr.mxu0 0.0
    %782 = vmatpush1.xpose.msra.mxu0 0.0
    %783 = vmatprep.subr.mxu0 0.0
    %784 = vmatpush1.xpose.msra.mxu0 0.0
    %785 = vmatprep.subr.mxu0 0.0
    %786 = vmatpush1.xpose.msra.mxu0 0.0
    %787 = vmatprep.subr.mxu0 0.0
    %788 = vmatpush1.xpose.msra.mxu0 0.0
    %789 = vmatprep.subr.mxu0 0.0
    %790 = vmatpush1.xpose.msra.mxu0 0.0
    %791 = vmatprep.subr.mxu0 0.0
    %792 = vmatpush1.xpose.msra.mxu0 0.0
    %793 = vmatprep.subr.mxu0 0.0
    %794 = vmatpush1.xpose.msra.mxu0 0.0
    %795 = vmatprep.subr.mxu0 0.0
    %796 = vmatpush1.xpose.msra.mxu0 0.0
    %797 = vmatprep.subr.mxu0 0.0
    %798 = vmatpush1.xpose.msra.mxu0 0.0
    %799 = vmatprep.subr.mxu0 0.0
    %800 = vmatpush1.xpose.msra.mxu0 0.0
    %801 = vmatprep.subr.mxu0 0.0
    %802 = vmatpush1.xpose.msra.mxu0 0.0
    %803 = vmatprep.subr.mxu0 0.0
    %804 = vmatpush1.xpose.msra.mxu0 0.0
    %805 = vmatprep.subr.mxu0 0.0
    %806 = vmatpush1.xpose.msra.mxu0 0.0
    %807 = vmatprep.subr.mxu0 0.0
    %808 = vmatpush1.xpose.msra.mxu0 0.0
    %809 = vmatprep.subr.mxu0 0.0
    %810 = vmatpush1.xpose.msra.mxu0 0.0
    %811 = vmatprep.subr.mxu0 0.0
    %812 = vmatpush1.xpose.msra.mxu0 0.0
    %813 = vmatprep.subr.mxu0 0.0
    %814 = vmatpush1.xpose.msra.mxu0 0.0
    %815 = vmatprep.subr.mxu0 0.0
    %816 = vmatpush1.xpose.msra.mxu0 0.0
    %817 = vmatprep.subr.mxu0 0.0
    %818 = vmatpush1.xpose.msra.mxu0 0.0
    %819 = vmatprep.subr.mxu0 0.0
    %820 = vmatpush1.xpose.msra.mxu0 0.0
    %821 = vmatprep.subr.mxu0 0.0
    %822 = vmatpush1.xpose.msra.mxu0 0.0
    %823 = vmatprep.subr.mxu0 0.0
    %824 = vmatpush1.xpose.msra.mxu0 0.0
    %825 = vmatprep.subr.mxu0 0.0
    %826 = vmatpush1.xpose.msra.mxu0 0.0
    %827 = vmatprep.subr.mxu0 0.0
    %828 = vmatpush1.xpose.msra.mxu0 0.0
    %829 = vmatprep.subr.mxu0 0.0
    %830 = vmatpush1.xpose.msra.mxu0 0.0
    %831 = vmatprep.subr.mxu0 0.0
    %832 = vmatpush1.xpose.msra.mxu0 0.0
    %833 = vmatprep.subr.mxu0 0.0
    %834 = vmatpush1.xpose.msra.mxu0 0.0
    %835 = vmatprep.subr.mxu0 0.0
    %836 = vmatpush1.xpose.msra.mxu0 0.0
    %837 = vmatprep.mubr.f32.mxu0 0.0
    %838 = vmatmul.mubr.f32.gmra.mrb[0].mxu0 %v769
    %v839 = vpop.f32.mrb[0].mxu0
    %v840 = vadd.f32 %v254, %v839
    %v841 = vpop.f32.mrb[0].mxu0
    %842 = vdwg.mxu0
    %843 = vrot.lane.b32.xlu0 %v398, 96
    %v844 = vpop.permute.xlu0 %843
    %v846 = vsel %vm459, %v430, 0
    %v848 = vsel %vm459, %v844, 0
    %850 = vmatprep.subr.mxu0 0.0
    %851 = vmatpush1.xpose.msra.mxu0 %v848
    %852 = vmatprep.subr.mxu0 0.0
    %853 = vmatpush1.xpose.msra.mxu0 0.0
    %854 = vmatprep.subr.mxu0 0.0
    %855 = vmatpush1.xpose.msra.mxu0 0.0
    %856 = vmatprep.subr.mxu0 0.0
    %857 = vmatpush1.xpose.msra.mxu0 0.0
    %858 = vmatprep.subr.mxu0 0.0
    %859 = vmatpush1.xpose.msra.mxu0 0.0
    %860 = vmatprep.subr.mxu0 0.0
    %861 = vmatpush1.xpose.msra.mxu0 0.0
    %862 = vmatprep.subr.mxu0 0.0
    %863 = vmatpush1.xpose.msra.mxu0 0.0
    %864 = vmatprep.subr.mxu0 0.0
    %865 = vmatpush1.xpose.msra.mxu0 0.0
    %866 = vmatprep.subr.mxu0 0.0
    %867 = vmatpush1.xpose.msra.mxu0 0.0
    %868 = vmatprep.subr.mxu0 0.0
    %869 = vmatpush1.xpose.msra.mxu0 0.0
    %870 = vmatprep.subr.mxu0 0.0
    %871 = vmatpush1.xpose.msra.mxu0 0.0
    %872 = vmatprep.subr.mxu0 0.0
    %873 = vmatpush1.xpose.msra.mxu0 0.0
    %874 = vmatprep.subr.mxu0 0.0
    %875 = vmatpush1.xpose.msra.mxu0 0.0
    %876 = vmatprep.subr.mxu0 0.0
    %877 = vmatpush1.xpose.msra.mxu0 0.0
    %878 = vmatprep.subr.mxu0 0.0
    %879 = vmatpush1.xpose.msra.mxu0 0.0
    %880 = vmatprep.subr.mxu0 0.0
    %881 = vmatpush1.xpose.msra.mxu0 0.0
    %882 = vmatprep.subr.mxu0 0.0
    %883 = vmatpush1.xpose.msra.mxu0 0.0
    %884 = vmatprep.subr.mxu0 0.0
    %885 = vmatpush1.xpose.msra.mxu0 0.0
    %886 = vmatprep.subr.mxu0 0.0
    %887 = vmatpush1.xpose.msra.mxu0 0.0
    %888 = vmatprep.subr.mxu0 0.0
    %889 = vmatpush1.xpose.msra.mxu0 0.0
    %890 = vmatprep.subr.mxu0 0.0
    %891 = vmatpush1.xpose.msra.mxu0 0.0
    %892 = vmatprep.subr.mxu0 0.0
    %893 = vmatpush1.xpose.msra.mxu0 0.0
    %894 = vmatprep.subr.mxu0 0.0
    %895 = vmatpush1.xpose.msra.mxu0 0.0
    %896 = vmatprep.subr.mxu0 0.0
    %897 = vmatpush1.xpose.msra.mxu0 0.0
    %898 = vmatprep.subr.mxu0 0.0
    %899 = vmatpush1.xpose.msra.mxu0 0.0
    %900 = vmatprep.subr.mxu0 0.0
    %901 = vmatpush1.xpose.msra.mxu0 0.0
    %902 = vmatprep.subr.mxu0 0.0
    %903 = vmatpush1.xpose.msra.mxu0 0.0
    %904 = vmatprep.subr.mxu0 0.0
    %905 = vmatpush1.xpose.msra.mxu0 0.0
    %906 = vmatprep.subr.mxu0 0.0
    %907 = vmatpush1.xpose.msra.mxu0 0.0
    %908 = vmatprep.subr.mxu0 0.0
    %909 = vmatpush1.xpose.msra.mxu0 0.0
    %910 = vmatprep.subr.mxu0 0.0
    %911 = vmatpush1.xpose.msra.mxu0 0.0
    %912 = vmatprep.subr.mxu0 0.0
    %913 = vmatpush1.xpose.msra.mxu0 0.0
    %914 = vmatprep.mubr.f32.mxu0 0.0
    %915 = vmatmul.mubr.f32.gmra.mrb[0].mxu0 %v846
    %v916 = vpop.f32.mrb[0].mxu0
    %v917 = vadd.f32 %v258, %v916
    %v918 = vpop.f32.mrb[0].mxu0
    %919 = vdwg.mxu0
    %920 = vrot.lane.b32.xlu0 %v408, 96
    %v921 = vpop.permute.xlu0 %920
    %v923 = vsel %vm459, %v431, 0
    %v925 = vsel %vm459, %v921, 0
    %927 = vmatprep.subr.mxu0 0.0
    %928 = vmatpush1.xpose.msra.mxu0 %v925
    %929 = vmatprep.subr.mxu0 0.0
    %930 = vmatpush1.xpose.msra.mxu0 0.0
    %931 = vmatprep.subr.mxu0 0.0
    %932 = vmatpush1.xpose.msra.mxu0 0.0
    %933 = vmatprep.subr.mxu0 0.0
    %934 = vmatpush1.xpose.msra.mxu0 0.0
    %935 = vmatprep.subr.mxu0 0.0
    %936 = vmatpush1.xpose.msra.mxu0 0.0
    %937 = vmatprep.subr.mxu0 0.0
    %938 = vmatpush1.xpose.msra.mxu0 0.0
    %939 = vmatprep.subr.mxu0 0.0
    %940 = vmatpush1.xpose.msra.mxu0 0.0
    %941 = vmatprep.subr.mxu0 0.0
    %942 = vmatpush1.xpose.msra.mxu0 0.0
    %943 = vmatprep.subr.mxu0 0.0
    %944 = vmatpush1.xpose.msra.mxu0 0.0
    %945 = vmatprep.subr.mxu0 0.0
    %946 = vmatpush1.xpose.msra.mxu0 0.0
    %947 = vmatprep.subr.mxu0 0.0
    %948 = vmatpush1.xpose.msra.mxu0 0.0
    %949 = vmatprep.subr.mxu0 0.0
    %950 = vmatpush1.xpose.msra.mxu0 0.0
    %951 = vmatprep.subr.mxu0 0.0
    %952 = vmatpush1.xpose.msra.mxu0 0.0
    %953 = vmatprep.subr.mxu0 0.0
    %954 = vmatpush1.xpose.msra.mxu0 0.0
    %955 = vmatprep.subr.mxu0 0.0
    %956 = vmatpush1.xpose.msra.mxu0 0.0
    %957 = vmatprep.subr.mxu0 0.0
    %958 = vmatpush1.xpose.msra.mxu0 0.0
    %959 = vmatprep.subr.mxu0 0.0
    %960 = vmatpush1.xpose.msra.mxu0 0.0
    %961 = vmatprep.subr.mxu0 0.0
    %962 = vmatpush1.xpose.msra.mxu0 0.0
    %963 = vmatprep.subr.mxu0 0.0
    %964 = vmatpush1.xpose.msra.mxu0 0.0
    %965 = vmatprep.subr.mxu0 0.0
    %966 = vmatpush1.xpose.msra.mxu0 0.0
    %967 = vmatprep.subr.mxu0 0.0
    %968 = vmatpush1.xpose.msra.mxu0 0.0
    %969 = vmatprep.subr.mxu0 0.0
    %970 = vmatpush1.xpose.msra.mxu0 0.0
    %971 = vmatprep.subr.mxu0 0.0
    %972 = vmatpush1.xpose.msra.mxu0 0.0
    %973 = vmatprep.subr.mxu0 0.0
    %974 = vmatpush1.xpose.msra.mxu0 0.0
    %975 = vmatprep.subr.mxu0 0.0
    %976 = vmatpush1.xpose.msra.mxu0 0.0
    %977 = vmatprep.subr.mxu0 0.0
    %978 = vmatpush1.xpose.msra.mxu0 0.0
    %979 = vmatprep.subr.mxu0 0.0
    %980 = vmatpush1.xpose.msra.mxu0 0.0
    %981 = vmatprep.subr.mxu0 0.0
    %982 = vmatpush1.xpose.msra.mxu0 0.0
    %983 = vmatprep.subr.mxu0 0.0
    %984 = vmatpush1.xpose.msra.mxu0 0.0
    %985 = vmatprep.subr.mxu0 0.0
    %986 = vmatpush1.xpose.msra.mxu0 0.0
    %987 = vmatprep.subr.mxu0 0.0
    %988 = vmatpush1.xpose.msra.mxu0 0.0
    %989 = vmatprep.subr.mxu0 0.0
    %990 = vmatpush1.xpose.msra.mxu0 0.0
    %991 = vmatprep.mubr.f32.mxu0 0.0
    %992 = vmatmul.mubr.f32.gmra.mrb[0].mxu0 %v923
    %v993 = vpop.f32.mrb[0].mxu0
    %v994 = vadd.f32 %v238, %v993
    %v995 = vpop.f32.mrb[0].mxu0
    %996 = vdwg.mxu0
    %997 = vrot.lane.b32.xlu0 %v410, 96
    %v998 = vpop.permute.xlu0 %997
    %v1000 = vsel %vm459, %v432, 0
    %v1002 = vsel %vm459, %v998, 0
    %1004 = vmatprep.subr.mxu0 0.0
    %1005 = vmatpush1.xpose.msra.mxu0 %v1002
    %1006 = vmatprep.subr.mxu0 0.0
    %1007 = vmatpush1.xpose.msra.mxu0 0.0
    %1008 = vmatprep.subr.mxu0 0.0
    %1009 = vmatpush1.xpose.msra.mxu0 0.0
    %1010 = vmatprep.subr.mxu0 0.0
    %1011 = vmatpush1.xpose.msra.mxu0 0.0
    %1012 = vmatprep.subr.mxu0 0.0
    %1013 = vmatpush1.xpose.msra.mxu0 0.0
    %1014 = vmatprep.subr.mxu0 0.0
    %1015 = vmatpush1.xpose.msra.mxu0 0.0
    %1016 = vmatprep.subr.mxu0 0.0
    %1017 = vmatpush1.xpose.msra.mxu0 0.0
    %1018 = vmatprep.subr.mxu0 0.0
    %1019 = vmatpush1.xpose.msra.mxu0 0.0
    %1020 = vmatprep.subr.mxu0 0.0
    %1021 = vmatpush1.xpose.msra.mxu0 0.0
    %1022 = vmatprep.subr.mxu0 0.0
    %1023 = vmatpush1.xpose.msra.mxu0 0.0
    %1024 = vmatprep.subr.mxu0 0.0
    %1025 = vmatpush1.xpose.msra.mxu0 0.0
    %1026 = vmatprep.subr.mxu0 0.0
    %1027 = vmatpush1.xpose.msra.mxu0 0.0
    %1028 = vmatprep.subr.mxu0 0.0
    %1029 = vmatpush1.xpose.msra.mxu0 0.0
    %1030 = vmatprep.subr.mxu0 0.0
    %1031 = vmatpush1.xpose.msra.mxu0 0.0
    %1032 = vmatprep.subr.mxu0 0.0
    %1033 = vmatpush1.xpose.msra.mxu0 0.0
    %1034 = vmatprep.subr.mxu0 0.0
    %1035 = vmatpush1.xpose.msra.mxu0 0.0
    %1036 = vmatprep.subr.mxu0 0.0
    %1037 = vmatpush1.xpose.msra.mxu0 0.0
    %1038 = vmatprep.subr.mxu0 0.0
    %1039 = vmatpush1.xpose.msra.mxu0 0.0
    %1040 = vmatprep.subr.mxu0 0.0
    %1041 = vmatpush1.xpose.msra.mxu0 0.0
    %1042 = vmatprep.subr.mxu0 0.0
    %1043 = vmatpush1.xpose.msra.mxu0 0.0
    %1044 = vmatprep.subr.mxu0 0.0
    %1045 = vmatpush1.xpose.msra.mxu0 0.0
    %1046 = vmatprep.subr.mxu0 0.0
    %1047 = vmatpush1.xpose.msra.mxu0 0.0
    %1048 = vmatprep.subr.mxu0 0.0
    %1049 = vmatpush1.xpose.msra.mxu0 0.0
    %1050 = vmatprep.subr.mxu0 0.0
    %1051 = vmatpush1.xpose.msra.mxu0 0.0
    %1052 = vmatprep.subr.mxu0 0.0
    %1053 = vmatpush1.xpose.msra.mxu0 0.0
    %1054 = vmatprep.subr.mxu0 0.0
    %1055 = vmatpush1.xpose.msra.mxu0 0.0
    %1056 = vmatprep.subr.mxu0 0.0
    %1057 = vmatpush1.xpose.msra.mxu0 0.0
    %1058 = vmatprep.subr.mxu0 0.0
    %1059 = vmatpush1.xpose.msra.mxu0 0.0
    %1060 = vmatprep.subr.mxu0 0.0
    %1061 = vmatpush1.xpose.msra.mxu0 0.0
    %1062 = vmatprep.subr.mxu0 0.0
    %1063 = vmatpush1.xpose.msra.mxu0 0.0
    %1064 = vmatprep.subr.mxu0 0.0
    %1065 = vmatpush1.xpose.msra.mxu0 0.0
    %1066 = vmatprep.subr.mxu0 0.0
    %1067 = vmatpush1.xpose.msra.mxu0 0.0
    %1068 = vmatprep.mubr.f32.mxu0 0.0
    %1069 = vmatmul.mubr.f32.gmra.mrb[0].mxu0 %v1000
    %v1070 = vpop.f32.mrb[0].mxu0
    %v1071 = vadd.f32 %v242, %v1070
    %v1072 = vpop.f32.mrb[0].mxu0
    %1073 = vdwg.mxu0
    %1074 = vrot.lane.b32.xlu0 %v412, 96
    %v1075 = vpop.permute.xlu0 %1074
    %v1077 = vsel %vm459, %v433, 0
    %v1079 = vsel %vm459, %v1075, 0
    %1081 = vmatprep.subr.mxu0 0.0
    %1082 = vmatpush1.xpose.msra.mxu0 %v1079
    %1083 = vmatprep.subr.mxu0 0.0
    %1084 = vmatpush1.xpose.msra.mxu0 0.0
    %1085 = vmatprep.subr.mxu0 0.0
    %1086 = vmatpush1.xpose.msra.mxu0 0.0
    %1087 = vmatprep.subr.mxu0 0.0
    %1088 = vmatpush1.xpose.msra.mxu0 0.0
    %1089 = vmatprep.subr.mxu0 0.0
    %1090 = vmatpush1.xpose.msra.mxu0 0.0
    %1091 = vmatprep.subr.mxu0 0.0
    %1092 = vmatpush1.xpose.msra.mxu0 0.0
    %1093 = vmatprep.subr.mxu0 0.0
    %1094 = vmatpush1.xpose.msra.mxu0 0.0
    %1095 = vmatprep.subr.mxu0 0.0
    %1096 = vmatpush1.xpose.msra.mxu0 0.0
    %1097 = vmatprep.subr.mxu0 0.0
    %1098 = vmatpush1.xpose.msra.mxu0 0.0
    %1099 = vmatprep.subr.mxu0 0.0
    %1100 = vmatpush1.xpose.msra.mxu0 0.0
    %1101 = vmatprep.subr.mxu0 0.0
    %1102 = vmatpush1.xpose.msra.mxu0 0.0
    %1103 = vmatprep.subr.mxu0 0.0
    %1104 = vmatpush1.xpose.msra.mxu0 0.0
    %1105 = vmatprep.subr.mxu0 0.0
    %1106 = vmatpush1.xpose.msra.mxu0 0.0
    %1107 = vmatprep.subr.mxu0 0.0
    %1108 = vmatpush1.xpose.msra.mxu0 0.0
    %1109 = vmatprep.subr.mxu0 0.0
    %1110 = vmatpush1.xpose.msra.mxu0 0.0
    %1111 = vmatprep.subr.mxu0 0.0
    %1112 = vmatpush1.xpose.msra.mxu0 0.0
    %1113 = vmatprep.subr.mxu0 0.0
    %1114 = vmatpush1.xpose.msra.mxu0 0.0
    %1115 = vmatprep.subr.mxu0 0.0
    %1116 = vmatpush1.xpose.msra.mxu0 0.0
    %1117 = vmatprep.subr.mxu0 0.0
    %1118 = vmatpush1.xpose.msra.mxu0 0.0
    %1119 = vmatprep.subr.mxu0 0.0
    %1120 = vmatpush1.xpose.msra.mxu0 0.0
    %1121 = vmatprep.subr.mxu0 0.0
    %1122 = vmatpush1.xpose.msra.mxu0 0.0
    %1123 = vmatprep.subr.mxu0 0.0
    %1124 = vmatpush1.xpose.msra.mxu0 0.0
    %1125 = vmatprep.subr.mxu0 0.0
    %1126 = vmatpush1.xpose.msra.mxu0 0.0
    %1127 = vmatprep.subr.mxu0 0.0
    %1128 = vmatpush1.xpose.msra.mxu0 0.0
    %1129 = vmatprep.subr.mxu0 0.0
    %1130 = vmatpush1.xpose.msra.mxu0 0.0
    %1131 = vmatprep.subr.mxu0 0.0
    %1132 = vmatpush1.xpose.msra.mxu0 0.0
    %1133 = vmatprep.subr.mxu0 0.0
    %1134 = vmatpush1.xpose.msra.mxu0 0.0
    %1135 = vmatprep.subr.mxu0 0.0
    %1136 = vmatpush1.xpose.msra.mxu0 0.0
    %1137 = vmatprep.subr.mxu0 0.0
    %1138 = vmatpush1.xpose.msra.mxu0 0.0
    %1139 = vmatprep.subr.mxu0 0.0
    %1140 = vmatpush1.xpose.msra.mxu0 0.0
    %1141 = vmatprep.subr.mxu0 0.0
    %1142 = vmatpush1.xpose.msra.mxu0 0.0
    %1143 = vmatprep.subr.mxu0 0.0
    %1144 = vmatpush1.xpose.msra.mxu0 0.0
    %1145 = vmatprep.mubr.f32.mxu0 0.0
    %1146 = vmatmul.mubr.f32.gmra.mrb[0].mxu0 %v1077
    %v1147 = vpop.f32.mrb[0].mxu0
    %v1148 = vadd.f32 %v246, %v1147
    %v1149 = vpop.f32.mrb[0].mxu0
    %1150 = vdwg.mxu0
    %1151 = vrot.lane.b32.xlu0 %v414, 96
    %v1152 = vpop.permute.xlu0 %1151
    %v1154 = vsel %vm459, %v434, 0
    %v1156 = vsel %vm459, %v1152, 0
    %1158 = vmatprep.subr.mxu0 0.0
    %1159 = vmatpush1.xpose.msra.mxu0 %v1156
    %1160 = vmatprep.subr.mxu0 0.0
    %1161 = vmatpush1.xpose.msra.mxu0 0.0
    %1162 = vmatprep.subr.mxu0 0.0
    %1163 = vmatpush1.xpose.msra.mxu0 0.0
    %1164 = vmatprep.subr.mxu0 0.0
    %1165 = vmatpush1.xpose.msra.mxu0 0.0
    %1166 = vmatprep.subr.mxu0 0.0
    %1167 = vmatpush1.xpose.msra.mxu0 0.0
    %1168 = vmatprep.subr.mxu0 0.0
    %1169 = vmatpush1.xpose.msra.mxu0 0.0
    %1170 = vmatprep.subr.mxu0 0.0
    %1171 = vmatpush1.xpose.msra.mxu0 0.0
    %1172 = vmatprep.subr.mxu0 0.0
    %1173 = vmatpush1.xpose.msra.mxu0 0.0
    %1174 = vmatprep.subr.mxu0 0.0
    %1175 = vmatpush1.xpose.msra.mxu0 0.0
    %1176 = vmatprep.subr.mxu0 0.0
    %1177 = vmatpush1.xpose.msra.mxu0 0.0
    %1178 = vmatprep.subr.mxu0 0.0
    %1179 = vmatpush1.xpose.msra.mxu0 0.0
    %1180 = vmatprep.subr.mxu0 0.0
    %1181 = vmatpush1.xpose.msra.mxu0 0.0
    %1182 = vmatprep.subr.mxu0 0.0
    %1183 = vmatpush1.xpose.msra.mxu0 0.0
    %1184 = vmatprep.subr.mxu0 0.0
    %1185 = vmatpush1.xpose.msra.mxu0 0.0
    %1186 = vmatprep.subr.mxu0 0.0
    %1187 = vmatpush1.xpose.msra.mxu0 0.0
    %1188 = vmatprep.subr.mxu0 0.0
    %1189 = vmatpush1.xpose.msra.mxu0 0.0
    %1190 = vmatprep.subr.mxu0 0.0
    %1191 = vmatpush1.xpose.msra.mxu0 0.0
    %1192 = vmatprep.subr.mxu0 0.0
    %1193 = vmatpush1.xpose.msra.mxu0 0.0
    %1194 = vmatprep.subr.mxu0 0.0
    %1195 = vmatpush1.xpose.msra.mxu0 0.0
    %1196 = vmatprep.subr.mxu0 0.0
    %1197 = vmatpush1.xpose.msra.mxu0 0.0
    %1198 = vmatprep.subr.mxu0 0.0
    %1199 = vmatpush1.xpose.msra.mxu0 0.0
    %1200 = vmatprep.subr.mxu0 0.0
    %1201 = vmatpush1.xpose.msra.mxu0 0.0
    %1202 = vmatprep.subr.mxu0 0.0
    %1203 = vmatpush1.xpose.msra.mxu0 0.0
    %1204 = vmatprep.subr.mxu0 0.0
    %1205 = vmatpush1.xpose.msra.mxu0 0.0
    %1206 = vmatprep.subr.mxu0 0.0
    %1207 = vmatpush1.xpose.msra.mxu0 0.0
    %1208 = vmatprep.subr.mxu0 0.0
    %1209 = vmatpush1.xpose.msra.mxu0 0.0
    %1210 = vmatprep.subr.mxu0 0.0
    %1211 = vmatpush1.xpose.msra.mxu0 0.0
    %1212 = vmatprep.subr.mxu0 0.0
    %1213 = vmatpush1.xpose.msra.mxu0 0.0
    %1214 = vmatprep.subr.mxu0 0.0
    %1215 = vmatpush1.xpose.msra.mxu0 0.0
    %1216 = vmatprep.subr.mxu0 0.0
    %1217 = vmatpush1.xpose.msra.mxu0 0.0
    %1218 = vmatprep.subr.mxu0 0.0
    %1219 = vmatpush1.xpose.msra.mxu0 0.0
    %1220 = vmatprep.subr.mxu0 0.0
    %1221 = vmatpush1.xpose.msra.mxu0 0.0
    %1222 = vmatprep.mubr.f32.mxu0 0.0
    %1223 = vmatmul.mubr.f32.gmra.mrb[0].mxu0 %v1154
    %v1224 = vpop.f32.mrb[0].mxu0
    %v1225 = vadd.f32 %v250, %v1224
    %v1226 = vpop.f32.mrb[0].mxu0
    %1227 = vdwg.mxu0
    %1228 = vrot.lane.b32.xlu0 %v416, 96
    %v1229 = vpop.permute.xlu0 %1228
    %v1231 = vsel %vm459, %v435, 0
    %v1233 = vsel %vm459, %v1229, 0
    %1235 = vmatprep.subr.mxu0 0.0
    %1236 = vmatpush1.xpose.msra.mxu0 %v1233
    %1237 = vmatprep.subr.mxu0 0.0
    %1238 = vmatpush1.xpose.msra.mxu0 0.0
    %1239 = vmatprep.subr.mxu0 0.0
    %1240 = vmatpush1.xpose.msra.mxu0 0.0
    %1241 = vmatprep.subr.mxu0 0.0
    %1242 = vmatpush1.xpose.msra.mxu0 0.0
    %1243 = vmatprep.subr.mxu0 0.0
    %1244 = vmatpush1.xpose.msra.mxu0 0.0
    %1245 = vmatprep.subr.mxu0 0.0
    %1246 = vmatpush1.xpose.msra.mxu0 0.0
    %1247 = vmatprep.subr.mxu0 0.0
    %1248 = vmatpush1.xpose.msra.mxu0 0.0
    %1249 = vmatprep.subr.mxu0 0.0
    %1250 = vmatpush1.xpose.msra.mxu0 0.0
    %1251 = vmatprep.subr.mxu0 0.0
    %1252 = vmatpush1.xpose.msra.mxu0 0.0
    %1253 = vmatprep.subr.mxu0 0.0
    %1254 = vmatpush1.xpose.msra.mxu0 0.0
    %1255 = vmatprep.subr.mxu0 0.0
    %1256 = vmatpush1.xpose.msra.mxu0 0.0
    %1257 = vmatprep.subr.mxu0 0.0
    %1258 = vmatpush1.xpose.msra.mxu0 0.0
    %1259 = vmatprep.subr.mxu0 0.0
    %1260 = vmatpush1.xpose.msra.mxu0 0.0
    %1261 = vmatprep.subr.mxu0 0.0
    %1262 = vmatpush1.xpose.msra.mxu0 0.0
    %1263 = vmatprep.subr.mxu0 0.0
    %1264 = vmatpush1.xpose.msra.mxu0 0.0
    %1265 = vmatprep.subr.mxu0 0.0
    %1266 = vmatpush1.xpose.msra.mxu0 0.0
    %1267 = vmatprep.subr.mxu0 0.0
    %1268 = vmatpush1.xpose.msra.mxu0 0.0
    %1269 = vmatprep.subr.mxu0 0.0
    %1270 = vmatpush1.xpose.msra.mxu0 0.0
    %1271 = vmatprep.subr.mxu0 0.0
    %1272 = vmatpush1.xpose.msra.mxu0 0.0
    %1273 = vmatprep.subr.mxu0 0.0
    %1274 = vmatpush1.xpose.msra.mxu0 0.0
    %1275 = vmatprep.subr.mxu0 0.0
    %1276 = vmatpush1.xpose.msra.mxu0 0.0
    %1277 = vmatprep.subr.mxu0 0.0
    %1278 = vmatpush1.xpose.msra.mxu0 0.0
    %1279 = vmatprep.subr.mxu0 0.0
    %1280 = vmatpush1.xpose.msra.mxu0 0.0
    %1281 = vmatprep.subr.mxu0 0.0
    %1282 = vmatpush1.xpose.msra.mxu0 0.0
    %1283 = vmatprep.subr.mxu0 0.0
    %1284 = vmatpush1.xpose.msra.mxu0 0.0
    %1285 = vmatprep.subr.mxu0 0.0
    %1286 = vmatpush1.xpose.msra.mxu0 0.0
    %1287 = vmatprep.subr.mxu0 0.0
    %1288 = vmatpush1.xpose.msra.mxu0 0.0
    %1289 = vmatprep.subr.mxu0 0.0
    %1290 = vmatpush1.xpose.msra.mxu0 0.0
    %1291 = vmatprep.subr.mxu0 0.0
    %1292 = vmatpush1.xpose.msra.mxu0 0.0
    %1293 = vmatprep.subr.mxu0 0.0
    %1294 = vmatpush1.xpose.msra.mxu0 0.0
    %1295 = vmatprep.subr.mxu0 0.0
    %1296 = vmatpush1.xpose.msra.mxu0 0.0
    %1297 = vmatprep.subr.mxu0 0.0
    %1298 = vmatpush1.xpose.msra.mxu0 0.0
    %1299 = vmatprep.mubr.f32.mxu0 0.0
    %1300 = vmatmul.mubr.f32.gmra.mrb[0].mxu0 %v1231
    %v1301 = vpop.f32.mrb[0].mxu0
    %v1302 = vadd.f32 %v254, %v1301
    %v1303 = vpop.f32.mrb[0].mxu0
    %1304 = vdwg.mxu0
    %1305 = vrot.lane.b32.xlu0 %v418, 96
    %v1306 = vpop.permute.xlu0 %1305
    %v1308 = vsel %vm459, %v436, 0
    %v1310 = vsel %vm459, %v1306, 0
    %1312 = vmatprep.subr.mxu0 0.0
    %1313 = vmatpush1.xpose.msra.mxu0 %v1310
    %1314 = vmatprep.subr.mxu0 0.0
    %1315 = vmatpush1.xpose.msra.mxu0 0.0
    %1316 = vmatprep.subr.mxu0 0.0
    %1317 = vmatpush1.xpose.msra.mxu0 0.0
    %1318 = vmatprep.subr.mxu0 0.0
    %1319 = vmatpush1.xpose.msra.mxu0 0.0
    %1320 = vmatprep.subr.mxu0 0.0
    %1321 = vmatpush1.xpose.msra.mxu0 0.0
    %1322 = vmatprep.subr.mxu0 0.0
    %1323 = vmatpush1.xpose.msra.mxu0 0.0
    %1324 = vmatprep.subr.mxu0 0.0
    %1325 = vmatpush1.xpose.msra.mxu0 0.0
    %1326 = vmatprep.subr.mxu0 0.0
    %1327 = vmatpush1.xpose.msra.mxu0 0.0
    %1328 = vmatprep.subr.mxu0 0.0
    %1329 = vmatpush1.xpose.msra.mxu0 0.0
    %1330 = vmatprep.subr.mxu0 0.0
    %1331 = vmatpush1.xpose.msra.mxu0 0.0
    %1332 = vmatprep.subr.mxu0 0.0
    %1333 = vmatpush1.xpose.msra.mxu0 0.0
    %1334 = vmatprep.subr.mxu0 0.0
    %1335 = vmatpush1.xpose.msra.mxu0 0.0
    %1336 = vmatprep.subr.mxu0 0.0
    %1337 = vmatpush1.xpose.msra.mxu0 0.0
    %1338 = vmatprep.subr.mxu0 0.0
    %1339 = vmatpush1.xpose.msra.mxu0 0.0
    %1340 = vmatprep.subr.mxu0 0.0
    %1341 = vmatpush1.xpose.msra.mxu0 0.0
    %1342 = vmatprep.subr.mxu0 0.0
    %1343 = vmatpush1.xpose.msra.mxu0 0.0
    %1344 = vmatprep.subr.mxu0 0.0
    %1345 = vmatpush1.xpose.msra.mxu0 0.0
    %1346 = vmatprep.subr.mxu0 0.0
    %1347 = vmatpush1.xpose.msra.mxu0 0.0
    %1348 = vmatprep.subr.mxu0 0.0
    %1349 = vmatpush1.xpose.msra.mxu0 0.0
    %1350 = vmatprep.subr.mxu0 0.0
    %1351 = vmatpush1.xpose.msra.mxu0 0.0
    %1352 = vmatprep.subr.mxu0 0.0
    %1353 = vmatpush1.xpose.msra.mxu0 0.0
    %1354 = vmatprep.subr.mxu0 0.0
    %1355 = vmatpush1.xpose.msra.mxu0 0.0
    %1356 = vmatprep.subr.mxu0 0.0
    %1357 = vmatpush1.xpose.msra.mxu0 0.0
    %1358 = vmatprep.subr.mxu0 0.0
    %1359 = vmatpush1.xpose.msra.mxu0 0.0
    %1360 = vmatprep.subr.mxu0 0.0
    %1361 = vmatpush1.xpose.msra.mxu0 0.0
    %1362 = vmatprep.subr.mxu0 0.0
    %1363 = vmatpush1.xpose.msra.mxu0 0.0
    %1364 = vmatprep.subr.mxu0 0.0
    %1365 = vmatpush1.xpose.msra.mxu0 0.0
    %1366 = vmatprep.subr.mxu0 0.0
    %1367 = vmatpush1.xpose.msra.mxu0 0.0
    %1368 = vmatprep.subr.mxu0 0.0
    %1369 = vmatpush1.xpose.msra.mxu0 0.0
    %1370 = vmatprep.subr.mxu0 0.0
    %1371 = vmatpush1.xpose.msra.mxu0 0.0
    %1372 = vmatprep.subr.mxu0 0.0
    %1373 = vmatpush1.xpose.msra.mxu0 0.0
    %1374 = vmatprep.subr.mxu0 0.0
    %1375 = vmatpush1.xpose.msra.mxu0 0.0
    %1376 = vmatprep.mubr.f32.mxu0 0.0
    %1377 = vmatmul.mubr.f32.gmra.mrb[0].mxu0 %v1308
    %v1378 = vpop.f32.mrb[0].mxu0
    %v1379 = vadd.f32 %v258, %v1378
    %v1380 = vpop.f32.mrb[0].mxu0
    %1381 = vdwg.mxu0
    %vm1382 = vcmask 64512
    %v1383 = vsel %vm1382, %v532, -inf
    %1384 = vmax.xlane.f32.xlu0 %v1383
    %v1385 = vpop.xlane.xlu0 %1384
    %v1386 = vsel %vm1382, %v609, -inf
    %1387 = vmax.xlane.f32.xlu0 %v1386
    %v1388 = vpop.xlane.xlu0 %1387
    %v1389 = vsel %vm1382, %v686, -inf
    %1390 = vmax.xlane.f32.xlu0 %v1389
    %v1391 = vpop.xlane.xlu0 %1390
    %v1392 = vsel %vm1382, %v763, -inf
    %1393 = vmax.xlane.f32.xlu0 %v1392
    %v1394 = vpop.xlane.xlu0 %1393
    %v1395 = vsel %vm1382, %v840, -inf
    %1396 = vmax.xlane.f32.xlu0 %v1395
    %v1397 = vpop.xlane.xlu0 %1396
    %v1398 = vsel %vm1382, %v917, -inf
    %1399 = vmax.xlane.f32.xlu0 %v1398
    %v1400 = vpop.xlane.xlu0 %1399
    %v1401 = vsel %vm1382, %v994, -inf
    %1402 = vmax.xlane.f32.xlu0 %v1401
    %v1403 = vpop.xlane.xlu0 %1402
    %v1404 = vsel %vm1382, %v1071, -inf
    %1405 = vmax.xlane.f32.xlu0 %v1404
    %v1406 = vpop.xlane.xlu0 %1405
    %v1407 = vsel %vm1382, %v1148, -inf
    %1408 = vmax.xlane.f32.xlu0 %v1407
    %v1409 = vpop.xlane.xlu0 %1408
    %v1410 = vsel %vm1382, %v1225, -inf
    %1411 = vmax.xlane.f32.xlu0 %v1410
    %v1412 = vpop.xlane.xlu0 %1411
    %v1413 = vsel %vm1382, %v1302, -inf
    %1414 = vmax.xlane.f32.xlu0 %v1413
    %v1415 = vpop.xlane.xlu0 %1414
    %v1416 = vsel %vm1382, %v1379, -inf
    %1417 = vmax.xlane.f32.xlu0 %v1416
    %v1418 = vpop.xlane.xlu0 %1417
    %v1419 = vsub.f32 %v532, %v1385
    %v1420 = vsub.f32 %v609, %v1388
    %v1421 = vsub.f32 %v686, %v1391
    %v1422 = vsub.f32 %v763, %v1394
    %v1423 = vsub.f32 %v840, %v1397
    %v1424 = vsub.f32 %v917, %v1400
    %v1425 = vsub.f32 %v994, %v1403
    %v1426 = vsub.f32 %v1071, %v1406
    %v1427 = vsub.f32 %v1148, %v1409
    %v1428 = vsub.f32 %v1225, %v1412
    %v1429 = vsub.f32 %v1302, %v1415
    %v1430 = vsub.f32 %v1379, %v1418
    %v1431 = vmul.f32 %v1419, 1.442695
    %v1432 = vpow.pop %v1431
    %v1433 = vmul.f32 %v1420, 1.442695
    %v1434 = vpow.pop %v1433
    %v1435 = vmul.f32 %v1421, 1.442695
    %v1436 = vpow.pop %v1435
    %v1437 = vmul.f32 %v1422, 1.442695
    %v1438 = vpow.pop %v1437
    %v1439 = vmul.f32 %v1423, 1.442695
    %v1440 = vpow.pop %v1439
    %v1441 = vmul.f32 %v1424, 1.442695
    %v1442 = vpow.pop %v1441
    %v1443 = vmul.f32 %v1425, 1.442695
    %v1444 = vpow.pop %v1443
    %v1445 = vmul.f32 %v1426, 1.442695
    %v1446 = vpow.pop %v1445
    %v1447 = vmul.f32 %v1427, 1.442695
    %v1448 = vpow.pop %v1447
    %v1449 = vmul.f32 %v1428, 1.442695
    %v1450 = vpow.pop %v1449
    %v1451 = vmul.f32 %v1429, 1.442695
    %v1452 = vpow.pop %v1451
    %v1453 = vmul.f32 %v1430, 1.442695
    %v1454 = vpow.pop %v1453
    %v1455 = vsel %vm1382, %v1432, 0.0
    %1456 = vadd.xlane.f32.xlu0 %v1455
    %v1457 = vpop.xlane.xlu0 %1456
    %v1458 = vsel %vm1382, %v1434, 0.0
    %1459 = vadd.xlane.f32.xlu0 %v1458
    %v1460 = vpop.xlane.xlu0 %1459
    %v1461 = vsel %vm1382, %v1436, 0.0
    %1462 = vadd.xlane.f32.xlu0 %v1461
    %v1463 = vpop.xlane.xlu0 %1462
    %v1464 = vsel %vm1382, %v1438, 0.0
    %1465 = vadd.xlane.f32.xlu0 %v1464
    %v1466 = vpop.xlane.xlu0 %1465
    %v1467 = vsel %vm1382, %v1440, 0.0
    %1468 = vadd.xlane.f32.xlu0 %v1467
    %v1469 = vpop.xlane.xlu0 %1468
    %v1470 = vsel %vm1382, %v1442, 0.0
    %1471 = vadd.xlane.f32.xlu0 %v1470
    %v1472 = vpop.xlane.xlu0 %1471
    %v1473 = vsel %vm1382, %v1444, 0.0
    %1474 = vadd.xlane.f32.xlu0 %v1473
    %v1475 = vpop.xlane.xlu0 %1474
    %v1476 = vsel %vm1382, %v1446, 0.0
    %1477 = vadd.xlane.f32.xlu0 %v1476
    %v1478 = vpop.xlane.xlu0 %1477
    %v1479 = vsel %vm1382, %v1448, 0.0
    %1480 = vadd.xlane.f32.xlu0 %v1479
    %v1481 = vpop.xlane.xlu0 %1480
    %v1482 = vsel %vm1382, %v1450, 0.0
    %1483 = vadd.xlane.f32.xlu0 %v1482
    %v1484 = vpop.xlane.xlu0 %1483
    %v1485 = vsel %vm1382, %v1452, 0.0
    %1486 = vadd.xlane.f32.xlu0 %v1485
    %v1487 = vpop.xlane.xlu0 %1486
    %v1488 = vsel %vm1382, %v1454, 0.0
    %1489 = vadd.xlane.f32.xlu0 %v1488
    %v1490 = vpop.xlane.xlu0 %1489
    %v1491 = vrcp.pop %v1457
    %v1492 = vmul.f32 %v1432, %v1491
    %v1493 = vrcp.pop %v1460
    %v1494 = vmul.f32 %v1434, %v1493
    %v1495 = vrcp.pop %v1463
    %v1496 = vmul.f32 %v1436, %v1495
    %v1497 = vrcp.pop %v1466
    %v1498 = vmul.f32 %v1438, %v1497
    %v1499 = vrcp.pop %v1469
    %v1500 = vmul.f32 %v1440, %v1499
    %v1501 = vrcp.pop %v1472
    %v1502 = vmul.f32 %v1442, %v1501
    %v1503 = vrcp.pop %v1475
    %v1504 = vmul.f32 %v1444, %v1503
    %v1505 = vrcp.pop %v1478
    %v1506 = vmul.f32 %v1446, %v1505
    %v1507 = vrcp.pop %v1481
    %v1508 = vmul.f32 %v1448, %v1507
    %v1509 = vrcp.pop %v1484
    %v1510 = vmul.f32 %v1450, %v1509
    %v1511 = vrcp.pop %v1487
    %v1512 = vmul.f32 %v1452, %v1511
    %v1513 = vrcp.pop %v1490
    %v1514 = vmul.f32 %v1454, %v1513
    %1516 = vrot.lane.b32.xlu0 %v441, 64
    %v1517 = vpop.permute.xlu0 %1516
    %v1520 = vsel %vm1382, %v1492, 0
    %1522 = vmatprep.subr.mxu0 0.0
    %1523 = vmatpush1.msra.mxu0 %v1517
    %1524 = vmatprep.subr.mxu0 0.0
    %1525 = vmatpush1.msra.mxu0 0.0
    %1526 = vmatprep.subr.mxu0 0.0
    %1527 = vmatpush1.msra.mxu0 0.0
    %1528 = vmatprep.subr.mxu0 0.0
    %1529 = vmatpush1.msra.mxu0 0.0
    %1530 = vmatprep.subr.mxu0 0.0
    %1531 = vmatpush1.msra.mxu0 0.0
    %1532 = vmatprep.subr.mxu0 0.0
    %1533 = vmatpush1.msra.mxu0 0.0
    %1534 = vmatprep.subr.mxu0 0.0
    %1535 = vmatpush1.msra.mxu0 0.0
    %1536 = vmatprep.subr.mxu0 0.0
    %1537 = vmatpush1.msra.mxu0 0.0
    %1538 = vmatprep.subr.mxu0 0.0
    %1539 = vmatpush1.msra.mxu0 0.0
    %1540 = vmatprep.subr.mxu0 0.0
    %1541 = vmatpush1.msra.mxu0 0.0
    %1542 = vmatprep.subr.mxu0 0.0
    %1543 = vmatpush1.msra.mxu0 0.0
    %1544 = vmatprep.subr.mxu0 0.0
    %1545 = vmatpush1.msra.mxu0 0.0
    %1546 = vmatprep.subr.mxu0 0.0
    %1547 = vmatpush1.msra.mxu0 0.0
    %1548 = vmatprep.subr.mxu0 0.0
    %1549 = vmatpush1.msra.mxu0 0.0
    %1550 = vmatprep.subr.mxu0 0.0
    %1551 = vmatpush1.msra.mxu0 0.0
    %1552 = vmatprep.subr.mxu0 0.0
    %1553 = vmatpush1.msra.mxu0 0.0
    %1554 = vmatprep.subr.mxu0 0.0
    %1555 = vmatpush1.msra.mxu0 0.0
    %1556 = vmatprep.subr.mxu0 0.0
    %1557 = vmatpush1.msra.mxu0 0.0
    %1558 = vmatprep.subr.mxu0 0.0
    %1559 = vmatpush1.msra.mxu0 0.0
    %1560 = vmatprep.subr.mxu0 0.0
    %1561 = vmatpush1.msra.mxu0 0.0
    %1562 = vmatprep.subr.mxu0 0.0
    %1563 = vmatpush1.msra.mxu0 0.0
    %1564 = vmatprep.subr.mxu0 0.0
    %1565 = vmatpush1.msra.mxu0 0.0
    %1566 = vmatprep.subr.mxu0 0.0
    %1567 = vmatpush1.msra.mxu0 0.0
    %1568 = vmatprep.subr.mxu0 0.0
    %1569 = vmatpush1.msra.mxu0 0.0
    %1570 = vmatprep.subr.mxu0 0.0
    %1571 = vmatpush1.msra.mxu0 0.0
    %1572 = vmatprep.subr.mxu0 0.0
    %1573 = vmatpush1.msra.mxu0 0.0
    %1574 = vmatprep.subr.mxu0 0.0
    %1575 = vmatpush1.msra.mxu0 0.0
    %1576 = vmatprep.subr.mxu0 0.0
    %1577 = vmatpush1.msra.mxu0 0.0
    %1578 = vmatprep.subr.mxu0 0.0
    %1579 = vmatpush1.msra.mxu0 0.0
    %1580 = vmatprep.subr.mxu0 0.0
    %1581 = vmatpush1.msra.mxu0 0.0
    %1582 = vmatprep.subr.mxu0 0.0
    %1583 = vmatpush1.msra.mxu0 0.0
    %1584 = vmatprep.subr.mxu0 0.0
    %1585 = vmatpush1.msra.mxu0 0.0
    %1586 = vmatprep.mubr.f32.mxu0 0.0
    %1587 = vmatmul.mubr.f32.gmra.mrb[0].mxu0 %v1520
    %v1588 = vpop.f32.mrb[0].mxu0
    %v1589 = vadd.f32 0.0, %v1588
    %v1590 = vpop.f32.mrb[0].mxu0
    %1591 = vdwg.mxu0
    %1593 = vrot.lane.b32.xlu0 %v442, 64
    %v1594 = vpop.permute.xlu0 %1593
    %v1597 = vsel %vm1382, %v1494, 0
    %1599 = vmatprep.subr.mxu0 0.0
    %1600 = vmatpush1.msra.mxu0 %v1594
    %1601 = vmatprep.subr.mxu0 0.0
    %1602 = vmatpush1.msra.mxu0 0.0
    %1603 = vmatprep.subr.mxu0 0.0
    %1604 = vmatpush1.msra.mxu0 0.0
    %1605 = vmatprep.subr.mxu0 0.0
    %1606 = vmatpush1.msra.mxu0 0.0
    %1607 = vmatprep.subr.mxu0 0.0
    %1608 = vmatpush1.msra.mxu0 0.0
    %1609 = vmatprep.subr.mxu0 0.0
    %1610 = vmatpush1.msra.mxu0 0.0
    %1611 = vmatprep.subr.mxu0 0.0
    %1612 = vmatpush1.msra.mxu0 0.0
    %1613 = vmatprep.subr.mxu0 0.0
    %1614 = vmatpush1.msra.mxu0 0.0
    %1615 = vmatprep.subr.mxu0 0.0
    %1616 = vmatpush1.msra.mxu0 0.0
    %1617 = vmatprep.subr.mxu0 0.0
    %1618 = vmatpush1.msra.mxu0 0.0
    %1619 = vmatprep.subr.mxu0 0.0
    %1620 = vmatpush1.msra.mxu0 0.0
    %1621 = vmatprep.subr.mxu0 0.0
    %1622 = vmatpush1.msra.mxu0 0.0
    %1623 = vmatprep.subr.mxu0 0.0
    %1624 = vmatpush1.msra.mxu0 0.0
    %1625 = vmatprep.subr.mxu0 0.0
    %1626 = vmatpush1.msra.mxu0 0.0
    %1627 = vmatprep.subr.mxu0 0.0
    %1628 = vmatpush1.msra.mxu0 0.0
    %1629 = vmatprep.subr.mxu0 0.0
    %1630 = vmatpush1.msra.mxu0 0.0
    %1631 = vmatprep.subr.mxu0 0.0
    %1632 = vmatpush1.msra.mxu0 0.0
    %1633 = vmatprep.subr.mxu0 0.0
    %1634 = vmatpush1.msra.mxu0 0.0
    %1635 = vmatprep.subr.mxu0 0.0
    %1636 = vmatpush1.msra.mxu0 0.0
    %1637 = vmatprep.subr.mxu0 0.0
    %1638 = vmatpush1.msra.mxu0 0.0
    %1639 = vmatprep.subr.mxu0 0.0
    %1640 = vmatpush1.msra.mxu0 0.0
    %1641 = vmatprep.subr.mxu0 0.0
    %1642 = vmatpush1.msra.mxu0 0.0
    %1643 = vmatprep.subr.mxu0 0.0
    %1644 = vmatpush1.msra.mxu0 0.0
    %1645 = vmatprep.subr.mxu0 0.0
    %1646 = vmatpush1.msra.mxu0 0.0
    %1647 = vmatprep.subr.mxu0 0.0
    %1648 = vmatpush1.msra.mxu0 0.0
    %1649 = vmatprep.subr.mxu0 0.0
    %1650 = vmatpush1.msra.mxu0 0.0
    %1651 = vmatprep.subr.mxu0 0.0
    %1652 = vmatpush1.msra.mxu0 0.0
    %1653 = vmatprep.subr.mxu0 0.0
    %1654 = vmatpush1.msra.mxu0 0.0
    %1655 = vmatprep.subr.mxu0 0.0
    %1656 = vmatpush1.msra.mxu0 0.0
    %1657 = vmatprep.subr.mxu0 0.0
    %1658 = vmatpush1.msra.mxu0 0.0
    %1659 = vmatprep.subr.mxu0 0.0
    %1660 = vmatpush1.msra.mxu0 0.0
    %1661 = vmatprep.subr.mxu0 0.0
    %1662 = vmatpush1.msra.mxu0 0.0
    %1663 = vmatprep.mubr.f32.mxu0 0.0
    %1664 = vmatmul.mubr.f32.gmra.mrb[0].mxu0 %v1597
    %v1665 = vpop.f32.mrb[0].mxu0
    %v1666 = vadd.f32 0.0, %v1665
    %v1667 = vpop.f32.mrb[0].mxu0
    %1668 = vdwg.mxu0
    %1670 = vrot.lane.b32.xlu0 %v443, 64
    %v1671 = vpop.permute.xlu0 %1670
    %v1674 = vsel %vm1382, %v1496, 0
    %1676 = vmatprep.subr.mxu0 0.0
    %1677 = vmatpush1.msra.mxu0 %v1671
    %1678 = vmatprep.subr.mxu0 0.0
    %1679 = vmatpush1.msra.mxu0 0.0
    %1680 = vmatprep.subr.mxu0 0.0
    %1681 = vmatpush1.msra.mxu0 0.0
    %1682 = vmatprep.subr.mxu0 0.0
    %1683 = vmatpush1.msra.mxu0 0.0
    %1684 = vmatprep.subr.mxu0 0.0
    %1685 = vmatpush1.msra.mxu0 0.0
    %1686 = vmatprep.subr.mxu0 0.0
    %1687 = vmatpush1.msra.mxu0 0.0
    %1688 = vmatprep.subr.mxu0 0.0
    %1689 = vmatpush1.msra.mxu0 0.0
    %1690 = vmatprep.subr.mxu0 0.0
    %1691 = vmatpush1.msra.mxu0 0.0
    %1692 = vmatprep.subr.mxu0 0.0
    %1693 = vmatpush1.msra.mxu0 0.0
    %1694 = vmatprep.subr.mxu0 0.0
    %1695 = vmatpush1.msra.mxu0 0.0
    %1696 = vmatprep.subr.mxu0 0.0
    %1697 = vmatpush1.msra.mxu0 0.0
    %1698 = vmatprep.subr.mxu0 0.0
    %1699 = vmatpush1.msra.mxu0 0.0
    %1700 = vmatprep.subr.mxu0 0.0
    %1701 = vmatpush1.msra.mxu0 0.0
    %1702 = vmatprep.subr.mxu0 0.0
    %1703 = vmatpush1.msra.mxu0 0.0
    %1704 = vmatprep.subr.mxu0 0.0
    %1705 = vmatpush1.msra.mxu0 0.0
    %1706 = vmatprep.subr.mxu0 0.0
    %1707 = vmatpush1.msra.mxu0 0.0
    %1708 = vmatprep.subr.mxu0 0.0
    %1709 = vmatpush1.msra.mxu0 0.0
    %1710 = vmatprep.subr.mxu0 0.0
    %1711 = vmatpush1.msra.mxu0 0.0
    %1712 = vmatprep.subr.mxu0 0.0
    %1713 = vmatpush1.msra.mxu0 0.0
    %1714 = vmatprep.subr.mxu0 0.0
    %1715 = vmatpush1.msra.mxu0 0.0
    %1716 = vmatprep.subr.mxu0 0.0
    %1717 = vmatpush1.msra.mxu0 0.0
    %1718 = vmatprep.subr.mxu0 0.0
    %1719 = vmatpush1.msra.mxu0 0.0
    %1720 = vmatprep.subr.mxu0 0.0
    %1721 = vmatpush1.msra.mxu0 0.0
    %1722 = vmatprep.subr.mxu0 0.0
    %1723 = vmatpush1.msra.mxu0 0.0
    %1724 = vmatprep.subr.mxu0 0.0
    %1725 = vmatpush1.msra.mxu0 0.0
    %1726 = vmatprep.subr.mxu0 0.0
    %1727 = vmatpush1.msra.mxu0 0.0
    %1728 = vmatprep.subr.mxu0 0.0
    %1729 = vmatpush1.msra.mxu0 0.0
    %1730 = vmatprep.subr.mxu0 0.0
    %1731 = vmatpush1.msra.mxu0 0.0
    %1732 = vmatprep.subr.mxu0 0.0
    %1733 = vmatpush1.msra.mxu0 0.0
    %1734 = vmatprep.subr.mxu0 0.0
    %1735 = vmatpush1.msra.mxu0 0.0
    %1736 = vmatprep.subr.mxu0 0.0
    %1737 = vmatpush1.msra.mxu0 0.0
    %1738 = vmatprep.subr.mxu0 0.0
    %1739 = vmatpush1.msra.mxu0 0.0
    %1740 = vmatprep.mubr.f32.mxu0 0.0
    %1741 = vmatmul.mubr.f32.gmra.mrb[0].mxu0 %v1674
    %v1742 = vpop.f32.mrb[0].mxu0
    %v1743 = vadd.f32 0.0, %v1742
    %v1744 = vpop.f32.mrb[0].mxu0
    %1745 = vdwg.mxu0
    %1747 = vrot.lane.b32.xlu0 %v444, 64
    %v1748 = vpop.permute.xlu0 %1747
    %v1751 = vsel %vm1382, %v1498, 0
    %1753 = vmatprep.subr.mxu0 0.0
    %1754 = vmatpush1.msra.mxu0 %v1748
    %1755 = vmatprep.subr.mxu0 0.0
    %1756 = vmatpush1.msra.mxu0 0.0
    %1757 = vmatprep.subr.mxu0 0.0
    %1758 = vmatpush1.msra.mxu0 0.0
    %1759 = vmatprep.subr.mxu0 0.0
    %1760 = vmatpush1.msra.mxu0 0.0
    %1761 = vmatprep.subr.mxu0 0.0
    %1762 = vmatpush1.msra.mxu0 0.0
    %1763 = vmatprep.subr.mxu0 0.0
    %1764 = vmatpush1.msra.mxu0 0.0
    %1765 = vmatprep.subr.mxu0 0.0
    %1766 = vmatpush1.msra.mxu0 0.0
    %1767 = vmatprep.subr.mxu0 0.0
    %1768 = vmatpush1.msra.mxu0 0.0
    %1769 = vmatprep.subr.mxu0 0.0
    %1770 = vmatpush1.msra.mxu0 0.0
    %1771 = vmatprep.subr.mxu0 0.0
    %1772 = vmatpush1.msra.mxu0 0.0
    %1773 = vmatprep.subr.mxu0 0.0
    %1774 = vmatpush1.msra.mxu0 0.0
    %1775 = vmatprep.subr.mxu0 0.0
    %1776 = vmatpush1.msra.mxu0 0.0
    %1777 = vmatprep.subr.mxu0 0.0
    %1778 = vmatpush1.msra.mxu0 0.0
    %1779 = vmatprep.subr.mxu0 0.0
    %1780 = vmatpush1.msra.mxu0 0.0
    %1781 = vmatprep.subr.mxu0 0.0
    %1782 = vmatpush1.msra.mxu0 0.0
    %1783 = vmatprep.subr.mxu0 0.0
    %1784 = vmatpush1.msra.mxu0 0.0
    %1785 = vmatprep.subr.mxu0 0.0
    %1786 = vmatpush1.msra.mxu0 0.0
    %1787 = vmatprep.subr.mxu0 0.0
    %1788 = vmatpush1.msra.mxu0 0.0
    %1789 = vmatprep.subr.mxu0 0.0
    %1790 = vmatpush1.msra.mxu0 0.0
    %1791 = vmatprep.subr.mxu0 0.0
    %1792 = vmatpush1.msra.mxu0 0.0
    %1793 = vmatprep.subr.mxu0 0.0
    %1794 = vmatpush1.msra.mxu0 0.0
    %1795 = vmatprep.subr.mxu0 0.0
    %1796 = vmatpush1.msra.mxu0 0.0
    %1797 = vmatprep.subr.mxu0 0.0
    %1798 = vmatpush1.msra.mxu0 0.0
    %1799 = vmatprep.subr.mxu0 0.0
    %1800 = vmatpush1.msra.mxu0 0.0
    %1801 = vmatprep.subr.mxu0 0.0
    %1802 = vmatpush1.msra.mxu0 0.0
    %1803 = vmatprep.subr.mxu0 0.0
    %1804 = vmatpush1.msra.mxu0 0.0
    %1805 = vmatprep.subr.mxu0 0.0
    %1806 = vmatpush1.msra.mxu0 0.0
    %1807 = vmatprep.subr.mxu0 0.0
    %1808 = vmatpush1.msra.mxu0 0.0
    %1809 = vmatprep.subr.mxu0 0.0
    %1810 = vmatpush1.msra.mxu0 0.0
    %1811 = vmatprep.subr.mxu0 0.0
    %1812 = vmatpush1.msra.mxu0 0.0
    %1813 = vmatprep.subr.mxu0 0.0
    %1814 = vmatpush1.msra.mxu0 0.0
    %1815 = vmatprep.subr.mxu0 0.0
    %1816 = vmatpush1.msra.mxu0 0.0
    %1817 = vmatprep.mubr.f32.mxu0 0.0
    %1818 = vmatmul.mubr.f32.gmra.mrb[0].mxu0 %v1751
    %v1819 = vpop.f32.mrb[0].mxu0
    %v1820 = vadd.f32 0.0, %v1819
    %v1821 = vpop.f32.mrb[0].mxu0
    %1822 = vdwg.mxu0
    %1824 = vrot.lane.b32.xlu0 %v445, 64
    %v1825 = vpop.permute.xlu0 %1824
    %v1828 = vsel %vm1382, %v1500, 0
    %1830 = vmatprep.subr.mxu0 0.0
    %1831 = vmatpush1.msra.mxu0 %v1825
    %1832 = vmatprep.subr.mxu0 0.0
    %1833 = vmatpush1.msra.mxu0 0.0
    %1834 = vmatprep.subr.mxu0 0.0
    %1835 = vmatpush1.msra.mxu0 0.0
    %1836 = vmatprep.subr.mxu0 0.0
    %1837 = vmatpush1.msra.mxu0 0.0
    %1838 = vmatprep.subr.mxu0 0.0
    %1839 = vmatpush1.msra.mxu0 0.0
    %1840 = vmatprep.subr.mxu0 0.0
    %1841 = vmatpush1.msra.mxu0 0.0
    %1842 = vmatprep.subr.mxu0 0.0
    %1843 = vmatpush1.msra.mxu0 0.0
    %1844 = vmatprep.subr.mxu0 0.0
    %1845 = vmatpush1.msra.mxu0 0.0
    %1846 = vmatprep.subr.mxu0 0.0
    %1847 = vmatpush1.msra.mxu0 0.0
    %1848 = vmatprep.subr.mxu0 0.0
    %1849 = vmatpush1.msra.mxu0 0.0
    %1850 = vmatprep.subr.mxu0 0.0
    %1851 = vmatpush1.msra.mxu0 0.0
    %1852 = vmatprep.subr.mxu0 0.0
    %1853 = vmatpush1.msra.mxu0 0.0
    %1854 = vmatprep.subr.mxu0 0.0
    %1855 = vmatpush1.msra.mxu0 0.0
    %1856 = vmatprep.subr.mxu0 0.0
    %1857 = vmatpush1.msra.mxu0 0.0
    %1858 = vmatprep.subr.mxu0 0.0
    %1859 = vmatpush1.msra.mxu0 0.0
    %1860 = vmatprep.subr.mxu0 0.0
    %1861 = vmatpush1.msra.mxu0 0.0
    %1862 = vmatprep.subr.mxu0 0.0
    %1863 = vmatpush1.msra.mxu0 0.0
    %1864 = vmatprep.subr.mxu0 0.0
    %1865 = vmatpush1.msra.mxu0 0.0
    %1866 = vmatprep.subr.mxu0 0.0
    %1867 = vmatpush1.msra.mxu0 0.0
    %1868 = vmatprep.subr.mxu0 0.0
    %1869 = vmatpush1.msra.mxu0 0.0
    %1870 = vmatprep.subr.mxu0 0.0
    %1871 = vmatpush1.msra.mxu0 0.0
    %1872 = vmatprep.subr.mxu0 0.0
    %1873 = vmatpush1.msra.mxu0 0.0
    %1874 = vmatprep.subr.mxu0 0.0
    %1875 = vmatpush1.msra.mxu0 0.0
    %1876 = vmatprep.subr.mxu0 0.0
    %1877 = vmatpush1.msra.mxu0 0.0
    %1878 = vmatprep.subr.mxu0 0.0
    %1879 = vmatpush1.msra.mxu0 0.0
    %1880 = vmatprep.subr.mxu0 0.0
    %1881 = vmatpush1.msra.mxu0 0.0
    %1882 = vmatprep.subr.mxu0 0.0
    %1883 = vmatpush1.msra.mxu0 0.0
    %1884 = vmatprep.subr.mxu0 0.0
    %1885 = vmatpush1.msra.mxu0 0.0
    %1886 = vmatprep.subr.mxu0 0.0
    %1887 = vmatpush1.msra.mxu0 0.0
    %1888 = vmatprep.subr.mxu0 0.0
    %1889 = vmatpush1.msra.mxu0 0.0
    %1890 = vmatprep.subr.mxu0 0.0
    %1891 = vmatpush1.msra.mxu0 0.0
    %1892 = vmatprep.subr.mxu0 0.0
    %1893 = vmatpush1.msra.mxu0 0.0
    %1894 = vmatprep.mubr.f32.mxu0 0.0
    %1895 = vmatmul.mubr.f32.gmra.mrb[0].mxu0 %v1828
    %v1896 = vpop.f32.mrb[0].mxu0
    %v1897 = vadd.f32 0.0, %v1896
    %v1898 = vpop.f32.mrb[0].mxu0
    %1899 = vdwg.mxu0
    %1901 = vrot.lane.b32.xlu0 %v446, 64
    %v1902 = vpop.permute.xlu0 %1901
    %v1905 = vsel %vm1382, %v1502, 0
    %1907 = vmatprep.subr.mxu0 0.0
    %1908 = vmatpush1.msra.mxu0 %v1902
    %1909 = vmatprep.subr.mxu0 0.0
    %1910 = vmatpush1.msra.mxu0 0.0
    %1911 = vmatprep.subr.mxu0 0.0
    %1912 = vmatpush1.msra.mxu0 0.0
    %1913 = vmatprep.subr.mxu0 0.0
    %1914 = vmatpush1.msra.mxu0 0.0
    %1915 = vmatprep.subr.mxu0 0.0
    %1916 = vmatpush1.msra.mxu0 0.0
    %1917 = vmatprep.subr.mxu0 0.0
    %1918 = vmatpush1.msra.mxu0 0.0
    %1919 = vmatprep.subr.mxu0 0.0
    %1920 = vmatpush1.msra.mxu0 0.0
    %1921 = vmatprep.subr.mxu0 0.0
    %1922 = vmatpush1.msra.mxu0 0.0
    %1923 = vmatprep.subr.mxu0 0.0
    %1924 = vmatpush1.msra.mxu0 0.0
    %1925 = vmatprep.subr.mxu0 0.0
    %1926 = vmatpush1.msra.mxu0 0.0
    %1927 = vmatprep.subr.mxu0 0.0
    %1928 = vmatpush1.msra.mxu0 0.0
    %1929 = vmatprep.subr.mxu0 0.0
    %1930 = vmatpush1.msra.mxu0 0.0
    %1931 = vmatprep.subr.mxu0 0.0
    %1932 = vmatpush1.msra.mxu0 0.0
    %1933 = vmatprep.subr.mxu0 0.0
    %1934 = vmatpush1.msra.mxu0 0.0
    %1935 = vmatprep.subr.mxu0 0.0
    %1936 = vmatpush1.msra.mxu0 0.0
    %1937 = vmatprep.subr.mxu0 0.0
    %1938 = vmatpush1.msra.mxu0 0.0
    %1939 = vmatprep.subr.mxu0 0.0
    %1940 = vmatpush1.msra.mxu0 0.0
    %1941 = vmatprep.subr.mxu0 0.0
    %1942 = vmatpush1.msra.mxu0 0.0
    %1943 = vmatprep.subr.mxu0 0.0
    %1944 = vmatpush1.msra.mxu0 0.0
    %1945 = vmatprep.subr.mxu0 0.0
    %1946 = vmatpush1.msra.mxu0 0.0
    %1947 = vmatprep.subr.mxu0 0.0
    %1948 = vmatpush1.msra.mxu0 0.0
    %1949 = vmatprep.subr.mxu0 0.0
    %1950 = vmatpush1.msra.mxu0 0.0
    %1951 = vmatprep.subr.mxu0 0.0
    %1952 = vmatpush1.msra.mxu0 0.0
    %1953 = vmatprep.subr.mxu0 0.0
    %1954 = vmatpush1.msra.mxu0 0.0
    %1955 = vmatprep.subr.mxu0 0.0
    %1956 = vmatpush1.msra.mxu0 0.0
    %1957 = vmatprep.subr.mxu0 0.0
    %1958 = vmatpush1.msra.mxu0 0.0
    %1959 = vmatprep.subr.mxu0 0.0
    %1960 = vmatpush1.msra.mxu0 0.0
    %1961 = vmatprep.subr.mxu0 0.0
    %1962 = vmatpush1.msra.mxu0 0.0
    %1963 = vmatprep.subr.mxu0 0.0
    %1964 = vmatpush1.msra.mxu0 0.0
    %1965 = vmatprep.subr.mxu0 0.0
    %1966 = vmatpush1.msra.mxu0 0.0
    %1967 = vmatprep.subr.mxu0 0.0
    %1968 = vmatpush1.msra.mxu0 0.0
    %1969 = vmatprep.subr.mxu0 0.0
    %1970 = vmatpush1.msra.mxu0 0.0
    %1971 = vmatprep.mubr.f32.mxu0 0.0
    %1972 = vmatmul.mubr.f32.gmra.mrb[0].mxu0 %v1905
    %v1973 = vpop.f32.mrb[0].mxu0
    %v1974 = vadd.f32 0.0, %v1973
    %v1975 = vpop.f32.mrb[0].mxu0
    %1976 = vdwg.mxu0
    %1978 = vrot.lane.b32.xlu0 %v451, 64
    %v1979 = vpop.permute.xlu0 %1978
    %v1982 = vsel %vm1382, %v1504, 0
    %1984 = vmatprep.subr.mxu0 0.0
    %1985 = vmatpush1.msra.mxu0 %v1979
    %1986 = vmatprep.subr.mxu0 0.0
    %1987 = vmatpush1.msra.mxu0 0.0
    %1988 = vmatprep.subr.mxu0 0.0
    %1989 = vmatpush1.msra.mxu0 0.0
    %1990 = vmatprep.subr.mxu0 0.0
    %1991 = vmatpush1.msra.mxu0 0.0
    %1992 = vmatprep.subr.mxu0 0.0
    %1993 = vmatpush1.msra.mxu0 0.0
    %1994 = vmatprep.subr.mxu0 0.0
    %1995 = vmatpush1.msra.mxu0 0.0
    %1996 = vmatprep.subr.mxu0 0.0
    %1997 = vmatpush1.msra.mxu0 0.0
    %1998 = vmatprep.subr.mxu0 0.0
    %1999 = vmatpush1.msra.mxu0 0.0
    %2000 = vmatprep.subr.mxu0 0.0
    %2001 = vmatpush1.msra.mxu0 0.0
    %2002 = vmatprep.subr.mxu0 0.0
    %2003 = vmatpush1.msra.mxu0 0.0
    %2004 = vmatprep.subr.mxu0 0.0
    %2005 = vmatpush1.msra.mxu0 0.0
    %2006 = vmatprep.subr.mxu0 0.0
    %2007 = vmatpush1.msra.mxu0 0.0
    %2008 = vmatprep.subr.mxu0 0.0
    %2009 = vmatpush1.msra.mxu0 0.0
    %2010 = vmatprep.subr.mxu0 0.0
    %2011 = vmatpush1.msra.mxu0 0.0
    %2012 = vmatprep.subr.mxu0 0.0
    %2013 = vmatpush1.msra.mxu0 0.0
    %2014 = vmatprep.subr.mxu0 0.0
    %2015 = vmatpush1.msra.mxu0 0.0
    %2016 = vmatprep.subr.mxu0 0.0
    %2017 = vmatpush1.msra.mxu0 0.0
    %2018 = vmatprep.subr.mxu0 0.0
    %2019 = vmatpush1.msra.mxu0 0.0
    %2020 = vmatprep.subr.mxu0 0.0
    %2021 = vmatpush1.msra.mxu0 0.0
    %2022 = vmatprep.subr.mxu0 0.0
    %2023 = vmatpush1.msra.mxu0 0.0
    %2024 = vmatprep.subr.mxu0 0.0
    %2025 = vmatpush1.msra.mxu0 0.0
    %2026 = vmatprep.subr.mxu0 0.0
    %2027 = vmatpush1.msra.mxu0 0.0
    %2028 = vmatprep.subr.mxu0 0.0
    %2029 = vmatpush1.msra.mxu0 0.0
    %2030 = vmatprep.subr.mxu0 0.0
    %2031 = vmatpush1.msra.mxu0 0.0
    %2032 = vmatprep.subr.mxu0 0.0
    %2033 = vmatpush1.msra.mxu0 0.0
    %2034 = vmatprep.subr.mxu0 0.0
    %2035 = vmatpush1.msra.mxu0 0.0
    %2036 = vmatprep.subr.mxu0 0.0
    %2037 = vmatpush1.msra.mxu0 0.0
    %2038 = vmatprep.subr.mxu0 0.0
    %2039 = vmatpush1.msra.mxu0 0.0
    %2040 = vmatprep.subr.mxu0 0.0
    %2041 = vmatpush1.msra.mxu0 0.0
    %2042 = vmatprep.subr.mxu0 0.0
    %2043 = vmatpush1.msra.mxu0 0.0
    %2044 = vmatprep.subr.mxu0 0.0
    %2045 = vmatpush1.msra.mxu0 0.0
    %2046 = vmatprep.subr.mxu0 0.0
    %2047 = vmatpush1.msra.mxu0 0.0
    %2048 = vmatprep.mubr.f32.mxu0 0.0
    %2049 = vmatmul.mubr.f32.gmra.mrb[0].mxu0 %v1982
    %v2050 = vpop.f32.mrb[0].mxu0
    %v2051 = vadd.f32 0.0, %v2050
    %v2052 = vpop.f32.mrb[0].mxu0
    %2053 = vdwg.mxu0
    %2055 = vrot.lane.b32.xlu0 %v452, 64
    %v2056 = vpop.permute.xlu0 %2055
    %v2059 = vsel %vm1382, %v1506, 0
    %2061 = vmatprep.subr.mxu0 0.0
    %2062 = vmatpush1.msra.mxu0 %v2056
    %2063 = vmatprep.subr.mxu0 0.0
    %2064 = vmatpush1.msra.mxu0 0.0
    %2065 = vmatprep.subr.mxu0 0.0
    %2066 = vmatpush1.msra.mxu0 0.0
    %2067 = vmatprep.subr.mxu0 0.0
    %2068 = vmatpush1.msra.mxu0 0.0
    %2069 = vmatprep.subr.mxu0 0.0
    %2070 = vmatpush1.msra.mxu0 0.0
    %2071 = vmatprep.subr.mxu0 0.0
    %2072 = vmatpush1.msra.mxu0 0.0
    %2073 = vmatprep.subr.mxu0 0.0
    %2074 = vmatpush1.msra.mxu0 0.0
    %2075 = vmatprep.subr.mxu0 0.0
    %2076 = vmatpush1.msra.mxu0 0.0
    %2077 = vmatprep.subr.mxu0 0.0
    %2078 = vmatpush1.msra.mxu0 0.0
    %2079 = vmatprep.subr.mxu0 0.0
    %2080 = vmatpush1.msra.mxu0 0.0
    %2081 = vmatprep.subr.mxu0 0.0
    %2082 = vmatpush1.msra.mxu0 0.0
    %2083 = vmatprep.subr.mxu0 0.0
    %2084 = vmatpush1.msra.mxu0 0.0
    %2085 = vmatprep.subr.mxu0 0.0
    %2086 = vmatpush1.msra.mxu0 0.0
    %2087 = vmatprep.subr.mxu0 0.0
    %2088 = vmatpush1.msra.mxu0 0.0
    %2089 = vmatprep.subr.mxu0 0.0
    %2090 = vmatpush1.msra.mxu0 0.0
    %2091 = vmatprep.subr.mxu0 0.0
    %2092 = vmatpush1.msra.mxu0 0.0
    %2093 = vmatprep.subr.mxu0 0.0
    %2094 = vmatpush1.msra.mxu0 0.0
    %2095 = vmatprep.subr.mxu0 0.0
    %2096 = vmatpush1.msra.mxu0 0.0
    %2097 = vmatprep.subr.mxu0 0.0
    %2098 = vmatpush1.msra.mxu0 0.0
    %2099 = vmatprep.subr.mxu0 0.0
    %2100 = vmatpush1.msra.mxu0 0.0
    %2101 = vmatprep.subr.mxu0 0.0
    %2102 = vmatpush1.msra.mxu0 0.0
    %2103 = vmatprep.subr.mxu0 0.0
    %2104 = vmatpush1.msra.mxu0 0.0
    %2105 = vmatprep.subr.mxu0 0.0
    %2106 = vmatpush1.msra.mxu0 0.0
    %2107 = vmatprep.subr.mxu0 0.0
    %2108 = vmatpush1.msra.mxu0 0.0
    %2109 = vmatprep.subr.mxu0 0.0
    %2110 = vmatpush1.msra.mxu0 0.0
    %2111 = vmatprep.subr.mxu0 0.0
    %2112 = vmatpush1.msra.mxu0 0.0
    %2113 = vmatprep.subr.mxu0 0.0
    %2114 = vmatpush1.msra.mxu0 0.0
    %2115 = vmatprep.subr.mxu0 0.0
    %2116 = vmatpush1.msra.mxu0 0.0
    %2117 = vmatprep.subr.mxu0 0.0
    %2118 = vmatpush1.msra.mxu0 0.0
    %2119 = vmatprep.subr.mxu0 0.0
    %2120 = vmatpush1.msra.mxu0 0.0
    %2121 = vmatprep.subr.mxu0 0.0
    %2122 = vmatpush1.msra.mxu0 0.0
    %2123 = vmatprep.subr.mxu0 0.0
    %2124 = vmatpush1.msra.mxu0 0.0
    %2125 = vmatprep.mubr.f32.mxu0 0.0
    %2126 = vmatmul.mubr.f32.gmra.mrb[0].mxu0 %v2059
    %v2127 = vpop.f32.mrb[0].mxu0
    %v2128 = vadd.f32 0.0, %v2127
    %v2129 = vpop.f32.mrb[0].mxu0
    %2130 = vdwg.mxu0
    %2132 = vrot.lane.b32.xlu0 %v453, 64
    %v2133 = vpop.permute.xlu0 %2132
    %v2136 = vsel %vm1382, %v1508, 0
    %2138 = vmatprep.subr.mxu0 0.0
    %2139 = vmatpush1.msra.mxu0 %v2133
    %2140 = vmatprep.subr.mxu0 0.0
    %2141 = vmatpush1.msra.mxu0 0.0
    %2142 = vmatprep.subr.mxu0 0.0
    %2143 = vmatpush1.msra.mxu0 0.0
    %2144 = vmatprep.subr.mxu0 0.0
    %2145 = vmatpush1.msra.mxu0 0.0
    %2146 = vmatprep.subr.mxu0 0.0
    %2147 = vmatpush1.msra.mxu0 0.0
    %2148 = vmatprep.subr.mxu0 0.0
    %2149 = vmatpush1.msra.mxu0 0.0
    %2150 = vmatprep.subr.mxu0 0.0
    %2151 = vmatpush1.msra.mxu0 0.0
    %2152 = vmatprep.subr.mxu0 0.0
    %2153 = vmatpush1.msra.mxu0 0.0
    %2154 = vmatprep.subr.mxu0 0.0
    %2155 = vmatpush1.msra.mxu0 0.0
    %2156 = vmatprep.subr.mxu0 0.0
    %2157 = vmatpush1.msra.mxu0 0.0
    %2158 = vmatprep.subr.mxu0 0.0
    %2159 = vmatpush1.msra.mxu0 0.0
    %2160 = vmatprep.subr.mxu0 0.0
    %2161 = vmatpush1.msra.mxu0 0.0
    %2162 = vmatprep.subr.mxu0 0.0
    %2163 = vmatpush1.msra.mxu0 0.0
    %2164 = vmatprep.subr.mxu0 0.0
    %2165 = vmatpush1.msra.mxu0 0.0
    %2166 = vmatprep.subr.mxu0 0.0
    %2167 = vmatpush1.msra.mxu0 0.0
    %2168 = vmatprep.subr.mxu0 0.0
    %2169 = vmatpush1.msra.mxu0 0.0
    %2170 = vmatprep.subr.mxu0 0.0
    %2171 = vmatpush1.msra.mxu0 0.0
    %2172 = vmatprep.subr.mxu0 0.0
    %2173 = vmatpush1.msra.mxu0 0.0
    %2174 = vmatprep.subr.mxu0 0.0
    %2175 = vmatpush1.msra.mxu0 0.0
    %2176 = vmatprep.subr.mxu0 0.0
    %2177 = vmatpush1.msra.mxu0 0.0
    %2178 = vmatprep.subr.mxu0 0.0
    %2179 = vmatpush1.msra.mxu0 0.0
    %2180 = vmatprep.subr.mxu0 0.0
    %2181 = vmatpush1.msra.mxu0 0.0
    %2182 = vmatprep.subr.mxu0 0.0
    %2183 = vmatpush1.msra.mxu0 0.0
    %2184 = vmatprep.subr.mxu0 0.0
    %2185 = vmatpush1.msra.mxu0 0.0
    %2186 = vmatprep.subr.mxu0 0.0
    %2187 = vmatpush1.msra.mxu0 0.0
    %2188 = vmatprep.subr.mxu0 0.0
    %2189 = vmatpush1.msra.mxu0 0.0
    %2190 = vmatprep.subr.mxu0 0.0
    %2191 = vmatpush1.msra.mxu0 0.0
    %2192 = vmatprep.subr.mxu0 0.0
    %2193 = vmatpush1.msra.mxu0 0.0
    %2194 = vmatprep.subr.mxu0 0.0
    %2195 = vmatpush1.msra.mxu0 0.0
    %2196 = vmatprep.subr.mxu0 0.0
    %2197 = vmatpush1.msra.mxu0 0.0
    %2198 = vmatprep.subr.mxu0 0.0
    %2199 = vmatpush1.msra.mxu0 0.0
    %2200 = vmatprep.subr.mxu0 0.0
    %2201 = vmatpush1.msra.mxu0 0.0
    %2202 = vmatprep.mubr.f32.mxu0 0.0
    %2203 = vmatmul.mubr.f32.gmra.mrb[0].mxu0 %v2136
    %v2204 = vpop.f32.mrb[0].mxu0
    %v2205 = vadd.f32 0.0, %v2204
    %v2206 = vpop.f32.mrb[0].mxu0
    %2207 = vdwg.mxu0
    %2209 = vrot.lane.b32.xlu0 %v454, 64
    %v2210 = vpop.permute.xlu0 %2209
    %v2213 = vsel %vm1382, %v1510, 0
    %2215 = vmatprep.subr.mxu0 0.0
    %2216 = vmatpush1.msra.mxu0 %v2210
    %2217 = vmatprep.subr.mxu0 0.0
    %2218 = vmatpush1.msra.mxu0 0.0
    %2219 = vmatprep.subr.mxu0 0.0
    %2220 = vmatpush1.msra.mxu0 0.0
    %2221 = vmatprep.subr.mxu0 0.0
    %2222 = vmatpush1.msra.mxu0 0.0
    %2223 = vmatprep.subr.mxu0 0.0
    %2224 = vmatpush1.msra.mxu0 0.0
    %2225 = vmatprep.subr.mxu0 0.0
    %2226 = vmatpush1.msra.mxu0 0.0
    %2227 = vmatprep.subr.mxu0 0.0
    %2228 = vmatpush1.msra.mxu0 0.0
    %2229 = vmatprep.subr.mxu0 0.0
    %2230 = vmatpush1.msra.mxu0 0.0
    %2231 = vmatprep.subr.mxu0 0.0
    %2232 = vmatpush1.msra.mxu0 0.0
    %2233 = vmatprep.subr.mxu0 0.0
    %2234 = vmatpush1.msra.mxu0 0.0
    %2235 = vmatprep.subr.mxu0 0.0
    %2236 = vmatpush1.msra.mxu0 0.0
    %2237 = vmatprep.subr.mxu0 0.0
    %2238 = vmatpush1.msra.mxu0 0.0
    %2239 = vmatprep.subr.mxu0 0.0
    %2240 = vmatpush1.msra.mxu0 0.0
    %2241 = vmatprep.subr.mxu0 0.0
    %2242 = vmatpush1.msra.mxu0 0.0
    %2243 = vmatprep.subr.mxu0 0.0
    %2244 = vmatpush1.msra.mxu0 0.0
    %2245 = vmatprep.subr.mxu0 0.0
    %2246 = vmatpush1.msra.mxu0 0.0
    %2247 = vmatprep.subr.mxu0 0.0
    %2248 = vmatpush1.msra.mxu0 0.0
    %2249 = vmatprep.subr.mxu0 0.0
    %2250 = vmatpush1.msra.mxu0 0.0
    %2251 = vmatprep.subr.mxu0 0.0
    %2252 = vmatpush1.msra.mxu0 0.0
    %2253 = vmatprep.subr.mxu0 0.0
    %2254 = vmatpush1.msra.mxu0 0.0
    %2255 = vmatprep.subr.mxu0 0.0
    %2256 = vmatpush1.msra.mxu0 0.0
    %2257 = vmatprep.subr.mxu0 0.0
    %2258 = vmatpush1.msra.mxu0 0.0
    %2259 = vmatprep.subr.mxu0 0.0
    %2260 = vmatpush1.msra.mxu0 0.0
    %2261 = vmatprep.subr.mxu0 0.0
    %2262 = vmatpush1.msra.mxu0 0.0
    %2263 = vmatprep.subr.mxu0 0.0
    %2264 = vmatpush1.msra.mxu0 0.0
    %2265 = vmatprep.subr.mxu0 0.0
    %2266 = vmatpush1.msra.mxu0 0.0
    %2267 = vmatprep.subr.mxu0 0.0
    %2268 = vmatpush1.msra.mxu0 0.0
    %2269 = vmatprep.subr.mxu0 0.0
    %2270 = vmatpush1.msra.mxu0 0.0
    %2271 = vmatprep.subr.mxu0 0.0
    %2272 = vmatpush1.msra.mxu0 0.0
    %2273 = vmatprep.subr.mxu0 0.0
    %2274 = vmatpush1.msra.mxu0 0.0
    %2275 = vmatprep.subr.mxu0 0.0
    %2276 = vmatpush1.msra.mxu0 0.0
    %2277 = vmatprep.subr.mxu0 0.0
    %2278 = vmatpush1.msra.mxu0 0.0
    %2279 = vmatprep.mubr.f32.mxu0 0.0
    %2280 = vmatmul.mubr.f32.gmra.mrb[0].mxu0 %v2213
    %v2281 = vpop.f32.mrb[0].mxu0
    %v2282 = vadd.f32 0.0, %v2281
    %v2283 = vpop.f32.mrb[0].mxu0
    %2284 = vdwg.mxu0
    %2286 = vrot.lane.b32.xlu0 %v455, 64
    %v2287 = vpop.permute.xlu0 %2286
    %v2290 = vsel %vm1382, %v1512, 0
    %2292 = vmatprep.subr.mxu0 0.0
    %2293 = vmatpush1.msra.mxu0 %v2287
    %2294 = vmatprep.subr.mxu0 0.0
    %2295 = vmatpush1.msra.mxu0 0.0
    %2296 = vmatprep.subr.mxu0 0.0
    %2297 = vmatpush1.msra.mxu0 0.0
    %2298 = vmatprep.subr.mxu0 0.0
    %2299 = vmatpush1.msra.mxu0 0.0
    %2300 = vmatprep.subr.mxu0 0.0
    %2301 = vmatpush1.msra.mxu0 0.0
    %2302 = vmatprep.subr.mxu0 0.0
    %2303 = vmatpush1.msra.mxu0 0.0
    %2304 = vmatprep.subr.mxu0 0.0
    %2305 = vmatpush1.msra.mxu0 0.0
    %2306 = vmatprep.subr.mxu0 0.0
    %2307 = vmatpush1.msra.mxu0 0.0
    %2308 = vmatprep.subr.mxu0 0.0
    %2309 = vmatpush1.msra.mxu0 0.0
    %2310 = vmatprep.subr.mxu0 0.0
    %2311 = vmatpush1.msra.mxu0 0.0
    %2312 = vmatprep.subr.mxu0 0.0
    %2313 = vmatpush1.msra.mxu0 0.0
    %2314 = vmatprep.subr.mxu0 0.0
    %2315 = vmatpush1.msra.mxu0 0.0
    %2316 = vmatprep.subr.mxu0 0.0
    %2317 = vmatpush1.msra.mxu0 0.0
    %2318 = vmatprep.subr.mxu0 0.0
    %2319 = vmatpush1.msra.mxu0 0.0
    %2320 = vmatprep.subr.mxu0 0.0
    %2321 = vmatpush1.msra.mxu0 0.0
    %2322 = vmatprep.subr.mxu0 0.0
    %2323 = vmatpush1.msra.mxu0 0.0
    %2324 = vmatprep.subr.mxu0 0.0
    %2325 = vmatpush1.msra.mxu0 0.0
    %2326 = vmatprep.subr.mxu0 0.0
    %2327 = vmatpush1.msra.mxu0 0.0
    %2328 = vmatprep.subr.mxu0 0.0
    %2329 = vmatpush1.msra.mxu0 0.0
    %2330 = vmatprep.subr.mxu0 0.0
    %2331 = vmatpush1.msra.mxu0 0.0
    %2332 = vmatprep.subr.mxu0 0.0
    %2333 = vmatpush1.msra.mxu0 0.0
    %2334 = vmatprep.subr.mxu0 0.0
    %2335 = vmatpush1.msra.mxu0 0.0
    %2336 = vmatprep.subr.mxu0 0.0
    %2337 = vmatpush1.msra.mxu0 0.0
    %2338 = vmatprep.subr.mxu0 0.0
    %2339 = vmatpush1.msra.mxu0 0.0
    %2340 = vmatprep.subr.mxu0 0.0
    %2341 = vmatpush1.msra.mxu0 0.0
    %2342 = vmatprep.subr.mxu0 0.0
    %2343 = vmatpush1.msra.mxu0 0.0
    %2344 = vmatprep.subr.mxu0 0.0
    %2345 = vmatpush1.msra.mxu0 0.0
    %2346 = vmatprep.subr.mxu0 0.0
    %2347 = vmatpush1.msra.mxu0 0.0
    %2348 = vmatprep.subr.mxu0 0.0
    %2349 = vmatpush1.msra.mxu0 0.0
    %2350 = vmatprep.subr.mxu0 0.0
    %2351 = vmatpush1.msra.mxu0 0.0
    %2352 = vmatprep.subr.mxu0 0.0
    %2353 = vmatpush1.msra.mxu0 0.0
    %2354 = vmatprep.subr.mxu0 0.0
    %2355 = vmatpush1.msra.mxu0 0.0
    %2356 = vmatprep.mubr.f32.mxu0 0.0
    %2357 = vmatmul.mubr.f32.gmra.mrb[0].mxu0 %v2290
    %v2358 = vpop.f32.mrb[0].mxu0
    %v2359 = vadd.f32 0.0, %v2358
    %v2360 = vpop.f32.mrb[0].mxu0
    %2361 = vdwg.mxu0
    %2363 = vrot.lane.b32.xlu0 %v456, 64
    %v2364 = vpop.permute.xlu0 %2363
    %v2367 = vsel %vm1382, %v1514, 0
    %2369 = vmatprep.subr.mxu0 0.0
    %2370 = vmatpush1.msra.mxu0 %v2364
    %2371 = vmatprep.subr.mxu0 0.0
    %2372 = vmatpush1.msra.mxu0 0.0
    %2373 = vmatprep.subr.mxu0 0.0
    %2374 = vmatpush1.msra.mxu0 0.0
    %2375 = vmatprep.subr.mxu0 0.0
    %2376 = vmatpush1.msra.mxu0 0.0
    %2377 = vmatprep.subr.mxu0 0.0
    %2378 = vmatpush1.msra.mxu0 0.0
    %2379 = vmatprep.subr.mxu0 0.0
    %2380 = vmatpush1.msra.mxu0 0.0
    %2381 = vmatprep.subr.mxu0 0.0
    %2382 = vmatpush1.msra.mxu0 0.0
    %2383 = vmatprep.subr.mxu0 0.0
    %2384 = vmatpush1.msra.mxu0 0.0
    %2385 = vmatprep.subr.mxu0 0.0
    %2386 = vmatpush1.msra.mxu0 0.0
    %2387 = vmatprep.subr.mxu0 0.0
    %2388 = vmatpush1.msra.mxu0 0.0
    %2389 = vmatprep.subr.mxu0 0.0
    %2390 = vmatpush1.msra.mxu0 0.0
    %2391 = vmatprep.subr.mxu0 0.0
    %2392 = vmatpush1.msra.mxu0 0.0
    %2393 = vmatprep.subr.mxu0 0.0
    %2394 = vmatpush1.msra.mxu0 0.0
    %2395 = vmatprep.subr.mxu0 0.0
    %2396 = vmatpush1.msra.mxu0 0.0
    %2397 = vmatprep.subr.mxu0 0.0
    %2398 = vmatpush1.msra.mxu0 0.0
    %2399 = vmatprep.subr.mxu0 0.0
    %2400 = vmatpush1.msra.mxu0 0.0
    %2401 = vmatprep.subr.mxu0 0.0
    %2402 = vmatpush1.msra.mxu0 0.0
    %2403 = vmatprep.subr.mxu0 0.0
    %2404 = vmatpush1.msra.mxu0 0.0
    %2405 = vmatprep.subr.mxu0 0.0
    %2406 = vmatpush1.msra.mxu0 0.0
    %2407 = vmatprep.subr.mxu0 0.0
    %2408 = vmatpush1.msra.mxu0 0.0
    %2409 = vmatprep.subr.mxu0 0.0
    %2410 = vmatpush1.msra.mxu0 0.0
    %2411 = vmatprep.subr.mxu0 0.0
    %2412 = vmatpush1.msra.mxu0 0.0
    %2413 = vmatprep.subr.mxu0 0.0
    %2414 = vmatpush1.msra.mxu0 0.0
    %2415 = vmatprep.subr.mxu0 0.0
    %2416 = vmatpush1.msra.mxu0 0.0
    %2417 = vmatprep.subr.mxu0 0.0
    %2418 = vmatpush1.msra.mxu0 0.0
    %2419 = vmatprep.subr.mxu0 0.0
    %2420 = vmatpush1.msra.mxu0 0.0
    %2421 = vmatprep.subr.mxu0 0.0
    %2422 = vmatpush1.msra.mxu0 0.0
    %2423 = vmatprep.subr.mxu0 0.0
    %2424 = vmatpush1.msra.mxu0 0.0
    %2425 = vmatprep.subr.mxu0 0.0
    %2426 = vmatpush1.msra.mxu0 0.0
    %2427 = vmatprep.subr.mxu0 0.0
    %2428 = vmatpush1.msra.mxu0 0.0
    %2429 = vmatprep.subr.mxu0 0.0
    %2430 = vmatpush1.msra.mxu0 0.0
    %2431 = vmatprep.subr.mxu0 0.0
    %2432 = vmatpush1.msra.mxu0 0.0
    %2433 = vmatprep.mubr.f32.mxu0 0.0
    %2434 = vmatmul.mubr.f32.gmra.mrb[0].mxu0 %v2367
    %v2435 = vpop.f32.mrb[0].mxu0
    %v2436 = vadd.f32 0.0, %v2435
    %v2437 = vpop.f32.mrb[0].mxu0
    %2438 = vdwg.mxu0
    %v2439 = vadd.f32 %v1589, %v2051
    %v2440 = vadd.f32 %v1666, %v2128
    %v2441 = vadd.f32 %v1743, %v2205
    %v2442 = vadd.f32 %v1820, %v2282
    %v2443 = vadd.f32 %v1897, %v2359
    %v2444 = vadd.f32 %v1974, %v2436
    %v2445 = vld [vmem:[%s6] sm:$0xff]
    %v2446 = vld [vmem:[%s6 + $0x8] sm:$0xff]
    %v2447 = vld [vmem:[%s6 + $0x10] sm:$0xff]
    %v2448 = vld [vmem:[%s6 + $0x18] sm:$0xff]
    %v2449 = vld [vmem:[%s7] sm:$0x1]
    %v2451 = vlaneseq
    %v2452 = vshrl.u32 %v2451, 7
    %v2453 = vsub.s32 0, %v2452
    %v2454 = vrot.slane %v2449, %v2453
    %v2457 = vsel %vm62, %v2439, 0
    %v2460 = vsel %vm62, %v2440, 0
    %v2463 = vsel %vm62, %v2441, 0
    %v2466 = vsel %vm62, %v2442, 0
    %v2469 = vsel %vm62, %v2443, 0
    %v2472 = vsel %vm62, %v2444, 0
    %2474 = vmatprep.subr.mxu0 0.0
    %2475 = vmatpush1.msra.mxu0 %v2445
    %2476 = vmatprep.subr.mxu0 0.0
    %2477 = vmatpush1.msra.mxu0 %v2446
    %2478 = vmatprep.subr.mxu0 0.0
    %2479 = vmatpush1.msra.mxu0 %v2447
    %2480 = vmatprep.subr.mxu0 0.0
    %2481 = vmatpush1.msra.mxu0 %v2448
    %2482 = vmatprep.subr.mxu0 0.0
    %2483 = vmatpush1.msra.mxu0 0.0
    %2484 = vmatprep.subr.mxu0 0.0
    %2485 = vmatpush1.msra.mxu0 0.0
    %2486 = vmatprep.subr.mxu0 0.0
    %2487 = vmatpush1.msra.mxu0 0.0
    %2488 = vmatprep.subr.mxu0 0.0
    %2489 = vmatpush1.msra.mxu0 0.0
    %2490 = vmatprep.subr.mxu0 0.0
    %2491 = vmatpush1.msra.mxu0 0.0
    %2492 = vmatprep.subr.mxu0 0.0
    %2493 = vmatpush1.msra.mxu0 0.0
    %2494 = vmatprep.subr.mxu0 0.0
    %2495 = vmatpush1.msra.mxu0 0.0
    %2496 = vmatprep.subr.mxu0 0.0
    %2497 = vmatpush1.msra.mxu0 0.0
    %2498 = vmatprep.subr.mxu0 0.0
    %2499 = vmatpush1.msra.mxu0 0.0
    %2500 = vmatprep.subr.mxu0 0.0
    %2501 = vmatpush1.msra.mxu0 0.0
    %2502 = vmatprep.subr.mxu0 0.0
    %2503 = vmatpush1.msra.mxu0 0.0
    %2504 = vmatprep.subr.mxu0 0.0
    %2505 = vmatpush1.msra.mxu0 0.0
    %2506 = vmatprep.subr.mxu0 0.0
    %2507 = vmatpush1.msra.mxu0 0.0
    %2508 = vmatprep.subr.mxu0 0.0
    %2509 = vmatpush1.msra.mxu0 0.0
    %2510 = vmatprep.subr.mxu0 0.0
    %2511 = vmatpush1.msra.mxu0 0.0
    %2512 = vmatprep.subr.mxu0 0.0
    %2513 = vmatpush1.msra.mxu0 0.0
    %2514 = vmatprep.subr.mxu0 0.0
    %2515 = vmatpush1.msra.mxu0 0.0
    %2516 = vmatprep.subr.mxu0 0.0
    %2517 = vmatpush1.msra.mxu0 0.0
    %2518 = vmatprep.subr.mxu0 0.0
    %2519 = vmatpush1.msra.mxu0 0.0
    %2520 = vmatprep.subr.mxu0 0.0
    %2521 = vmatpush1.msra.mxu0 0.0
    %2522 = vmatprep.subr.mxu0 0.0
    %2523 = vmatpush1.msra.mxu0 0.0
    %2524 = vmatprep.subr.mxu0 0.0
    %2525 = vmatpush1.msra.mxu0 0.0
    %2526 = vmatprep.subr.mxu0 0.0
    %2527 = vmatpush1.msra.mxu0 0.0
    %2528 = vmatprep.subr.mxu0 0.0
    %2529 = vmatpush1.msra.mxu0 0.0
    %2530 = vmatprep.subr.mxu0 0.0
    %2531 = vmatpush1.msra.mxu0 0.0
    %2532 = vmatprep.subr.mxu0 0.0
    %2533 = vmatpush1.msra.mxu0 0.0
    %2534 = vmatprep.subr.mxu0 0.0
    %2535 = vmatpush1.msra.mxu0 0.0
    %2536 = vmatprep.subr.mxu0 0.0
    %2537 = vmatpush1.msra.mxu0 0.0
    %2538 = vmatprep.mubr.f32.mxu0 0.0
    %2539 = vmatmul.mubr.f32.gmra.mrb[0].mxu0 %v2457
    %v2540 = vpop.f32.mrb[0].mxu0
    %v2541 = vadd.f32 %v2454, %v2540
    %v2542 = vpop.f32.mrb[0].mxu0
    %2543 = vmatprep.mubr.f32.mxu0 0.0
    %2544 = vmatmul.mubr.f32.gmra.mrb[0].mxu0 %v2460
    %v2545 = vpop.f32.mrb[0].mxu0
    %v2546 = vadd.f32 %v2454, %v2545
    %v2547 = vpop.f32.mrb[0].mxu0
    %2548 = vmatprep.mubr.f32.mxu0 0.0
    %2549 = vmatmul.mubr.f32.gmra.mrb[0].mxu0 %v2463
    %v2550 = vpop.f32.mrb[0].mxu0
    %v2551 = vadd.f32 %v2454, %v2550
    %v2552 = vpop.f32.mrb[0].mxu0
    %2553 = vmatprep.mubr.f32.mxu0 0.0
    %2554 = vmatmul.mubr.f32.gmra.mrb[0].mxu0 %v2466
    %v2555 = vpop.f32.mrb[0].mxu0
    %v2556 = vadd.f32 %v2454, %v2555
    %v2557 = vpop.f32.mrb[0].mxu0
    %2558 = vmatprep.mubr.f32.mxu0 0.0
    %2559 = vmatmul.mubr.f32.gmra.mrb[0].mxu0 %v2469
    %v2560 = vpop.f32.mrb[0].mxu0
    %v2561 = vadd.f32 %v2454, %v2560
    %v2562 = vpop.f32.mrb[0].mxu0
    %2563 = vmatprep.mubr.f32.mxu0 0.0
    %2564 = vmatmul.mubr.f32.gmra.mrb[0].mxu0 %v2472
    %v2565 = vpop.f32.mrb[0].mxu0
    %v2566 = vadd.f32 %v2454, %v2565
    %v2567 = vpop.f32.mrb[0].mxu0
    %2568 = vdwg.mxu0
    %v2569 = vadd.f32 %v178, %v2541
    %v2570 = vadd.f32 %v179, %v2546
    %v2571 = vadd.f32 %v180, %v2551
    %v2572 = vadd.f32 %v181, %v2556
    %v2573 = vadd.f32 %v182, %v2561
    %v2574 = vadd.f32 %v183, %v2566
    %v2575 = vld [vmem:[%s8] sm:$0x1]
    %v2576 = vld [vmem:[%s9] sm:$0x1]
    %v2577 = vsel %vm62, %v2569, 0.0
    %2578 = vadd.xlane.f32.xlu0 %v2577
    %v2579 = vpop.xlane.xlu0 %2578
    %v2580 = vsel %vm62, %v2570, 0.0
    %2581 = vadd.xlane.f32.xlu0 %v2580
    %v2582 = vpop.xlane.xlu0 %2581
    %v2583 = vsel %vm62, %v2571, 0.0
    %2584 = vadd.xlane.f32.xlu0 %v2583
    %v2585 = vpop.xlane.xlu0 %2584
    %v2586 = vsel %vm62, %v2572, 0.0
    %2587 = vadd.xlane.f32.xlu0 %v2586
    %v2588 = vpop.xlane.xlu0 %2587
    %v2589 = vsel %vm62, %v2573, 0.0
    %2590 = vadd.xlane.f32.xlu0 %v2589
    %v2591 = vpop.xlane.xlu0 %2590
    %v2592 = vsel %vm62, %v2574, 0.0
    %2593 = vadd.xlane.f32.xlu0 %v2592
    %v2594 = vpop.xlane.xlu0 %2593
    %v2595 = vmul.f32 %v2579, %v81
    %v2596 = vmul.f32 %v2582, %v81
    %v2597 = vmul.f32 %v2585, %v81
    %v2598 = vmul.f32 %v2588, %v81
    %v2599 = vmul.f32 %v2591, %v81
    %v2600 = vmul.f32 %v2594, %v81
    %v2601 = vmul.f32 %v2569, %v2569
    %v2602 = vmul.f32 %v2570, %v2570
    %v2603 = vmul.f32 %v2571, %v2571
    %v2604 = vmul.f32 %v2572, %v2572
    %v2605 = vmul.f32 %v2573, %v2573
    %v2606 = vmul.f32 %v2574, %v2574
    %v2607 = vsel %vm62, %v2601, 0.0
    %2608 = vadd.xlane.f32.xlu0 %v2607
    %v2609 = vpop.xlane.xlu0 %2608
    %v2610 = vsel %vm62, %v2602, 0.0
    %2611 = vadd.xlane.f32.xlu0 %v2610
    %v2612 = vpop.xlane.xlu0 %2611
    %v2613 = vsel %vm62, %v2603, 0.0
    %2614 = vadd.xlane.f32.xlu0 %v2613
    %v2615 = vpop.xlane.xlu0 %2614
    %v2616 = vsel %vm62, %v2604, 0.0
    %2617 = vadd.xlane.f32.xlu0 %v2616
    %v2618 = vpop.xlane.xlu0 %2617
    %v2619 = vsel %vm62, %v2605, 0.0
    %2620 = vadd.xlane.f32.xlu0 %v2619
    %v2621 = vpop.xlane.xlu0 %2620
    %v2622 = vsel %vm62, %v2606, 0.0
    %2623 = vadd.xlane.f32.xlu0 %v2622
    %v2624 = vpop.xlane.xlu0 %2623
    %v2625 = vmul.f32 %v2609, %v81
    %v2626 = vmul.f32 %v2612, %v81
    %v2627 = vmul.f32 %v2615, %v81
    %v2628 = vmul.f32 %v2618, %v81
    %v2629 = vmul.f32 %v2621, %v81
    %v2630 = vmul.f32 %v2624, %v81
    %v2631 = vmul.f32 %v2595, %v2595
    %v2632 = vmul.f32 %v2596, %v2596
    %v2633 = vmul.f32 %v2597, %v2597
    %v2634 = vmul.f32 %v2598, %v2598
    %v2635 = vmul.f32 %v2599, %v2599
    %v2636 = vmul.f32 %v2600, %v2600
    %v2637 = vsub.f32 %v2625, %v2631
    %v2638 = vsub.f32 %v2626, %v2632
    %v2639 = vsub.f32 %v2627, %v2633
    %v2640 = vsub.f32 %v2628, %v2634
    %v2641 = vsub.f32 %v2629, %v2635
    %v2642 = vsub.f32 %v2630, %v2636
    %v2643 = vmax.f32 %v2637, 0.0
    %v2644 = vmax.f32 %v2638, 0.0
    %v2645 = vmax.f32 %v2639, 0.0
    %v2646 = vmax.f32 %v2640, 0.0
    %v2647 = vmax.f32 %v2641, 0.0
    %v2648 = vmax.f32 %v2642, 0.0
    %v2649 = vsub.f32 %v2569, %v2595
    %v2650 = vsub.f32 %v2570, %v2596
    %v2651 = vsub.f32 %v2571, %v2597
    %v2652 = vsub.f32 %v2572, %v2598
    %v2653 = vsub.f32 %v2573, %v2599
    %v2654 = vsub.f32 %v2574, %v2600
    %v2655 = vadd.f32 %v2643, 1e-12
    %v2656 = vadd.f32 %v2644, 1e-12
    %v2657 = vadd.f32 %v2645, 1e-12
    %v2658 = vadd.f32 %v2646, 1e-12
    %v2659 = vadd.f32 %v2647, 1e-12
    %v2660 = vadd.f32 %v2648, 1e-12
    %v2661 = vrsqrt.pop %v2655
    %v2662 = vrsqrt.pop %v2656
    %v2663 = vrsqrt.pop %v2657
    %v2664 = vrsqrt.pop %v2658
    %v2665 = vrsqrt.pop %v2659
    %v2666 = vrsqrt.pop %v2660
    %v2667 = vmul.f32 %v2649, %v2661
    %v2668 = vmul.f32 %v2650, %v2662
    %v2669 = vmul.f32 %v2651, %v2663
    %v2670 = vmul.f32 %v2652, %v2664
    %v2671 = vmul.f32 %v2653, %v2665
    %v2672 = vmul.f32 %v2654, %v2666
    %v2674 = vlaneseq
    %v2675 = vshrl.u32 %v2674, 7
    %v2676 = vsub.s32 0, %v2675
    %v2677 = vrot.slane %v2575, %v2676
    %v2679 = vmul.f32 %v2667, %v2677
    %v2680 = vmul.f32 %v2668, %v2677
    %v2681 = vmul.f32 %v2669, %v2677
    %v2682 = vmul.f32 %v2670, %v2677
    %v2683 = vmul.f32 %v2671, %v2677
    %v2684 = vmul.f32 %v2672, %v2677
    %v2686 = vlaneseq
    %v2687 = vshrl.u32 %v2686, 7
    %v2688 = vsub.s32 0, %v2687
    %v2689 = vrot.slane %v2576, %v2688
    %v2691 = vadd.f32 %v2679, %v2689
    %v2692 = vadd.f32 %v2680, %v2689
    %v2693 = vadd.f32 %v2681, %v2689
    %v2694 = vadd.f32 %v2682, %v2689
    %v2695 = vadd.f32 %v2683, %v2689
    %v2696 = vadd.f32 %v2684, %v2689
    %v2697 = vld [vmem:[%s10] sm:$0xff]
    %v2698 = vld [vmem:[%s10 + $0x8] sm:$0xff]
    %v2699 = vld [vmem:[%s10 + $0x10] sm:$0xff]
    %v2700 = vld [vmem:[%s10 + $0x18] sm:$0xff]
    %v2701 = vld [vmem:[%s11] sm:$0x1]
    %v2703 = vlaneseq
    %v2704 = vshrl.u32 %v2703, 7
    %v2705 = vsub.s32 0, %v2704
    %v2706 = vrot.slane %v2701, %v2705
    %v2709 = vsel %vm62, %v2691, 0
    %v2712 = vsel %vm62, %v2692, 0
    %v2715 = vsel %vm62, %v2693, 0
    %v2718 = vsel %vm62, %v2694, 0
    %v2721 = vsel %vm62, %v2695, 0
    %v2724 = vsel %vm62, %v2696, 0
    %2726 = vmatprep.subr.mxu0 0.0
    %2727 = vmatpush1.msra.mxu0 %v2697
    %2728 = vmatprep.subr.mxu0 0.0
    %2729 = vmatpush1.msra.mxu0 %v2698
    %2730 = vmatprep.subr.mxu0 0.0
    %2731 = vmatpush1.msra.mxu0 %v2699
    %2732 = vmatprep.subr.mxu0 0.0
    %2733 = vmatpush1.msra.mxu0 %v2700
    %2734 = vmatprep.subr.mxu0 0.0
    %2735 = vmatpush1.msra.mxu0 0.0
    %2736 = vmatprep.subr.mxu0 0.0
    %2737 = vmatpush1.msra.mxu0 0.0
    %2738 = vmatprep.subr.mxu0 0.0
    %2739 = vmatpush1.msra.mxu0 0.0
    %2740 = vmatprep.subr.mxu0 0.0
    %2741 = vmatpush1.msra.mxu0 0.0
    %2742 = vmatprep.subr.mxu0 0.0
    %2743 = vmatpush1.msra.mxu0 0.0
    %2744 = vmatprep.subr.mxu0 0.0
    %2745 = vmatpush1.msra.mxu0 0.0
    %2746 = vmatprep.subr.mxu0 0.0
    %2747 = vmatpush1.msra.mxu0 0.0
    %2748 = vmatprep.subr.mxu0 0.0
    %2749 = vmatpush1.msra.mxu0 0.0
    %2750 = vmatprep.subr.mxu0 0.0
    %2751 = vmatpush1.msra.mxu0 0.0
    %2752 = vmatprep.subr.mxu0 0.0
    %2753 = vmatpush1.msra.mxu0 0.0
    %2754 = vmatprep.subr.mxu0 0.0
    %2755 = vmatpush1.msra.mxu0 0.0
    %2756 = vmatprep.subr.mxu0 0.0
    %2757 = vmatpush1.msra.mxu0 0.0
    %2758 = vmatprep.subr.mxu0 0.0
    %2759 = vmatpush1.msra.mxu0 0.0
    %2760 = vmatprep.subr.mxu0 0.0
    %2761 = vmatpush1.msra.mxu0 0.0
    %2762 = vmatprep.subr.mxu0 0.0
    %2763 = vmatpush1.msra.mxu0 0.0
    %2764 = vmatprep.subr.mxu0 0.0
    %2765 = vmatpush1.msra.mxu0 0.0
    %2766 = vmatprep.subr.mxu0 0.0
    %2767 = vmatpush1.msra.mxu0 0.0
    %2768 = vmatprep.subr.mxu0 0.0
    %2769 = vmatpush1.msra.mxu0 0.0
    %2770 = vmatprep.subr.mxu0 0.0
    %2771 = vmatpush1.msra.mxu0 0.0
    %2772 = vmatprep.subr.mxu0 0.0
    %2773 = vmatpush1.msra.mxu0 0.0
    %2774 = vmatprep.subr.mxu0 0.0
    %2775 = vmatpush1.msra.mxu0 0.0
    %2776 = vmatprep.subr.mxu0 0.0
    %2777 = vmatpush1.msra.mxu0 0.0
    %2778 = vmatprep.subr.mxu0 0.0
    %2779 = vmatpush1.msra.mxu0 0.0
    %2780 = vmatprep.subr.mxu0 0.0
    %2781 = vmatpush1.msra.mxu0 0.0
    %2782 = vmatprep.subr.mxu0 0.0
    %2783 = vmatpush1.msra.mxu0 0.0
    %2784 = vmatprep.subr.mxu0 0.0
    %2785 = vmatpush1.msra.mxu0 0.0
    %2786 = vmatprep.subr.mxu0 0.0
    %2787 = vmatpush1.msra.mxu0 0.0
    %2788 = vmatprep.subr.mxu0 0.0
    %2789 = vmatpush1.msra.mxu0 0.0
    %2790 = vmatprep.mubr.f32.mxu0 0.0
    %2791 = vmatmul.mubr.f32.gmra.mrb[0].mxu0 %v2709
    %v2792 = vpop.f32.mrb[0].mxu0
    %v2793 = vadd.f32 %v2706, %v2792
    %v2794 = vpop.f32.mrb[0].mxu0
    %2795 = vmatprep.mubr.f32.mxu0 0.0
    %2796 = vmatmul.mubr.f32.gmra.mrb[0].mxu0 %v2712
    %v2797 = vpop.f32.mrb[0].mxu0
    %v2798 = vadd.f32 %v2706, %v2797
    %v2799 = vpop.f32.mrb[0].mxu0
    %2800 = vmatprep.mubr.f32.mxu0 0.0
    %2801 = vmatmul.mubr.f32.gmra.mrb[0].mxu0 %v2715
    %v2802 = vpop.f32.mrb[0].mxu0
    %v2803 = vadd.f32 %v2706, %v2802
    %v2804 = vpop.f32.mrb[0].mxu0
    %2805 = vmatprep.mubr.f32.mxu0 0.0
    %2806 = vmatmul.mubr.f32.gmra.mrb[0].mxu0 %v2718
    %v2807 = vpop.f32.mrb[0].mxu0
    %v2808 = vadd.f32 %v2706, %v2807
    %v2809 = vpop.f32.mrb[0].mxu0
    %2810 = vmatprep.mubr.f32.mxu0 0.0
    %2811 = vmatmul.mubr.f32.gmra.mrb[0].mxu0 %v2721
    %v2812 = vpop.f32.mrb[0].mxu0
    %v2813 = vadd.f32 %v2706, %v2812
    %v2814 = vpop.f32.mrb[0].mxu0
    %2815 = vmatprep.mubr.f32.mxu0 0.0
    %2816 = vmatmul.mubr.f32.gmra.mrb[0].mxu0 %v2724
    %v2817 = vpop.f32.mrb[0].mxu0
    %v2818 = vadd.f32 %v2706, %v2817
    %v2819 = vpop.f32.mrb[0].mxu0
    %2820 = vdwg.mxu0
    %v2821 = vmul.f32 %v2793, %v2793
    %v2822 = vmul.f32 %v2798, %v2798
    %v2823 = vmul.f32 %v2803, %v2803
    %v2824 = vmul.f32 %v2808, %v2808
    %v2825 = vmul.f32 %v2813, %v2813
    %v2826 = vmul.f32 %v2818, %v2818
    %v2827 = vmul.f32 %v2793, %v2821
    %v2828 = vmul.f32 %v2798, %v2822
    %v2829 = vmul.f32 %v2803, %v2823
    %v2830 = vmul.f32 %v2808, %v2824
    %v2831 = vmul.f32 %v2813, %v2825
    %v2832 = vmul.f32 %v2818, %v2826
    %v2833 = vmul.f32 %v2827, 0.044715
    %v2834 = vmul.f32 %v2828, 0.044715
    %v2835 = vmul.f32 %v2829, 0.044715
    %v2836 = vmul.f32 %v2830, 0.044715
    %v2837 = vmul.f32 %v2831, 0.044715
    %v2838 = vmul.f32 %v2832, 0.044715
    %v2839 = vadd.f32 %v2793, %v2833
    %v2840 = vadd.f32 %v2798, %v2834
    %v2841 = vadd.f32 %v2803, %v2835
    %v2842 = vadd.f32 %v2808, %v2836
    %v2843 = vadd.f32 %v2813, %v2837
    %v2844 = vadd.f32 %v2818, %v2838
    %v2845 = vmul.f32 %v2839, 0.7978846
    %v2846 = vmul.f32 %v2840, 0.7978846
    %v2847 = vmul.f32 %v2841, 0.7978846
    %v2848 = vmul.f32 %v2842, 0.7978846
    %v2849 = vmul.f32 %v2843, 0.7978846
    %v2850 = vmul.f32 %v2844, 0.7978846
    %v2851 = vtanh.pop %v2845
    %v2852 = vtanh.pop %v2846
    %v2853 = vtanh.pop %v2847
    %v2854 = vtanh.pop %v2848
    %v2855 = vtanh.pop %v2849
    %v2856 = vtanh.pop %v2850
    %v2857 = vadd.f32 %v2851, 1.0
    %v2858 = vadd.f32 %v2852, 1.0
    %v2859 = vadd.f32 %v2853, 1.0
    %v2860 = vadd.f32 %v2854, 1.0
    %v2861 = vadd.f32 %v2855, 1.0
    %v2862 = vadd.f32 %v2856, 1.0
    %v2863 = vmul.f32 %v2857, 0.5
    %v2864 = vmul.f32 %v2858, 0.5
    %v2865 = vmul.f32 %v2859, 0.5
    %v2866 = vmul.f32 %v2860, 0.5
    %v2867 = vmul.f32 %v2861, 0.5
    %v2868 = vmul.f32 %v2862, 0.5
    %v2869 = vmul.f32 %v2793, %v2863
    %v2870 = vmul.f32 %v2798, %v2864
    %v2871 = vmul.f32 %v2803, %v2865
    %v2872 = vmul.f32 %v2808, %v2866
    %v2873 = vmul.f32 %v2813, %v2867
    %v2874 = vmul.f32 %v2818, %v2868
    %v2875 = vld [vmem:[%s12] sm:$0xff]
    %v2876 = vld [vmem:[%s12 + $0x8] sm:$0xff]
    %v2877 = vld [vmem:[%s12 + $0x10] sm:$0xff]
    %v2878 = vld [vmem:[%s12 + $0x18] sm:$0xff]
    %v2879 = vld [vmem:[%s12 + $0x20] sm:$0xff]
    %v2880 = vld [vmem:[%s12 + $0x28] sm:$0xff]
    %v2881 = vld [vmem:[%s12 + $0x30] sm:$0xff]
    %v2882 = vld [vmem:[%s12 + $0x38] sm:$0xff]
    %v2883 = vld [vmem:[%s13] sm:$0x1]
    %v2885 = vlaneseq
    %v2886 = vshrl.u32 %v2885, 7
    %v2887 = vsub.s32 0, %v2886
    %v2888 = vrot.slane %v2883, %v2887
    %vm2890 = vcmask 523264
    %v2892 = vsel %vm2890, %v2869, 0
    %v2895 = vsel %vm2890, %v2870, 0
    %v2898 = vsel %vm2890, %v2871, 0
    %v2901 = vsel %vm2890, %v2872, 0
    %v2904 = vsel %vm2890, %v2873, 0
    %v2907 = vsel %vm2890, %v2874, 0
    %2909 = vmatprep.subr.mxu0 0.0
    %2910 = vmatpush1.msra.mxu0 %v2875
    %2911 = vmatprep.subr.mxu0 0.0
    %2912 = vmatpush1.msra.mxu0 %v2876
    %2913 = vmatprep.subr.mxu0 0.0
    %2914 = vmatpush1.msra.mxu0 %v2877
    %2915 = vmatprep.subr.mxu0 0.0
    %2916 = vmatpush1.msra.mxu0 %v2878
    %2917 = vmatprep.subr.mxu0 0.0
    %2918 = vmatpush1.msra.mxu0 %v2879
    %2919 = vmatprep.subr.mxu0 0.0
    %2920 = vmatpush1.msra.mxu0 %v2880
    %2921 = vmatprep.subr.mxu0 0.0
    %2922 = vmatpush1.msra.mxu0 %v2881
    %2923 = vmatprep.subr.mxu0 0.0
    %2924 = vmatpush1.msra.mxu0 %v2882
    %2925 = vmatprep.subr.mxu0 0.0
    %2926 = vmatpush1.msra.mxu0 0.0
    %2927 = vmatprep.subr.mxu0 0.0
    %2928 = vmatpush1.msra.mxu0 0.0
    %2929 = vmatprep.subr.mxu0 0.0
    %2930 = vmatpush1.msra.mxu0 0.0
    %2931 = vmatprep.subr.mxu0 0.0
    %2932 = vmatpush1.msra.mxu0 0.0
    %2933 = vmatprep.subr.mxu0 0.0
    %2934 = vmatpush1.msra.mxu0 0.0
    %2935 = vmatprep.subr.mxu0 0.0
    %2936 = vmatpush1.msra.mxu0 0.0
    %2937 = vmatprep.subr.mxu0 0.0
    %2938 = vmatpush1.msra.mxu0 0.0
    %2939 = vmatprep.subr.mxu0 0.0
    %2940 = vmatpush1.msra.mxu0 0.0
    %2941 = vmatprep.subr.mxu0 0.0
    %2942 = vmatpush1.msra.mxu0 0.0
    %2943 = vmatprep.subr.mxu0 0.0
    %2944 = vmatpush1.msra.mxu0 0.0
    %2945 = vmatprep.subr.mxu0 0.0
    %2946 = vmatpush1.msra.mxu0 0.0
    %2947 = vmatprep.subr.mxu0 0.0
    %2948 = vmatpush1.msra.mxu0 0.0
    %2949 = vmatprep.subr.mxu0 0.0
    %2950 = vmatpush1.msra.mxu0 0.0
    %2951 = vmatprep.subr.mxu0 0.0
    %2952 = vmatpush1.msra.mxu0 0.0
    %2953 = vmatprep.subr.mxu0 0.0
    %2954 = vmatpush1.msra.mxu0 0.0
    %2955 = vmatprep.subr.mxu0 0.0
    %2956 = vmatpush1.msra.mxu0 0.0
    %2957 = vmatprep.subr.mxu0 0.0
    %2958 = vmatpush1.msra.mxu0 0.0
    %2959 = vmatprep.subr.mxu0 0.0
    %2960 = vmatpush1.msra.mxu0 0.0
    %2961 = vmatprep.subr.mxu0 0.0
    %2962 = vmatpush1.msra.mxu0 0.0
    %2963 = vmatprep.subr.mxu0 0.0
    %2964 = vmatpush1.msra.mxu0 0.0
    %2965 = vmatprep.subr.mxu0 0.0
    %2966 = vmatpush1.msra.mxu0 0.0
    %2967 = vmatprep.subr.mxu0 0.0
    %2968 = vmatpush1.msra.mxu0 0.0
    %2969 = vmatprep.subr.mxu0 0.0
    %2970 = vmatpush1.msra.mxu0 0.0
    %2971 = vmatprep.subr.mxu0 0.0
    %2972 = vmatpush1.msra.mxu0 0.0
    %2973 = vmatprep.mubr.f32.mxu0 0.0
    %2974 = vmatmul.mubr.f32.gmra.mrb[0].mxu0 %v2892
    %v2975 = vpop.f32.mrb[0].mxu0
    %v2976 = vadd.f32 %v2888, %v2975
    %v2977 = vpop.f32.mrb[0].mxu0
    %2978 = vmatprep.mubr.f32.mxu0 0.0
    %2979 = vmatmul.mubr.f32.gmra.mrb[0].mxu0 %v2895
    %v2980 = vpop.f32.mrb[0].mxu0
    %v2981 = vadd.f32 %v2888, %v2980
    %v2982 = vpop.f32.mrb[0].mxu0
    %2983 = vmatprep.mubr.f32.mxu0 0.0
    %2984 = vmatmul.mubr.f32.gmra.mrb[0].mxu0 %v2898
    %v2985 = vpop.f32.mrb[0].mxu0
    %v2986 = vadd.f32 %v2888, %v2985
    %v2987 = vpop.f32.mrb[0].mxu0
    %2988 = vmatprep.mubr.f32.mxu0 0.0
    %2989 = vmatmul.mubr.f32.gmra.mrb[0].mxu0 %v2901
    %v2990 = vpop.f32.mrb[0].mxu0
    %v2991 = vadd.f32 %v2888, %v2990
    %v2992 = vpop.f32.mrb[0].mxu0
    %2993 = vmatprep.mubr.f32.mxu0 0.0
    %2994 = vmatmul.mubr.f32.gmra.mrb[0].mxu0 %v2904
    %v2995 = vpop.f32.mrb[0].mxu0
    %v2996 = vadd.f32 %v2888, %v2995
    %v2997 = vpop.f32.mrb[0].mxu0
    %2998 = vmatprep.mubr.f32.mxu0 0.0
    %2999 = vmatmul.mubr.f32.gmra.mrb[0].mxu0 %v2907
    %v3000 = vpop.f32.mrb[0].mxu0
    %v3001 = vadd.f32 %v2888, %v3000
    %v3002 = vpop.f32.mrb[0].mxu0
    %3003 = vdwg.mxu0
    %v3004 = vadd.f32 %v2691, %v2976
    %v3005 = vadd.f32 %v2692, %v2981
    %v3006 = vadd.f32 %v2693, %v2986
    %v3007 = vadd.f32 %v2694, %v2991
    %v3008 = vadd.f32 %v2695, %v2996
    %v3009 = vadd.f32 %v2696, %v3001
    %v3010 = vld [vmem:[%s14] sm:$0x1]
    %v3011 = vld [vmem:[%s15] sm:$0x1]
    %v3012 = vsel %vm62, %v3004, 0.0
    %3013 = vadd.xlane.f32.xlu0 %v3012
    %v3014 = vpop.xlane.xlu0 %3013
    %v3015 = vsel %vm62, %v3005, 0.0
    %3016 = vadd.xlane.f32.xlu0 %v3015
    %v3017 = vpop.xlane.xlu0 %3016
    %v3018 = vsel %vm62, %v3006, 0.0
    %3019 = vadd.xlane.f32.xlu0 %v3018
    %v3020 = vpop.xlane.xlu0 %3019
    %v3021 = vsel %vm62, %v3007, 0.0
    %3022 = vadd.xlane.f32.xlu0 %v3021
    %v3023 = vpop.xlane.xlu0 %3022
    %v3024 = vsel %vm62, %v3008, 0.0
    %3025 = vadd.xlane.f32.xlu0 %v3024
    %v3026 = vpop.xlane.xlu0 %3025
    %v3027 = vsel %vm62, %v3009, 0.0
    %3028 = vadd.xlane.f32.xlu0 %v3027
    %v3029 = vpop.xlane.xlu0 %3028
    %v3030 = vmul.f32 %v3014, %v81
    %v3031 = vmul.f32 %v3017, %v81
    %v3032 = vmul.f32 %v3020, %v81
    %v3033 = vmul.f32 %v3023, %v81
    %v3034 = vmul.f32 %v3026, %v81
    %v3035 = vmul.f32 %v3029, %v81
    %v3036 = vmul.f32 %v3004, %v3004
    %v3037 = vmul.f32 %v3005, %v3005
    %v3038 = vmul.f32 %v3006, %v3006
    %v3039 = vmul.f32 %v3007, %v3007
    %v3040 = vmul.f32 %v3008, %v3008
    %v3041 = vmul.f32 %v3009, %v3009
    %v3042 = vsel %vm62, %v3036, 0.0
    %3043 = vadd.xlane.f32.xlu0 %v3042
    %v3044 = vpop.xlane.xlu0 %3043
    %v3045 = vsel %vm62, %v3037, 0.0
    %3046 = vadd.xlane.f32.xlu0 %v3045
    %v3047 = vpop.xlane.xlu0 %3046
    %v3048 = vsel %vm62, %v3038, 0.0
    %3049 = vadd.xlane.f32.xlu0 %v3048
    %v3050 = vpop.xlane.xlu0 %3049
    %v3051 = vsel %vm62, %v3039, 0.0
    %3052 = vadd.xlane.f32.xlu0 %v3051
    %v3053 = vpop.xlane.xlu0 %3052
    %v3054 = vsel %vm62, %v3040, 0.0
    %3055 = vadd.xlane.f32.xlu0 %v3054
    %v3056 = vpop.xlane.xlu0 %3055
    %v3057 = vsel %vm62, %v3041, 0.0
    %3058 = vadd.xlane.f32.xlu0 %v3057
    %v3059 = vpop.xlane.xlu0 %3058
    %v3060 = vmul.f32 %v3044, %v81
    %v3061 = vmul.f32 %v3047, %v81
    %v3062 = vmul.f32 %v3050, %v81
    %v3063 = vmul.f32 %v3053, %v81
    %v3064 = vmul.f32 %v3056, %v81
    %v3065 = vmul.f32 %v3059, %v81
    %v3066 = vmul.f32 %v3030, %v3030
    %v3067 = vmul.f32 %v3031, %v3031
    %v3068 = vmul.f32 %v3032, %v3032
    %v3069 = vmul.f32 %v3033, %v3033
    %v3070 = vmul.f32 %v3034, %v3034
    %v3071 = vmul.f32 %v3035, %v3035
    %v3072 = vsub.f32 %v3060, %v3066
    %v3073 = vsub.f32 %v3061, %v3067
    %v3074 = vsub.f32 %v3062, %v3068
    %v3075 = vsub.f32 %v3063, %v3069
    %v3076 = vsub.f32 %v3064, %v3070
    %v3077 = vsub.f32 %v3065, %v3071
    %v3078 = vmax.f32 %v3072, 0.0
    %v3079 = vmax.f32 %v3073, 0.0
    %v3080 = vmax.f32 %v3074, 0.0
    %v3081 = vmax.f32 %v3075, 0.0
    %v3082 = vmax.f32 %v3076, 0.0
    %v3083 = vmax.f32 %v3077, 0.0
    %v3084 = vsub.f32 %v3004, %v3030
    %v3085 = vsub.f32 %v3005, %v3031
    %v3086 = vsub.f32 %v3006, %v3032
    %v3087 = vsub.f32 %v3007, %v3033
    %v3088 = vsub.f32 %v3008, %v3034
    %v3089 = vsub.f32 %v3009, %v3035
    %v3090 = vadd.f32 %v3078, 1e-12
    %v3091 = vadd.f32 %v3079, 1e-12
    %v3092 = vadd.f32 %v3080, 1e-12
    %v3093 = vadd.f32 %v3081, 1e-12
    %v3094 = vadd.f32 %v3082, 1e-12
    %v3095 = vadd.f32 %v3083, 1e-12
    %v3096 = vrsqrt.pop %v3090
    %v3097 = vrsqrt.pop %v3091
    %v3098 = vrsqrt.pop %v3092
    %v3099 = vrsqrt.pop %v3093
    %v3100 = vrsqrt.pop %v3094
    %v3101 = vrsqrt.pop %v3095
    %v3102 = vmul.f32 %v3084, %v3096
    %v3103 = vmul.f32 %v3085, %v3097
    %v3104 = vmul.f32 %v3086, %v3098
    %v3105 = vmul.f32 %v3087, %v3099
    %v3106 = vmul.f32 %v3088, %v3100
    %v3107 = vmul.f32 %v3089, %v3101
    %v3109 = vlaneseq
    %v3110 = vshrl.u32 %v3109, 7
    %v3111 = vsub.s32 0, %v3110
    %v3112 = vrot.slane %v3010, %v3111
    %v3114 = vmul.f32 %v3102, %v3112
    %v3115 = vmul.f32 %v3103, %v3112
    %v3116 = vmul.f32 %v3104, %v3112
    %v3117 = vmul.f32 %v3105, %v3112
    %v3118 = vmul.f32 %v3106, %v3112
    %v3119 = vmul.f32 %v3107, %v3112
    %v3121 = vlaneseq
    %v3122 = vshrl.u32 %v3121, 7
    %v3123 = vsub.s32 0, %v3122
    %v3124 = vrot.slane %v3011, %v3123
    %v3126 = vadd.f32 %v3114, %v3124
    %v3127 = vadd.f32 %v3115, %v3124
    %v3128 = vadd.f32 %v3116, %v3124
    %v3129 = vadd.f32 %v3117, %v3124
    %v3130 = vadd.f32 %v3118, %v3124
    %v3131 = vadd.f32 %v3119, %v3124
    %s3132 = scalar_lea.vmem %s4, 32
    %v3133 = vld [vmem:[%s3132] sm:$0xff]
    %v3134 = vld [vmem:[%s3132 + $0x8] sm:$0xff]
    %v3135 = vld [vmem:[%s3132 + $0x10] sm:$0xff]
    %v3136 = vld [vmem:[%s3132 + $0x18] sm:$0xff]
    %s3137 = scalar_lea.vmem %s5, 1
    %v3138 = vld [vmem:[%s3137] sm:$0x1]
    %v3140 = vlaneseq
    %v3141 = vshrl.u32 %v3140, 7
    %v3142 = vsub.s32 0, %v3141
    %v3143 = vrot.slane %v3138, %v3142
    %v3146 = vsel %vm62, %v3126, 0
    %v3149 = vsel %vm62, %v3127, 0
    %v3152 = vsel %vm62, %v3128, 0
    %v3155 = vsel %vm62, %v3129, 0
    %v3158 = vsel %vm62, %v3130, 0
    %v3161 = vsel %vm62, %v3131, 0
    %3163 = vmatprep.subr.mxu0 0.0
    %3164 = vmatpush1.msra.mxu0 %v3133
    %3165 = vmatprep.subr.mxu0 0.0
    %3166 = vmatpush1.msra.mxu0 %v3134
    %3167 = vmatprep.subr.mxu0 0.0
    %3168 = vmatpush1.msra.mxu0 %v3135
    %3169 = vmatprep.subr.mxu0 0.0
    %3170 = vmatpush1.msra.mxu0 %v3136
    %3171 = vmatprep.subr.mxu0 0.0
    %3172 = vmatpush1.msra.mxu0 0.0
    %3173 = vmatprep.subr.mxu0 0.0
    %3174 = vmatpush1.msra.mxu0 0.0
    %3175 = vmatprep.subr.mxu0 0.0
    %3176 = vmatpush1.msra.mxu0 0.0
    %3177 = vmatprep.subr.mxu0 0.0
    %3178 = vmatpush1.msra.mxu0 0.0
    %3179 = vmatprep.subr.mxu0 0.0
    %3180 = vmatpush1.msra.mxu0 0.0
    %3181 = vmatprep.subr.mxu0 0.0
    %3182 = vmatpush1.msra.mxu0 0.0
    %3183 = vmatprep.subr.mxu0 0.0
    %3184 = vmatpush1.msra.mxu0 0.0
    %3185 = vmatprep.subr.mxu0 0.0
    %3186 = vmatpush1.msra.mxu0 0.0
    %3187 = vmatprep.subr.mxu0 0.0
    %3188 = vmatpush1.msra.mxu0 0.0
    %3189 = vmatprep.subr.mxu0 0.0
    %3190 = vmatpush1.msra.mxu0 0.0
    %3191 = vmatprep.subr.mxu0 0.0
    %3192 = vmatpush1.msra.mxu0 0.0
    %3193 = vmatprep.subr.mxu0 0.0
    %3194 = vmatpush1.msra.mxu0 0.0
    %3195 = vmatprep.subr.mxu0 0.0
    %3196 = vmatpush1.msra.mxu0 0.0
    %3197 = vmatprep.subr.mxu0 0.0
    %3198 = vmatpush1.msra.mxu0 0.0
    %3199 = vmatprep.subr.mxu0 0.0
    %3200 = vmatpush1.msra.mxu0 0.0
    %3201 = vmatprep.subr.mxu0 0.0
    %3202 = vmatpush1.msra.mxu0 0.0
    %3203 = vmatprep.subr.mxu0 0.0
    %3204 = vmatpush1.msra.mxu0 0.0
    %3205 = vmatprep.subr.mxu0 0.0
    %3206 = vmatpush1.msra.mxu0 0.0
    %3207 = vmatprep.subr.mxu0 0.0
    %3208 = vmatpush1.msra.mxu0 0.0
    %3209 = vmatprep.subr.mxu0 0.0
    %3210 = vmatpush1.msra.mxu0 0.0
    %3211 = vmatprep.subr.mxu0 0.0
    %3212 = vmatpush1.msra.mxu0 0.0
    %3213 = vmatprep.subr.mxu0 0.0
    %3214 = vmatpush1.msra.mxu0 0.0
    %3215 = vmatprep.subr.mxu0 0.0
    %3216 = vmatpush1.msra.mxu0 0.0
    %3217 = vmatprep.subr.mxu0 0.0
    %3218 = vmatpush1.msra.mxu0 0.0
    %3219 = vmatprep.subr.mxu0 0.0
    %3220 = vmatpush1.msra.mxu0 0.0
    %3221 = vmatprep.subr.mxu0 0.0
    %3222 = vmatpush1.msra.mxu0 0.0
    %3223 = vmatprep.subr.mxu0 0.0
    %3224 = vmatpush1.msra.mxu0 0.0
    %3225 = vmatprep.subr.mxu0 0.0
    %3226 = vmatpush1.msra.mxu0 0.0
    %3227 = vmatprep.mubr.f32.mxu0 0.0
    %3228 = vmatmul.mubr.f32.gmra.mrb[0].mxu0 %v3146
    %v3229 = vpop.f32.mrb[0].mxu0
    %v3230 = vadd.f32 %v3143, %v3229
    %v3231 = vpop.f32.mrb[0].mxu0
    %3232 = vmatprep.mubr.f32.mxu0 0.0
    %3233 = vmatmul.mubr.f32.gmra.mrb[0].mxu0 %v3149
    %v3234 = vpop.f32.mrb[0].mxu0
    %v3235 = vadd.f32 %v3143, %v3234
    %v3236 = vpop.f32.mrb[0].mxu0
    %3237 = vmatprep.mubr.f32.mxu0 0.0
    %3238 = vmatmul.mubr.f32.gmra.mrb[0].mxu0 %v3152
    %v3239 = vpop.f32.mrb[0].mxu0
    %v3240 = vadd.f32 %v3143, %v3239
    %v3241 = vpop.f32.mrb[0].mxu0
    %3242 = vmatprep.mubr.f32.mxu0 0.0
    %3243 = vmatmul.mubr.f32.gmra.mrb[0].mxu0 %v3155
    %v3244 = vpop.f32.mrb[0].mxu0
    %v3245 = vadd.f32 %v3143, %v3244
    %v3246 = vpop.f32.mrb[0].mxu0
    %3247 = vmatprep.mubr.f32.mxu0 0.0
    %3248 = vmatmul.mubr.f32.gmra.mrb[0].mxu0 %v3158
    %v3249 = vpop.f32.mrb[0].mxu0
    %v3250 = vadd.f32 %v3143, %v3249
    %v3251 = vpop.f32.mrb[0].mxu0
    %3252 = vmatprep.mubr.f32.mxu0 0.0
    %3253 = vmatmul.mubr.f32.gmra.mrb[0].mxu0 %v3161
    %v3254 = vpop.f32.mrb[0].mxu0
    %v3255 = vadd.f32 %v3143, %v3254
    %v3256 = vpop.f32.mrb[0].mxu0
    %3257 = vdwg.mxu0
    %3264 = vrot.lane.b32.xlu0 %v3230, 112
    %v3265 = vpop.permute.xlu0 %3264
    %3266 = vrot.lane.b32.xlu0 %v3235, 112
    %v3267 = vpop.permute.xlu0 %3266
    %3268 = vrot.lane.b32.xlu0 %v3240, 112
    %v3269 = vpop.permute.xlu0 %3268
    %3270 = vrot.lane.b32.xlu0 %v3245, 112
    %v3271 = vpop.permute.xlu0 %3270
    %3272 = vrot.lane.b32.xlu0 %v3250, 112
    %v3273 = vpop.permute.xlu0 %3272
    %3274 = vrot.lane.b32.xlu0 %v3255, 112
    %v3275 = vpop.permute.xlu0 %3274
    %v3282 = vmul.f32 %v3230, 0.25
    %v3283 = vmul.f32 %v3235, 0.25
    %v3284 = vmul.f32 %v3240, 0.25
    %v3285 = vmul.f32 %v3245, 0.25
    %v3286 = vmul.f32 %v3250, 0.25
    %v3287 = vmul.f32 %v3255, 0.25
    %v3288 = vmul.f32 %v3265, 0.25
    %v3289 = vmul.f32 %v3267, 0.25
    %v3290 = vmul.f32 %v3269, 0.25
    %v3291 = vmul.f32 %v3271, 0.25
    %v3292 = vmul.f32 %v3273, 0.25
    %v3293 = vmul.f32 %v3275, 0.25
    %v3294 = vmul.f32 %v3230, %v439
    %v3295 = vmul.f32 %v3235, %v439
    %v3296 = vmul.f32 %v3240, %v439
    %v3297 = vmul.f32 %v3245, %v439
    %v3298 = vmul.f32 %v3250, %v439
    %v3299 = vmul.f32 %v3255, %v439
    %v3300 = vmul.f32 %v3230, %v449
    %v3301 = vmul.f32 %v3235, %v449
    %v3302 = vmul.f32 %v3240, %v449
    %v3303 = vmul.f32 %v3245, %v449
    %v3304 = vmul.f32 %v3250, %v449
    %v3305 = vmul.f32 %v3255, %v449
    %3306 = vrot.lane.b32.xlu0 %v3230, 96
    %v3307 = vpop.permute.xlu0 %3306
    %v3309 = vsel %vm459, %v3282, 0
    %v3311 = vsel %vm459, %v3307, 0
    %3313 = vmatprep.subr.mxu0 0.0
    %3314 = vmatpush1.xpose.msra.mxu0 %v3311
    %3315 = vmatprep.subr.mxu0 0.0
    %3316 = vmatpush1.xpose.msra.mxu0 0.0
    %3317 = vmatprep.subr.mxu0 0.0
    %3318 = vmatpush1.xpose.msra.mxu0 0.0
    %3319 = vmatprep.subr.mxu0 0.0
    %3320 = vmatpush1.xpose.msra.mxu0 0.0
    %3321 = vmatprep.subr.mxu0 0.0
    %3322 = vmatpush1.xpose.msra.mxu0 0.0
    %3323 = vmatprep.subr.mxu0 0.0
    %3324 = vmatpush1.xpose.msra.mxu0 0.0
    %3325 = vmatprep.subr.mxu0 0.0
    %3326 = vmatpush1.xpose.msra.mxu0 0.0
    %3327 = vmatprep.subr.mxu0 0.0
    %3328 = vmatpush1.xpose.msra.mxu0 0.0
    %3329 = vmatprep.subr.mxu0 0.0
    %3330 = vmatpush1.xpose.msra.mxu0 0.0
    %3331 = vmatprep.subr.mxu0 0.0
    %3332 = vmatpush1.xpose.msra.mxu0 0.0
    %3333 = vmatprep.subr.mxu0 0.0
    %3334 = vmatpush1.xpose.msra.mxu0 0.0
    %3335 = vmatprep.subr.mxu0 0.0
    %3336 = vmatpush1.xpose.msra.mxu0 0.0
    %3337 = vmatprep.subr.mxu0 0.0
    %3338 = vmatpush1.xpose.msra.mxu0 0.0
    %3339 = vmatprep.subr.mxu0 0.0
    %3340 = vmatpush1.xpose.msra.mxu0 0.0
    %3341 = vmatprep.subr.mxu0 0.0
    %3342 = vmatpush1.xpose.msra.mxu0 0.0
    %3343 = vmatprep.subr.mxu0 0.0
    %3344 = vmatpush1.xpose.msra.mxu0 0.0
    %3345 = vmatprep.subr.mxu0 0.0
    %3346 = vmatpush1.xpose.msra.mxu0 0.0
    %3347 = vmatprep.subr.mxu0 0.0
    %3348 = vmatpush1.xpose.msra.mxu0 0.0
    %3349 = vmatprep.subr.mxu0 0.0
    %3350 = vmatpush1.xpose.msra.mxu0 0.0
    %3351 = vmatprep.subr.mxu0 0.0
    %3352 = vmatpush1.xpose.msra.mxu0 0.0
    %3353 = vmatprep.subr.mxu0 0.0
    %3354 = vmatpush1.xpose.msra.mxu0 0.0
    %3355 = vmatprep.subr.mxu0 0.0
    %3356 = vmatpush1.xpose.msra.mxu0 0.0
    %3357 = vmatprep.subr.mxu0 0.0
    %3358 = vmatpush1.xpose.msra.mxu0 0.0
    %3359 = vmatprep.subr.mxu0 0.0
    %3360 = vmatpush1.xpose.msra.mxu0 0.0
    %3361 = vmatprep.subr.mxu0 0.0
    %3362 = vmatpush1.xpose.msra.mxu0 0.0
    %3363 = vmatprep.subr.mxu0 0.0
    %3364 = vmatpush1.xpose.msra.mxu0 0.0
    %3365 = vmatprep.subr.mxu0 0.0
    %3366 = vmatpush1.xpose.msra.mxu0 0.0
    %3367 = vmatprep.subr.mxu0 0.0
    %3368 = vmatpush1.xpose.msra.mxu0 0.0
    %3369 = vmatprep.subr.mxu0 0.0
    %3370 = vmatpush1.xpose.msra.mxu0 0.0
    %3371 = vmatprep.subr.mxu0 0.0
    %3372 = vmatpush1.xpose.msra.mxu0 0.0
    %3373 = vmatprep.subr.mxu0 0.0
    %3374 = vmatpush1.xpose.msra.mxu0 0.0
    %3375 = vmatprep.subr.mxu0 0.0
    %3376 = vmatpush1.xpose.msra.mxu0 0.0
    %3377 = vmatprep.mubr.f32.mxu0 0.0
    %3378 = vmatmul.mubr.f32.gmra.mrb[0].mxu0 %v3309
    %v3379 = vpop.f32.mrb[0].mxu0
    %v3380 = vadd.f32 %v238, %v3379
    %v3381 = vpop.f32.mrb[0].mxu0
    %3382 = vdwg.mxu0
    %3383 = vrot.lane.b32.xlu0 %v3235, 96
    %v3384 = vpop.permute.xlu0 %3383
    %v3386 = vsel %vm459, %v3283, 0
    %v3388 = vsel %vm459, %v3384, 0
    %3390 = vmatprep.subr.mxu0 0.0
    %3391 = vmatpush1.xpose.msra.mxu0 %v3388
    %3392 = vmatprep.subr.mxu0 0.0
    %3393 = vmatpush1.xpose.msra.mxu0 0.0
    %3394 = vmatprep.subr.mxu0 0.0
    %3395 = vmatpush1.xpose.msra.mxu0 0.0
    %3396 = vmatprep.subr.mxu0 0.0
    %3397 = vmatpush1.xpose.msra.mxu0 0.0
    %3398 = vmatprep.subr.mxu0 0.0
    %3399 = vmatpush1.xpose.msra.mxu0 0.0
    %3400 = vmatprep.subr.mxu0 0.0
    %3401 = vmatpush1.xpose.msra.mxu0 0.0
    %3402 = vmatprep.subr.mxu0 0.0
    %3403 = vmatpush1.xpose.msra.mxu0 0.0
    %3404 = vmatprep.subr.mxu0 0.0
    %3405 = vmatpush1.xpose.msra.mxu0 0.0
    %3406 = vmatprep.subr.mxu0 0.0
    %3407 = vmatpush1.xpose.msra.mxu0 0.0
    %3408 = vmatprep.subr.mxu0 0.0
    %3409 = vmatpush1.xpose.msra.mxu0 0.0
    %3410 = vmatprep.subr.mxu0 0.0
    %3411 = vmatpush1.xpose.msra.mxu0 0.0
    %3412 = vmatprep.subr.mxu0 0.0
    %3413 = vmatpush1.xpose.msra.mxu0 0.0
    %3414 = vmatprep.subr.mxu0 0.0
    %3415 = vmatpush1.xpose.msra.mxu0 0.0
    %3416 = vmatprep.subr.mxu0 0.0
    %3417 = vmatpush1.xpose.msra.mxu0 0.0
    %3418 = vmatprep.subr.mxu0 0.0
    %3419 = vmatpush1.xpose.msra.mxu0 0.0
    %3420 = vmatprep.subr.mxu0 0.0
    %3421 = vmatpush1.xpose.msra.mxu0 0.0
    %3422 = vmatprep.subr.mxu0 0.0
    %3423 = vmatpush1.xpose.msra.mxu0 0.0
    %3424 = vmatprep.subr.mxu0 0.0
    %3425 = vmatpush1.xpose.msra.mxu0 0.0
    %3426 = vmatprep.subr.mxu0 0.0
    %3427 = vmatpush1.xpose.msra.mxu0 0.0
    %3428 = vmatprep.subr.mxu0 0.0
    %3429 = vmatpush1.xpose.msra.mxu0 0.0
    %3430 = vmatprep.subr.mxu0 0.0
    %3431 = vmatpush1.xpose.msra.mxu0 0.0
    %3432 = vmatprep.subr.mxu0 0.0
    %3433 = vmatpush1.xpose.msra.mxu0 0.0
    %3434 = vmatprep.subr.mxu0 0.0
    %3435 = vmatpush1.xpose.msra.mxu0 0.0
    %3436 = vmatprep.subr.mxu0 0.0
    %3437 = vmatpush1.xpose.msra.mxu0 0.0
    %3438 = vmatprep.subr.mxu0 0.0
    %3439 = vmatpush1.xpose.msra.mxu0 0.0
    %3440 = vmatprep.subr.mxu0 0.0
    %3441 = vmatpush1.xpose.msra.mxu0 0.0
    %3442 = vmatprep.subr.mxu0 0.0
    %3443 = vmatpush1.xpose.msra.mxu0 0.0
    %3444 = vmatprep.subr.mxu0 0.0
    %3445 = vmatpush1.xpose.msra.mxu0 0.0
    %3446 = vmatprep.subr.mxu0 0.0
    %3447 = vmatpush1.xpose.msra.mxu0 0.0
    %3448 = vmatprep.subr.mxu0 0.0
    %3449 = vmatpush1.xpose.msra.mxu0 0.0
    %3450 = vmatprep.subr.mxu0 0.0
    %3451 = vmatpush1.xpose.msra.mxu0 0.0
    %3452 = vmatprep.subr.mxu0 0.0
    %3453 = vmatpush1.xpose.msra.mxu0 0.0
    %3454 = vmatprep.mubr.f32.mxu0 0.0
    %3455 = vmatmul.mubr.f32.gmra.mrb[0].mxu0 %v3386
    %v3456 = vpop.f32.mrb[0].mxu0
    %v3457 = vadd.f32 %v242, %v3456
    %v3458 = vpop.f32.mrb[0].mxu0
    %3459 = vdwg.mxu0
    %3460 = vrot.lane.b32.xlu0 %v3240, 96
    %v3461 = vpop.permute.xlu0 %3460
    %v3463 = vsel %vm459, %v3284, 0
    %v3465 = vsel %vm459, %v3461, 0
    %3467 = vmatprep.subr.mxu0 0.0
    %3468 = vmatpush1.xpose.msra.mxu0 %v3465
    %3469 = vmatprep.subr.mxu0 0.0
    %3470 = vmatpush1.xpose.msra.mxu0 0.0
    %3471 = vmatprep.subr.mxu0 0.0
    %3472 = vmatpush1.xpose.msra.mxu0 0.0
    %3473 = vmatprep.subr.mxu0 0.0
    %3474 = vmatpush1.xpose.msra.mxu0 0.0
    %3475 = vmatprep.subr.mxu0 0.0
    %3476 = vmatpush1.xpose.msra.mxu0 0.0
    %3477 = vmatprep.subr.mxu0 0.0
    %3478 = vmatpush1.xpose.msra.mxu0 0.0
    %3479 = vmatprep.subr.mxu0 0.0
    %3480 = vmatpush1.xpose.msra.mxu0 0.0
    %3481 = vmatprep.subr.mxu0 0.0
    %3482 = vmatpush1.xpose.msra.mxu0 0.0
    %3483 = vmatprep.subr.mxu0 0.0
    %3484 = vmatpush1.xpose.msra.mxu0 0.0
    %3485 = vmatprep.subr.mxu0 0.0
    %3486 = vmatpush1.xpose.msra.mxu0 0.0
    %3487 = vmatprep.subr.mxu0 0.0
    %3488 = vmatpush1.xpose.msra.mxu0 0.0
    %3489 = vmatprep.subr.mxu0 0.0
    %3490 = vmatpush1.xpose.msra.mxu0 0.0
    %3491 = vmatprep.subr.mxu0 0.0
    %3492 = vmatpush1.xpose.msra.mxu0 0.0
    %3493 = vmatprep.subr.mxu0 0.0
    %3494 = vmatpush1.xpose.msra.mxu0 0.0
    %3495 = vmatprep.subr.mxu0 0.0
    %3496 = vmatpush1.xpose.msra.mxu0 0.0
    %3497 = vmatprep.subr.mxu0 0.0
    %3498 = vmatpush1.xpose.msra.mxu0 0.0
    %3499 = vmatprep.subr.mxu0 0.0
    %3500 = vmatpush1.xpose.msra.mxu0 0.0
    %3501 = vmatprep.subr.mxu0 0.0
    %3502 = vmatpush1.xpose.msra.mxu0 0.0
    %3503 = vmatprep.subr.mxu0 0.0
    %3504 = vmatpush1.xpose.msra.mxu0 0.0
    %3505 = vmatprep.subr.mxu0 0.0
    %3506 = vmatpush1.xpose.msra.mxu0 0.0
    %3507 = vmatprep.subr.mxu0 0.0
    %3508 = vmatpush1.xpose.msra.mxu0 0.0
    %3509 = vmatprep.subr.mxu0 0.0
    %3510 = vmatpush1.xpose.msra.mxu0 0.0
    %3511 = vmatprep.subr.mxu0 0.0
    %3512 = vmatpush1.xpose.msra.mxu0 0.0
    %3513 = vmatprep.subr.mxu0 0.0
    %3514 = vmatpush1.xpose.msra.mxu0 0.0
    %3515 = vmatprep.subr.mxu0 0.0
    %3516 = vmatpush1.xpose.msra.mxu0 0.0
    %3517 = vmatprep.subr.mxu0 0.0
    %3518 = vmatpush1.xpose.msra.mxu0 0.0
    %3519 = vmatprep.subr.mxu0 0.0
    %3520 = vmatpush1.xpose.msra.mxu0 0.0
    %3521 = vmatprep.subr.mxu0 0.0
    %3522 = vmatpush1.xpose.msra.mxu0 0.0
    %3523 = vmatprep.subr.mxu0 0.0
    %3524 = vmatpush1.xpose.msra.mxu0 0.0
    %3525 = vmatprep.subr.mxu0 0.0
    %3526 = vmatpush1.xpose.msra.mxu0 0.0
    %3527 = vmatprep.subr.mxu0 0.0
    %3528 = vmatpush1.xpose.msra.mxu0 0.0
    %3529 = vmatprep.subr.mxu0 0.0
    %3530 = vmatpush1.xpose.msra.mxu0 0.0
    %3531 = vmatprep.mubr.f32.mxu0 0.0
    %3532 = vmatmul.mubr.f32.gmra.mrb[0].mxu0 %v3463
    %v3533 = vpop.f32.mrb[0].mxu0
    %v3534 = vadd.f32 %v246, %v3533
    %v3535 = vpop.f32.mrb[0].mxu0
    %3536 = vdwg.mxu0
    %3537 = vrot.lane.b32.xlu0 %v3245, 96
    %v3538 = vpop.permute.xlu0 %3537
    %v3540 = vsel %vm459, %v3285, 0
    %v3542 = vsel %vm459, %v3538, 0
    %3544 = vmatprep.subr.mxu0 0.0
    %3545 = vmatpush1.xpose.msra.mxu0 %v3542
    %3546 = vmatprep.subr.mxu0 0.0
    %3547 = vmatpush1.xpose.msra.mxu0 0.0
    %3548 = vmatprep.subr.mxu0 0.0
    %3549 = vmatpush1.xpose.msra.mxu0 0.0
    %3550 = vmatprep.subr.mxu0 0.0
    %3551 = vmatpush1.xpose.msra.mxu0 0.0
    %3552 = vmatprep.subr.mxu0 0.0
    %3553 = vmatpush1.xpose.msra.mxu0 0.0
    %3554 = vmatprep.subr.mxu0 0.0
    %3555 = vmatpush1.xpose.msra.mxu0 0.0
    %3556 = vmatprep.subr.mxu0 0.0
    %3557 = vmatpush1.xpose.msra.mxu0 0.0
    %3558 = vmatprep.subr.mxu0 0.0
    %3559 = vmatpush1.xpose.msra.mxu0 0.0
    %3560 = vmatprep.subr.mxu0 0.0
    %3561 = vmatpush1.xpose.msra.mxu0 0.0
    %3562 = vmatprep.subr.mxu0 0.0
    %3563 = vmatpush1.xpose.msra.mxu0 0.0
    %3564 = vmatprep.subr.mxu0 0.0
    %3565 = vmatpush1.xpose.msra.mxu0 0.0
    %3566 = vmatprep.subr.mxu0 0.0
    %3567 = vmatpush1.xpose.msra.mxu0 0.0
    %3568 = vmatprep.subr.mxu0 0.0
    %3569 = vmatpush1.xpose.msra.mxu0 0.0
    %3570 = vmatprep.subr.mxu0 0.0
    %3571 = vmatpush1.xpose.msra.mxu0 0.0
    %3572 = vmatprep.subr.mxu0 0.0
    %3573 = vmatpush1.xpose.msra.mxu0 0.0
    %3574 = vmatprep.subr.mxu0 0.0
    %3575 = vmatpush1.xpose.msra.mxu0 0.0
    %3576 = vmatprep.subr.mxu0 0.0
    %3577 = vmatpush1.xpose.msra.mxu0 0.0
    %3578 = vmatprep.subr.mxu0 0.0
    %3579 = vmatpush1.xpose.msra.mxu0 0.0
    %3580 = vmatprep.subr.mxu0 0.0
    %3581 = vmatpush1.xpose.msra.mxu0 0.0
    %3582 = vmatprep.subr.mxu0 0.0
    %3583 = vmatpush1.xpose.msra.mxu0 0.0
    %3584 = vmatprep.subr.mxu0 0.0
    %3585 = vmatpush1.xpose.msra.mxu0 0.0
    %3586 = vmatprep.subr.mxu0 0.0
    %3587 = vmatpush1.xpose.msra.mxu0 0.0
    %3588 = vmatprep.subr.mxu0 0.0
    %3589 = vmatpush1.xpose.msra.mxu0 0.0
    %3590 = vmatprep.subr.mxu0 0.0
    %3591 = vmatpush1.xpose.msra.mxu0 0.0
    %3592 = vmatprep.subr.mxu0 0.0
    %3593 = vmatpush1.xpose.msra.mxu0 0.0
    %3594 = vmatprep.subr.mxu0 0.0
    %3595 = vmatpush1.xpose.msra.mxu0 0.0
    %3596 = vmatprep.subr.mxu0 0.0
    %3597 = vmatpush1.xpose.msra.mxu0 0.0
    %3598 = vmatprep.subr.mxu0 0.0
    %3599 = vmatpush1.xpose.msra.mxu0 0.0
    %3600 = vmatprep.subr.mxu0 0.0
    %3601 = vmatpush1.xpose.msra.mxu0 0.0
    %3602 = vmatprep.subr.mxu0 0.0
    %3603 = vmatpush1.xpose.msra.mxu0 0.0
    %3604 = vmatprep.subr.mxu0 0.0
    %3605 = vmatpush1.xpose.msra.mxu0 0.0
    %3606 = vmatprep.subr.mxu0 0.0
    %3607 = vmatpush1.xpose.msra.mxu0 0.0
    %3608 = vmatprep.mubr.f32.mxu0 0.0
    %3609 = vmatmul.mubr.f32.gmra.mrb[0].mxu0 %v3540
    %v3610 = vpop.f32.mrb[0].mxu0
    %v3611 = vadd.f32 %v250, %v3610
    %v3612 = vpop.f32.mrb[0].mxu0
    %3613 = vdwg.mxu0
    %3614 = vrot.lane.b32.xlu0 %v3250, 96
    %v3615 = vpop.permute.xlu0 %3614
    %v3617 = vsel %vm459, %v3286, 0
    %v3619 = vsel %vm459, %v3615, 0
    %3621 = vmatprep.subr.mxu0 0.0
    %3622 = vmatpush1.xpose.msra.mxu0 %v3619
    %3623 = vmatprep.subr.mxu0 0.0
    %3624 = vmatpush1.xpose.msra.mxu0 0.0
    %3625 = vmatprep.subr.mxu0 0.0
    %3626 = vmatpush1.xpose.msra.mxu0 0.0
    %3627 = vmatprep.subr.mxu0 0.0
    %3628 = vmatpush1.xpose.msra.mxu0 0.0
    %3629 = vmatprep.subr.mxu0 0.0
    %3630 = vmatpush1.xpose.msra.mxu0 0.0
    %3631 = vmatprep.subr.mxu0 0.0
    %3632 = vmatpush1.xpose.msra.mxu0 0.0
    %3633 = vmatprep.subr.mxu0 0.0
    %3634 = vmatpush1.xpose.msra.mxu0 0.0
    %3635 = vmatprep.subr.mxu0 0.0
    %3636 = vmatpush1.xpose.msra.mxu0 0.0
    %3637 = vmatprep.subr.mxu0 0.0
    %3638 = vmatpush1.xpose.msra.mxu0 0.0
    %3639 = vmatprep.subr.mxu0 0.0
    %3640 = vmatpush1.xpose.msra.mxu0 0.0
    %3641 = vmatprep.subr.mxu0 0.0
    %3642 = vmatpush1.xpose.msra.mxu0 0.0
    %3643 = vmatprep.subr.mxu0 0.0
    %3644 = vmatpush1.xpose.msra.mxu0 0.0
    %3645 = vmatprep.subr.mxu0 0.0
    %3646 = vmatpush1.xpose.msra.mxu0 0.0
    %3647 = vmatprep.subr.mxu0 0.0
    %3648 = vmatpush1.xpose.msra.mxu0 0.0
    %3649 = vmatprep.subr.mxu0 0.0
    %3650 = vmatpush1.xpose.msra.mxu0 0.0
    %3651 = vmatprep.subr.mxu0 0.0
    %3652 = vmatpush1.xpose.msra.mxu0 0.0
    %3653 = vmatprep.subr.mxu0 0.0
    %3654 = vmatpush1.xpose.msra.mxu0 0.0
    %3655 = vmatprep.subr.mxu0 0.0
    %3656 = vmatpush1.xpose.msra.mxu0 0.0
    %3657 = vmatprep.subr.mxu0 0.0
    %3658 = vmatpush1.xpose.msra.mxu0 0.0
    %3659 = vmatprep.subr.mxu0 0.0
    %3660 = vmatpush1.xpose.msra.mxu0 0.0
    %3661 = vmatprep.subr.mxu0 0.0
    %3662 = vmatpush1.xpose.msra.mxu0 0.0
    %3663 = vmatprep.subr.mxu0 0.0
    %3664 = vmatpush1.xpose.msra.mxu0 0.0
    %3665 = vmatprep.subr.mxu0 0.0
    %3666 = vmatpush1.xpose.msra.mxu0 0.0
    %3667 = vmatprep.subr.mxu0 0.0
    %3668 = vmatpush1.xpose.msra.mxu0 0.0
    %3669 = vmatprep.subr.mxu0 0.0
    %3670 = vmatpush1.xpose.msra.mxu0 0.0
    %3671 = vmatprep.subr.mxu0 0.0
    %3672 = vmatpush1.xpose.msra.mxu0 0.0
    %3673 = vmatprep.subr.mxu0 0.0
    %3674 = vmatpush1.xpose.msra.mxu0 0.0
    %3675 = vmatprep.subr.mxu0 0.0
    %3676 = vmatpush1.xpose.msra.mxu0 0.0
    %3677 = vmatprep.subr.mxu0 0.0
    %3678 = vmatpush1.xpose.msra.mxu0 0.0
    %3679 = vmatprep.subr.mxu0 0.0
    %3680 = vmatpush1.xpose.msra.mxu0 0.0
    %3681 = vmatprep.subr.mxu0 0.0
    %3682 = vmatpush1.xpose.msra.mxu0 0.0
    %3683 = vmatprep.subr.mxu0 0.0
    %3684 = vmatpush1.xpose.msra.mxu0 0.0
    %3685 = vmatprep.mubr.f32.mxu0 0.0
    %3686 = vmatmul.mubr.f32.gmra.mrb[0].mxu0 %v3617
    %v3687 = vpop.f32.mrb[0].mxu0
    %v3688 = vadd.f32 %v254, %v3687
    %v3689 = vpop.f32.mrb[0].mxu0
    %3690 = vdwg.mxu0
    %3691 = vrot.lane.b32.xlu0 %v3255, 96
    %v3692 = vpop.permute.xlu0 %3691
    %v3694 = vsel %vm459, %v3287, 0
    %v3696 = vsel %vm459, %v3692, 0
    %3698 = vmatprep.subr.mxu0 0.0
    %3699 = vmatpush1.xpose.msra.mxu0 %v3696
    %3700 = vmatprep.subr.mxu0 0.0
    %3701 = vmatpush1.xpose.msra.mxu0 0.0
    %3702 = vmatprep.subr.mxu0 0.0
    %3703 = vmatpush1.xpose.msra.mxu0 0.0
    %3704 = vmatprep.subr.mxu0 0.0
    %3705 = vmatpush1.xpose.msra.mxu0 0.0
    %3706 = vmatprep.subr.mxu0 0.0
    %3707 = vmatpush1.xpose.msra.mxu0 0.0
    %3708 = vmatprep.subr.mxu0 0.0
    %3709 = vmatpush1.xpose.msra.mxu0 0.0
    %3710 = vmatprep.subr.mxu0 0.0
    %3711 = vmatpush1.xpose.msra.mxu0 0.0
    %3712 = vmatprep.subr.mxu0 0.0
    %3713 = vmatpush1.xpose.msra.mxu0 0.0
    %3714 = vmatprep.subr.mxu0 0.0
    %3715 = vmatpush1.xpose.msra.mxu0 0.0
    %3716 = vmatprep.subr.mxu0 0.0
    %3717 = vmatpush1.xpose.msra.mxu0 0.0
    %3718 = vmatprep.subr.mxu0 0.0
    %3719 = vmatpush1.xpose.msra.mxu0 0.0
    %3720 = vmatprep.subr.mxu0 0.0
    %3721 = vmatpush1.xpose.msra.mxu0 0.0
    %3722 = vmatprep.subr.mxu0 0.0
    %3723 = vmatpush1.xpose.msra.mxu0 0.0
    %3724 = vmatprep.subr.mxu0 0.0
    %3725 = vmatpush1.xpose.msra.mxu0 0.0
    %3726 = vmatprep.subr.mxu0 0.0
    %3727 = vmatpush1.xpose.msra.mxu0 0.0
    %3728 = vmatprep.subr.mxu0 0.0
    %3729 = vmatpush1.xpose.msra.mxu0 0.0
    %3730 = vmatprep.subr.mxu0 0.0
    %3731 = vmatpush1.xpose.msra.mxu0 0.0
    %3732 = vmatprep.subr.mxu0 0.0
    %3733 = vmatpush1.xpose.msra.mxu0 0.0
    %3734 = vmatprep.subr.mxu0 0.0
    %3735 = vmatpush1.xpose.msra.mxu0 0.0
    %3736 = vmatprep.subr.mxu0 0.0
    %3737 = vmatpush1.xpose.msra.mxu0 0.0
    %3738 = vmatprep.subr.mxu0 0.0
    %3739 = vmatpush1.xpose.msra.mxu0 0.0
    %3740 = vmatprep.subr.mxu0 0.0
    %3741 = vmatpush1.xpose.msra.mxu0 0.0
    %3742 = vmatprep.subr.mxu0 0.0
    %3743 = vmatpush1.xpose.msra.mxu0 0.0
    %3744 = vmatprep.subr.mxu0 0.0
    %3745 = vmatpush1.xpose.msra.mxu0 0.0
    %3746 = vmatprep.subr.mxu0 0.0
    %3747 = vmatpush1.xpose.msra.mxu0 0.0
    %3748 = vmatprep.subr.mxu0 0.0
    %3749 = vmatpush1.xpose.msra.mxu0 0.0
    %3750 = vmatprep.subr.mxu0 0.0
    %3751 = vmatpush1.xpose.msra.mxu0 0.0
    %3752 = vmatprep.subr.mxu0 0.0
    %3753 = vmatpush1.xpose.msra.mxu0 0.0
    %3754 = vmatprep.subr.mxu0 0.0
    %3755 = vmatpush1.xpose.msra.mxu0 0.0
    %3756 = vmatprep.subr.mxu0 0.0
    %3757 = vmatpush1.xpose.msra.mxu0 0.0
    %3758 = vmatprep.subr.mxu0 0.0
    %3759 = vmatpush1.xpose.msra.mxu0 0.0
    %3760 = vmatprep.subr.mxu0 0.0
    %3761 = vmatpush1.xpose.msra.mxu0 0.0
    %3762 = vmatprep.mubr.f32.mxu0 0.0
    %3763 = vmatmul.mubr.f32.gmra.mrb[0].mxu0 %v3694
    %v3764 = vpop.f32.mrb[0].mxu0
    %v3765 = vadd.f32 %v258, %v3764
    %v3766 = vpop.f32.mrb[0].mxu0
    %3767 = vdwg.mxu0
    %3768 = vrot.lane.b32.xlu0 %v3265, 96
    %v3769 = vpop.permute.xlu0 %3768
    %v3771 = vsel %vm459, %v3288, 0
    %v3773 = vsel %vm459, %v3769, 0
    %3775 = vmatprep.subr.mxu0 0.0
    %3776 = vmatpush1.xpose.msra.mxu0 %v3773
    %3777 = vmatprep.subr.mxu0 0.0
    %3778 = vmatpush1.xpose.msra.mxu0 0.0
    %3779 = vmatprep.subr.mxu0 0.0
    %3780 = vmatpush1.xpose.msra.mxu0 0.0
    %3781 = vmatprep.subr.mxu0 0.0
    %3782 = vmatpush1.xpose.msra.mxu0 0.0
    %3783 = vmatprep.subr.mxu0 0.0
    %3784 = vmatpush1.xpose.msra.mxu0 0.0
    %3785 = vmatprep.subr.mxu0 0.0
    %3786 = vmatpush1.xpose.msra.mxu0 0.0
    %3787 = vmatprep.subr.mxu0 0.0
    %3788 = vmatpush1.xpose.msra.mxu0 0.0
    %3789 = vmatprep.subr.mxu0 0.0
    %3790 = vmatpush1.xpose.msra.mxu0 0.0
    %3791 = vmatprep.subr.mxu0 0.0
    %3792 = vmatpush1.xpose.msra.mxu0 0.0
    %3793 = vmatprep.subr.mxu0 0.0
    %3794 = vmatpush1.xpose.msra.mxu0 0.0
    %3795 = vmatprep.subr.mxu0 0.0
    %3796 = vmatpush1.xpose.msra.mxu0 0.0
    %3797 = vmatprep.subr.mxu0 0.0
    %3798 = vmatpush1.xpose.msra.mxu0 0.0
    %3799 = vmatprep.subr.mxu0 0.0
    %3800 = vmatpush1.xpose.msra.mxu0 0.0
    %3801 = vmatprep.subr.mxu0 0.0
    %3802 = vmatpush1.xpose.msra.mxu0 0.0
    %3803 = vmatprep.subr.mxu0 0.0
    %3804 = vmatpush1.xpose.msra.mxu0 0.0
    %3805 = vmatprep.subr.mxu0 0.0
    %3806 = vmatpush1.xpose.msra.mxu0 0.0
    %3807 = vmatprep.subr.mxu0 0.0
    %3808 = vmatpush1.xpose.msra.mxu0 0.0
    %3809 = vmatprep.subr.mxu0 0.0
    %3810 = vmatpush1.xpose.msra.mxu0 0.0
    %3811 = vmatprep.subr.mxu0 0.0
    %3812 = vmatpush1.xpose.msra.mxu0 0.0
    %3813 = vmatprep.subr.mxu0 0.0
    %3814 = vmatpush1.xpose.msra.mxu0 0.0
    %3815 = vmatprep.subr.mxu0 0.0
    %3816 = vmatpush1.xpose.msra.mxu0 0.0
    %3817 = vmatprep.subr.mxu0 0.0
    %3818 = vmatpush1.xpose.msra.mxu0 0.0
    %3819 = vmatprep.subr.mxu0 0.0
    %3820 = vmatpush1.xpose.msra.mxu0 0.0
    %3821 = vmatprep.subr.mxu0 0.0
    %3822 = vmatpush1.xpose.msra.mxu0 0.0
    %3823 = vmatprep.subr.mxu0 0.0
    %3824 = vmatpush1.xpose.msra.mxu0 0.0
    %3825 = vmatprep.subr.mxu0 0.0
    %3826 = vmatpush1.xpose.msra.mxu0 0.0
    %3827 = vmatprep.subr.mxu0 0.0
    %3828 = vmatpush1.xpose.msra.mxu0 0.0
    %3829 = vmatprep.subr.mxu0 0.0
    %3830 = vmatpush1.xpose.msra.mxu0 0.0
    %3831 = vmatprep.subr.mxu0 0.0
    %3832 = vmatpush1.xpose.msra.mxu0 0.0
    %3833 = vmatprep.subr.mxu0 0.0
    %3834 = vmatpush1.xpose.msra.mxu0 0.0
    %3835 = vmatprep.subr.mxu0 0.0
    %3836 = vmatpush1.xpose.msra.mxu0 0.0
    %3837 = vmatprep.subr.mxu0 0.0
    %3838 = vmatpush1.xpose.msra.mxu0 0.0
    %3839 = vmatprep.mubr.f32.mxu0 0.0
    %3840 = vmatmul.mubr.f32.gmra.mrb[0].mxu0 %v3771
    %v3841 = vpop.f32.mrb[0].mxu0
    %v3842 = vadd.f32 %v238, %v3841
    %v3843 = vpop.f32.mrb[0].mxu0
    %3844 = vdwg.mxu0
    %3845 = vrot.lane.b32.xlu0 %v3267, 96
    %v3846 = vpop.permute.xlu0 %3845
    %v3848 = vsel %vm459, %v3289, 0
    %v3850 = vsel %vm459, %v3846, 0
    %3852 = vmatprep.subr.mxu0 0.0
    %3853 = vmatpush1.xpose.msra.mxu0 %v3850
    %3854 = vmatprep.subr.mxu0 0.0
    %3855 = vmatpush1.xpose.msra.mxu0 0.0
    %3856 = vmatprep.subr.mxu0 0.0
    %3857 = vmatpush1.xpose.msra.mxu0 0.0
    %3858 = vmatprep.subr.mxu0 0.0
    %3859 = vmatpush1.xpose.msra.mxu0 0.0
    %3860 = vmatprep.subr.mxu0 0.0
    %3861 = vmatpush1.xpose.msra.mxu0 0.0
    %3862 = vmatprep.subr.mxu0 0.0
    %3863 = vmatpush1.xpose.msra.mxu0 0.0
    %3864 = vmatprep.subr.mxu0 0.0
    %3865 = vmatpush1.xpose.msra.mxu0 0.0
    %3866 = vmatprep.subr.mxu0 0.0
    %3867 = vmatpush1.xpose.msra.mxu0 0.0
    %3868 = vmatprep.subr.mxu0 0.0
    %3869 = vmatpush1.xpose.msra.mxu0 0.0
    %3870 = vmatprep.subr.mxu0 0.0
    %3871 = vmatpush1.xpose.msra.mxu0 0.0
    %3872 = vmatprep.subr.mxu0 0.0
    %3873 = vmatpush1.xpose.msra.mxu0 0.0
    %3874 = vmatprep.subr.mxu0 0.0
    %3875 = vmatpush1.xpose.msra.mxu0 0.0
    %3876 = vmatprep.subr.mxu0 0.0
    %3877 = vmatpush1.xpose.msra.mxu0 0.0
    %3878 = vmatprep.subr.mxu0 0.0
    %3879 = vmatpush1.xpose.msra.mxu0 0.0
    %3880 = vmatprep.subr.mxu0 0.0
    %3881 = vmatpush1.xpose.msra.mxu0 0.0
    %3882 = vmatprep.subr.mxu0 0.0
    %3883 = vmatpush1.xpose.msra.mxu0 0.0
    %3884 = vmatprep.subr.mxu0 0.0
    %3885 = vmatpush1.xpose.msra.mxu0 0.0
    %3886 = vmatprep.subr.mxu0 0.0
    %3887 = vmatpush1.xpose.msra.mxu0 0.0
    %3888 = vmatprep.subr.mxu0 0.0
    %3889 = vmatpush1.xpose.msra.mxu0 0.0
    %3890 = vmatprep.subr.mxu0 0.0
    %3891 = vmatpush1.xpose.msra.mxu0 0.0
    %3892 = vmatprep.subr.mxu0 0.0
    %3893 = vmatpush1.xpose.msra.mxu0 0.0
    %3894 = vmatprep.subr.mxu0 0.0
    %3895 = vmatpush1.xpose.msra.mxu0 0.0
    %3896 = vmatprep.subr.mxu0 0.0
    %3897 = vmatpush1.xpose.msra.mxu0 0.0
    %3898 = vmatprep.subr.mxu0 0.0
    %3899 = vmatpush1.xpose.msra.mxu0 0.0
    %3900 = vmatprep.subr.mxu0 0.0
    %3901 = vmatpush1.xpose.msra.mxu0 0.0
    %3902 = vmatprep.subr.mxu0 0.0
    %3903 = vmatpush1.xpose.msra.mxu0 0.0
    %3904 = vmatprep.subr.mxu0 0.0
    %3905 = vmatpush1.xpose.msra.mxu0 0.0
    %3906 = vmatprep.subr.mxu0 0.0
    %3907 = vmatpush1.xpose.msra.mxu0 0.0
    %3908 = vmatprep.subr.mxu0 0.0
    %3909 = vmatpush1.xpose.msra.mxu0 0.0
    %3910 = vmatprep.subr.mxu0 0.0
    %3911 = vmatpush1.xpose.msra.mxu0 0.0
    %3912 = vmatprep.subr.mxu0 0.0
    %3913 = vmatpush1.xpose.msra.mxu0 0.0
    %3914 = vmatprep.subr.mxu0 0.0
    %3915 = vmatpush1.xpose.msra.mxu0 0.0
    %3916 = vmatprep.mubr.f32.mxu0 0.0
    %3917 = vmatmul.mubr.f32.gmra.mrb[0].mxu0 %v3848
    %v3918 = vpop.f32.mrb[0].mxu0
    %v3919 = vadd.f32 %v242, %v3918
    %v3920 = vpop.f32.mrb[0].mxu0
    %3921 = vdwg.mxu0
    %3922 = vrot.lane.b32.xlu0 %v3269, 96
    %v3923 = vpop.permute.xlu0 %3922
    %v3925 = vsel %vm459, %v3290, 0
    %v3927 = vsel %vm459, %v3923, 0
    %3929 = vmatprep.subr.mxu0 0.0
    %3930 = vmatpush1.xpose.msra.mxu0 %v3927
    %3931 = vmatprep.subr.mxu0 0.0
    %3932 = vmatpush1.xpose.msra.mxu0 0.0
    %3933 = vmatprep.subr.mxu0 0.0
    %3934 = vmatpush1.xpose.msra.mxu0 0.0
    %3935 = vmatprep.subr.mxu0 0.0
    %3936 = vmatpush1.xpose.msra.mxu0 0.0
    %3937 = vmatprep.subr.mxu0 0.0
    %3938 = vmatpush1.xpose.msra.mxu0 0.0
    %3939 = vmatprep.subr.mxu0 0.0
    %3940 = vmatpush1.xpose.msra.mxu0 0.0
    %3941 = vmatprep.subr.mxu0 0.0
    %3942 = vmatpush1.xpose.msra.mxu0 0.0
    %3943 = vmatprep.subr.mxu0 0.0
    %3944 = vmatpush1.xpose.msra.mxu0 0.0
    %3945 = vmatprep.subr.mxu0 0.0
    %3946 = vmatpush1.xpose.msra.mxu0 0.0
    %3947 = vmatprep.subr.mxu0 0.0
    %3948 = vmatpush1.xpose.msra.mxu0 0.0
    %3949 = vmatprep.subr.mxu0 0.0
    %3950 = vmatpush1.xpose.msra.mxu0 0.0
    %3951 = vmatprep.subr.mxu0 0.0
    %3952 = vmatpush1.xpose.msra.mxu0 0.0
    %3953 = vmatprep.subr.mxu0 0.0
    %3954 = vmatpush1.xpose.msra.mxu0 0.0
    %3955 = vmatprep.subr.mxu0 0.0
    %3956 = vmatpush1.xpose.msra.mxu0 0.0
    %3957 = vmatprep.subr.mxu0 0.0
    %3958 = vmatpush1.xpose.msra.mxu0 0.0
    %3959 = vmatprep.subr.mxu0 0.0
    %3960 = vmatpush1.xpose.msra.mxu0 0.0
    %3961 = vmatprep.subr.mxu0 0.0
    %3962 = vmatpush1.xpose.msra.mxu0 0.0
    %3963 = vmatprep.subr.mxu0 0.0
    %3964 = vmatpush1.xpose.msra.mxu0 0.0
    %3965 = vmatprep.subr.mxu0 0.0
    %3966 = vmatpush1.xpose.msra.mxu0 0.0
    %3967 = vmatprep.subr.mxu0 0.0
    %3968 = vmatpush1.xpose.msra.mxu0 0.0
    %3969 = vmatprep.subr.mxu0 0.0
    %3970 = vmatpush1.xpose.msra.mxu0 0.0
    %3971 = vmatprep.subr.mxu0 0.0
    %3972 = vmatpush1.xpose.msra.mxu0 0.0
    %3973 = vmatprep.subr.mxu0 0.0
    %3974 = vmatpush1.xpose.msra.mxu0 0.0
    %3975 = vmatprep.subr.mxu0 0.0
    %3976 = vmatpush1.xpose.msra.mxu0 0.0
    %3977 = vmatprep.subr.mxu0 0.0
    %3978 = vmatpush1.xpose.msra.mxu0 0.0
    %3979 = vmatprep.subr.mxu0 0.0
    %3980 = vmatpush1.xpose.msra.mxu0 0.0
    %3981 = vmatprep.subr.mxu0 0.0
    %3982 = vmatpush1.xpose.msra.mxu0 0.0
    %3983 = vmatprep.subr.mxu0 0.0
    %3984 = vmatpush1.xpose.msra.mxu0 0.0
    %3985 = vmatprep.subr.mxu0 0.0
    %3986 = vmatpush1.xpose.msra.mxu0 0.0
    %3987 = vmatprep.subr.mxu0 0.0
    %3988 = vmatpush1.xpose.msra.mxu0 0.0
    %3989 = vmatprep.subr.mxu0 0.0
    %3990 = vmatpush1.xpose.msra.mxu0 0.0
    %3991 = vmatprep.subr.mxu0 0.0
    %3992 = vmatpush1.xpose.msra.mxu0 0.0
    %3993 = vmatprep.mubr.f32.mxu0 0.0
    %3994 = vmatmul.mubr.f32.gmra.mrb[0].mxu0 %v3925
    %v3995 = vpop.f32.mrb[0].mxu0
    %v3996 = vadd.f32 %v246, %v3995
    %v3997 = vpop.f32.mrb[0].mxu0
    %3998 = vdwg.mxu0
    %3999 = vrot.lane.b32.xlu0 %v3271, 96
    %v4000 = vpop.permute.xlu0 %3999
    %v4002 = vsel %vm459, %v3291, 0
    %v4004 = vsel %vm459, %v4000, 0
    %4006 = vmatprep.subr.mxu0 0.0
    %4007 = vmatpush1.xpose.msra.mxu0 %v4004
    %4008 = vmatprep.subr.mxu0 0.0
    %4009 = vmatpush1.xpose.msra.mxu0 0.0
    %4010 = vmatprep.subr.mxu0 0.0
    %4011 = vmatpush1.xpose.msra.mxu0 0.0
    %4012 = vmatprep.subr.mxu0 0.0
    %4013 = vmatpush1.xpose.msra.mxu0 0.0
    %4014 = vmatprep.subr.mxu0 0.0
    %4015 = vmatpush1.xpose.msra.mxu0 0.0
    %4016 = vmatprep.subr.mxu0 0.0
    %4017 = vmatpush1.xpose.msra.mxu0 0.0
    %4018 = vmatprep.subr.mxu0 0.0
    %4019 = vmatpush1.xpose.msra.mxu0 0.0
    %4020 = vmatprep.subr.mxu0 0.0
    %4021 = vmatpush1.xpose.msra.mxu0 0.0
    %4022 = vmatprep.subr.mxu0 0.0
    %4023 = vmatpush1.xpose.msra.mxu0 0.0
    %4024 = vmatprep.subr.mxu0 0.0
    %4025 = vmatpush1.xpose.msra.mxu0 0.0
    %4026 = vmatprep.subr.mxu0 0.0
    %4027 = vmatpush1.xpose.msra.mxu0 0.0
    %4028 = vmatprep.subr.mxu0 0.0
    %4029 = vmatpush1.xpose.msra.mxu0 0.0
    %4030 = vmatprep.subr.mxu0 0.0
    %4031 = vmatpush1.xpose.msra.mxu0 0.0
    %4032 = vmatprep.subr.mxu0 0.0
    %4033 = vmatpush1.xpose.msra.mxu0 0.0
    %4034 = vmatprep.subr.mxu0 0.0
    %4035 = vmatpush1.xpose.msra.mxu0 0.0
    %4036 = vmatprep.subr.mxu0 0.0
    %4037 = vmatpush1.xpose.msra.mxu0 0.0
    %4038 = vmatprep.subr.mxu0 0.0
    %4039 = vmatpush1.xpose.msra.mxu0 0.0
    %4040 = vmatprep.subr.mxu0 0.0
    %4041 = vmatpush1.xpose.msra.mxu0 0.0
    %4042 = vmatprep.subr.mxu0 0.0
    %4043 = vmatpush1.xpose.msra.mxu0 0.0
    %4044 = vmatprep.subr.mxu0 0.0
    %4045 = vmatpush1.xpose.msra.mxu0 0.0
    %4046 = vmatprep.subr.mxu0 0.0
    %4047 = vmatpush1.xpose.msra.mxu0 0.0
    %4048 = vmatprep.subr.mxu0 0.0
    %4049 = vmatpush1.xpose.msra.mxu0 0.0
    %4050 = vmatprep.subr.mxu0 0.0
    %4051 = vmatpush1.xpose.msra.mxu0 0.0
    %4052 = vmatprep.subr.mxu0 0.0
    %4053 = vmatpush1.xpose.msra.mxu0 0.0
    %4054 = vmatprep.subr.mxu0 0.0
    %4055 = vmatpush1.xpose.msra.mxu0 0.0
    %4056 = vmatprep.subr.mxu0 0.0
    %4057 = vmatpush1.xpose.msra.mxu0 0.0
    %4058 = vmatprep.subr.mxu0 0.0
    %4059 = vmatpush1.xpose.msra.mxu0 0.0
    %4060 = vmatprep.subr.mxu0 0.0
    %4061 = vmatpush1.xpose.msra.mxu0 0.0
    %4062 = vmatprep.subr.mxu0 0.0
    %4063 = vmatpush1.xpose.msra.mxu0 0.0
    %4064 = vmatprep.subr.mxu0 0.0
    %4065 = vmatpush1.xpose.msra.mxu0 0.0
    %4066 = vmatprep.subr.mxu0 0.0
    %4067 = vmatpush1.xpose.msra.mxu0 0.0
    %4068 = vmatprep.subr.mxu0 0.0
    %4069 = vmatpush1.xpose.msra.mxu0 0.0
    %4070 = vmatprep.mubr.f32.mxu0 0.0
    %4071 = vmatmul.mubr.f32.gmra.mrb[0].mxu0 %v4002
    %v4072 = vpop.f32.mrb[0].mxu0
    %v4073 = vadd.f32 %v250, %v4072
    %v4074 = vpop.f32.mrb[0].mxu0
    %4075 = vdwg.mxu0
    %4076 = vrot.lane.b32.xlu0 %v3273, 96
    %v4077 = vpop.permute.xlu0 %4076
    %v4079 = vsel %vm459, %v3292, 0
    %v4081 = vsel %vm459, %v4077, 0
    %4083 = vmatprep.subr.mxu0 0.0
    %4084 = vmatpush1.xpose.msra.mxu0 %v4081
    %4085 = vmatprep.subr.mxu0 0.0
    %4086 = vmatpush1.xpose.msra.mxu0 0.0
    %4087 = vmatprep.subr.mxu0 0.0
    %4088 = vmatpush1.xpose.msra.mxu0 0.0
    %4089 = vmatprep.subr.mxu0 0.0
    %4090 = vmatpush1.xpose.msra.mxu0 0.0
    %4091 = vmatprep.subr.mxu0 0.0
    %4092 = vmatpush1.xpose.msra.mxu0 0.0
    %4093 = vmatprep.subr.mxu0 0.0
    %4094 = vmatpush1.xpose.msra.mxu0 0.0
    %4095 = vmatprep.subr.mxu0 0.0
    %4096 = vmatpush1.xpose.msra.mxu0 0.0
    %4097 = vmatprep.subr.mxu0 0.0
    %4098 = vmatpush1.xpose.msra.mxu0 0.0
    %4099 = vmatprep.subr.mxu0 0.0
    %4100 = vmatpush1.xpose.msra.mxu0 0.0
    %4101 = vmatprep.subr.mxu0 0.0
    %4102 = vmatpush1.xpose.msra.mxu0 0.0
    %4103 = vmatprep.subr.mxu0 0.0
    %4104 = vmatpush1.xpose.msra.mxu0 0.0
    %4105 = vmatprep.subr.mxu0 0.0
    %4106 = vmatpush1.xpose.msra.mxu0 0.0
    %4107 = vmatprep.subr.mxu0 0.0
    %4108 = vmatpush1.xpose.msra.mxu0 0.0
    %4109 = vmatprep.subr.mxu0 0.0
    %4110 = vmatpush1.xpose.msra.mxu0 0.0
    %4111 = vmatprep.subr.mxu0 0.0
    %4112 = vmatpush1.xpose.msra.mxu0 0.0
    %4113 = vmatprep.subr.mxu0 0.0
    %4114 = vmatpush1.xpose.msra.mxu0 0.0
    %4115 = vmatprep.subr.mxu0 0.0
    %4116 = vmatpush1.xpose.msra.mxu0 0.0
    %4117 = vmatprep.subr.mxu0 0.0
    %4118 = vmatpush1.xpose.msra.mxu0 0.0
    %4119 = vmatprep.subr.mxu0 0.0
    %4120 = vmatpush1.xpose.msra.mxu0 0.0
    %4121 = vmatprep.subr.mxu0 0.0
    %4122 = vmatpush1.xpose.msra.mxu0 0.0
    %4123 = vmatprep.subr.mxu0 0.0
    %4124 = vmatpush1.xpose.msra.mxu0 0.0
    %4125 = vmatprep.subr.mxu0 0.0
    %4126 = vmatpush1.xpose.msra.mxu0 0.0
    %4127 = vmatprep.subr.mxu0 0.0
    %4128 = vmatpush1.xpose.msra.mxu0 0.0
    %4129 = vmatprep.subr.mxu0 0.0
    %4130 = vmatpush1.xpose.msra.mxu0 0.0
    %4131 = vmatprep.subr.mxu0 0.0
    %4132 = vmatpush1.xpose.msra.mxu0 0.0
    %4133 = vmatprep.subr.mxu0 0.0
    %4134 = vmatpush1.xpose.msra.mxu0 0.0
    %4135 = vmatprep.subr.mxu0 0.0
    %4136 = vmatpush1.xpose.msra.mxu0 0.0
    %4137 = vmatprep.subr.mxu0 0.0
    %4138 = vmatpush1.xpose.msra.mxu0 0.0
    %4139 = vmatprep.subr.mxu0 0.0
    %4140 = vmatpush1.xpose.msra.mxu0 0.0
    %4141 = vmatprep.subr.mxu0 0.0
    %4142 = vmatpush1.xpose.msra.mxu0 0.0
    %4143 = vmatprep.subr.mxu0 0.0
    %4144 = vmatpush1.xpose.msra.mxu0 0.0
    %4145 = vmatprep.subr.mxu0 0.0
    %4146 = vmatpush1.xpose.msra.mxu0 0.0
    %4147 = vmatprep.mubr.f32.mxu0 0.0
    %4148 = vmatmul.mubr.f32.gmra.mrb[0].mxu0 %v4079
    %v4149 = vpop.f32.mrb[0].mxu0
    %v4150 = vadd.f32 %v254, %v4149
    %v4151 = vpop.f32.mrb[0].mxu0
    %4152 = vdwg.mxu0
    %4153 = vrot.lane.b32.xlu0 %v3275, 96
    %v4154 = vpop.permute.xlu0 %4153
    %v4156 = vsel %vm459, %v3293, 0
    %v4158 = vsel %vm459, %v4154, 0
    %4160 = vmatprep.subr.mxu0 0.0
    %4161 = vmatpush1.xpose.msra.mxu0 %v4158
    %4162 = vmatprep.subr.mxu0 0.0
    %4163 = vmatpush1.xpose.msra.mxu0 0.0
    %4164 = vmatprep.subr.mxu0 0.0
    %4165 = vmatpush1.xpose.msra.mxu0 0.0
    %4166 = vmatprep.subr.mxu0 0.0
    %4167 = vmatpush1.xpose.msra.mxu0 0.0
    %4168 = vmatprep.subr.mxu0 0.0
    %4169 = vmatpush1.xpose.msra.mxu0 0.0
    %4170 = vmatprep.subr.mxu0 0.0
    %4171 = vmatpush1.xpose.msra.mxu0 0.0
    %4172 = vmatprep.subr.mxu0 0.0
    %4173 = vmatpush1.xpose.msra.mxu0 0.0
    %4174 = vmatprep.subr.mxu0 0.0
    %4175 = vmatpush1.xpose.msra.mxu0 0.0
    %4176 = vmatprep.subr.mxu0 0.0
    %4177 = vmatpush1.xpose.msra.mxu0 0.0
    %4178 = vmatprep.subr.mxu0 0.0
    %4179 = vmatpush1.xpose.msra.mxu0 0.0
    %4180 = vmatprep.subr.mxu0 0.0
    %4181 = vmatpush1.xpose.msra.mxu0 0.0
    %4182 = vmatprep.subr.mxu0 0.0
    %4183 = vmatpush1.xpose.msra.mxu0 0.0
    %4184 = vmatprep.subr.mxu0 0.0
    %4185 = vmatpush1.xpose.msra.mxu0 0.0
    %4186 = vmatprep.subr.mxu0 0.0
    %4187 = vmatpush1.xpose.msra.mxu0 0.0
    %4188 = vmatprep.subr.mxu0 0.0
    %4189 = vmatpush1.xpose.msra.mxu0 0.0
    %4190 = vmatprep.subr.mxu0 0.0
    %4191 = vmatpush1.xpose.msra.mxu0 0.0
    %4192 = vmatprep.subr.mxu0 0.0
    %4193 = vmatpush1.xpose.msra.mxu0 0.0
    %4194 = vmatprep.subr.mxu0 0.0
    %4195 = vmatpush1.xpose.msra.mxu0 0.0
    %4196 = vmatprep.subr.mxu0 0.0
    %4197 = vmatpush1.xpose.msra.mxu0 0.0
    %4198 = vmatprep.subr.mxu0 0.0
    %4199 = vmatpush1.xpose.msra.mxu0 0.0
    %4200 = vmatprep.subr.mxu0 0.0
    %4201 = vmatpush1.xpose.msra.mxu0 0.0
    %4202 = vmatprep.subr.mxu0 0.0
    %4203 = vmatpush1.xpose.msra.mxu0 0.0
    %4204 = vmatprep.subr.mxu0 0.0
    %4205 = vmatpush1.xpose.msra.mxu0 0.0
    %4206 = vmatprep.subr.mxu0 0.0
    %4207 = vmatpush1.xpose.msra.mxu0 0.0
    %4208 = vmatprep.subr.mxu0 0.0
    %4209 = vmatpush1.xpose.msra.mxu0 0.0
    %4210 = vmatprep.subr.mxu0 0.0
    %4211 = vmatpush1.xpose.msra.mxu0 0.0
    %4212 = vmatprep.subr.mxu0 0.0
    %4213 = vmatpush1.xpose.msra.mxu0 0.0
    %4214 = vmatprep.subr.mxu0 0.0
    %4215 = vmatpush1.xpose.msra.mxu0 0.0
    %4216 = vmatprep.subr.mxu0 0.0
    %4217 = vmatpush1.xpose.msra.mxu0 0.0
    %4218 = vmatprep.subr.mxu0 0.0
    %4219 = vmatpush1.xpose.msra.mxu0 0.0
    %4220 = vmatprep.subr.mxu0 0.0
    %4221 = vmatpush1.xpose.msra.mxu0 0.0
    %4222 = vmatprep.subr.mxu0 0.0
    %4223 = vmatpush1.xpose.msra.mxu0 0.0
    %4224 = vmatprep.mubr.f32.mxu0 0.0
    %4225 = vmatmul.mubr.f32.gmra.mrb[0].mxu0 %v4156
    %v4226 = vpop.f32.mrb[0].mxu0
    %v4227 = vadd.f32 %v258, %v4226
    %v4228 = vpop.f32.mrb[0].mxu0
    %4229 = vdwg.mxu0
    %v4230 = vsel %vm1382, %v3380, -inf
    %4231 = vmax.xlane.f32.xlu0 %v4230
    %v4232 = vpop.xlane.xlu0 %4231
    %v4233 = vsel %vm1382, %v3457, -inf
    %4234 = vmax.xlane.f32.xlu0 %v4233
    %v4235 = vpop.xlane.xlu0 %4234
    %v4236 = vsel %vm1382, %v3534, -inf
    %4237 = vmax.xlane.f32.xlu0 %v4236
    %v4238 = vpop.xlane.xlu0 %4237
    %v4239 = vsel %vm1382, %v3611, -inf
    %4240 = vmax.xlane.f32.xlu0 %v4239
    %v4241 = vpop.xlane.xlu0 %4240
    %v4242 = vsel %vm1382, %v3688, -inf
    %4243 = vmax.xlane.f32.xlu0 %v4242
    %v4244 = vpop.xlane.xlu0 %4243
    %v4245 = vsel %vm1382, %v3765, -inf
    %4246 = vmax.xlane.f32.xlu0 %v4245
    %v4247 = vpop.xlane.xlu0 %4246
    %v4248 = vsel %vm1382, %v3842, -inf
    %4249 = vmax.xlane.f32.xlu0 %v4248
    %v4250 = vpop.xlane.xlu0 %4249
    %v4251 = vsel %vm1382, %v3919, -inf
    %4252 = vmax.xlane.f32.xlu0 %v4251
    %v4253 = vpop.xlane.xlu0 %4252
    %v4254 = vsel %vm1382, %v3996, -inf
    %4255 = vmax.xlane.f32.xlu0 %v4254
    %v4256 = vpop.xlane.xlu0 %4255
    %v4257 = vsel %vm1382, %v4073, -inf
    %4258 = vmax.xlane.f32.xlu0 %v4257
    %v4259 = vpop.xlane.xlu0 %4258
    %v4260 = vsel %vm1382, %v4150, -inf
    %4261 = vmax.xlane.f32.xlu0 %v4260
    %v4262 = vpop.xlane.xlu0 %4261
    %v4263 = vsel %vm1382, %v4227, -inf
    %4264 = vmax.xlane.f32.xlu0 %v4263
    %v4265 = vpop.xlane.xlu0 %4264
    %v4266 = vsub.f32 %v3380, %v4232
    %v4267 = vsub.f32 %v3457, %v4235
    %v4268 = vsub.f32 %v3534, %v4238
    %v4269 = vsub.f32 %v3611, %v4241
    %v4270 = vsub.f32 %v3688, %v4244
    %v4271 = vsub.f32 %v3765, %v4247
    %v4272 = vsub.f32 %v3842, %v4250
    %v4273 = vsub.f32 %v3919, %v4253
    %v4274 = vsub.f32 %v3996, %v4256
    %v4275 = vsub.f32 %v4073, %v4259
    %v4276 = vsub.f32 %v4150, %v4262
    %v4277 = vsub.f32 %v4227, %v4265
    %v4278 = vmul.f32 %v4266, 1.442695
    %v4279 = vpow.pop %v4278
    %v4280 = vmul.f32 %v4267, 1.442695
    %v4281 = vpow.pop %v4280
    %v4282 = vmul.f32 %v4268, 1.442695
    %v4283 = vpow.pop %v4282
    %v4284 = vmul.f32 %v4269, 1.442695
    %v4285 = vpow.pop %v4284
    %v4286 = vmul.f32 %v4270, 1.442695
    %v4287 = vpow.pop %v4286
    %v4288 = vmul.f32 %v4271, 1.442695
    %v4289 = vpow.pop %v4288
    %v4290 = vmul.f32 %v4272, 1.442695
    %v4291 = vpow.pop %v4290
    %v4292 = vmul.f32 %v4273, 1.442695
    %v4293 = vpow.pop %v4292
    %v4294 = vmul.f32 %v4274, 1.442695
    %v4295 = vpow.pop %v4294
    %v4296 = vmul.f32 %v4275, 1.442695
    %v4297 = vpow.pop %v4296
    %v4298 = vmul.f32 %v4276, 1.442695
    %v4299 = vpow.pop %v4298
    %v4300 = vmul.f32 %v4277, 1.442695
    %v4301 = vpow.pop %v4300
    %v4302 = vsel %vm1382, %v4279, 0.0
    %4303 = vadd.xlane.f32.xlu0 %v4302
    %v4304 = vpop.xlane.xlu0 %4303
    %v4305 = vsel %vm1382, %v4281, 0.0
    %4306 = vadd.xlane.f32.xlu0 %v4305
    %v4307 = vpop.xlane.xlu0 %4306
    %v4308 = vsel %vm1382, %v4283, 0.0
    %4309 = vadd.xlane.f32.xlu0 %v4308
    %v4310 = vpop.xlane.xlu0 %4309
    %v4311 = vsel %vm1382, %v4285, 0.0
    %4312 = vadd.xlane.f32.xlu0 %v4311
    %v4313 = vpop.xlane.xlu0 %4312
    %v4314 = vsel %vm1382, %v4287, 0.0
    %4315 = vadd.xlane.f32.xlu0 %v4314
    %v4316 = vpop.xlane.xlu0 %4315
    %v4317 = vsel %vm1382, %v4289, 0.0
    %4318 = vadd.xlane.f32.xlu0 %v4317
    %v4319 = vpop.xlane.xlu0 %4318
    %v4320 = vsel %vm1382, %v4291, 0.0
    %4321 = vadd.xlane.f32.xlu0 %v4320
    %v4322 = vpop.xlane.xlu0 %4321
    %v4323 = vsel %vm1382, %v4293, 0.0
    %4324 = vadd.xlane.f32.xlu0 %v4323
    %v4325 = vpop.xlane.xlu0 %4324
    %v4326 = vsel %vm1382, %v4295, 0.0
    %4327 = vadd.xlane.f32.xlu0 %v4326
    %v4328 = vpop.xlane.xlu0 %4327
    %v4329 = vsel %vm1382, %v4297, 0.0
    %4330 = vadd.xlane.f32.xlu0 %v4329
    %v4331 = vpop.xlane.xlu0 %4330
    %v4332 = vsel %vm1382, %v4299, 0.0
    %4333 = vadd.xlane.f32.xlu0 %v4332
    %v4334 = vpop.xlane.xlu0 %4333
    %v4335 = vsel %vm1382, %v4301, 0.0
    %4336 = vadd.xlane.f32.xlu0 %v4335
    %v4337 = vpop.xlane.xlu0 %4336
    %v4338 = vrcp.pop %v4304
    %v4339 = vmul.f32 %v4279, %v4338
    %v4340 = vrcp.pop %v4307
    %v4341 = vmul.f32 %v4281, %v4340
    %v4342 = vrcp.pop %v4310
    %v4343 = vmul.f32 %v4283, %v4342
    %v4344 = vrcp.pop %v4313
    %v4345 = vmul.f32 %v4285, %v4344
    %v4346 = vrcp.pop %v4316
    %v4347 = vmul.f32 %v4287, %v4346
    %v4348 = vrcp.pop %v4319
    %v4349 = vmul.f32 %v4289, %v4348
    %v4350 = vrcp.pop %v4322
    %v4351 = vmul.f32 %v4291, %v4350
    %v4352 = vrcp.pop %v4325
    %v4353 = vmul.f32 %v4293, %v4352
    %v4354 = vrcp.pop %v4328
    %v4355 = vmul.f32 %v4295, %v4354
    %v4356 = vrcp.pop %v4331
    %v4357 = vmul.f32 %v4297, %v4356
    %v4358 = vrcp.pop %v4334
    %v4359 = vmul.f32 %v4299, %v4358
    %v4360 = vrcp.pop %v4337
    %v4361 = vmul.f32 %v4301, %v4360
    %4363 = vrot.lane.b32.xlu0 %v3294, 64
    %v4364 = vpop.permute.xlu0 %4363
    %v4367 = vsel %vm1382, %v4339, 0
    %4369 = vmatprep.subr.mxu0 0.0
    %4370 = vmatpush1.msra.mxu0 %v4364
    %4371 = vmatprep.subr.mxu0 0.0
    %4372 = vmatpush1.msra.mxu0 0.0
    %4373 = vmatprep.subr.mxu0 0.0
    %4374 = vmatpush1.msra.mxu0 0.0
    %4375 = vmatprep.subr.mxu0 0.0
    %4376 = vmatpush1.msra.mxu0 0.0
    %4377 = vmatprep.subr.mxu0 0.0
    %4378 = vmatpush1.msra.mxu0 0.0
    %4379 = vmatprep.subr.mxu0 0.0
    %4380 = vmatpush1.msra.mxu0 0.0
    %4381 = vmatprep.subr.mxu0 0.0
    %4382 = vmatpush1.msra.mxu0 0.0
    %4383 = vmatprep.subr.mxu0 0.0
    %4384 = vmatpush1.msra.mxu0 0.0
    %4385 = vmatprep.subr.mxu0 0.0
    %4386 = vmatpush1.msra.mxu0 0.0
    %4387 = vmatprep.subr.mxu0 0.0
    %4388 = vmatpush1.msra.mxu0 0.0
    %4389 = vmatprep.subr.mxu0 0.0
    %4390 = vmatpush1.msra.mxu0 0.0
    %4391 = vmatprep.subr.mxu0 0.0
    %4392 = vmatpush1.msra.mxu0 0.0
    %4393 = vmatprep.subr.mxu0 0.0
    %4394 = vmatpush1.msra.mxu0 0.0
    %4395 = vmatprep.subr.mxu0 0.0
    %4396 = vmatpush1.msra.mxu0 0.0
    %4397 = vmatprep.subr.mxu0 0.0
    %4398 = vmatpush1.msra.mxu0 0.0
    %4399 = vmatprep.subr.mxu0 0.0
    %4400 = vmatpush1.msra.mxu0 0.0
    %4401 = vmatprep.subr.mxu0 0.0
    %4402 = vmatpush1.msra.mxu0 0.0
    %4403 = vmatprep.subr.mxu0 0.0
    %4404 = vmatpush1.msra.mxu0 0.0
    %4405 = vmatprep.subr.mxu0 0.0
    %4406 = vmatpush1.msra.mxu0 0.0
    %4407 = vmatprep.subr.mxu0 0.0
    %4408 = vmatpush1.msra.mxu0 0.0
    %4409 = vmatprep.subr.mxu0 0.0
    %4410 = vmatpush1.msra.mxu0 0.0
    %4411 = vmatprep.subr.mxu0 0.0
    %4412 = vmatpush1.msra.mxu0 0.0
    %4413 = vmatprep.subr.mxu0 0.0
    %4414 = vmatpush1.msra.mxu0 0.0
    %4415 = vmatprep.subr.mxu0 0.0
    %4416 = vmatpush1.msra.mxu0 0.0
    %4417 = vmatprep.subr.mxu0 0.0
    %4418 = vmatpush1.msra.mxu0 0.0
    %4419 = vmatprep.subr.mxu0 0.0
    %4420 = vmatpush1.msra.mxu0 0.0
    %4421 = vmatprep.subr.mxu0 0.0
    %4422 = vmatpush1.msra.mxu0 0.0
    %4423 = vmatprep.subr.mxu0 0.0
    %4424 = vmatpush1.msra.mxu0 0.0
    %4425 = vmatprep.subr.mxu0 0.0
    %4426 = vmatpush1.msra.mxu0 0.0
    %4427 = vmatprep.subr.mxu0 0.0
    %4428 = vmatpush1.msra.mxu0 0.0
    %4429 = vmatprep.subr.mxu0 0.0
    %4430 = vmatpush1.msra.mxu0 0.0
    %4431 = vmatprep.subr.mxu0 0.0
    %4432 = vmatpush1.msra.mxu0 0.0
    %4433 = vmatprep.mubr.f32.mxu0 0.0
    %4434 = vmatmul.mubr.f32.gmra.mrb[0].mxu0 %v4367
    %v4435 = vpop.f32.mrb[0].mxu0
    %v4436 = vadd.f32 0.0, %v4435
    %v4437 = vpop.f32.mrb[0].mxu0
    %4438 = vdwg.mxu0
    %4440 = vrot.lane.b32.xlu0 %v3295, 64
    %v4441 = vpop.permute.xlu0 %4440
    %v4444 = vsel %vm1382, %v4341, 0
    %4446 = vmatprep.subr.mxu0 0.0
    %4447 = vmatpush1.msra.mxu0 %v4441
    %4448 = vmatprep.subr.mxu0 0.0
    %4449 = vmatpush1.msra.mxu0 0.0
    %4450 = vmatprep.subr.mxu0 0.0
    %4451 = vmatpush1.msra.mxu0 0.0
    %4452 = vmatprep.subr.mxu0 0.0
    %4453 = vmatpush1.msra.mxu0 0.0
    %4454 = vmatprep.subr.mxu0 0.0
    %4455 = vmatpush1.msra.mxu0 0.0
    %4456 = vmatprep.subr.mxu0 0.0
    %4457 = vmatpush1.msra.mxu0 0.0
    %4458 = vmatprep.subr.mxu0 0.0
    %4459 = vmatpush1.msra.mxu0 0.0
    %4460 = vmatprep.subr.mxu0 0.0
    %4461 = vmatpush1.msra.mxu0 0.0
    %4462 = vmatprep.subr.mxu0 0.0
    %4463 = vmatpush1.msra.mxu0 0.0
    %4464 = vmatprep.subr.mxu0 0.0
    %4465 = vmatpush1.msra.mxu0 0.0
    %4466 = vmatprep.subr.mxu0 0.0
    %4467 = vmatpush1.msra.mxu0 0.0
    %4468 = vmatprep.subr.mxu0 0.0
    %4469 = vmatpush1.msra.mxu0 0.0
    %4470 = vmatprep.subr.mxu0 0.0
    %4471 = vmatpush1.msra.mxu0 0.0
    %4472 = vmatprep.subr.mxu0 0.0
    %4473 = vmatpush1.msra.mxu0 0.0
    %4474 = vmatprep.subr.mxu0 0.0
    %4475 = vmatpush1.msra.mxu0 0.0
    %4476 = vmatprep.subr.mxu0 0.0
    %4477 = vmatpush1.msra.mxu0 0.0
    %4478 = vmatprep.subr.mxu0 0.0
    %4479 = vmatpush1.msra.mxu0 0.0
    %4480 = vmatprep.subr.mxu0 0.0
    %4481 = vmatpush1.msra.mxu0 0.0
    %4482 = vmatprep.subr.mxu0 0.0
    %4483 = vmatpush1.msra.mxu0 0.0
    %4484 = vmatprep.subr.mxu0 0.0
    %4485 = vmatpush1.msra.mxu0 0.0
    %4486 = vmatprep.subr.mxu0 0.0
    %4487 = vmatpush1.msra.mxu0 0.0
    %4488 = vmatprep.subr.mxu0 0.0
    %4489 = vmatpush1.msra.mxu0 0.0
    %4490 = vmatprep.subr.mxu0 0.0
    %4491 = vmatpush1.msra.mxu0 0.0
    %4492 = vmatprep.subr.mxu0 0.0
    %4493 = vmatpush1.msra.mxu0 0.0
    %4494 = vmatprep.subr.mxu0 0.0
    %4495 = vmatpush1.msra.mxu0 0.0
    %4496 = vmatprep.subr.mxu0 0.0
    %4497 = vmatpush1.msra.mxu0 0.0
    %4498 = vmatprep.subr.mxu0 0.0
    %4499 = vmatpush1.msra.mxu0 0.0
    %4500 = vmatprep.subr.mxu0 0.0
    %4501 = vmatpush1.msra.mxu0 0.0
    %4502 = vmatprep.subr.mxu0 0.0
    %4503 = vmatpush1.msra.mxu0 0.0
    %4504 = vmatprep.subr.mxu0 0.0
    %4505 = vmatpush1.msra.mxu0 0.0
    %4506 = vmatprep.subr.mxu0 0.0
    %4507 = vmatpush1.msra.mxu0 0.0
    %4508 = vmatprep.subr.mxu0 0.0
    %4509 = vmatpush1.msra.mxu0 0.0
    %4510 = vmatprep.mubr.f32.mxu0 0.0
    %4511 = vmatmul.mubr.f32.gmra.mrb[0].mxu0 %v4444
    %v4512 = vpop.f32.mrb[0].mxu0
    %v4513 = vadd.f32 0.0, %v4512
    %v4514 = vpop.f32.mrb[0].mxu0
    %4515 = vdwg.mxu0
    %4517 = vrot.lane.b32.xlu0 %v3296, 64
    %v4518 = vpop.permute.xlu0 %4517
    %v4521 = vsel %vm1382, %v4343, 0
    %4523 = vmatprep.subr.mxu0 0.0
    %4524 = vmatpush1.msra.mxu0 %v4518
    %4525 = vmatprep.subr.mxu0 0.0
    %4526 = vmatpush1.msra.mxu0 0.0
    %4527 = vmatprep.subr.mxu0 0.0
    %4528 = vmatpush1.msra.mxu0 0.0
    %4529 = vmatprep.subr.mxu0 0.0
    %4530 = vmatpush1.msra.mxu0 0.0
    %4531 = vmatprep.subr.mxu0 0.0
    %4532 = vmatpush1.msra.mxu0 0.0
    %4533 = vmatprep.subr.mxu0 0.0
    %4534 = vmatpush1.msra.mxu0 0.0
    %4535 = vmatprep.subr.mxu0 0.0
    %4536 = vmatpush1.msra.mxu0 0.0
    %4537 = vmatprep.subr.mxu0 0.0
    %4538 = vmatpush1.msra.mxu0 0.0
    %4539 = vmatprep.subr.mxu0 0.0
    %4540 = vmatpush1.msra.mxu0 0.0
    %4541 = vmatprep.subr.mxu0 0.0
    %4542 = vmatpush1.msra.mxu0 0.0
    %4543 = vmatprep.subr.mxu0 0.0
    %4544 = vmatpush1.msra.mxu0 0.0
    %4545 = vmatprep.subr.mxu0 0.0
    %4546 = vmatpush1.msra.mxu0 0.0
    %4547 = vmatprep.subr.mxu0 0.0
    %4548 = vmatpush1.msra.mxu0 0.0
    %4549 = vmatprep.subr.mxu0 0.0
    %4550 = vmatpush1.msra.mxu0 0.0
    %4551 = vmatprep.subr.mxu0 0.0
    %4552 = vmatpush1.msra.mxu0 0.0
    %4553 = vmatprep.subr.mxu0 0.0
    %4554 = vmatpush1.msra.mxu0 0.0
    %4555 = vmatprep.subr.mxu0 0.0
    %4556 = vmatpush1.msra.mxu0 0.0
    %4557 = vmatprep.subr.mxu0 0.0
    %4558 = vmatpush1.msra.mxu0 0.0
    %4559 = vmatprep.subr.mxu0 0.0
    %4560 = vmatpush1.msra.mxu0 0.0
    %4561 = vmatprep.subr.mxu0 0.0
    %4562 = vmatpush1.msra.mxu0 0.0
    %4563 = vmatprep.subr.mxu0 0.0
    %4564 = vmatpush1.msra.mxu0 0.0
    %4565 = vmatprep.subr.mxu0 0.0
    %4566 = vmatpush1.msra.mxu0 0.0
    %4567 = vmatprep.subr.mxu0 0.0
    %4568 = vmatpush1.msra.mxu0 0.0
    %4569 = vmatprep.subr.mxu0 0.0
    %4570 = vmatpush1.msra.mxu0 0.0
    %4571 = vmatprep.subr.mxu0 0.0
    %4572 = vmatpush1.msra.mxu0 0.0
    %4573 = vmatprep.subr.mxu0 0.0
    %4574 = vmatpush1.msra.mxu0 0.0
    %4575 = vmatprep.subr.mxu0 0.0
    %4576 = vmatpush1.msra.mxu0 0.0
    %4577 = vmatprep.subr.mxu0 0.0
    %4578 = vmatpush1.msra.mxu0 0.0
    %4579 = vmatprep.subr.mxu0 0.0
    %4580 = vmatpush1.msra.mxu0 0.0
    %4581 = vmatprep.subr.mxu0 0.0
    %4582 = vmatpush1.msra.mxu0 0.0
    %4583 = vmatprep.subr.mxu0 0.0
    %4584 = vmatpush1.msra.mxu0 0.0
    %4585 = vmatprep.subr.mxu0 0.0
    %4586 = vmatpush1.msra.mxu0 0.0
    %4587 = vmatprep.mubr.f32.mxu0 0.0
    %4588 = vmatmul.mubr.f32.gmra.mrb[0].mxu0 %v4521
    %v4589 = vpop.f32.mrb[0].mxu0
    %v4590 = vadd.f32 0.0, %v4589
    %v4591 = vpop.f32.mrb[0].mxu0
    %4592 = vdwg.mxu0
    %4594 = vrot.lane.b32.xlu0 %v3297, 64
    %v4595 = vpop.permute.xlu0 %4594
    %v4598 = vsel %vm1382, %v4345, 0
    %4600 = vmatprep.subr.mxu0 0.0
    %4601 = vmatpush1.msra.mxu0 %v4595
    %4602 = vmatprep.subr.mxu0 0.0
    %4603 = vmatpush1.msra.mxu0 0.0
    %4604 = vmatprep.subr.mxu0 0.0
    %4605 = vmatpush1.msra.mxu0 0.0
    %4606 = vmatprep.subr.mxu0 0.0
    %4607 = vmatpush1.msra.mxu0 0.0
    %4608 = vmatprep.subr.mxu0 0.0
    %4609 = vmatpush1.msra.mxu0 0.0
    %4610 = vmatprep.subr.mxu0 0.0
    %4611 = vmatpush1.msra.mxu0 0.0
    %4612 = vmatprep.subr.mxu0 0.0
    %4613 = vmatpush1.msra.mxu0 0.0
    %4614 = vmatprep.subr.mxu0 0.0
    %4615 = vmatpush1.msra.mxu0 0.0
    %4616 = vmatprep.subr.mxu0 0.0
    %4617 = vmatpush1.msra.mxu0 0.0
    %4618 = vmatprep.subr.mxu0 0.0
    %4619 = vmatpush1.msra.mxu0 0.0
    %4620 = vmatprep.subr.mxu0 0.0
    %4621 = vmatpush1.msra.mxu0 0.0
    %4622 = vmatprep.subr.mxu0 0.0
    %4623 = vmatpush1.msra.mxu0 0.0
    %4624 = vmatprep.subr.mxu0 0.0
    %4625 = vmatpush1.msra.mxu0 0.0
    %4626 = vmatprep.subr.mxu0 0.0
    %4627 = vmatpush1.msra.mxu0 0.0
    %4628 = vmatprep.subr.mxu0 0.0
    %4629 = vmatpush1.msra.mxu0 0.0
    %4630 = vmatprep.subr.mxu0 0.0
    %4631 = vmatpush1.msra.mxu0 0.0
    %4632 = vmatprep.subr.mxu0 0.0
    %4633 = vmatpush1.msra.mxu0 0.0
    %4634 = vmatprep.subr.mxu0 0.0
    %4635 = vmatpush1.msra.mxu0 0.0
    %4636 = vmatprep.subr.mxu0 0.0
    %4637 = vmatpush1.msra.mxu0 0.0
    %4638 = vmatprep.subr.mxu0 0.0
    %4639 = vmatpush1.msra.mxu0 0.0
    %4640 = vmatprep.subr.mxu0 0.0
    %4641 = vmatpush1.msra.mxu0 0.0
    %4642 = vmatprep.subr.mxu0 0.0
    %4643 = vmatpush1.msra.mxu0 0.0
    %4644 = vmatprep.subr.mxu0 0.0
    %4645 = vmatpush1.msra.mxu0 0.0
    %4646 = vmatprep.subr.mxu0 0.0
    %4647 = vmatpush1.msra.mxu0 0.0
    %4648 = vmatprep.subr.mxu0 0.0
    %4649 = vmatpush1.msra.mxu0 0.0
    %4650 = vmatprep.subr.mxu0 0.0
    %4651 = vmatpush1.msra.mxu0 0.0
    %4652 = vmatprep.subr.mxu0 0.0
    %4653 = vmatpush1.msra.mxu0 0.0
    %4654 = vmatprep.subr.mxu0 0.0
    %4655 = vmatpush1.msra.mxu0 0.0
    %4656 = vmatprep.subr.mxu0 0.0
    %4657 = vmatpush1.msra.mxu0 0.0
    %4658 = vmatprep.subr.mxu0 0.0
    %4659 = vmatpush1.msra.mxu0 0.0
    %4660 = vmatprep.subr.mxu0 0.0
    %4661 = vmatpush1.msra.mxu0 0.0
    %4662 = vmatprep.subr.mxu0 0.0
    %4663 = vmatpush1.msra.mxu0 0.0
    %4664 = vmatprep.mubr.f32.mxu0 0.0
    %4665 = vmatmul.mubr.f32.gmra.mrb[0].mxu0 %v4598
    %v4666 = vpop.f32.mrb[0].mxu0
    %v4667 = vadd.f32 0.0, %v4666
    %v4668 = vpop.f32.mrb[0].mxu0
    %4669 = vdwg.mxu0
    %4671 = vrot.lane.b32.xlu0 %v3298, 64
    %v4672 = vpop.permute.xlu0 %4671
    %v4675 = vsel %vm1382, %v4347, 0
    %4677 = vmatprep.subr.mxu0 0.0
    %4678 = vmatpush1.msra.mxu0 %v4672
    %4679 = vmatprep.subr.mxu0 0.0
    %4680 = vmatpush1.msra.mxu0 0.0
    %4681 = vmatprep.subr.mxu0 0.0
    %4682 = vmatpush1.msra.mxu0 0.0
    %4683 = vmatprep.subr.mxu0 0.0
    %4684 = vmatpush1.msra.mxu0 0.0
    %4685 = vmatprep.subr.mxu0 0.0
    %4686 = vmatpush1.msra.mxu0 0.0
    %4687 = vmatprep.subr.mxu0 0.0
    %4688 = vmatpush1.msra.mxu0 0.0
    %4689 = vmatprep.subr.mxu0 0.0
    %4690 = vmatpush1.msra.mxu0 0.0
    %4691 = vmatprep.subr.mxu0 0.0
    %4692 = vmatpush1.msra.mxu0 0.0
    %4693 = vmatprep.subr.mxu0 0.0
    %4694 = vmatpush1.msra.mxu0 0.0
    %4695 = vmatprep.subr.mxu0 0.0
    %4696 = vmatpush1.msra.mxu0 0.0
    %4697 = vmatprep.subr.mxu0 0.0
    %4698 = vmatpush1.msra.mxu0 0.0
    %4699 = vmatprep.subr.mxu0 0.0
    %4700 = vmatpush1.msra.mxu0 0.0
    %4701 = vmatprep.subr.mxu0 0.0
    %4702 = vmatpush1.msra.mxu0 0.0
    %4703 = vmatprep.subr.mxu0 0.0
    %4704 = vmatpush1.msra.mxu0 0.0
    %4705 = vmatprep.subr.mxu0 0.0
    %4706 = vmatpush1.msra.mxu0 0.0
    %4707 = vmatprep.subr.mxu0 0.0
    %4708 = vmatpush1.msra.mxu0 0.0
    %4709 = vmatprep.subr.mxu0 0.0
    %4710 = vmatpush1.msra.mxu0 0.0
    %4711 = vmatprep.subr.mxu0 0.0
    %4712 = vmatpush1.msra.mxu0 0.0
    %4713 = vmatprep.subr.mxu0 0.0
    %4714 = vmatpush1.msra.mxu0 0.0
    %4715 = vmatprep.subr.mxu0 0.0
    %4716 = vmatpush1.msra.mxu0 0.0
    %4717 = vmatprep.subr.mxu0 0.0
    %4718 = vmatpush1.msra.mxu0 0.0
    %4719 = vmatprep.subr.mxu0 0.0
    %4720 = vmatpush1.msra.mxu0 0.0
    %4721 = vmatprep.subr.mxu0 0.0
    %4722 = vmatpush1.msra.mxu0 0.0
    %4723 = vmatprep.subr.mxu0 0.0
    %4724 = vmatpush1.msra.mxu0 0.0
    %4725 = vmatprep.subr.mxu0 0.0
    %4726 = vmatpush1.msra.mxu0 0.0
    %4727 = vmatprep.subr.mxu0 0.0
    %4728 = vmatpush1.msra.mxu0 0.0
    %4729 = vmatprep.subr.mxu0 0.0
    %4730 = vmatpush1.msra.mxu0 0.0
    %4731 = vmatprep.subr.mxu0 0.0
    %4732 = vmatpush1.msra.mxu0 0.0
    %4733 = vmatprep.subr.mxu0 0.0
    %4734 = vmatpush1.msra.mxu0 0.0
    %4735 = vmatprep.subr.mxu0 0.0
    %4736 = vmatpush1.msra.mxu0 0.0
    %4737 = vmatprep.subr.mxu0 0.0
    %4738 = vmatpush1.msra.mxu0 0.0
    %4739 = vmatprep.subr.mxu0 0.0
    %4740 = vmatpush1.msra.mxu0 0.0
    %4741 = vmatprep.mubr.f32.mxu0 0.0
    %4742 = vmatmul.mubr.f32.gmra.mrb[0].mxu0 %v4675
    %v4743 = vpop.f32.mrb[0].mxu0
    %v4744 = vadd.f32 0.0, %v4743
    %v4745 = vpop.f32.mrb[0].mxu0
    %4746 = vdwg.mxu0
    %4748 = vrot.lane.b32.xlu0 %v3299, 64
    %v4749 = vpop.permute.xlu0 %4748
    %v4752 = vsel %vm1382, %v4349, 0
    %4754 = vmatprep.subr.mxu0 0.0
    %4755 = vmatpush1.msra.mxu0 %v4749
    %4756 = vmatprep.subr.mxu0 0.0
    %4757 = vmatpush1.msra.mxu0 0.0
    %4758 = vmatprep.subr.mxu0 0.0
    %4759 = vmatpush1.msra.mxu0 0.0
    %4760 = vmatprep.subr.mxu0 0.0
    %4761 = vmatpush1.msra.mxu0 0.0
    %4762 = vmatprep.subr.mxu0 0.0
    %4763 = vmatpush1.msra.mxu0 0.0
    %4764 = vmatprep.subr.mxu0 0.0
    %4765 = vmatpush1.msra.mxu0 0.0
    %4766 = vmatprep.subr.mxu0 0.0
    %4767 = vmatpush1.msra.mxu0 0.0
    %4768 = vmatprep.subr.mxu0 0.0
    %4769 = vmatpush1.msra.mxu0 0.0
    %4770 = vmatprep.subr.mxu0 0.0
    %4771 = vmatpush1.msra.mxu0 0.0
    %4772 = vmatprep.subr.mxu0 0.0
    %4773 = vmatpush1.msra.mxu0 0.0
    %4774 = vmatprep.subr.mxu0 0.0
    %4775 = vmatpush1.msra.mxu0 0.0
    %4776 = vmatprep.subr.mxu0 0.0
    %4777 = vmatpush1.msra.mxu0 0.0
    %4778 = vmatprep.subr.mxu0 0.0
    %4779 = vmatpush1.msra.mxu0 0.0
    %4780 = vmatprep.subr.mxu0 0.0
    %4781 = vmatpush1.msra.mxu0 0.0
    %4782 = vmatprep.subr.mxu0 0.0
    %4783 = vmatpush1.msra.mxu0 0.0
    %4784 = vmatprep.subr.mxu0 0.0
    %4785 = vmatpush1.msra.mxu0 0.0
    %4786 = vmatprep.subr.mxu0 0.0
    %4787 = vmatpush1.msra.mxu0 0.0
    %4788 = vmatprep.subr.mxu0 0.0
    %4789 = vmatpush1.msra.mxu0 0.0
    %4790 = vmatprep.subr.mxu0 0.0
    %4791 = vmatpush1.msra.mxu0 0.0
    %4792 = vmatprep.subr.mxu0 0.0
    %4793 = vmatpush1.msra.mxu0 0.0
    %4794 = vmatprep.subr.mxu0 0.0
    %4795 = vmatpush1.msra.mxu0 0.0
    %4796 = vmatprep.subr.mxu0 0.0
    %4797 = vmatpush1.msra.mxu0 0.0
    %4798 = vmatprep.subr.mxu0 0.0
    %4799 = vmatpush1.msra.mxu0 0.0
    %4800 = vmatprep.subr.mxu0 0.0
    %4801 = vmatpush1.msra.mxu0 0.0
    %4802 = vmatprep.subr.mxu0 0.0
    %4803 = vmatpush1.msra.mxu0 0.0
    %4804 = vmatprep.subr.mxu0 0.0
    %4805 = vmatpush1.msra.mxu0 0.0
    %4806 = vmatprep.subr.mxu0 0.0
    %4807 = vmatpush1.msra.mxu0 0.0
    %4808 = vmatprep.subr.mxu0 0.0
    %4809 = vmatpush1.msra.mxu0 0.0
    %4810 = vmatprep.subr.mxu0 0.0
    %4811 = vmatpush1.msra.mxu0 0.0
    %4812 = vmatprep.subr.mxu0 0.0
    %4813 = vmatpush1.msra.mxu0 0.0
    %4814 = vmatprep.subr.mxu0 0.0
    %4815 = vmatpush1.msra.mxu0 0.0
    %4816 = vmatprep.subr.mxu0 0.0
    %4817 = vmatpush1.msra.mxu0 0.0
    %4818 = vmatprep.mubr.f32.mxu0 0.0
    %4819 = vmatmul.mubr.f32.gmra.mrb[0].mxu0 %v4752
    %v4820 = vpop.f32.mrb[0].mxu0
    %v4821 = vadd.f32 0.0, %v4820
    %v4822 = vpop.f32.mrb[0].mxu0
    %4823 = vdwg.mxu0
    %4825 = vrot.lane.b32.xlu0 %v3300, 64
    %v4826 = vpop.permute.xlu0 %4825
    %v4829 = vsel %vm1382, %v4351, 0
    %4831 = vmatprep.subr.mxu0 0.0
    %4832 = vmatpush1.msra.mxu0 %v4826
    %4833 = vmatprep.subr.mxu0 0.0
    %4834 = vmatpush1.msra.mxu0 0.0
    %4835 = vmatprep.subr.mxu0 0.0
    %4836 = vmatpush1.msra.mxu0 0.0
    %4837 = vmatprep.subr.mxu0 0.0
    %4838 = vmatpush1.msra.mxu0 0.0
    %4839 = vmatprep.subr.mxu0 0.0
    %4840 = vmatpush1.msra.mxu0 0.0
    %4841 = vmatprep.subr.mxu0 0.0
    %4842 = vmatpush1.msra.mxu0 0.0
    %4843 = vmatprep.subr.mxu0 0.0
    %4844 = vmatpush1.msra.mxu0 0.0
    %4845 = vmatprep.subr.mxu0 0.0
    %4846 = vmatpush1.msra.mxu0 0.0
    %4847 = vmatprep.subr.mxu0 0.0
    %4848 = vmatpush1.msra.mxu0 0.0
    %4849 = vmatprep.subr.mxu0 0.0
    %4850 = vmatpush1.msra.mxu0 0.0
    %4851 = vmatprep.subr.mxu0 0.0
    %4852 = vmatpush1.msra.mxu0 0.0
    %4853 = vmatprep.subr.mxu0 0.0
    %4854 = vmatpush1.msra.mxu0 0.0
    %4855 = vmatprep.subr.mxu0 0.0
    %4856 = vmatpush1.msra.mxu0 0.0
    %4857 = vmatprep.subr.mxu0 0.0
    %4858 = vmatpush1.msra.mxu0 0.0
    %4859 = vmatprep.subr.mxu0 0.0
    %4860 = vmatpush1.msra.mxu0 0.0
    %4861 = vmatprep.subr.mxu0 0.0
    %4862 = vmatpush1.msra.mxu0 0.0
    %4863 = vmatprep.subr.mxu0 0.0
    %4864 = vmatpush1.msra.mxu0 0.0
    %4865 = vmatprep.subr.mxu0 0.0
    %4866 = vmatpush1.msra.mxu0 0.0
    %4867 = vmatprep.subr.mxu0 0.0
    %4868 = vmatpush1.msra.mxu0 0.0
    %4869 = vmatprep.subr.mxu0 0.0
    %4870 = vmatpush1.msra.mxu0 0.0
    %4871 = vmatprep.subr.mxu0 0.0
    %4872 = vmatpush1.msra.mxu0 0.0
    %4873 = vmatprep.subr.mxu0 0.0
    %4874 = vmatpush1.msra.mxu0 0.0
    %4875 = vmatprep.subr.mxu0 0.0
    %4876 = vmatpush1.msra.mxu0 0.0
    %4877 = vmatprep.subr.mxu0 0.0
    %4878 = vmatpush1.msra.mxu0 0.0
    %4879 = vmatprep.subr.mxu0 0.0
    %4880 = vmatpush1.msra.mxu0 0.0
    %4881 = vmatprep.subr.mxu0 0.0
    %4882 = vmatpush1.msra.mxu0 0.0
    %4883 = vmatprep.subr.mxu0 0.0
    %4884 = vmatpush1.msra.mxu0 0.0
    %4885 = vmatprep.subr.mxu0 0.0
    %4886 = vmatpush1.msra.mxu0 0.0
    %4887 = vmatprep.subr.mxu0 0.0
    %4888 = vmatpush1.msra.mxu0 0.0
    %4889 = vmatprep.subr.mxu0 0.0
    %4890 = vmatpush1.msra.mxu0 0.0
    %4891 = vmatprep.subr.mxu0 0.0
    %4892 = vmatpush1.msra.mxu0 0.0
    %4893 = vmatprep.subr.mxu0 0.0
    %4894 = vmatpush1.msra.mxu0 0.0
    %4895 = vmatprep.mubr.f32.mxu0 0.0
    %4896 = vmatmul.mubr.f32.gmra.mrb[0].mxu0 %v4829
    %v4897 = vpop.f32.mrb[0].mxu0
    %v4898 = vadd.f32 0.0, %v4897
    %v4899 = vpop.f32.mrb[0].mxu0
    %4900 = vdwg.mxu0
    %4902 = vrot.lane.b32.xlu0 %v3301, 64
    %v4903 = vpop.permute.xlu0 %4902
    %v4906 = vsel %vm1382, %v4353, 0
    %4908 = vmatprep.subr.mxu0 0.0
    %4909 = vmatpush1.msra.mxu0 %v4903
    %4910 = vmatprep.subr.mxu0 0.0
    %4911 = vmatpush1.msra.mxu0 0.0
    %4912 = vmatprep.subr.mxu0 0.0
    %4913 = vmatpush1.msra.mxu0 0.0
    %4914 = vmatprep.subr.mxu0 0.0
    %4915 = vmatpush1.msra.mxu0 0.0
    %4916 = vmatprep.subr.mxu0 0.0
    %4917 = vmatpush1.msra.mxu0 0.0
    %4918 = vmatprep.subr.mxu0 0.0
    %4919 = vmatpush1.msra.mxu0 0.0
    %4920 = vmatprep.subr.mxu0 0.0
    %4921 = vmatpush1.msra.mxu0 0.0
    %4922 = vmatprep.subr.mxu0 0.0
    %4923 = vmatpush1.msra.mxu0 0.0
    %4924 = vmatprep.subr.mxu0 0.0
    %4925 = vmatpush1.msra.mxu0 0.0
    %4926 = vmatprep.subr.mxu0 0.0
    %4927 = vmatpush1.msra.mxu0 0.0
    %4928 = vmatprep.subr.mxu0 0.0
    %4929 = vmatpush1.msra.mxu0 0.0
    %4930 = vmatprep.subr.mxu0 0.0
    %4931 = vmatpush1.msra.mxu0 0.0
    %4932 = vmatprep.subr.mxu0 0.0
    %4933 = vmatpush1.msra.mxu0 0.0
    %4934 = vmatprep.subr.mxu0 0.0
    %4935 = vmatpush1.msra.mxu0 0.0
    %4936 = vmatprep.subr.mxu0 0.0
    %4937 = vmatpush1.msra.mxu0 0.0
    %4938 = vmatprep.subr.mxu0 0.0
    %4939 = vmatpush1.msra.mxu0 0.0
    %4940 = vmatprep.subr.mxu0 0.0
    %4941 = vmatpush1.msra.mxu0 0.0
    %4942 = vmatprep.subr.mxu0 0.0
    %4943 = vmatpush1.msra.mxu0 0.0
    %4944 = vmatprep.subr.mxu0 0.0
    %4945 = vmatpush1.msra.mxu0 0.0
    %4946 = vmatprep.subr.mxu0 0.0
    %4947 = vmatpush1.msra.mxu0 0.0
    %4948 = vmatprep.subr.mxu0 0.0
    %4949 = vmatpush1.msra.mxu0 0.0
    %4950 = vmatprep.subr.mxu0 0.0
    %4951 = vmatpush1.msra.mxu0 0.0
    %4952 = vmatprep.subr.mxu0 0.0
    %4953 = vmatpush1.msra.mxu0 0.0
    %4954 = vmatprep.subr.mxu0 0.0
    %4955 = vmatpush1.msra.mxu0 0.0
    %4956 = vmatprep.subr.mxu0 0.0
    %4957 = vmatpush1.msra.mxu0 0.0
    %4958 = vmatprep.subr.mxu0 0.0
    %4959 = vmatpush1.msra.mxu0 0.0
    %4960 = vmatprep.subr.mxu0 0.0
    %4961 = vmatpush1.msra.mxu0 0.0
    %4962 = vmatprep.subr.mxu0 0.0
    %4963 = vmatpush1.msra.mxu0 0.0
    %4964 = vmatprep.subr.mxu0 0.0
    %4965 = vmatpush1.msra.mxu0 0.0
    %4966 = vmatprep.subr.mxu0 0.0
    %4967 = vmatpush1.msra.mxu0 0.0
    %4968 = vmatprep.subr.mxu0 0.0
    %4969 = vmatpush1.msra.mxu0 0.0
    %4970 = vmatprep.subr.mxu0 0.0
    %4971 = vmatpush1.msra.mxu0 0.0
    %4972 = vmatprep.mubr.f32.mxu0 0.0
    %4973 = vmatmul.mubr.f32.gmra.mrb[0].mxu0 %v4906
    %v4974 = vpop.f32.mrb[0].mxu0
    %v4975 = vadd.f32 0.0, %v4974
    %v4976 = vpop.f32.mrb[0].mxu0
    %4977 = vdwg.mxu0
    %4979 = vrot.lane.b32.xlu0 %v3302, 64
    %v4980 = vpop.permute.xlu0 %4979
    %v4983 = vsel %vm1382, %v4355, 0
    %4985 = vmatprep.subr.mxu0 0.0
    %4986 = vmatpush1.msra.mxu0 %v4980
    %4987 = vmatprep.subr.mxu0 0.0
    %4988 = vmatpush1.msra.mxu0 0.0
    %4989 = vmatprep.subr.mxu0 0.0
    %4990 = vmatpush1.msra.mxu0 0.0
    %4991 = vmatprep.subr.mxu0 0.0
    %4992 = vmatpush1.msra.mxu0 0.0
    %4993 = vmatprep.subr.mxu0 0.0
    %4994 = vmatpush1.msra.mxu0 0.0
    %4995 = vmatprep.subr.mxu0 0.0
    %4996 = vmatpush1.msra.mxu0 0.0
    %4997 = vmatprep.subr.mxu0 0.0
    %4998 = vmatpush1.msra.mxu0 0.0
    %4999 = vmatprep.subr.mxu0 0.0
    %5000 = vmatpush1.msra.mxu0 0.0
    %5001 = vmatprep.subr.mxu0 0.0
    %5002 = vmatpush1.msra.mxu0 0.0
    %5003 = vmatprep.subr.mxu0 0.0
    %5004 = vmatpush1.msra.mxu0 0.0
    %5005 = vmatprep.subr.mxu0 0.0
    %5006 = vmatpush1.msra.mxu0 0.0
    %5007 = vmatprep.subr.mxu0 0.0
    %5008 = vmatpush1.msra.mxu0 0.0
    %5009 = vmatprep.subr.mxu0 0.0
    %5010 = vmatpush1.msra.mxu0 0.0
    %5011 = vmatprep.subr.mxu0 0.0
    %5012 = vmatpush1.msra.mxu0 0.0
    %5013 = vmatprep.subr.mxu0 0.0
    %5014 = vmatpush1.msra.mxu0 0.0
    %5015 = vmatprep.subr.mxu0 0.0
    %5016 = vmatpush1.msra.mxu0 0.0
    %5017 = vmatprep.subr.mxu0 0.0
    %5018 = vmatpush1.msra.mxu0 0.0
    %5019 = vmatprep.subr.mxu0 0.0
    %5020 = vmatpush1.msra.mxu0 0.0
    %5021 = vmatprep.subr.mxu0 0.0
    %5022 = vmatpush1.msra.mxu0 0.0
    %5023 = vmatprep.subr.mxu0 0.0
    %5024 = vmatpush1.msra.mxu0 0.0
    %5025 = vmatprep.subr.mxu0 0.0
    %5026 = vmatpush1.msra.mxu0 0.0
    %5027 = vmatprep.subr.mxu0 0.0
    %5028 = vmatpush1.msra.mxu0 0.0
    %5029 = vmatprep.subr.mxu0 0.0
    %5030 = vmatpush1.msra.mxu0 0.0
    %5031 = vmatprep.subr.mxu0 0.0
    %5032 = vmatpush1.msra.mxu0 0.0
    %5033 = vmatprep.subr.mxu0 0.0
    %5034 = vmatpush1.msra.mxu0 0.0
    %5035 = vmatprep.subr.mxu0 0.0
    %5036 = vmatpush1.msra.mxu0 0.0
    %5037 = vmatprep.subr.mxu0 0.0
    %5038 = vmatpush1.msra.mxu0 0.0
    %5039 = vmatprep.subr.mxu0 0.0
    %5040 = vmatpush1.msra.mxu0 0.0
    %5041 = vmatprep.subr.mxu0 0.0
    %5042 = vmatpush1.msra.mxu0 0.0
    %5043 = vmatprep.subr.mxu0 0.0
    %5044 = vmatpush1.msra.mxu0 0.0
    %5045 = vmatprep.subr.mxu0 0.0
    %5046 = vmatpush1.msra.mxu0 0.0
    %5047 = vmatprep.subr.mxu0 0.0
    %5048 = vmatpush1.msra.mxu0 0.0
    %5049 = vmatprep.mubr.f32.mxu0 0.0
    %5050 = vmatmul.mubr.f32.gmra.mrb[0].mxu0 %v4983
    %v5051 = vpop.f32.mrb[0].mxu0
    %v5052 = vadd.f32 0.0, %v5051
    %v5053 = vpop.f32.mrb[0].mxu0
    %5054 = vdwg.mxu0
    %5056 = vrot.lane.b32.xlu0 %v3303, 64
    %v5057 = vpop.permute.xlu0 %5056
    %v5060 = vsel %vm1382, %v4357, 0
    %5062 = vmatprep.subr.mxu0 0.0
    %5063 = vmatpush1.msra.mxu0 %v5057
    %5064 = vmatprep.subr.mxu0 0.0
    %5065 = vmatpush1.msra.mxu0 0.0
    %5066 = vmatprep.subr.mxu0 0.0
    %5067 = vmatpush1.msra.mxu0 0.0
    %5068 = vmatprep.subr.mxu0 0.0
    %5069 = vmatpush1.msra.mxu0 0.0
    %5070 = vmatprep.subr.mxu0 0.0
    %5071 = vmatpush1.msra.mxu0 0.0
    %5072 = vmatprep.subr.mxu0 0.0
    %5073 = vmatpush1.msra.mxu0 0.0
    %5074 = vmatprep.subr.mxu0 0.0
    %5075 = vmatpush1.msra.mxu0 0.0
    %5076 = vmatprep.subr.mxu0 0.0
    %5077 = vmatpush1.msra.mxu0 0.0
    %5078 = vmatprep.subr.mxu0 0.0
    %5079 = vmatpush1.msra.mxu0 0.0
    %5080 = vmatprep.subr.mxu0 0.0
    %5081 = vmatpush1.msra.mxu0 0.0
    %5082 = vmatprep.subr.mxu0 0.0
    %5083 = vmatpush1.msra.mxu0 0.0
    %5084 = vmatprep.subr.mxu0 0.0
    %5085 = vmatpush1.msra.mxu0 0.0
    %5086 = vmatprep.subr.mxu0 0.0
    %5087 = vmatpush1.msra.mxu0 0.0
    %5088 = vmatprep.subr.mxu0 0.0
    %5089 = vmatpush1.msra.mxu0 0.0
    %5090 = vmatprep.subr.mxu0 0.0
    %5091 = vmatpush1.msra.mxu0 0.0
    %5092 = vmatprep.subr.mxu0 0.0
    %5093 = vmatpush1.msra.mxu0 0.0
    %5094 = vmatprep.subr.mxu0 0.0
    %5095 = vmatpush1.msra.mxu0 0.0
    %5096 = vmatprep.subr.mxu0 0.0
    %5097 = vmatpush1.msra.mxu0 0.0
    %5098 = vmatprep.subr.mxu0 0.0
    %5099 = vmatpush1.msra.mxu0 0.0
    %5100 = vmatprep.subr.mxu0 0.0
    %5101 = vmatpush1.msra.mxu0 0.0
    %5102 = vmatprep.subr.mxu0 0.0
    %5103 = vmatpush1.msra.mxu0 0.0
    %5104 = vmatprep.subr.mxu0 0.0
    %5105 = vmatpush1.msra.mxu0 0.0
    %5106 = vmatprep.subr.mxu0 0.0
    %5107 = vmatpush1.msra.mxu0 0.0
    %5108 = vmatprep.subr.mxu0 0.0
    %5109 = vmatpush1.msra.mxu0 0.0
    %5110 = vmatprep.subr.mxu0 0.0
    %5111 = vmatpush1.msra.mxu0 0.0
    %5112 = vmatprep.subr.mxu0 0.0
    %5113 = vmatpush1.msra.mxu0 0.0
    %5114 = vmatprep.subr.mxu0 0.0
    %5115 = vmatpush1.msra.mxu0 0.0
    %5116 = vmatprep.subr.mxu0 0.0
    %5117 = vmatpush1.msra.mxu0 0.0
    %5118 = vmatprep.subr.mxu0 0.0
    %5119 = vmatpush1.msra.mxu0 0.0
    %5120 = vmatprep.subr.mxu0 0.0
    %5121 = vmatpush1.msra.mxu0 0.0
    %5122 = vmatprep.subr.mxu0 0.0
    %5123 = vmatpush1.msra.mxu0 0.0
    %5124 = vmatprep.subr.mxu0 0.0
    %5125 = vmatpush1.msra.mxu0 0.0
    %5126 = vmatprep.mubr.f32.mxu0 0.0
    %5127 = vmatmul.mubr.f32.gmra.mrb[0].mxu0 %v5060
    %v5128 = vpop.f32.mrb[0].mxu0
    %v5129 = vadd.f32 0.0, %v5128
    %v5130 = vpop.f32.mrb[0].mxu0
    %5131 = vdwg.mxu0
    %5133 = vrot.lane.b32.xlu0 %v3304, 64
    %v5134 = vpop.permute.xlu0 %5133
    %v5137 = vsel %vm1382, %v4359, 0
    %5139 = vmatprep.subr.mxu0 0.0
    %5140 = vmatpush1.msra.mxu0 %v5134
    %5141 = vmatprep.subr.mxu0 0.0
    %5142 = vmatpush1.msra.mxu0 0.0
    %5143 = vmatprep.subr.mxu0 0.0
    %5144 = vmatpush1.msra.mxu0 0.0
    %5145 = vmatprep.subr.mxu0 0.0
    %5146 = vmatpush1.msra.mxu0 0.0
    %5147 = vmatprep.subr.mxu0 0.0
    %5148 = vmatpush1.msra.mxu0 0.0
    %5149 = vmatprep.subr.mxu0 0.0
    %5150 = vmatpush1.msra.mxu0 0.0
    %5151 = vmatprep.subr.mxu0 0.0
    %5152 = vmatpush1.msra.mxu0 0.0
    %5153 = vmatprep.subr.mxu0 0.0
    %5154 = vmatpush1.msra.mxu0 0.0
    %5155 = vmatprep.subr.mxu0 0.0
    %5156 = vmatpush1.msra.mxu0 0.0
    %5157 = vmatprep.subr.mxu0 0.0
    %5158 = vmatpush1.msra.mxu0 0.0
    %5159 = vmatprep.subr.mxu0 0.0
    %5160 = vmatpush1.msra.mxu0 0.0
    %5161 = vmatprep.subr.mxu0 0.0
    %5162 = vmatpush1.msra.mxu0 0.0
    %5163 = vmatprep.subr.mxu0 0.0
    %5164 = vmatpush1.msra.mxu0 0.0
    %5165 = vmatprep.subr.mxu0 0.0
    %5166 = vmatpush1.msra.mxu0 0.0
    %5167 = vmatprep.subr.mxu0 0.0
    %5168 = vmatpush1.msra.mxu0 0.0
    %5169 = vmatprep.subr.mxu0 0.0
    %5170 = vmatpush1.msra.mxu0 0.0
    %5171 = vmatprep.subr.mxu0 0.0
    %5172 = vmatpush1.msra.mxu0 0.0
    %5173 = vmatprep.subr.mxu0 0.0
    %5174 = vmatpush1.msra.mxu0 0.0
    %5175 = vmatprep.subr.mxu0 0.0
    %5176 = vmatpush1.msra.mxu0 0.0
    %5177 = vmatprep.subr.mxu0 0.0
    %5178 = vmatpush1.msra.mxu0 0.0
    %5179 = vmatprep.subr.mxu0 0.0
    %5180 = vmatpush1.msra.mxu0 0.0
    %5181 = vmatprep.subr.mxu0 0.0
    %5182 = vmatpush1.msra.mxu0 0.0
    %5183 = vmatprep.subr.mxu0 0.0
    %5184 = vmatpush1.msra.mxu0 0.0
    %5185 = vmatprep.subr.mxu0 0.0
    %5186 = vmatpush1.msra.mxu0 0.0
    %5187 = vmatprep.subr.mxu0 0.0
    %5188 = vmatpush1.msra.mxu0 0.0
    %5189 = vmatprep.subr.mxu0 0.0
    %5190 = vmatpush1.msra.mxu0 0.0
    %5191 = vmatprep.subr.mxu0 0.0
    %5192 = vmatpush1.msra.mxu0 0.0
    %5193 = vmatprep.subr.mxu0 0.0
    %5194 = vmatpush1.msra.mxu0 0.0
    %5195 = vmatprep.subr.mxu0 0.0
    %5196 = vmatpush1.msra.mxu0 0.0
    %5197 = vmatprep.subr.mxu0 0.0
    %5198 = vmatpush1.msra.mxu0 0.0
    %5199 = vmatprep.subr.mxu0 0.0
    %5200 = vmatpush1.msra.mxu0 0.0
    %5201 = vmatprep.subr.mxu0 0.0
    %5202 = vmatpush1.msra.mxu0 0.0
    %5203 = vmatprep.mubr.f32.mxu0 0.0
    %5204 = vmatmul.mubr.f32.gmra.mrb[0].mxu0 %v5137
    %v5205 = vpop.f32.mrb[0].mxu0
    %v5206 = vadd.f32 0.0, %v5205
    %v5207 = vpop.f32.mrb[0].mxu0
    %5208 = vdwg.mxu0
    %5210 = vrot.lane.b32.xlu0 %v3305, 64
    %v5211 = vpop.permute.xlu0 %5210
    %v5214 = vsel %vm1382, %v4361, 0
    %5216 = vmatprep.subr.mxu0 0.0
    %5217 = vmatpush1.msra.mxu0 %v5211
    %5218 = vmatprep.subr.mxu0 0.0
    %5219 = vmatpush1.msra.mxu0 0.0
    %5220 = vmatprep.subr.mxu0 0.0
    %5221 = vmatpush1.msra.mxu0 0.0
    %5222 = vmatprep.subr.mxu0 0.0
    %5223 = vmatpush1.msra.mxu0 0.0
    %5224 = vmatprep.subr.mxu0 0.0
    %5225 = vmatpush1.msra.mxu0 0.0
    %5226 = vmatprep.subr.mxu0 0.0
    %5227 = vmatpush1.msra.mxu0 0.0
    %5228 = vmatprep.subr.mxu0 0.0
    %5229 = vmatpush1.msra.mxu0 0.0
    %5230 = vmatprep.subr.mxu0 0.0
    %5231 = vmatpush1.msra.mxu0 0.0
    %5232 = vmatprep.subr.mxu0 0.0
    %5233 = vmatpush1.msra.mxu0 0.0
    %5234 = vmatprep.subr.mxu0 0.0
    %5235 = vmatpush1.msra.mxu0 0.0
    %5236 = vmatprep.subr.mxu0 0.0
    %5237 = vmatpush1.msra.mxu0 0.0
    %5238 = vmatprep.subr.mxu0 0.0
    %5239 = vmatpush1.msra.mxu0 0.0
    %5240 = vmatprep.subr.mxu0 0.0
    %5241 = vmatpush1.msra.mxu0 0.0
    %5242 = vmatprep.subr.mxu0 0.0
    %5243 = vmatpush1.msra.mxu0 0.0
    %5244 = vmatprep.subr.mxu0 0.0
    %5245 = vmatpush1.msra.mxu0 0.0
    %5246 = vmatprep.subr.mxu0 0.0
    %5247 = vmatpush1.msra.mxu0 0.0
    %5248 = vmatprep.subr.mxu0 0.0
    %5249 = vmatpush1.msra.mxu0 0.0
    %5250 = vmatprep.subr.mxu0 0.0
    %5251 = vmatpush1.msra.mxu0 0.0
    %5252 = vmatprep.subr.mxu0 0.0
    %5253 = vmatpush1.msra.mxu0 0.0
    %5254 = vmatprep.subr.mxu0 0.0
    %5255 = vmatpush1.msra.mxu0 0.0
    %5256 = vmatprep.subr.mxu0 0.0
    %5257 = vmatpush1.msra.mxu0 0.0
    %5258 = vmatprep.subr.mxu0 0.0
    %5259 = vmatpush1.msra.mxu0 0.0
    %5260 = vmatprep.subr.mxu0 0.0
    %5261 = vmatpush1.msra.mxu0 0.0
    %5262 = vmatprep.subr.mxu0 0.0
    %5263 = vmatpush1.msra.mxu0 0.0
    %5264 = vmatprep.subr.mxu0 0.0
    %5265 = vmatpush1.msra.mxu0 0.0
    %5266 = vmatprep.subr.mxu0 0.0
    %5267 = vmatpush1.msra.mxu0 0.0
    %5268 = vmatprep.subr.mxu0 0.0
    %5269 = vmatpush1.msra.mxu0 0.0
    %5270 = vmatprep.subr.mxu0 0.0
    %5271 = vmatpush1.msra.mxu0 0.0
    %5272 = vmatprep.subr.mxu0 0.0
    %5273 = vmatpush1.msra.mxu0 0.0
    %5274 = vmatprep.subr.mxu0 0.0
    %5275 = vmatpush1.msra.mxu0 0.0
    %5276 = vmatprep.subr.mxu0 0.0
    %5277 = vmatpush1.msra.mxu0 0.0
    %5278 = vmatprep.subr.mxu0 0.0
    %5279 = vmatpush1.msra.mxu0 0.0
    %5280 = vmatprep.mubr.f32.mxu0 0.0
    %5281 = vmatmul.mubr.f32.gmra.mrb[0].mxu0 %v5214
    %v5282 = vpop.f32.mrb[0].mxu0
    %v5283 = vadd.f32 0.0, %v5282
    %v5284 = vpop.f32.mrb[0].mxu0
    %5285 = vdwg.mxu0
    %v5286 = vadd.f32 %v4436, %v4898
    %v5287 = vadd.f32 %v4513, %v4975
    %v5288 = vadd.f32 %v4590, %v5052
    %v5289 = vadd.f32 %v4667, %v5129
    %v5290 = vadd.f32 %v4744, %v5206
    %v5291 = vadd.f32 %v4821, %v5283
    %s5292 = scalar_lea.vmem %s6, 32
    %v5293 = vld [vmem:[%s5292] sm:$0xff]
    %v5294 = vld [vmem:[%s5292 + $0x8] sm:$0xff]
    %v5295 = vld [vmem:[%s5292 + $0x10] sm:$0xff]
    %v5296 = vld [vmem:[%s5292 + $0x18] sm:$0xff]
    %s5297 = scalar_lea.vmem %s7, 1
    %v5298 = vld [vmem:[%s5297] sm:$0x1]
    %v5300 = vlaneseq
    %v5301 = vshrl.u32 %v5300, 7
    %v5302 = vsub.s32 0, %v5301
    %v5303 = vrot.slane %v5298, %v5302
    %v5306 = vsel %vm62, %v5286, 0
    %v5309 = vsel %vm62, %v5287, 0
    %v5312 = vsel %vm62, %v5288, 0
    %v5315 = vsel %vm62, %v5289, 0
    %v5318 = vsel %vm62, %v5290, 0
    %v5321 = vsel %vm62, %v5291, 0
    %5323 = vmatprep.subr.mxu0 0.0
    %5324 = vmatpush1.msra.mxu0 %v5293
    %5325 = vmatprep.subr.mxu0 0.0
    %5326 = vmatpush1.msra.mxu0 %v5294
    %5327 = vmatprep.subr.mxu0 0.0
    %5328 = vmatpush1.msra.mxu0 %v5295
    %5329 = vmatprep.subr.mxu0 0.0
    %5330 = vmatpush1.msra.mxu0 %v5296
    %5331 = vmatprep.subr.mxu0 0.0
    %5332 = vmatpush1.msra.mxu0 0.0
    %5333 = vmatprep.subr.mxu0 0.0
    %5334 = vmatpush1.msra.mxu0 0.0
    %5335 = vmatprep.subr.mxu0 0.0
    %5336 = vmatpush1.msra.mxu0 0.0
    %5337 = vmatprep.subr.mxu0 0.0
    %5338 = vmatpush1.msra.mxu0 0.0
    %5339 = vmatprep.subr.mxu0 0.0
    %5340 = vmatpush1.msra.mxu0 0.0
    %5341 = vmatprep.subr.mxu0 0.0
    %5342 = vmatpush1.msra.mxu0 0.0
    %5343 = vmatprep.subr.mxu0 0.0
    %5344 = vmatpush1.msra.mxu0 0.0
    %5345 = vmatprep.subr.mxu0 0.0
    %5346 = vmatpush1.msra.mxu0 0.0
    %5347 = vmatprep.subr.mxu0 0.0
    %5348 = vmatpush1.msra.mxu0 0.0
    %5349 = vmatprep.subr.mxu0 0.0
    %5350 = vmatpush1.msra.mxu0 0.0
    %5351 = vmatprep.subr.mxu0 0.0
    %5352 = vmatpush1.msra.mxu0 0.0
    %5353 = vmatprep.subr.mxu0 0.0
    %5354 = vmatpush1.msra.mxu0 0.0
    %5355 = vmatprep.subr.mxu0 0.0
    %5356 = vmatpush1.msra.mxu0 0.0
    %5357 = vmatprep.subr.mxu0 0.0
    %5358 = vmatpush1.msra.mxu0 0.0
    %5359 = vmatprep.subr.mxu0 0.0
    %5360 = vmatpush1.msra.mxu0 0.0
    %5361 = vmatprep.subr.mxu0 0.0
    %5362 = vmatpush1.msra.mxu0 0.0
    %5363 = vmatprep.subr.mxu0 0.0
    %5364 = vmatpush1.msra.mxu0 0.0
    %5365 = vmatprep.subr.mxu0 0.0
    %5366 = vmatpush1.msra.mxu0 0.0
    %5367 = vmatprep.subr.mxu0 0.0
    %5368 = vmatpush1.msra.mxu0 0.0
    %5369 = vmatprep.subr.mxu0 0.0
    %5370 = vmatpush1.msra.mxu0 0.0
    %5371 = vmatprep.subr.mxu0 0.0
    %5372 = vmatpush1.msra.mxu0 0.0
    %5373 = vmatprep.subr.mxu0 0.0
    %5374 = vmatpush1.msra.mxu0 0.0
    %5375 = vmatprep.subr.mxu0 0.0
    %5376 = vmatpush1.msra.mxu0 0.0
    %5377 = vmatprep.subr.mxu0 0.0
    %5378 = vmatpush1.msra.mxu0 0.0
    %5379 = vmatprep.subr.mxu0 0.0
    %5380 = vmatpush1.msra.mxu0 0.0
    %5381 = vmatprep.subr.mxu0 0.0
    %5382 = vmatpush1.msra.mxu0 0.0
    %5383 = vmatprep.subr.mxu0 0.0
    %5384 = vmatpush1.msra.mxu0 0.0
    %5385 = vmatprep.subr.mxu0 0.0
    %5386 = vmatpush1.msra.mxu0 0.0
    %5387 = vmatprep.mubr.f32.mxu0 0.0
    %5388 = vmatmul.mubr.f32.gmra.mrb[0].mxu0 %v5306
    %v5389 = vpop.f32.mrb[0].mxu0
    %v5390 = vadd.f32 %v5303, %v5389
    %v5391 = vpop.f32.mrb[0].mxu0
    %5392 = vmatprep.mubr.f32.mxu0 0.0
    %5393 = vmatmul.mubr.f32.gmra.mrb[0].mxu0 %v5309
    %v5394 = vpop.f32.mrb[0].mxu0
    %v5395 = vadd.f32 %v5303, %v5394
    %v5396 = vpop.f32.mrb[0].mxu0
    %5397 = vmatprep.mubr.f32.mxu0 0.0
    %5398 = vmatmul.mubr.f32.gmra.mrb[0].mxu0 %v5312
    %v5399 = vpop.f32.mrb[0].mxu0
    %v5400 = vadd.f32 %v5303, %v5399
    %v5401 = vpop.f32.mrb[0].mxu0
    %5402 = vmatprep.mubr.f32.mxu0 0.0
    %5403 = vmatmul.mubr.f32.gmra.mrb[0].mxu0 %v5315
    %v5404 = vpop.f32.mrb[0].mxu0
    %v5405 = vadd.f32 %v5303, %v5404
    %v5406 = vpop.f32.mrb[0].mxu0
    %5407 = vmatprep.mubr.f32.mxu0 0.0
    %5408 = vmatmul.mubr.f32.gmra.mrb[0].mxu0 %v5318
    %v5409 = vpop.f32.mrb[0].mxu0
    %v5410 = vadd.f32 %v5303, %v5409
    %v5411 = vpop.f32.mrb[0].mxu0
    %5412 = vmatprep.mubr.f32.mxu0 0.0
    %5413 = vmatmul.mubr.f32.gmra.mrb[0].mxu0 %v5321
    %v5414 = vpop.f32.mrb[0].mxu0
    %v5415 = vadd.f32 %v5303, %v5414
    %v5416 = vpop.f32.mrb[0].mxu0
    %5417 = vdwg.mxu0
    %v5418 = vadd.f32 %v3126, %v5390
    %v5419 = vadd.f32 %v3127, %v5395
    %v5420 = vadd.f32 %v3128, %v5400
    %v5421 = vadd.f32 %v3129, %v5405
    %v5422 = vadd.f32 %v3130, %v5410
    %v5423 = vadd.f32 %v3131, %v5415
    %s5424 = scalar_lea.vmem %s8, 1
    %v5425 = vld [vmem:[%s5424] sm:$0x1]
    %s5426 = scalar_lea.vmem %s9, 1
    %v5427 = vld [vmem:[%s5426] sm:$0x1]
    %v5428 = vsel %vm62, %v5418, 0.0
    %5429 = vadd.xlane.f32.xlu0 %v5428
    %v5430 = vpop.xlane.xlu0 %5429
    %v5431 = vsel %vm62, %v5419, 0.0
    %5432 = vadd.xlane.f32.xlu0 %v5431
    %v5433 = vpop.xlane.xlu0 %5432
    %v5434 = vsel %vm62, %v5420, 0.0
    %5435 = vadd.xlane.f32.xlu0 %v5434
    %v5436 = vpop.xlane.xlu0 %5435
    %v5437 = vsel %vm62, %v5421, 0.0
    %5438 = vadd.xlane.f32.xlu0 %v5437
    %v5439 = vpop.xlane.xlu0 %5438
    %v5440 = vsel %vm62, %v5422, 0.0
    %5441 = vadd.xlane.f32.xlu0 %v5440
    %v5442 = vpop.xlane.xlu0 %5441
    %v5443 = vsel %vm62, %v5423, 0.0
    %5444 = vadd.xlane.f32.xlu0 %v5443
    %v5445 = vpop.xlane.xlu0 %5444
    %v5446 = vmul.f32 %v5430, %v81
    %v5447 = vmul.f32 %v5433, %v81
    %v5448 = vmul.f32 %v5436, %v81
    %v5449 = vmul.f32 %v5439, %v81
    %v5450 = vmul.f32 %v5442, %v81
    %v5451 = vmul.f32 %v5445, %v81
    %v5452 = vmul.f32 %v5418, %v5418
    %v5453 = vmul.f32 %v5419, %v5419
    %v5454 = vmul.f32 %v5420, %v5420
    %v5455 = vmul.f32 %v5421, %v5421
    %v5456 = vmul.f32 %v5422, %v5422
    %v5457 = vmul.f32 %v5423, %v5423
    %v5458 = vsel %vm62, %v5452, 0.0
    %5459 = vadd.xlane.f32.xlu0 %v5458
    %v5460 = vpop.xlane.xlu0 %5459
    %v5461 = vsel %vm62, %v5453, 0.0
    %5462 = vadd.xlane.f32.xlu0 %v5461
    %v5463 = vpop.xlane.xlu0 %5462
    %v5464 = vsel %vm62, %v5454, 0.0
    %5465 = vadd.xlane.f32.xlu0 %v5464
    %v5466 = vpop.xlane.xlu0 %5465
    %v5467 = vsel %vm62, %v5455, 0.0
    %5468 = vadd.xlane.f32.xlu0 %v5467
    %v5469 = vpop.xlane.xlu0 %5468
    %v5470 = vsel %vm62, %v5456, 0.0
    %5471 = vadd.xlane.f32.xlu0 %v5470
    %v5472 = vpop.xlane.xlu0 %5471
    %v5473 = vsel %vm62, %v5457, 0.0
    %5474 = vadd.xlane.f32.xlu0 %v5473
    %v5475 = vpop.xlane.xlu0 %5474
    %v5476 = vmul.f32 %v5460, %v81
    %v5477 = vmul.f32 %v5463, %v81
    %v5478 = vmul.f32 %v5466, %v81
    %v5479 = vmul.f32 %v5469, %v81
    %v5480 = vmul.f32 %v5472, %v81
    %v5481 = vmul.f32 %v5475, %v81
    %v5482 = vmul.f32 %v5446, %v5446
    %v5483 = vmul.f32 %v5447, %v5447
    %v5484 = vmul.f32 %v5448, %v5448
    %v5485 = vmul.f32 %v5449, %v5449
    %v5486 = vmul.f32 %v5450, %v5450
    %v5487 = vmul.f32 %v5451, %v5451
    %v5488 = vsub.f32 %v5476, %v5482
    %v5489 = vsub.f32 %v5477, %v5483
    %v5490 = vsub.f32 %v5478, %v5484
    %v5491 = vsub.f32 %v5479, %v5485
    %v5492 = vsub.f32 %v5480, %v5486
    %v5493 = vsub.f32 %v5481, %v5487
    %v5494 = vmax.f32 %v5488, 0.0
    %v5495 = vmax.f32 %v5489, 0.0
    %v5496 = vmax.f32 %v5490, 0.0
    %v5497 = vmax.f32 %v5491, 0.0
    %v5498 = vmax.f32 %v5492, 0.0
    %v5499 = vmax.f32 %v5493, 0.0
    %v5500 = vsub.f32 %v5418, %v5446
    %v5501 = vsub.f32 %v5419, %v5447
    %v5502 = vsub.f32 %v5420, %v5448
    %v5503 = vsub.f32 %v5421, %v5449
    %v5504 = vsub.f32 %v5422, %v5450
    %v5505 = vsub.f32 %v5423, %v5451
    %v5506 = vadd.f32 %v5494, 1e-12
    %v5507 = vadd.f32 %v5495, 1e-12
    %v5508 = vadd.f32 %v5496, 1e-12
    %v5509 = vadd.f32 %v5497, 1e-12
    %v5510 = vadd.f32 %v5498, 1e-12
    %v5511 = vadd.f32 %v5499, 1e-12
    %v5512 = vrsqrt.pop %v5506
    %v5513 = vrsqrt.pop %v5507
    %v5514 = vrsqrt.pop %v5508
    %v5515 = vrsqrt.pop %v5509
    %v5516 = vrsqrt.pop %v5510
    %v5517 = vrsqrt.pop %v5511
    %v5518 = vmul.f32 %v5500, %v5512
    %v5519 = vmul.f32 %v5501, %v5513
    %v5520 = vmul.f32 %v5502, %v5514
    %v5521 = vmul.f32 %v5503, %v5515
    %v5522 = vmul.f32 %v5504, %v5516
    %v5523 = vmul.f32 %v5505, %v5517
    %v5525 = vlaneseq
    %v5526 = vshrl.u32 %v5525, 7
    %v5527 = vsub.s32 0, %v5526
    %v5528 = vrot.slane %v5425, %v5527
    %v5530 = vmul.f32 %v5518, %v5528
    %v5531 = vmul.f32 %v5519, %v5528
    %v5532 = vmul.f32 %v5520, %v5528
    %v5533 = vmul.f32 %v5521, %v5528
    %v5534 = vmul.f32 %v5522, %v5528
    %v5535 = vmul.f32 %v5523, %v5528
    %v5537 = vlaneseq
    %v5538 = vshrl.u32 %v5537, 7
    %v5539 = vsub.s32 0, %v5538
    %v5540 = vrot.slane %v5427, %v5539
    %v5542 = vadd.f32 %v5530, %v5540
    %v5543 = vadd.f32 %v5531, %v5540
    %v5544 = vadd.f32 %v5532, %v5540
    %v5545 = vadd.f32 %v5533, %v5540
    %v5546 = vadd.f32 %v5534, %v5540
    %v5547 = vadd.f32 %v5535, %v5540
    %s5548 = scalar_lea.vmem %s10, 32
    %v5549 = vld [vmem:[%s5548] sm:$0xff]
    %v5550 = vld [vmem:[%s5548 + $0x8] sm:$0xff]
    %v5551 = vld [vmem:[%s5548 + $0x10] sm:$0xff]
    %v5552 = vld [vmem:[%s5548 + $0x18] sm:$0xff]
    %s5553 = scalar_lea.vmem %s11, 1
    %v5554 = vld [vmem:[%s5553] sm:$0x1]
    %v5556 = vlaneseq
    %v5557 = vshrl.u32 %v5556, 7
    %v5558 = vsub.s32 0, %v5557
    %v5559 = vrot.slane %v5554, %v5558
    %v5562 = vsel %vm62, %v5542, 0
    %v5565 = vsel %vm62, %v5543, 0
    %v5568 = vsel %vm62, %v5544, 0
    %v5571 = vsel %vm62, %v5545, 0
    %v5574 = vsel %vm62, %v5546, 0
    %v5577 = vsel %vm62, %v5547, 0
    %5579 = vmatprep.subr.mxu0 0.0
    %5580 = vmatpush1.msra.mxu0 %v5549
    %5581 = vmatprep.subr.mxu0 0.0
    %5582 = vmatpush1.msra.mxu0 %v5550
    %5583 = vmatprep.subr.mxu0 0.0
    %5584 = vmatpush1.msra.mxu0 %v5551
    %5585 = vmatprep.subr.mxu0 0.0
    %5586 = vmatpush1.msra.mxu0 %v5552
    %5587 = vmatprep.subr.mxu0 0.0
    %5588 = vmatpush1.msra.mxu0 0.0
    %5589 = vmatprep.subr.mxu0 0.0
    %5590 = vmatpush1.msra.mxu0 0.0
    %5591 = vmatprep.subr.mxu0 0.0
    %5592 = vmatpush1.msra.mxu0 0.0
    %5593 = vmatprep.subr.mxu0 0.0
    %5594 = vmatpush1.msra.mxu0 0.0
    %5595 = vmatprep.subr.mxu0 0.0
    %5596 = vmatpush1.msra.mxu0 0.0
    %5597 = vmatprep.subr.mxu0 0.0
    %5598 = vmatpush1.msra.mxu0 0.0
    %5599 = vmatprep.subr.mxu0 0.0
    %5600 = vmatpush1.msra.mxu0 0.0
    %5601 = vmatprep.subr.mxu0 0.0
    %5602 = vmatpush1.msra.mxu0 0.0
    %5603 = vmatprep.subr.mxu0 0.0
    %5604 = vmatpush1.msra.mxu0 0.0
    %5605 = vmatprep.subr.mxu0 0.0
    %5606 = vmatpush1.msra.mxu0 0.0
    %5607 = vmatprep.subr.mxu0 0.0
    %5608 = vmatpush1.msra.mxu0 0.0
    %5609 = vmatprep.subr.mxu0 0.0
    %5610 = vmatpush1.msra.mxu0 0.0
    %5611 = vmatprep.subr.mxu0 0.0
    %5612 = vmatpush1.msra.mxu0 0.0
    %5613 = vmatprep.subr.mxu0 0.0
    %5614 = vmatpush1.msra.mxu0 0.0
    %5615 = vmatprep.subr.mxu0 0.0
    %5616 = vmatpush1.msra.mxu0 0.0
    %5617 = vmatprep.subr.mxu0 0.0
    %5618 = vmatpush1.msra.mxu0 0.0
    %5619 = vmatprep.subr.mxu0 0.0
    %5620 = vmatpush1.msra.mxu0 0.0
    %5621 = vmatprep.subr.mxu0 0.0
    %5622 = vmatpush1.msra.mxu0 0.0
    %5623 = vmatprep.subr.mxu0 0.0
    %5624 = vmatpush1.msra.mxu0 0.0
    %5625 = vmatprep.subr.mxu0 0.0
    %5626 = vmatpush1.msra.mxu0 0.0
    %5627 = vmatprep.subr.mxu0 0.0
    %5628 = vmatpush1.msra.mxu0 0.0
    %5629 = vmatprep.subr.mxu0 0.0
    %5630 = vmatpush1.msra.mxu0 0.0
    %5631 = vmatprep.subr.mxu0 0.0
    %5632 = vmatpush1.msra.mxu0 0.0
    %5633 = vmatprep.subr.mxu0 0.0
    %5634 = vmatpush1.msra.mxu0 0.0
    %5635 = vmatprep.subr.mxu0 0.0
    %5636 = vmatpush1.msra.mxu0 0.0
    %5637 = vmatprep.subr.mxu0 0.0
    %5638 = vmatpush1.msra.mxu0 0.0
    %5639 = vmatprep.subr.mxu0 0.0
    %5640 = vmatpush1.msra.mxu0 0.0
    %5641 = vmatprep.subr.mxu0 0.0
    %5642 = vmatpush1.msra.mxu0 0.0
    %5643 = vmatprep.mubr.f32.mxu0 0.0
    %5644 = vmatmul.mubr.f32.gmra.mrb[0].mxu0 %v5562
    %v5645 = vpop.f32.mrb[0].mxu0
    %v5646 = vadd.f32 %v5559, %v5645
    %v5647 = vpop.f32.mrb[0].mxu0
    %5648 = vmatprep.mubr.f32.mxu0 0.0
    %5649 = vmatmul.mubr.f32.gmra.mrb[0].mxu0 %v5565
    %v5650 = vpop.f32.mrb[0].mxu0
    %v5651 = vadd.f32 %v5559, %v5650
    %v5652 = vpop.f32.mrb[0].mxu0
    %5653 = vmatprep.mubr.f32.mxu0 0.0
    %5654 = vmatmul.mubr.f32.gmra.mrb[0].mxu0 %v5568
    %v5655 = vpop.f32.mrb[0].mxu0
    %v5656 = vadd.f32 %v5559, %v5655
    %v5657 = vpop.f32.mrb[0].mxu0
    %5658 = vmatprep.mubr.f32.mxu0 0.0
    %5659 = vmatmul.mubr.f32.gmra.mrb[0].mxu0 %v5571
    %v5660 = vpop.f32.mrb[0].mxu0
    %v5661 = vadd.f32 %v5559, %v5660
    %v5662 = vpop.f32.mrb[0].mxu0
    %5663 = vmatprep.mubr.f32.mxu0 0.0
    %5664 = vmatmul.mubr.f32.gmra.mrb[0].mxu0 %v5574
    %v5665 = vpop.f32.mrb[0].mxu0
    %v5666 = vadd.f32 %v5559, %v5665
    %v5667 = vpop.f32.mrb[0].mxu0
    %5668 = vmatprep.mubr.f32.mxu0 0.0
    %5669 = vmatmul.mubr.f32.gmra.mrb[0].mxu0 %v5577
    %v5670 = vpop.f32.mrb[0].mxu0
    %v5671 = vadd.f32 %v5559, %v5670
    %v5672 = vpop.f32.mrb[0].mxu0
    %5673 = vdwg.mxu0
    %v5674 = vmul.f32 %v5646, %v5646
    %v5675 = vmul.f32 %v5651, %v5651
    %v5676 = vmul.f32 %v5656, %v5656
    %v5677 = vmul.f32 %v5661, %v5661
    %v5678 = vmul.f32 %v5666, %v5666
    %v5679 = vmul.f32 %v5671, %v5671
    %v5680 = vmul.f32 %v5646, %v5674
    %v5681 = vmul.f32 %v5651, %v5675
    %v5682 = vmul.f32 %v5656, %v5676
    %v5683 = vmul.f32 %v5661, %v5677
    %v5684 = vmul.f32 %v5666, %v5678
    %v5685 = vmul.f32 %v5671, %v5679
    %v5686 = vmul.f32 %v5680, 0.044715
    %v5687 = vmul.f32 %v5681, 0.044715
    %v5688 = vmul.f32 %v5682, 0.044715
    %v5689 = vmul.f32 %v5683, 0.044715
    %v5690 = vmul.f32 %v5684, 0.044715
    %v5691 = vmul.f32 %v5685, 0.044715
    %v5692 = vadd.f32 %v5646, %v5686
    %v5693 = vadd.f32 %v5651, %v5687
    %v5694 = vadd.f32 %v5656, %v5688
    %v5695 = vadd.f32 %v5661, %v5689
    %v5696 = vadd.f32 %v5666, %v5690
    %v5697 = vadd.f32 %v5671, %v5691
    %v5698 = vmul.f32 %v5692, 0.7978846
    %v5699 = vmul.f32 %v5693, 0.7978846
    %v5700 = vmul.f32 %v5694, 0.7978846
    %v5701 = vmul.f32 %v5695, 0.7978846
    %v5702 = vmul.f32 %v5696, 0.7978846
    %v5703 = vmul.f32 %v5697, 0.7978846
    %v5704 = vtanh.pop %v5698
    %v5705 = vtanh.pop %v5699
    %v5706 = vtanh.pop %v5700
    %v5707 = vtanh.pop %v5701
    %v5708 = vtanh.pop %v5702
    %v5709 = vtanh.pop %v5703
    %v5710 = vadd.f32 %v5704, 1.0
    %v5711 = vadd.f32 %v5705, 1.0
    %v5712 = vadd.f32 %v5706, 1.0
    %v5713 = vadd.f32 %v5707, 1.0
    %v5714 = vadd.f32 %v5708, 1.0
    %v5715 = vadd.f32 %v5709, 1.0
    %v5716 = vmul.f32 %v5710, 0.5
    %v5717 = vmul.f32 %v5711, 0.5
    %v5718 = vmul.f32 %v5712, 0.5
    %v5719 = vmul.f32 %v5713, 0.5
    %v5720 = vmul.f32 %v5714, 0.5
    %v5721 = vmul.f32 %v5715, 0.5
    %v5722 = vmul.f32 %v5646, %v5716
    %v5723 = vmul.f32 %v5651, %v5717
    %v5724 = vmul.f32 %v5656, %v5718
    %v5725 = vmul.f32 %v5661, %v5719
    %v5726 = vmul.f32 %v5666, %v5720
    %v5727 = vmul.f32 %v5671, %v5721
    %s5728 = scalar_lea.vmem %s12, 64
    %v5729 = vld [vmem:[%s5728] sm:$0xff]
    %v5730 = vld [vmem:[%s5728 + $0x8] sm:$0xff]
    %v5731 = vld [vmem:[%s5728 + $0x10] sm:$0xff]
    %v5732 = vld [vmem:[%s5728 + $0x18] sm:$0xff]
    %v5733 = vld [vmem:[%s5728 + $0x20] sm:$0xff]
    %v5734 = vld [vmem:[%s5728 + $0x28] sm:$0xff]
    %v5735 = vld [vmem:[%s5728 + $0x30] sm:$0xff]
    %v5736 = vld [vmem:[%s5728 + $0x38] sm:$0xff]
    %s5737 = scalar_lea.vmem %s13, 1
    %v5738 = vld [vmem:[%s5737] sm:$0x1]
    %v5740 = vlaneseq
    %v5741 = vshrl.u32 %v5740, 7
    %v5742 = vsub.s32 0, %v5741
    %v5743 = vrot.slane %v5738, %v5742
    %v5746 = vsel %vm2890, %v5722, 0
    %v5749 = vsel %vm2890, %v5723, 0
    %v5752 = vsel %vm2890, %v5724, 0
    %v5755 = vsel %vm2890, %v5725, 0
    %v5758 = vsel %vm2890, %v5726, 0
    %v5761 = vsel %vm2890, %v5727, 0
    %5763 = vmatprep.subr.mxu0 0.0
    %5764 = vmatpush1.msra.mxu0 %v5729
    %5765 = vmatprep.subr.mxu0 0.0
    %5766 = vmatpush1.msra.mxu0 %v5730
    %5767 = vmatprep.subr.mxu0 0.0
    %5768 = vmatpush1.msra.mxu0 %v5731
    %5769 = vmatprep.subr.mxu0 0.0
    %5770 = vmatpush1.msra.mxu0 %v5732
    %5771 = vmatprep.subr.mxu0 0.0
    %5772 = vmatpush1.msra.mxu0 %v5733
    %5773 = vmatprep.subr.mxu0 0.0
    %5774 = vmatpush1.msra.mxu0 %v5734
    %5775 = vmatprep.subr.mxu0 0.0
    %5776 = vmatpush1.msra.mxu0 %v5735
    %5777 = vmatprep.subr.mxu0 0.0
    %5778 = vmatpush1.msra.mxu0 %v5736
    %5779 = vmatprep.subr.mxu0 0.0
    %5780 = vmatpush1.msra.mxu0 0.0
    %5781 = vmatprep.subr.mxu0 0.0
    %5782 = vmatpush1.msra.mxu0 0.0
    %5783 = vmatprep.subr.mxu0 0.0
    %5784 = vmatpush1.msra.mxu0 0.0
    %5785 = vmatprep.subr.mxu0 0.0
    %5786 = vmatpush1.msra.mxu0 0.0
    %5787 = vmatprep.subr.mxu0 0.0
    %5788 = vmatpush1.msra.mxu0 0.0
    %5789 = vmatprep.subr.mxu0 0.0
    %5790 = vmatpush1.msra.mxu0 0.0
    %5791 = vmatprep.subr.mxu0 0.0
    %5792 = vmatpush1.msra.mxu0 0.0
    %5793 = vmatprep.subr.mxu0 0.0
    %5794 = vmatpush1.msra.mxu0 0.0
    %5795 = vmatprep.subr.mxu0 0.0
    %5796 = vmatpush1.msra.mxu0 0.0
    %5797 = vmatprep.subr.mxu0 0.0
    %5798 = vmatpush1.msra.mxu0 0.0
    %5799 = vmatprep.subr.mxu0 0.0
    %5800 = vmatpush1.msra.mxu0 0.0
    %5801 = vmatprep.subr.mxu0 0.0
    %5802 = vmatpush1.msra.mxu0 0.0
    %5803 = vmatprep.subr.mxu0 0.0
    %5804 = vmatpush1.msra.mxu0 0.0
    %5805 = vmatprep.subr.mxu0 0.0
    %5806 = vmatpush1.msra.mxu0 0.0
    %5807 = vmatprep.subr.mxu0 0.0
    %5808 = vmatpush1.msra.mxu0 0.0
    %5809 = vmatprep.subr.mxu0 0.0
    %5810 = vmatpush1.msra.mxu0 0.0
    %5811 = vmatprep.subr.mxu0 0.0
    %5812 = vmatpush1.msra.mxu0 0.0
    %5813 = vmatprep.subr.mxu0 0.0
    %5814 = vmatpush1.msra.mxu0 0.0
    %5815 = vmatprep.subr.mxu0 0.0
    %5816 = vmatpush1.msra.mxu0 0.0
    %5817 = vmatprep.subr.mxu0 0.0
    %5818 = vmatpush1.msra.mxu0 0.0
    %5819 = vmatprep.subr.mxu0 0.0
    %5820 = vmatpush1.msra.mxu0 0.0
    %5821 = vmatprep.subr.mxu0 0.0
    %5822 = vmatpush1.msra.mxu0 0.0
    %5823 = vmatprep.subr.mxu0 0.0
    %5824 = vmatpush1.msra.mxu0 0.0
    %5825 = vmatprep.subr.mxu0 0.0
    %5826 = vmatpush1.msra.mxu0 0.0
    %5827 = vmatprep.mubr.f32.mxu0 0.0
    %5828 = vmatmul.mubr.f32.gmra.mrb[0].mxu0 %v5746
    %v5829 = vpop.f32.mrb[0].mxu0
    %v5830 = vadd.f32 %v5743, %v5829
    %v5831 = vpop.f32.mrb[0].mxu0
    %5832 = vmatprep.mubr.f32.mxu0 0.0
    %5833 = vmatmul.mubr.f32.gmra.mrb[0].mxu0 %v5749
    %v5834 = vpop.f32.mrb[0].mxu0
    %v5835 = vadd.f32 %v5743, %v5834
    %v5836 = vpop.f32.mrb[0].mxu0
    %5837 = vmatprep.mubr.f32.mxu0 0.0
    %5838 = vmatmul.mubr.f32.gmra.mrb[0].mxu0 %v5752
    %v5839 = vpop.f32.mrb[0].mxu0
    %v5840 = vadd.f32 %v5743, %v5839
    %v5841 = vpop.f32.mrb[0].mxu0
    %5842 = vmatprep.mubr.f32.mxu0 0.0
    %5843 = vmatmul.mubr.f32.gmra.mrb[0].mxu0 %v5755
    %v5844 = vpop.f32.mrb[0].mxu0
    %v5845 = vadd.f32 %v5743, %v5844
    %v5846 = vpop.f32.mrb[0].mxu0
    %5847 = vmatprep.mubr.f32.mxu0 0.0
    %5848 = vmatmul.mubr.f32.gmra.mrb[0].mxu0 %v5758
    %v5849 = vpop.f32.mrb[0].mxu0
    %v5850 = vadd.f32 %v5743, %v5849
    %v5851 = vpop.f32.mrb[0].mxu0
    %5852 = vmatprep.mubr.f32.mxu0 0.0
    %5853 = vmatmul.mubr.f32.gmra.mrb[0].mxu0 %v5761
    %v5854 = vpop.f32.mrb[0].mxu0
    %v5855 = vadd.f32 %v5743, %v5854
    %v5856 = vpop.f32.mrb[0].mxu0
    %5857 = vdwg.mxu0
    %v5858 = vadd.f32 %v5542, %v5830
    %v5859 = vadd.f32 %v5543, %v5835
    %v5860 = vadd.f32 %v5544, %v5840
    %v5861 = vadd.f32 %v5545, %v5845
    %v5862 = vadd.f32 %v5546, %v5850
    %v5863 = vadd.f32 %v5547, %v5855
    %s5864 = scalar_lea.vmem %s14, 1
    %v5865 = vld [vmem:[%s5864] sm:$0x1]
    %s5866 = scalar_lea.vmem %s15, 1
    %v5867 = vld [vmem:[%s5866] sm:$0x1]
    %v5868 = vsel %vm62, %v5858, 0.0
    %5869 = vadd.xlane.f32.xlu0 %v5868
    %v5870 = vpop.xlane.xlu0 %5869
    %v5871 = vsel %vm62, %v5859, 0.0
    %5872 = vadd.xlane.f32.xlu0 %v5871
    %v5873 = vpop.xlane.xlu0 %5872
    %v5874 = vsel %vm62, %v5860, 0.0
    %5875 = vadd.xlane.f32.xlu0 %v5874
    %v5876 = vpop.xlane.xlu0 %5875
    %v5877 = vsel %vm62, %v5861, 0.0
    %5878 = vadd.xlane.f32.xlu0 %v5877
    %v5879 = vpop.xlane.xlu0 %5878
    %v5880 = vsel %vm62, %v5862, 0.0
    %5881 = vadd.xlane.f32.xlu0 %v5880
    %v5882 = vpop.xlane.xlu0 %5881
    %v5883 = vsel %vm62, %v5863, 0.0
    %5884 = vadd.xlane.f32.xlu0 %v5883
    %v5885 = vpop.xlane.xlu0 %5884
    %v5886 = vmul.f32 %v5870, %v81
    %v5887 = vmul.f32 %v5873, %v81
    %v5888 = vmul.f32 %v5876, %v81
    %v5889 = vmul.f32 %v5879, %v81
    %v5890 = vmul.f32 %v5882, %v81
    %v5891 = vmul.f32 %v5885, %v81
    %v5892 = vmul.f32 %v5858, %v5858
    %v5893 = vmul.f32 %v5859, %v5859
    %v5894 = vmul.f32 %v5860, %v5860
    %v5895 = vmul.f32 %v5861, %v5861
    %v5896 = vmul.f32 %v5862, %v5862
    %v5897 = vmul.f32 %v5863, %v5863
    %v5898 = vsel %vm62, %v5892, 0.0
    %5899 = vadd.xlane.f32.xlu0 %v5898
    %v5900 = vpop.xlane.xlu0 %5899
    %v5901 = vsel %vm62, %v5893, 0.0
    %5902 = vadd.xlane.f32.xlu0 %v5901
    %v5903 = vpop.xlane.xlu0 %5902
    %v5904 = vsel %vm62, %v5894, 0.0
    %5905 = vadd.xlane.f32.xlu0 %v5904
    %v5906 = vpop.xlane.xlu0 %5905
    %v5907 = vsel %vm62, %v5895, 0.0
    %5908 = vadd.xlane.f32.xlu0 %v5907
    %v5909 = vpop.xlane.xlu0 %5908
    %v5910 = vsel %vm62, %v5896, 0.0
    %5911 = vadd.xlane.f32.xlu0 %v5910
    %v5912 = vpop.xlane.xlu0 %5911
    %v5913 = vsel %vm62, %v5897, 0.0
    %5914 = vadd.xlane.f32.xlu0 %v5913
    %v5915 = vpop.xlane.xlu0 %5914
    %v5916 = vmul.f32 %v5900, %v81
    %v5917 = vmul.f32 %v5903, %v81
    %v5918 = vmul.f32 %v5906, %v81
    %v5919 = vmul.f32 %v5909, %v81
    %v5920 = vmul.f32 %v5912, %v81
    %v5921 = vmul.f32 %v5915, %v81
    %v5922 = vmul.f32 %v5886, %v5886
    %v5923 = vmul.f32 %v5887, %v5887
    %v5924 = vmul.f32 %v5888, %v5888
    %v5925 = vmul.f32 %v5889, %v5889
    %v5926 = vmul.f32 %v5890, %v5890
    %v5927 = vmul.f32 %v5891, %v5891
    %v5928 = vsub.f32 %v5916, %v5922
    %v5929 = vsub.f32 %v5917, %v5923
    %v5930 = vsub.f32 %v5918, %v5924
    %v5931 = vsub.f32 %v5919, %v5925
    %v5932 = vsub.f32 %v5920, %v5926
    %v5933 = vsub.f32 %v5921, %v5927
    %v5934 = vmax.f32 %v5928, 0.0
    %v5935 = vmax.f32 %v5929, 0.0
    %v5936 = vmax.f32 %v5930, 0.0
    %v5937 = vmax.f32 %v5931, 0.0
    %v5938 = vmax.f32 %v5932, 0.0
    %v5939 = vmax.f32 %v5933, 0.0
    %v5940 = vsub.f32 %v5858, %v5886
    %v5941 = vsub.f32 %v5859, %v5887
    %v5942 = vsub.f32 %v5860, %v5888
    %v5943 = vsub.f32 %v5861, %v5889
    %v5944 = vsub.f32 %v5862, %v5890
    %v5945 = vsub.f32 %v5863, %v5891
    %v5946 = vadd.f32 %v5934, 1e-12
    %v5947 = vadd.f32 %v5935, 1e-12
    %v5948 = vadd.f32 %v5936, 1e-12
    %v5949 = vadd.f32 %v5937, 1e-12
    %v5950 = vadd.f32 %v5938, 1e-12
    %v5951 = vadd.f32 %v5939, 1e-12
    %v5952 = vrsqrt.pop %v5946
    %v5953 = vrsqrt.pop %v5947
    %v5954 = vrsqrt.pop %v5948
    %v5955 = vrsqrt.pop %v5949
    %v5956 = vrsqrt.pop %v5950
    %v5957 = vrsqrt.pop %v5951
    %v5958 = vmul.f32 %v5940, %v5952
    %v5959 = vmul.f32 %v5941, %v5953
    %v5960 = vmul.f32 %v5942, %v5954
    %v5961 = vmul.f32 %v5943, %v5955
    %v5962 = vmul.f32 %v5944, %v5956
    %v5963 = vmul.f32 %v5945, %v5957
    %v5965 = vlaneseq
    %v5966 = vshrl.u32 %v5965, 7
    %v5967 = vsub.s32 0, %v5966
    %v5968 = vrot.slane %v5865, %v5967
    %v5970 = vmul.f32 %v5958, %v5968
    %v5971 = vmul.f32 %v5959, %v5968
    %v5972 = vmul.f32 %v5960, %v5968
    %v5973 = vmul.f32 %v5961, %v5968
    %v5974 = vmul.f32 %v5962, %v5968
    %v5975 = vmul.f32 %v5963, %v5968
    %v5977 = vlaneseq
    %v5978 = vshrl.u32 %v5977, 7
    %v5979 = vsub.s32 0, %v5978
    %v5980 = vrot.slane %v5867, %v5979
    %v5982 = vadd.f32 %v5970, %v5980
    %v5983 = vadd.f32 %v5971, %v5980
    %v5984 = vadd.f32 %v5972, %v5980
    %v5985 = vadd.f32 %v5973, %v5980
    %v5986 = vadd.f32 %v5974, %v5980
    %v5987 = vadd.f32 %v5975, %v5980
    %v5988 = vsel %vm62, %v5982, 0.0
    %v5989 = vrot.slane %v5988, 4
    %v5990 = vadd.f32 %v5988, %v5989
    %v5991 = vrot.slane %v5990, 2
    %v5992 = vadd.f32 %v5990, %v5991
    %v5993 = vrot.slane %v5992, 1
    %v5994 = vadd.f32 %v5992, %v5993
    %v5995 = vsel %vm62, %v5983, 0.0
    %v5996 = vrot.slane %v5995, 4
    %v5997 = vadd.f32 %v5995, %v5996
    %v5998 = vrot.slane %v5997, 2
    %v5999 = vadd.f32 %v5997, %v5998
    %v6000 = vrot.slane %v5999, 1
    %v6001 = vadd.f32 %v5999, %v6000
    %v6002 = vsel %vm62, %v5984, 0.0
    %v6003 = vrot.slane %v6002, 4
    %v6004 = vadd.f32 %v6002, %v6003
    %v6005 = vrot.slane %v6004, 2
    %v6006 = vadd.f32 %v6004, %v6005
    %v6007 = vrot.slane %v6006, 1
    %v6008 = vadd.f32 %v6006, %v6007
    %v6009 = vsel %vm62, %v5985, 0.0
    %v6010 = vrot.slane %v6009, 4
    %v6011 = vadd.f32 %v6009, %v6010
    %v6012 = vrot.slane %v6011, 2
    %v6013 = vadd.f32 %v6011, %v6012
    %v6014 = vrot.slane %v6013, 1
    %v6015 = vadd.f32 %v6013, %v6014
    %v6016 = vsel %vm62, %v5986, 0.0
    %v6017 = vrot.slane %v6016, 4
    %v6018 = vadd.f32 %v6016, %v6017
    %v6019 = vrot.slane %v6018, 2
    %v6020 = vadd.f32 %v6018, %v6019
    %v6021 = vrot.slane %v6020, 1
    %v6022 = vadd.f32 %v6020, %v6021
    %v6023 = vsel %vm62, %v5987, 0.0
    %v6024 = vrot.slane %v6023, 4
    %v6025 = vadd.f32 %v6023, %v6024
    %v6026 = vrot.slane %v6025, 2
    %v6027 = vadd.f32 %v6025, %v6026
    %v6028 = vrot.slane %v6027, 1
    %v6029 = vadd.f32 %v6027, %v6028
    %v6030 = vrcp.pop 8.0
    %v6031 = vmul.f32 %v5994, %v6030
    %v6032 = vmul.f32 %v6001, %v6030
    %v6033 = vmul.f32 %v6008, %v6030
    %v6034 = vmul.f32 %v6015, %v6030
    %v6035 = vmul.f32 %v6022, %v6030
    %v6036 = vmul.f32 %v6029, %v6030
    %v6037 = vsub.f32 %v6031, %v6033
    %v6038 = vsub.f32 %v6032, %v6034
    %v6039 = vadd.f32 %v6037, 1e-06
    %v6040 = vadd.f32 %v6038, 1e-06
    %v6041 = vmul.f32 %v6039, %v6039
    %v6042 = vmul.f32 %v6040, %v6040
    %vm6045 = vcmask 1041409
    %v6046 = vsel %vm6045, %v6042, %v6041
    %vm6048 = vcmask 254976
    %v6049 = vsel %vm6048, %v6046, 0.0
    %6050 = vadd.xlane.f32.xlu0 %v6049
    %v6051 = vpop.xlane.xlu0 %6050
    %v6052 = vrsqrt.pop %v6051
    %v6053 = vmul.f32 %v6051, %v6052
    %vm6054 = vcmp.eq.f32.partialorder %v6051, inf
    %v6055 = vsel %vm6054, %v6051, %v6053
    %vm6056 = vcmp.eq.f32.partialorder %v6051, 0.0
    %v6057 = vand.u32 %v6051, 2147483648
    %v6058 = vsel %vm6056, %v6057, %v6055
    %v6059 = vsub.f32 %v6031, %v6035
    %v6060 = vsub.f32 %v6032, %v6036
    %v6061 = vadd.f32 %v6059, 1e-06
    %v6062 = vadd.f32 %v6060, 1e-06
    %v6063 = vmul.f32 %v6061, %v6061
    %v6064 = vmul.f32 %v6062, %v6062
    %v6067 = vsel %vm6045, %v6064, %v6063
    %v6069 = vsel %vm6048, %v6067, 0.0
    %6070 = vadd.xlane.f32.xlu0 %v6069
    %v6071 = vpop.xlane.xlu0 %6070
    %v6072 = vrsqrt.pop %v6071
    %v6073 = vmul.f32 %v6071, %v6072
    %vm6074 = vcmp.eq.f32.partialorder %v6071, inf
    %v6075 = vsel %vm6074, %v6071, %v6073
    %vm6076 = vcmp.eq.f32.partialorder %v6071, 0.0
    %v6077 = vand.u32 %v6071, 2147483648
    %v6078 = vsel %vm6076, %v6077, %v6075
    %v6079 = vsub.f32 %v6058, %v6078
    %v6080 = vadd.f32 %v6079, 3.0
    %v6081 = vmax.f32 %v6080, 0.0
    %vm6082 = vcmask 1024
    %v6083 = vsel %vm6082, %v6081, 0.0
    %6084 = vadd.xlane.f32.xlu0 %v6083
    %v6085 = vpop.xlane.xlu0 %6084
    %v6086 = vrot.slane %v6085, 4
    %v6087 = vadd.f32 %v6085, %v6086
    %v6088 = vrot.slane %v6087, 2
    %v6089 = vadd.f32 %v6087, %v6088
    %v6090 = vrot.slane %v6089, 1
    %v6091 = vadd.f32 %v6089, %v6090
    %s6092 = vtos %v6091
    %v6093 = vstv %s6092
    %v6094 = vrcp.pop 2.0
    %v6095 = vmul.f32 %v6093, %v6094
    %vm6096 = vcmask 0
    %6097 = vst.msk [vmem:[#allocation2] sm:$0x1] %vm6096, %v6095
    // Predicated region
    $region66: #{triplet_model_forward.1} parent=1 // pred_check
      _
    $region67: #{triplet_model_forward.1} parent=1 // pred_check_branch
      %6099 = sbr.rel (0) target = $region69
    $region68: #{triplet_model_forward.1} parent=1 // pred_region
      %s6101 = ssub.s32 16, 16
      %6102 = vsyncadd [#allocation3], %s6101
      %s6104 = sshll.u32 [#allocation2], 4
      %s6105 = int_to_ptr.vmem [resolvable:$true] %s6104
      %6107 = dma.vmem_to_hbm [thread:$0]  %s6105, 16, %s16, [#allocation3]
    $region69: #{triplet_model_forward.1} parent=1 // pred_fallthru
      _
    // Predicated region
    $region70: #{triplet_model_forward.1} parent=1 // pred_check
      _
    $region71: #{triplet_model_forward.1} parent=1 // pred_check_branch
      %6109 = sbr.rel (0) target = $region73
    $region72: #{triplet_model_forward.1} parent=1 // pred_region
      %6110 = dma.done [#allocation3], 16
    $region73: #{triplet_model_forward.1} parent=1 // pred_fallthru
      _
    %6111 = vsyncpa [#allocation3], 1

</llo_original>
